<compile_context>
chip_gen: v5e
topology: v5e:2x2
jax: 0.10.0
libtpu: 0.0.40
codegen_flags: <defaults>
</compile_context>

<pallas_src>
import functools

import jax
import jax.numpy as jnp
from jax.experimental import pallas as pl
from jax.experimental.pallas import tpu as pltpu


def _round_up(x, m):
    return (x + m - 1) // m * m


_VMEM_LIMIT = 32 * 1024 * 1024  # explicit scoped-VMEM budget (safe on v5e/v6e/v7x)


# ----------------------------------------------------------------------------
# Kernel 1: tiled matmul (+ optional bias / addend / residual / activation)
#   grid = (nM, nK); K is the reduction axis (last, "arbitrary"); M "parallel".
# ----------------------------------------------------------------------------
def _mm_fused_kernel(*refs, act, has_bias, has_add, has_res):
    n = 0
    p_ref = refs[n]; n += 1          # (TM, TK) bf16 patches tile
    w_ref = refs[n]; n += 1          # (TK, C)  bf16 weight tile
    b_ref = a_ref = r_ref = None
    if has_bias:
        b_ref = refs[n]; n += 1      # (1, C) f32
    if has_add:
        a_ref = refs[n]; n += 1      # (TM, C) f32 pre-activation addend
    if has_res:
        r_ref = refs[n]; n += 1      # (TM, C) f32 post-activation residual
    o_ref = refs[n]; n += 1          # (TM, C)
    acc_ref = refs[n]                # (TM, C) f32 scratch accumulator

    k = pl.program_id(1)

    @pl.when(k == 0)
    def _():
        acc_ref[...] = jnp.zeros_like(acc_ref)

    acc_ref[...] += jnp.dot(p_ref[...], w_ref[...],
                            preferred_element_type=jnp.float32)

    @pl.when(k == pl.num_programs(1) - 1)
    def _():
        y = acc_ref[...]
        if has_bias:
            y = y + b_ref[...]
        if has_add:
            y = y + a_ref[...]
        if act == "leaky":
            y = jnp.where(y >= 0.0, y, 0.01 * y)   # nn.LeakyReLU default slope
        elif act == "tanh":
            y = jnp.tanh(y)
        if has_res:
            y = y + r_ref[...]
        o_ref[...] = y.astype(o_ref.dtype)


# ----------------------------------------------------------------------------
# Kernel 2: tiled matmul + per-tile sum / sum-of-squares (BatchNorm pass 1).
#   Writes the raw conv tile and an (8, C) stats block (row 0 = sum,
#   row 1 = sum of squares) so that M can be tiled / pipelined.
# ----------------------------------------------------------------------------
def _mm_stats_kernel(p_ref, w_ref, o_ref, st_ref, acc_ref):
    k = pl.program_id(1)

    @pl.when(k == 0)
    def _():
        acc_ref[...] = jnp.zeros_like(acc_ref)

    acc_ref[...] += jnp.dot(p_ref[...], w_ref[...],
                            preferred_element_type=jnp.float32)

    @pl.when(k == pl.num_programs(1) - 1)
    def _():
        y = acc_ref[...]
        o_ref[...] = y
        s = jnp.broadcast_to(jnp.sum(y, axis=0, keepdims=True), st_ref.shape)
        ss = jnp.broadcast_to(jnp.sum(y * y, axis=0, keepdims=True),
                              st_ref.shape)
        rows = jax.lax.broadcasted_iota(jnp.int32, st_ref.shape, 0)
        st_ref[...] = jnp.where(rows == 0, s, jnp.where(rows == 1, ss, 0.0))


# ----------------------------------------------------------------------------
# Kernel 3: apply BatchNorm scale/shift + activation (BatchNorm pass 2).
# ----------------------------------------------------------------------------
def _bn_act_kernel(y_ref, sc_ref, sh_ref, o_ref, *, act):
    y = y_ref[...] * sc_ref[...] + sh_ref[...]
    if act == "leaky":
        y = jnp.where(y >= 0.0, y, 0.01 * y)
    elif act == "tanh":
        y = jnp.tanh(y)
    o_ref[...] = y.astype(o_ref.dtype)


# ----------------------------------------------------------------------------
# Tiling helpers + pallas_call wrappers
# ----------------------------------------------------------------------------
def _tiles(M, K):
    TM = min(256, _round_up(M, 8))
    TK = min(1024, _round_up(K, 128))
    Mp = _round_up(M, TM)
    Kp = _round_up(K, TK)
    return TM, TK, Mp, Kp, Mp // TM, Kp // TK


def _prep_operands(patches, w2d, Mp, Kp):
    M, K = patches.shape
    p = jnp.pad(patches.astype(jnp.bfloat16), ((0, Mp - M), (0, Kp - K)))
    w = jnp.pad(w2d.astype(jnp.bfloat16), ((0, Kp - K), (0, 0)))
    return p, w


def _pallas_matmul_fused(patches, w2d, bias=None, add=None, res=None, *,
                         act="none"):
    """act(patches @ w2d [+ bias] [+ add]) [+ res], tiled over (M, K)."""
    M, K = patches.shape
    _, C = w2d.shape
    TM, TK, Mp, Kp, nM, nK = _tiles(M, K)
    p, w = _prep_operands(patches, w2d, Mp, Kp)

    in_specs = [
        pl.BlockSpec((TM, TK), lambda i, k: (i, k)),
        pl.BlockSpec((TK, C), lambda i, k: (k, 0)),
    ]
    inputs = [p, w]
    has_bias, has_add, has_res = bias is not None, add is not None, res is not None
    if has_bias:
        inputs.append(bias.astype(jnp.float32).reshape(1, C))
        in_specs.append(pl.BlockSpec((1, C), lambda i, k: (0, 0)))
    if has_add:
        a = jnp.pad(add.astype(jnp.float32), ((0, Mp - M), (0, 0)))
        inputs.append(a)
        in_specs.append(pl.BlockSpec((TM, C), lambda i, k: (i, 0)))
    if has_res:
        r = jnp.pad(res.astype(jnp.float32), ((0, Mp - M), (0, 0)))
        inputs.append(r)
        in_specs.append(pl.BlockSpec((TM, C), lambda i, k: (i, 0)))

    kernel = functools.partial(_mm_fused_kernel, act=act, has_bias=has_bias,
                               has_add=has_add, has_res=has_res)
    out = pl.pallas_call(
        kernel,
        out_shape=jax.ShapeDtypeStruct((Mp, C), jnp.float32),
        grid=(nM, nK),
        in_specs=in_specs,
        out_specs=pl.BlockSpec((TM, C), lambda i, k: (i, 0)),
        scratch_shapes=[pltpu.VMEM((TM, C), jnp.float32)],
        compiler_params=pltpu.CompilerParams(
            dimension_semantics=("parallel", "arbitrary"),
            vmem_limit_bytes=_VMEM_LIMIT),
    )(*inputs)
    return out[:M]


def _pallas_conv_bn_act(patches, w2d, gamma, beta, *, act, eps=1e-5):
    """Conv matmul + training-mode BatchNorm3d + activation (two passes)."""
    M, K = patches.shape
    _, C = w2d.shape
    TM, TK, Mp, Kp, nM, nK = _tiles(M, K)
    p, w = _prep_operands(patches, w2d, Mp, Kp)

    raw, st = pl.pallas_call(
        _mm_stats_kernel,
        out_shape=(jax.ShapeDtypeStruct((Mp, C), jnp.float32),
                   jax.ShapeDtypeStruct((nM * 8, C), jnp.float32)),
        grid=(nM, nK),
        in_specs=[pl.BlockSpec((TM, TK), lambda i, k: (i, k)),
                  pl.BlockSpec((TK, C), lambda i, k: (k, 0))],
        out_specs=(pl.BlockSpec((TM, C), lambda i, k: (i, 0)),
                   pl.BlockSpec((8, C), lambda i, k: (i, 0))),
        scratch_shapes=[pltpu.VMEM((TM, C), jnp.float32)],
        compiler_params=pltpu.CompilerParams(
            dimension_semantics=("parallel", "arbitrary"),
            vmem_limit_bytes=_VMEM_LIMIT),
    )(p, w)

    # Tiny cross-tile reduction in JAX.  Padded rows are exactly zero, so the
    # divisor is the TRUE row count M (exact PyTorch batch statistics).
    st = st.reshape(nM, 8, C)
    total = jnp.sum(st[:, 0, :], axis=0)
    total_sq = jnp.sum(st[:, 1, :], axis=0)
    mean = total / M
    var = total_sq / M - mean * mean            # biased variance (BN training)
    scale = gamma.astype(jnp.float32) * jax.lax.rsqrt(var + eps)
    shift = beta.astype(jnp.float32) - mean * scale
    # NOTE: the conv bias is intentionally never added — BN's mean subtraction
    # cancels it exactly in training mode.

    out = pl.pallas_call(
        functools.partial(_bn_act_kernel, act=act),
        out_shape=jax.ShapeDtypeStruct((Mp, C), jnp.float32),
        grid=(nM,),
        in_specs=[pl.BlockSpec((TM, C), lambda i: (i, 0)),
                  pl.BlockSpec((1, C), lambda i: (0, 0)),
                  pl.BlockSpec((1, C), lambda i: (0, 0))],
        out_specs=pl.BlockSpec((TM, C), lambda i: (i, 0)),
        compiler_params=pltpu.CompilerParams(
            dimension_semantics=("parallel",),
            vmem_limit_bytes=_VMEM_LIMIT),
    )(raw, scale.reshape(1, C), shift.reshape(1, C))
    return out[:M]


# ----------------------------------------------------------------------------
# im2col + conv wrappers (JAX glue)
# ----------------------------------------------------------------------------
def _im2col_3d(x, ksize, stride, pad):
    # x: (N, D, H, W, C)
    N, D, H, W, C = x.shape
    kD, kH, kW = ksize
    sD, sH, sW = stride
    pD, pH, pW = pad
    xp = jnp.pad(x, ((0, 0), (pD, pD), (pH, pH), (pW, pW), (0, 0)))
    Do = (D + 2 * pD - kD) // sD + 1
    Ho = (H + 2 * pH - kH) // sH + 1
    Wo = (W + 2 * pW - kW) // sW + 1
    cols = []
    for kd in range(kD):
        for kh in range(kH):
            for kw in range(kW):
                cols.append(xp[:, kd:kd + (Do - 1) * sD + 1:sD,
                               kh:kh + (Ho - 1) * sH + 1:sH,
                               kw:kw + (Wo - 1) * sW + 1:sW, :])
    p = jnp.stack(cols, axis=-2)  # (N, Do, Ho, Wo, kD*kH*kW, C)
    return p.reshape(N * Do * Ho * Wo, kD * kH * kW * C), (N, Do, Ho, Wo)


def _w2d(w):
    # w: (Cout, Cin, kD, kH, kW) -> (kD*kH*kW*Cin, Cout), matches im2col order
    Cout, Cin, kD, kH, kW = w.shape
    return jnp.transpose(w, (2, 3, 4, 1, 0)).reshape(kD * kH * kW * Cin, Cout)


def conv3d_bn_act(x, w, gamma, beta, *, stride=(1, 1, 1), pad, act):
    Cout = w.shape[0]
    patches, (N, Do, Ho, Wo) = _im2col_3d(x, w.shape[2:], stride, pad)
    out = _pallas_conv_bn_act(patches, _w2d(w), gamma, beta, act=act)
    return out.reshape(N, Do, Ho, Wo, Cout)


def conv3d_act(x, w, b=None, add=None, res=None, *, stride=(1, 1, 1), pad,
               act):
    Cout = w.shape[0]
    patches, (N, Do, Ho, Wo) = _im2col_3d(x, w.shape[2:], stride, pad)
    add2 = None if add is None else add.reshape(-1, Cout)
    res2 = None if res is None else res.reshape(-1, Cout)
    out = _pallas_matmul_fused(patches, _w2d(w), bias=b, add=add2, res=res2,
                               act=act)
    return out.reshape(N, Do, Ho, Wo, Cout)


def conv_transpose3d_bn_act(x, w, gamma, beta, *, stride, pad, act):
    # w: (Cin, Cout, kD, kH, kW)  (PyTorch ConvTranspose3d weight layout)
    # TODO(synk): sub-pixel per-phase decomposition would avoid ~sD*sH*sW x
    # zero work of this dilated-input formulation.
    Cin, Cout, kD, kH, kW = w.shape
    N, D, H, W, C = x.shape
    sD, sH, sW = stride
    pD, pH, pW = pad
    xd = jnp.zeros((N, (D - 1) * sD + 1, (H - 1) * sH + 1,
                    (W - 1) * sW + 1, C), x.dtype)
    xd = xd.at[:, ::sD, ::sH, ::sW, :].set(x)
    w_eq = jnp.transpose(jnp.flip(w, axis=(2, 3, 4)), (1, 0, 2, 3, 4))
    return conv3d_bn_act(xd, w_eq, gamma, beta, stride=(1, 1, 1),
                         pad=(kD - 1 - pD, kH - 1 - pH, kW - 1 - pW), act=act)


# ----------------------------------------------------------------------------
# HCNet forward
# ----------------------------------------------------------------------------
def hcnet_forward(x_ncdhw, params, i=5):
    p = params
    x = jnp.transpose(x_ncdhw, (0, 2, 3, 4, 1))  # NCDHW -> NDHWC

    # conv3x3_1 -> bn_1 -> LeakyReLU
    x = conv3d_bn_act(x, p["w1"], p["g1"], p["be1"],
                      stride=(1, 1, 1), pad=(1, 1, 1), act="leaky")
    # strided_conv -> bn_strided -> LeakyReLU
    x = conv3d_bn_act(x, p["wS"], p["gS"], p["beS"],
                      stride=(3, 3, 2), pad=(1, 1, 1), act="leaky")

    # Recurrent HCBlock:  conv(cat(x, y), W) == conv(x, Wx) + conv(y, Wy) + b.
    # The x-half (and the bias) is loop-invariant -> compute once (hoisted).
    c = p["wHC"].shape[0]
    Wx = p["wHC"][:, :c]
    Wy = p["wHC"][:, c:]
    ax = conv3d_act(x, Wx, b=p["bHC"], pad=(3, 3, 3), act="none")
    y = jnp.zeros_like(ax)
    for _ in range(i):
        # y_new = tanh(conv(y, Wy) + ax) + y  (one fused Pallas kernel)
        y = conv3d_act(y, Wy, add=ax, res=y, pad=(3, 3, 3), act="tanh")

    # transposed_conv -> bn -> LeakyReLU
    y = conv_transpose3d_bn_act(y, p["wT"], p["gT"], p["beT"],
                                stride=(3, 3, 2), pad=(1, 1, 1), act="leaky")
    # conv5x5_1 -> bn -> LeakyReLU
    y = conv3d_bn_act(y, p["w5"], p["g5"], p["be5"],
                      stride=(1, 1, 1), pad=(2, 2, 2), act="leaky")
    # conv3x3_2 -> bn -> LeakyReLU
    y = conv3d_bn_act(y, p["w2"], p["g2"], p["be2"],
                      stride=(1, 1, 1), pad=(1, 1, 1), act="leaky")
    # out_conv (1x1x1) -> tanh
    y = conv3d_act(y, p["wO"], b=p["bO"], pad=(0, 0, 0), act="tanh")

    return jnp.transpose(y, (0, 4, 1, 2, 3))  # NDHWC -> NCDHW


# ----------------------------------------------------------------------------
# Deterministic parameter init
# ----------------------------------------------------------------------------
def _init_conv(key, cout, cin, k):
    k1, k2 = jax.random.split(key)
    fan_in = cin * k[0] * k[1] * k[2]
    bound = 1.0 / (fan_in ** 0.5)
    w = jax.random.uniform(k1, (cout, cin) + k, jnp.float32, -bound, bound)
    b = jax.random.uniform(k2, (cout,), jnp.float32, -bound, bound)
    return w, b


def make_params(key, in_channels, out_channels, complexity):
    ks = jax.random.split(key, 8)
    c = complexity
    params = {}
    params["w1"], params["b1"] = _init_conv(ks[0], 10, in_channels, (3, 3, 3))
    params["g1"], params["be1"] = jnp.ones((10,)), jnp.zeros((10,))
    params["wS"], params["bS"] = _init_conv(ks[1], c, 10, (3, 3, 3))
    params["gS"], params["beS"] = jnp.ones((c,)), jnp.zeros((c,))
    params["wHC"], params["bHC"] = _init_conv(ks[2], c, 2 * c, (7, 7, 7))
    # ConvTranspose3d weight: (Cin, Cout, kD, kH, kW); Cin == Cout == c here.
    params["wT"], params["bT"] = _init_conv(ks[3], c, c, (3, 3, 3))
    params["gT"], params["beT"] = jnp.ones((c,)), jnp.zeros((c,))
    params["w5"], params["b5"] = _init_conv(ks[4], 2 * c, c, (5, 5, 5))
    params["g5"], params["be5"] = jnp.ones((2 * c,)), jnp.zeros((2 * c,))
    params["w2"], params["b2"] = _init_conv(ks[5], 3 * c, 2 * c, (3, 3, 3))
    params["g2"], params["be2"] = jnp.ones((3 * c,)), jnp.zeros((3 * c,))
    params["wO"], params["bO"] = _init_conv(ks[6], out_channels, 3 * c,
                                            (1, 1, 1))
    return params, ks[7]


if __name__ == "__main__":
    in_channels, out_channels, complexity = 4, 3, 8
    key = jax.random.PRNGKey(0)
    params, xkey = make_params(key, in_channels, out_channels, complexity)

    # x: (N, C, D, H, W) = (2, 4, 6, 6, 8)
    x = jax.random.normal(xkey, (2, in_channels, 6, 6, 8), jnp.float32)

    fwd = jax.jit(hcnet_forward, static_argnames=("i",))
    out = fwd(x, params, i=5)
    out = jax.block_until_ready(out)
    assert out.shape == (2, out_channels, 4, 4, 7), out.shape
    assert bool(jnp.all(jnp.isfinite(out)))
    print("KERNEL_OK")
</pallas_src>

<mosaic_0001>
module attributes {stable_mosaic.version = 11 : i64} {
  func.func @_mm_stats_kernel(%arg0: i32, %arg1: i32, %arg2: memref<256x128xbf16, #tpu.memory_space<vmem>>, %arg3: memref<128x10xbf16, #tpu.memory_space<vmem>>, %arg4: memref<256x10xf32, #tpu.memory_space<vmem>>, %arg5: memref<8x10xf32, #tpu.memory_space<vmem>>, %arg6: memref<256x10xf32, #tpu.memory_space<vmem>>) attributes {dimension_semantics = [#tpu.dimension_semantics<parallel>, #tpu.dimension_semantics<arbitrary>], iteration_bounds = array<i64: 3, 1>, scalar_prefetch = 0 : i64, scratch_operands = 1 : i64, tpu.core_type = #tpu.core_type<tc>, window_params = [{transform_indices = @transform_0, window_bounds = array<i64: 256, 128>}, {transform_indices = @transform_1, window_bounds = array<i64: 128, 10>}, {transform_indices = @transform_2, window_bounds = array<i64: 256, 10>}, {transform_indices = @transform_3, window_bounds = array<i64: 8, 10>}]} {
    %c0_i32 = arith.constant 0 : i32
    %0 = arith.cmpi eq, %arg1, %c0_i32 : i32
    %1 = arith.extui %0 : i1 to i32
    %c0_i32_0 = arith.constant 0 : i32
    %2 = arith.cmpi ne, %1, %c0_i32_0 : i32
    scf.if %2 {
      %cst_10 = arith.constant 0.000000e+00 : f32
      %12 = vector.broadcast %cst_10 : f32 to vector<256x10xf32>
      %c0_11 = arith.constant 0 : index
      %c0_12 = arith.constant 0 : index
      %13 = vector.load %arg6[%c0_11, %c0_12] : memref<256x10xf32, #tpu.memory_space<vmem>>, vector<256x10xf32>
      tpu.vector_store %arg6[%c0_11, %c0_12], %12 {strides = array<i32>} : memref<256x10xf32, #tpu.memory_space<vmem>>, vector<256x10xf32>,
    } else {
    }
    %c0 = arith.constant 0 : index
    %c0_1 = arith.constant 0 : index
    %3 = vector.load %arg6[%c0, %c0_1] : memref<256x10xf32, #tpu.memory_space<vmem>>, vector<256x10xf32>
    %c0_2 = arith.constant 0 : index
    %c0_3 = arith.constant 0 : index
    %4 = vector.load %arg2[%c0_2, %c0_3] : memref<256x128xbf16, #tpu.memory_space<vmem>>, vector<256x128xbf16>
    %c0_4 = arith.constant 0 : index
    %c0_5 = arith.constant 0 : index
    %5 = vector.load %arg3[%c0_4, %c0_5] : memref<128x10xbf16, #tpu.memory_space<vmem>>, vector<128x10xbf16>
    %cst = arith.constant dense<0.000000e+00> : vector<256x10xf32>
    %6 = tpu.matmul %4, %5, %cst {dimension_numbers = #tpu.dot_dimension_numbers<[1], [0], [0], [1], [0, 0, 1, 1], [], []>} : vector<256x128xbf16>, vector<128x10xbf16>, vector<256x10xf32> -> vector<256x10xf32>
    %7 = arith.addf %3, %6 : vector<256x10xf32>
    %c0_6 = arith.constant 0 : index
    %c0_7 = arith.constant 0 : index
    %8 = vector.load %arg6[%c0_6, %c0_7] : memref<256x10xf32, #tpu.memory_space<vmem>>, vector<256x10xf32>
    tpu.vector_store %arg6[%c0_6, %c0_7], %7 {strides = array<i32>} : memref<256x10xf32, #tpu.memory_space<vmem>>, vector<256x10xf32>,
    %c0_i32_8 = arith.constant 0 : i32
    %9 = arith.cmpi eq, %arg1, %c0_i32_8 : i32
    %10 = arith.extui %9 : i1 to i32
    %c0_i32_9 = arith.constant 0 : i32
    %11 = arith.cmpi ne, %10, %c0_i32_9 : i32
    scf.if %11 {
      %c0_10 = arith.constant 0 : index
      %c0_11 = arith.constant 0 : index
      %12 = vector.load %arg6[%c0_10, %c0_11] : memref<256x10xf32, #tpu.memory_space<vmem>>, vector<256x10xf32>
      %c0_12 = arith.constant 0 : index
      %c0_13 = arith.constant 0 : index
      %13 = vector.load %arg4[%c0_12, %c0_13] : memref<256x10xf32, #tpu.memory_space<vmem>>, vector<256x10xf32>
      tpu.vector_store %arg4[%c0_12, %c0_13], %12 {strides = array<i32>} : memref<256x10xf32, #tpu.memory_space<vmem>>, vector<256x10xf32>,
      %cst_14 = arith.constant dense<0.000000e+00> : vector<10xf32>
      %14 = vector.multi_reduction <add>, %12, %cst_14 [0] : vector<256x10xf32> to vector<10xf32>
      %15 = vector.shape_cast %14 : vector<10xf32> to vector<1x10xf32>
      %16 = vector.shape_cast %15 : vector<1x10xf32> to vector<1x10xf32>
      %17 = vector.broadcast %16 : vector<1x10xf32> to vector<8x10xf32>
      %18 = arith.mulf %12, %12 : vector<256x10xf32>
      %cst_15 = arith.constant dense<0.000000e+00> : vector<10xf32>
      %19 = vector.multi_reduction <add>, %18, %cst_15 [0] : vector<256x10xf32> to vector<10xf32>
      %20 = vector.shape_cast %19 : vector<10xf32> to vector<1x10xf32>
      %21 = vector.shape_cast %20 : vector<1x10xf32> to vector<1x10xf32>
      %22 = vector.broadcast %21 : vector<1x10xf32> to vector<8x10xf32>
      %23 = tpu.iota {dimensions = array<i32: 0>} : vector<8x10xi32>
      %c0_i32_16 = arith.constant 0 : i32
      %24 = vector.broadcast %c0_i32_16 : i32 to vector<8x10xi32>
      %25 = arith.cmpi eq, %23, %24 : vector<8x10xi32>
      %c1_i32 = arith.constant 1 : i32
      %26 = vector.broadcast %c1_i32 : i32 to vector<8x10xi32>
      %27 = arith.cmpi eq, %23, %26 : vector<8x10xi32>
      %cst_17 = arith.constant 0.000000e+00 : f32
      %28 = vector.broadcast %cst_17 : f32 to vector<8x10xf32>
      %29 = arith.select %27, %22, %28 : vector<8x10xi1>, vector<8x10xf32>
      %30 = arith.select %25, %17, %29 : vector<8x10xi1>, vector<8x10xf32>
      %c0_18 = arith.constant 0 : index
      %c0_19 = arith.constant 0 : index
      %31 = vector.load %arg5[%c0_18, %c0_19] : memref<8x10xf32, #tpu.memory_space<vmem>>, vector<8x10xf32>
      tpu.vector_store %arg5[%c0_18, %c0_19], %30 {strides = array<i32>} : memref<8x10xf32, #tpu.memory_space<vmem>>, vector<8x10xf32>,
    } else {
    }
    return
  }
  func.func @transform_0(%arg0: i32, %arg1: i32) -> (i32, i32) {
    %c0_i32 = arith.constant 0 : i32
    return %arg0, %arg1 : i32, i32
  }
  func.func @transform_1(%arg0: i32, %arg1: i32) -> (i32, i32) {
    %c0_i32 = arith.constant 0 : i32
    %c0_i32_0 = arith.constant 0 : i32
    return %arg1, %c0_i32 : i32, i32
  }
  func.func @transform_2(%arg0: i32, %arg1: i32) -> (i32, i32) {
    %c0_i32 = arith.constant 0 : i32
    %c0_i32_0 = arith.constant 0 : i32
    return %arg0, %c0_i32 : i32, i32
  }
  func.func @transform_3(%arg0: i32, %arg1: i32) -> (i32, i32) {
    %c0_i32 = arith.constant 0 : i32
    %c0_i32_0 = arith.constant 0 : i32
    return %arg0, %c0_i32 : i32, i32
  }
}

module attributes {stable_mosaic.version = 11 : i64} {
  func.func @_bn_act_kernel(%arg0: i32, %arg1: memref<256x10xf32, #tpu.memory_space<vmem>>, %arg2: memref<1x10xf32, #tpu.memory_space<vmem>>, %arg3: memref<1x10xf32, #tpu.memory_space<vmem>>, %arg4: memref<256x10xf32, #tpu.memory_space<vmem>>) attributes {dimension_semantics = [#tpu.dimension_semantics<parallel>], iteration_bounds = array<i64: 3>, scalar_prefetch = 0 : i64, scratch_operands = 0 : i64, tpu.core_type = #tpu.core_type<tc>, window_params = [{transform_indices = @transform_0, window_bounds = array<i64: 256, 10>}, {pipeline_mode = #tpu.pipeline_mode<synchronous>, transform_indices = @transform_1, window_bounds = array<i64: 1, 10>}, {pipeline_mode = #tpu.pipeline_mode<synchronous>, transform_indices = @transform_2, window_bounds = array<i64: 1, 10>}, {transform_indices = @transform_3, window_bounds = array<i64: 256, 10>}]} {
    %c0 = arith.constant 0 : index
    %c0_0 = arith.constant 0 : index
    %0 = vector.load %arg1[%c0, %c0_0] : memref<256x10xf32, #tpu.memory_space<vmem>>, vector<256x10xf32>
    %c0_1 = arith.constant 0 : index
    %c0_2 = arith.constant 0 : index
    %1 = vector.load %arg2[%c0_1, %c0_2] : memref<1x10xf32, #tpu.memory_space<vmem>>, vector<1x10xf32>
    %2 = vector.broadcast %1 : vector<1x10xf32> to vector<256x10xf32>
    %3 = arith.mulf %0, %2 : vector<256x10xf32>
    %c0_3 = arith.constant 0 : index
    %c0_4 = arith.constant 0 : index
    %4 = vector.load %arg3[%c0_3, %c0_4] : memref<1x10xf32, #tpu.memory_space<vmem>>, vector<1x10xf32>
    %5 = vector.broadcast %4 : vector<1x10xf32> to vector<256x10xf32>
    %6 = arith.addf %3, %5 : vector<256x10xf32>
    %cst = arith.constant 0.000000e+00 : f32
    %7 = vector.broadcast %cst : f32 to vector<256x10xf32>
    %8 = arith.cmpf oge, %6, %7 : vector<256x10xf32>
    %cst_5 = arith.constant 0.00999999977 : f32
    %9 = vector.broadcast %cst_5 : f32 to vector<256x10xf32>
    %10 = arith.mulf %9, %6 : vector<256x10xf32>
    %11 = arith.select %8, %6, %10 : vector<256x10xi1>, vector<256x10xf32>
    %c0_6 = arith.constant 0 : index
    %c0_7 = arith.constant 0 : index
    %12 = vector.load %arg4[%c0_6, %c0_7] : memref<256x10xf32, #tpu.memory_space<vmem>>, vector<256x10xf32>
    tpu.vector_store %arg4[%c0_6, %c0_7], %11 {strides = array<i32>} : memref<256x10xf32, #tpu.memory_space<vmem>>, vector<256x10xf32>,
    return
  }
  func.func @transform_0(%arg0: i32) -> (i32, i32) {
    %c0_i32 = arith.constant 0 : i32
    %c0_i32_0 = arith.constant 0 : i32
    return %arg0, %c0_i32 : i32, i32
  }
  func.func @transform_1(%arg0: i32) -> (i32, i32) {
    %c0_i32 = arith.constant 0 : i32
    %c0_i32_0 = arith.constant 0 : i32
    %c0_i32_1 = arith.constant 0 : i32
    return %c0_i32, %c0_i32_0 : i32, i32
  }
  func.func @transform_2(%arg0: i32) -> (i32, i32) {
    %c0_i32 = arith.constant 0 : i32
    %c0_i32_0 = arith.constant 0 : i32
    %c0_i32_1 = arith.constant 0 : i32
    return %c0_i32, %c0_i32_0 : i32, i32
  }
  func.func @transform_3(%arg0: i32) -> (i32, i32) {
    %c0_i32 = arith.constant 0 : i32
    %c0_i32_0 = arith.constant 0 : i32
    return %arg0, %c0_i32 : i32, i32
  }
}

module attributes {stable_mosaic.version = 11 : i64} {
  func.func @_bn_act_kernel(%arg0: i32, %arg1: memref<32x8xf32, #tpu.memory_space<vmem>>, %arg2: memref<1x8xf32, #tpu.memory_space<vmem>>, %arg3: memref<1x8xf32, #tpu.memory_space<vmem>>, %arg4: memref<32x8xf32, #tpu.memory_space<vmem>>) attributes {dimension_semantics = [#tpu.dimension_semantics<parallel>], iteration_bounds = array<i64: 1>, scalar_prefetch = 0 : i64, scratch_operands = 0 : i64, tpu.core_type = #tpu.core_type<tc>, window_params = [{transform_indices = @transform_0, window_bounds = array<i64: 32, 8>}, {pipeline_mode = #tpu.pipeline_mode<synchronous>, transform_indices = @transform_1, window_bounds = array<i64: 1, 8>}, {pipeline_mode = #tpu.pipeline_mode<synchronous>, transform_indices = @transform_2, window_bounds = array<i64: 1, 8>}, {transform_indices = @transform_3, window_bounds = array<i64: 32, 8>}]} {
    %c0 = arith.constant 0 : index
    %c0_0 = arith.constant 0 : index
    %0 = vector.load %arg1[%c0, %c0_0] : memref<32x8xf32, #tpu.memory_space<vmem>>, vector<32x8xf32>
    %c0_1 = arith.constant 0 : index
    %c0_2 = arith.constant 0 : index
    %1 = vector.load %arg2[%c0_1, %c0_2] : memref<1x8xf32, #tpu.memory_space<vmem>>, vector<1x8xf32>
    %2 = vector.broadcast %1 : vector<1x8xf32> to vector<32x8xf32>
    %3 = arith.mulf %0, %2 : vector<32x8xf32>
    %c0_3 = arith.constant 0 : index
    %c0_4 = arith.constant 0 : index
    %4 = vector.load %arg3[%c0_3, %c0_4] : memref<1x8xf32, #tpu.memory_space<vmem>>, vector<1x8xf32>
    %5 = vector.broadcast %4 : vector<1x8xf32> to vector<32x8xf32>
    %6 = arith.addf %3, %5 : vector<32x8xf32>
    %cst = arith.constant 0.000000e+00 : f32
    %7 = vector.broadcast %cst : f32 to vector<32x8xf32>
    %8 = arith.cmpf oge, %6, %7 : vector<32x8xf32>
    %cst_5 = arith.constant 0.00999999977 : f32
    %9 = vector.broadcast %cst_5 : f32 to vector<32x8xf32>
    %10 = arith.mulf %9, %6 : vector<32x8xf32>
    %11 = arith.select %8, %6, %10 : vector<32x8xi1>, vector<32x8xf32>
    %c0_6 = arith.constant 0 : index
    %c0_7 = arith.constant 0 : index
    %12 = vector.load %arg4[%c0_6, %c0_7] : memref<32x8xf32, #tpu.memory_space<vmem>>, vector<32x8xf32>
    tpu.vector_store %arg4[%c0_6, %c0_7], %11 {strides = array<i32>} : memref<32x8xf32, #tpu.memory_space<vmem>>, vector<32x8xf32>,
    return
  }
  func.func @transform_0(%arg0: i32) -> (i32, i32) {
    %c0_i32 = arith.constant 0 : i32
    %c0_i32_0 = arith.constant 0 : i32
    return %arg0, %c0_i32 : i32, i32
  }
  func.func @transform_1(%arg0: i32) -> (i32, i32) {
    %c0_i32 = arith.constant 0 : i32
    %c0_i32_0 = arith.constant 0 : i32
    %c0_i32_1 = arith.constant 0 : i32
    return %c0_i32, %c0_i32_0 : i32, i32
  }
  func.func @transform_2(%arg0: i32) -> (i32, i32) {
    %c0_i32 = arith.constant 0 : i32
    %c0_i32_0 = arith.constant 0 : i32
    %c0_i32_1 = arith.constant 0 : i32
    return %c0_i32, %c0_i32_0 : i32, i32
  }
  func.func @transform_3(%arg0: i32) -> (i32, i32) {
    %c0_i32 = arith.constant 0 : i32
    %c0_i32_0 = arith.constant 0 : i32
    return %arg0, %c0_i32 : i32, i32
  }
}

module attributes {stable_mosaic.version = 11 : i64} {
  func.func @_mm_stats_kernel(%arg0: i32, %arg1: i32, %arg2: memref<32x384xbf16, #tpu.memory_space<vmem>>, %arg3: memref<384x8xbf16, #tpu.memory_space<vmem>>, %arg4: memref<32x8xf32, #tpu.memory_space<vmem>>, %arg5: memref<8x8xf32, #tpu.memory_space<vmem>>, %arg6: memref<32x8xf32, #tpu.memory_space<vmem>>) attributes {dimension_semantics = [#tpu.dimension_semantics<parallel>, #tpu.dimension_semantics<arbitrary>], iteration_bounds = array<i64: 1, 1>, scalar_prefetch = 0 : i64, scratch_operands = 1 : i64, tpu.core_type = #tpu.core_type<tc>, window_params = [{transform_indices = @transform_0, window_bounds = array<i64: 32, 384>}, {transform_indices = @transform_1, window_bounds = array<i64: 384, 8>}, {transform_indices = @transform_2, window_bounds = array<i64: 32, 8>}, {transform_indices = @transform_3, window_bounds = array<i64: 8, 8>}]} {
    %c0_i32 = arith.constant 0 : i32
    %0 = arith.cmpi eq, %arg1, %c0_i32 : i32
    %1 = arith.extui %0 : i1 to i32
    %c0_i32_0 = arith.constant 0 : i32
    %2 = arith.cmpi ne, %1, %c0_i32_0 : i32
    scf.if %2 {
      %cst_10 = arith.constant 0.000000e+00 : f32
      %12 = vector.broadcast %cst_10 : f32 to vector<32x8xf32>
      %c0_11 = arith.constant 0 : index
      %c0_12 = arith.constant 0 : index
      %13 = vector.load %arg6[%c0_11, %c0_12] : memref<32x8xf32, #tpu.memory_space<vmem>>, vector<32x8xf32>
      tpu.vector_store %arg6[%c0_11, %c0_12], %12 {strides = array<i32>} : memref<32x8xf32, #tpu.memory_space<vmem>>, vector<32x8xf32>,
    } else {
    }
    %c0 = arith.constant 0 : index
    %c0_1 = arith.constant 0 : index
    %3 = vector.load %arg6[%c0, %c0_1] : memref<32x8xf32, #tpu.memory_space<vmem>>, vector<32x8xf32>
    %c0_2 = arith.constant 0 : index
    %c0_3 = arith.constant 0 : index
    %4 = vector.load %arg2[%c0_2, %c0_3] : memref<32x384xbf16, #tpu.memory_space<vmem>>, vector<32x384xbf16>
    %c0_4 = arith.constant 0 : index
    %c0_5 = arith.constant 0 : index
    %5 = vector.load %arg3[%c0_4, %c0_5] : memref<384x8xbf16, #tpu.memory_space<vmem>>, vector<384x8xbf16>
    %cst = arith.constant dense<0.000000e+00> : vector<32x8xf32>
    %6 = tpu.matmul %4, %5, %cst {dimension_numbers = #tpu.dot_dimension_numbers<[1], [0], [0], [1], [0, 0, 1, 1], [], []>} : vector<32x384xbf16>, vector<384x8xbf16>, vector<32x8xf32> -> vector<32x8xf32>
    %7 = arith.addf %3, %6 : vector<32x8xf32>
    %c0_6 = arith.constant 0 : index
    %c0_7 = arith.constant 0 : index
    %8 = vector.load %arg6[%c0_6, %c0_7] : memref<32x8xf32, #tpu.memory_space<vmem>>, vector<32x8xf32>
    tpu.vector_store %arg6[%c0_6, %c0_7], %7 {strides = array<i32>} : memref<32x8xf32, #tpu.memory_space<vmem>>, vector<32x8xf32>,
    %c0_i32_8 = arith.constant 0 : i32
    %9 = arith.cmpi eq, %arg1, %c0_i32_8 : i32
    %10 = arith.extui %9 : i1 to i32
    %c0_i32_9 = arith.constant 0 : i32
    %11 = arith.cmpi ne, %10, %c0_i32_9 : i32
    scf.if %11 {
      %c0_10 = arith.constant 0 : index
      %c0_11 = arith.constant 0 : index
      %12 = vector.load %arg6[%c0_10, %c0_11] : memref<32x8xf32, #tpu.memory_space<vmem>>, vector<32x8xf32>
      %c0_12 = arith.constant 0 : index
      %c0_13 = arith.constant 0 : index
      %13 = vector.load %arg4[%c0_12, %c0_13] : memref<32x8xf32, #tpu.memory_space<vmem>>, vector<32x8xf32>
      tpu.vector_store %arg4[%c0_12, %c0_13], %12 {strides = array<i32>} : memref<32x8xf32, #tpu.memory_space<vmem>>, vector<32x8xf32>,
      %cst_14 = arith.constant dense<0.000000e+00> : vector<8xf32>
      %14 = vector.multi_reduction <add>, %12, %cst_14 [0] : vector<32x8xf32> to vector<8xf32>
      %15 = vector.shape_cast %14 : vector<8xf32> to vector<1x8xf32>
      %16 = vector.shape_cast %15 : vector<1x8xf32> to vector<1x8xf32>
      %17 = vector.broadcast %16 : vector<1x8xf32> to vector<8x8xf32>
      %18 = arith.mulf %12, %12 : vector<32x8xf32>
      %cst_15 = arith.constant dense<0.000000e+00> : vector<8xf32>
      %19 = vector.multi_reduction <add>, %18, %cst_15 [0] : vector<32x8xf32> to vector<8xf32>
      %20 = vector.shape_cast %19 : vector<8xf32> to vector<1x8xf32>
      %21 = vector.shape_cast %20 : vector<1x8xf32> to vector<1x8xf32>
      %22 = vector.broadcast %21 : vector<1x8xf32> to vector<8x8xf32>
      %23 = tpu.iota {dimensions = array<i32: 0>} : vector<8x8xi32>
      %c0_i32_16 = arith.constant 0 : i32
      %24 = vector.broadcast %c0_i32_16 : i32 to vector<8x8xi32>
      %25 = arith.cmpi eq, %23, %24 : vector<8x8xi32>
      %c1_i32 = arith.constant 1 : i32
      %26 = vector.broadcast %c1_i32 : i32 to vector<8x8xi32>
      %27 = arith.cmpi eq, %23, %26 : vector<8x8xi32>
      %cst_17 = arith.constant 0.000000e+00 : f32
      %28 = vector.broadcast %cst_17 : f32 to vector<8x8xf32>
      %29 = arith.select %27, %22, %28 : vector<8x8xi1>, vector<8x8xf32>
      %30 = arith.select %25, %17, %29 : vector<8x8xi1>, vector<8x8xf32>
      %c0_18 = arith.constant 0 : index
      %c0_19 = arith.constant 0 : index
      %31 = vector.load %arg5[%c0_18, %c0_19] : memref<8x8xf32, #tpu.memory_space<vmem>>, vector<8x8xf32>
      tpu.vector_store %arg5[%c0_18, %c0_19], %30 {strides = array<i32>} : memref<8x8xf32, #tpu.memory_space<vmem>>, vector<8x8xf32>,
    } else {
    }
    return
  }
  func.func @transform_0(%arg0: i32, %arg1: i32) -> (i32, i32) {
    %c0_i32 = arith.constant 0 : i32
    return %arg0, %arg1 : i32, i32
  }
  func.func @transform_1(%arg0: i32, %arg1: i32) -> (i32, i32) {
    %c0_i32 = arith.constant 0 : i32
    %c0_i32_0 = arith.constant 0 : i32
    return %arg1, %c0_i32 : i32, i32
  }
  func.func @transform_2(%arg0: i32, %arg1: i32) -> (i32, i32) {
    %c0_i32 = arith.constant 0 : i32
    %c0_i32_0 = arith.constant 0 : i32
    return %arg0, %c0_i32 : i32, i32
  }
  func.func @transform_3(%arg0: i32, %arg1: i32) -> (i32, i32) {
    %c0_i32 = arith.constant 0 : i32
    %c0_i32_0 = arith.constant 0 : i32
    return %arg0, %c0_i32 : i32, i32
  }
}

module attributes {stable_mosaic.version = 11 : i64} {
  func.func @_mm_fused_kernel(%arg0: i32, %arg1: i32, %arg2: memref<32x1024xbf16, #tpu.memory_space<vmem>>, %arg3: memref<1024x8xbf16, #tpu.memory_space<vmem>>, %arg4: memref<1x8xf32, #tpu.memory_space<vmem>>, %arg5: memref<32x8xf32, #tpu.memory_space<vmem>>, %arg6: memref<32x8xf32, #tpu.memory_space<vmem>>) attributes {dimension_semantics = [#tpu.dimension_semantics<parallel>, #tpu.dimension_semantics<arbitrary>], iteration_bounds = array<i64: 1, 3>, scalar_prefetch = 0 : i64, scratch_operands = 1 : i64, tpu.core_type = #tpu.core_type<tc>, window_params = [{transform_indices = @transform_0, window_bounds = array<i64: 32, 1024>}, {transform_indices = @transform_1, window_bounds = array<i64: 1024, 8>}, {pipeline_mode = #tpu.pipeline_mode<synchronous>, transform_indices = @transform_2, window_bounds = array<i64: 1, 8>}, {transform_indices = @transform_3, window_bounds = array<i64: 32, 8>}]} {
    %c0_i32 = arith.constant 0 : i32
    %0 = arith.cmpi eq, %arg1, %c0_i32 : i32
    %1 = arith.extui %0 : i1 to i32
    %c0_i32_0 = arith.constant 0 : i32
    %2 = arith.cmpi ne, %1, %c0_i32_0 : i32
    scf.if %2 {
      %cst_9 = arith.constant 0.000000e+00 : f32
      %12 = vector.broadcast %cst_9 : f32 to vector<32x8xf32>
      %c0_10 = arith.constant 0 : index
      %c0_11 = arith.constant 0 : index
      %13 = vector.load %arg6[%c0_10, %c0_11] : memref<32x8xf32, #tpu.memory_space<vmem>>, vector<32x8xf32>
      tpu.vector_store %arg6[%c0_10, %c0_11], %12 {strides = array<i32>} : memref<32x8xf32, #tpu.memory_space<vmem>>, vector<32x8xf32>,
    } else {
    }
    %c0 = arith.constant 0 : index
    %c0_1 = arith.constant 0 : index
    %3 = vector.load %arg6[%c0, %c0_1] : memref<32x8xf32, #tpu.memory_space<vmem>>, vector<32x8xf32>
    %c0_2 = arith.constant 0 : index
    %c0_3 = arith.constant 0 : index
    %4 = vector.load %arg2[%c0_2, %c0_3] : memref<32x1024xbf16, #tpu.memory_space<vmem>>, vector<32x1024xbf16>
    %c0_4 = arith.constant 0 : index
    %c0_5 = arith.constant 0 : index
    %5 = vector.load %arg3[%c0_4, %c0_5] : memref<1024x8xbf16, #tpu.memory_space<vmem>>, vector<1024x8xbf16>
    %cst = arith.constant dense<0.000000e+00> : vector<32x8xf32>
    %6 = tpu.matmul %4, %5, %cst {dimension_numbers = #tpu.dot_dimension_numbers<[1], [0], [0], [1], [0, 0, 1, 1], [], []>} : vector<32x1024xbf16>, vector<1024x8xbf16>, vector<32x8xf32> -> vector<32x8xf32>
    %7 = arith.addf %3, %6 : vector<32x8xf32>
    %c0_6 = arith.constant 0 : index
    %c0_7 = arith.constant 0 : index
    %8 = vector.load %arg6[%c0_6, %c0_7] : memref<32x8xf32, #tpu.memory_space<vmem>>, vector<32x8xf32>
    tpu.vector_store %arg6[%c0_6, %c0_7], %7 {strides = array<i32>} : memref<32x8xf32, #tpu.memory_space<vmem>>, vector<32x8xf32>,
    %c2_i32 = arith.constant 2 : i32
    %9 = arith.cmpi eq, %arg1, %c2_i32 : i32
    %10 = arith.extui %9 : i1 to i32
    %c0_i32_8 = arith.constant 0 : i32
    %11 = arith.cmpi ne, %10, %c0_i32_8 : i32
    scf.if %11 {
      %c0_9 = arith.constant 0 : index
      %c0_10 = arith.constant 0 : index
      %12 = vector.load %arg6[%c0_9, %c0_10] : memref<32x8xf32, #tpu.memory_space<vmem>>, vector<32x8xf32>
      %c0_11 = arith.constant 0 : index
      %c0_12 = arith.constant 0 : index
      %13 = vector.load %arg4[%c0_11, %c0_12] : memref<1x8xf32, #tpu.memory_space<vmem>>, vector<1x8xf32>
      %14 = vector.broadcast %13 : vector<1x8xf32> to vector<32x8xf32>
      %15 = arith.addf %12, %14 : vector<32x8xf32>
      %c0_13 = arith.constant 0 : index
      %c0_14 = arith.constant 0 : index
      %16 = vector.load %arg5[%c0_13, %c0_14] : memref<32x8xf32, #tpu.memory_space<vmem>>, vector<32x8xf32>
      tpu.vector_store %arg5[%c0_13, %c0_14], %15 {strides = array<i32>} : memref<32x8xf32, #tpu.memory_space<vmem>>, vector<32x8xf32>,
    } else {
    }
    return
  }
  func.func @transform_0(%arg0: i32, %arg1: i32) -> (i32, i32) {
    %c0_i32 = arith.constant 0 : i32
    return %arg0, %arg1 : i32, i32
  }
  func.func @transform_1(%arg0: i32, %arg1: i32) -> (i32, i32) {
    %c0_i32 = arith.constant 0 : i32
    %c0_i32_0 = arith.constant 0 : i32
    return %arg1, %c0_i32 : i32, i32
  }
  func.func @transform_2(%arg0: i32, %arg1: i32) -> (i32, i32) {
    %c0_i32 = arith.constant 0 : i32
    %c0_i32_0 = arith.constant 0 : i32
    %c0_i32_1 = arith.constant 0 : i32
    return %c0_i32, %c0_i32_0 : i32, i32
  }
  func.func @transform_3(%arg0: i32, %arg1: i32) -> (i32, i32) {
    %c0_i32 = arith.constant 0 : i32
    %c0_i32_0 = arith.constant 0 : i32
    return %arg0, %c0_i32 : i32, i32
  }
}

module attributes {stable_mosaic.version = 11 : i64} {
  func.func @_mm_fused_kernel(%arg0: i32, %arg1: i32, %arg2: memref<32x1024xbf16, #tpu.memory_space<vmem>>, %arg3: memref<1024x8xbf16, #tpu.memory_space<vmem>>, %arg4: memref<32x8xf32, #tpu.memory_space<vmem>>, %arg5: memref<32x8xf32, #tpu.memory_space<vmem>>, %arg6: memref<32x8xf32, #tpu.memory_space<vmem>>, %arg7: memref<32x8xf32, #tpu.memory_space<vmem>>) attributes {dimension_semantics = [#tpu.dimension_semantics<parallel>, #tpu.dimension_semantics<arbitrary>], iteration_bounds = array<i64: 1, 3>, scalar_prefetch = 0 : i64, scratch_operands = 1 : i64, tpu.core_type = #tpu.core_type<tc>, window_params = [{transform_indices = @transform_0, window_bounds = array<i64: 32, 1024>}, {transform_indices = @transform_1, window_bounds = array<i64: 1024, 8>}, {transform_indices = @transform_2, window_bounds = array<i64: 32, 8>}, {transform_indices = @transform_3, window_bounds = array<i64: 32, 8>}, {transform_indices = @transform_4, window_bounds = array<i64: 32, 8>}]} {
    %c0_i32 = arith.constant 0 : i32
    %0 = arith.cmpi eq, %arg1, %c0_i32 : i32
    %1 = arith.extui %0 : i1 to i32
    %c0_i32_0 = arith.constant 0 : i32
    %2 = arith.cmpi ne, %1, %c0_i32_0 : i32
    scf.if %2 {
      %cst_9 = arith.constant 0.000000e+00 : f32
      %12 = vector.broadcast %cst_9 : f32 to vector<32x8xf32>
      %c0_10 = arith.constant 0 : index
      %c0_11 = arith.constant 0 : index
      %13 = vector.load %arg7[%c0_10, %c0_11] : memref<32x8xf32, #tpu.memory_space<vmem>>, vector<32x8xf32>
      tpu.vector_store %arg7[%c0_10, %c0_11], %12 {strides = array<i32>} : memref<32x8xf32, #tpu.memory_space<vmem>>, vector<32x8xf32>,
    } else {
    }
    %c0 = arith.constant 0 : index
    %c0_1 = arith.constant 0 : index
    %3 = vector.load %arg7[%c0, %c0_1] : memref<32x8xf32, #tpu.memory_space<vmem>>, vector<32x8xf32>
    %c0_2 = arith.constant 0 : index
    %c0_3 = arith.constant 0 : index
    %4 = vector.load %arg2[%c0_2, %c0_3] : memref<32x1024xbf16, #tpu.memory_space<vmem>>, vector<32x1024xbf16>
    %c0_4 = arith.constant 0 : index
    %c0_5 = arith.constant 0 : index
    %5 = vector.load %arg3[%c0_4, %c0_5] : memref<1024x8xbf16, #tpu.memory_space<vmem>>, vector<1024x8xbf16>
    %cst = arith.constant dense<0.000000e+00> : vector<32x8xf32>
    %6 = tpu.matmul %4, %5, %cst {dimension_numbers = #tpu.dot_dimension_numbers<[1], [0], [0], [1], [0, 0, 1, 1], [], []>} : vector<32x1024xbf16>, vector<1024x8xbf16>, vector<32x8xf32> -> vector<32x8xf32>
    %7 = arith.addf %3, %6 : vector<32x8xf32>
    %c0_6 = arith.constant 0 : index
    %c0_7 = arith.constant 0 : index
    %8 = vector.load %arg7[%c0_6, %c0_7] : memref<32x8xf32, #tpu.memory_space<vmem>>, vector<32x8xf32>
    tpu.vector_store %arg7[%c0_6, %c0_7], %7 {strides = array<i32>} : memref<32x8xf32, #tpu.memory_space<vmem>>, vector<32x8xf32>,
    %c2_i32 = arith.constant 2 : i32
    %9 = arith.cmpi eq, %arg1, %c2_i32 : i32
    %10 = arith.extui %9 : i1 to i32
    %c0_i32_8 = arith.constant 0 : i32
    %11 = arith.cmpi ne, %10, %c0_i32_8 : i32
    scf.if %11 {
      %c0_9 = arith.constant 0 : index
      %c0_10 = arith.constant 0 : index
      %12 = vector.load %arg7[%c0_9, %c0_10] : memref<32x8xf32, #tpu.memory_space<vmem>>, vector<32x8xf32>
      %c0_11 = arith.constant 0 : index
      %c0_12 = arith.constant 0 : index
      %13 = vector.load %arg4[%c0_11, %c0_12] : memref<32x8xf32, #tpu.memory_space<vmem>>, vector<32x8xf32>
      %14 = arith.addf %12, %13 : vector<32x8xf32>
      %15 = math.tanh %14 : vector<32x8xf32>
      %c0_13 = arith.constant 0 : index
      %c0_14 = arith.constant 0 : index
      %16 = vector.load %arg5[%c0_13, %c0_14] : memref<32x8xf32, #tpu.memory_space<vmem>>, vector<32x8xf32>
      %17 = arith.addf %15, %16 : vector<32x8xf32>
      %c0_15 = arith.constant 0 : index
      %c0_16 = arith.constant 0 : index
      %18 = vector.load %arg6[%c0_15, %c0_16] : memref<32x8xf32, #tpu.memory_space<vmem>>, vector<32x8xf32>
      tpu.vector_store %arg6[%c0_15, %c0_16], %17 {strides = array<i32>} : memref<32x8xf32, #tpu.memory_space<vmem>>, vector<32x8xf32>,
    } else {
    }
    return
  }
  func.func @transform_0(%arg0: i32, %arg1: i32) -> (i32, i32) {
    %c0_i32 = arith.constant 0 : i32
    return %arg0, %arg1 : i32, i32
  }
  func.func @transform_1(%arg0: i32, %arg1: i32) -> (i32, i32) {
    %c0_i32 = arith.constant 0 : i32
    %c0_i32_0 = arith.constant 0 : i32
    return %arg1, %c0_i32 : i32, i32
  }
  func.func @transform_2(%arg0: i32, %arg1: i32) -> (i32, i32) {
    %c0_i32 = arith.constant 0 : i32
    %c0_i32_0 = arith.constant 0 : i32
    return %arg0, %c0_i32 : i32, i32
  }
  func.func @transform_3(%arg0: i32, %arg1: i32) -> (i32, i32) {
    %c0_i32 = arith.constant 0 : i32
    %c0_i32_0 = arith.constant 0 : i32
    return %arg0, %c0_i32 : i32, i32
  }
  func.func @transform_4(%arg0: i32, %arg1: i32) -> (i32, i32) {
    %c0_i32 = arith.constant 0 : i32
    %c0_i32_0 = arith.constant 0 : i32
    return %arg0, %c0_i32 : i32, i32
  }
}

module attributes {stable_mosaic.version = 11 : i64} {
  func.func @_mm_stats_kernel(%arg0: i32, %arg1: i32, %arg2: memref<224x256xbf16, #tpu.memory_space<vmem>>, %arg3: memref<256x8xbf16, #tpu.memory_space<vmem>>, %arg4: memref<224x8xf32, #tpu.memory_space<vmem>>, %arg5: memref<8x8xf32, #tpu.memory_space<vmem>>, %arg6: memref<224x8xf32, #tpu.memory_space<vmem>>) attributes {dimension_semantics = [#tpu.dimension_semantics<parallel>, #tpu.dimension_semantics<arbitrary>], iteration_bounds = array<i64: 1, 1>, scalar_prefetch = 0 : i64, scratch_operands = 1 : i64, tpu.core_type = #tpu.core_type<tc>, window_params = [{transform_indices = @transform_0, window_bounds = array<i64: 224, 256>}, {transform_indices = @transform_1, window_bounds = array<i64: 256, 8>}, {transform_indices = @transform_2, window_bounds = array<i64: 224, 8>}, {transform_indices = @transform_3, window_bounds = array<i64: 8, 8>}]} {
    %c0_i32 = arith.constant 0 : i32
    %0 = arith.cmpi eq, %arg1, %c0_i32 : i32
    %1 = arith.extui %0 : i1 to i32
    %c0_i32_0 = arith.constant 0 : i32
    %2 = arith.cmpi ne, %1, %c0_i32_0 : i32
    scf.if %2 {
      %cst_10 = arith.constant 0.000000e+00 : f32
      %12 = vector.broadcast %cst_10 : f32 to vector<224x8xf32>
      %c0_11 = arith.constant 0 : index
      %c0_12 = arith.constant 0 : index
      %13 = vector.load %arg6[%c0_11, %c0_12] : memref<224x8xf32, #tpu.memory_space<vmem>>, vector<224x8xf32>
      tpu.vector_store %arg6[%c0_11, %c0_12], %12 {strides = array<i32>} : memref<224x8xf32, #tpu.memory_space<vmem>>, vector<224x8xf32>,
    } else {
    }
    %c0 = arith.constant 0 : index
    %c0_1 = arith.constant 0 : index
    %3 = vector.load %arg6[%c0, %c0_1] : memref<224x8xf32, #tpu.memory_space<vmem>>, vector<224x8xf32>
    %c0_2 = arith.constant 0 : index
    %c0_3 = arith.constant 0 : index
    %4 = vector.load %arg2[%c0_2, %c0_3] : memref<224x256xbf16, #tpu.memory_space<vmem>>, vector<224x256xbf16>
    %c0_4 = arith.constant 0 : index
    %c0_5 = arith.constant 0 : index
    %5 = vector.load %arg3[%c0_4, %c0_5] : memref<256x8xbf16, #tpu.memory_space<vmem>>, vector<256x8xbf16>
    %cst = arith.constant dense<0.000000e+00> : vector<224x8xf32>
    %6 = tpu.matmul %4, %5, %cst {dimension_numbers = #tpu.dot_dimension_numbers<[1], [0], [0], [1], [0, 0, 1, 1], [], []>} : vector<224x256xbf16>, vector<256x8xbf16>, vector<224x8xf32> -> vector<224x8xf32>
    %7 = arith.addf %3, %6 : vector<224x8xf32>
    %c0_6 = arith.constant 0 : index
    %c0_7 = arith.constant 0 : index
    %8 = vector.load %arg6[%c0_6, %c0_7] : memref<224x8xf32, #tpu.memory_space<vmem>>, vector<224x8xf32>
    tpu.vector_store %arg6[%c0_6, %c0_7], %7 {strides = array<i32>} : memref<224x8xf32, #tpu.memory_space<vmem>>, vector<224x8xf32>,
    %c0_i32_8 = arith.constant 0 : i32
    %9 = arith.cmpi eq, %arg1, %c0_i32_8 : i32
    %10 = arith.extui %9 : i1 to i32
    %c0_i32_9 = arith.constant 0 : i32
    %11 = arith.cmpi ne, %10, %c0_i32_9 : i32
    scf.if %11 {
      %c0_10 = arith.constant 0 : index
      %c0_11 = arith.constant 0 : index
      %12 = vector.load %arg6[%c0_10, %c0_11] : memref<224x8xf32, #tpu.memory_space<vmem>>, vector<224x8xf32>
      %c0_12 = arith.constant 0 : index
      %c0_13 = arith.constant 0 : index
      %13 = vector.load %arg4[%c0_12, %c0_13] : memref<224x8xf32, #tpu.memory_space<vmem>>, vector<224x8xf32>
      tpu.vector_store %arg4[%c0_12, %c0_13], %12 {strides = array<i32>} : memref<224x8xf32, #tpu.memory_space<vmem>>, vector<224x8xf32>,
      %cst_14 = arith.constant dense<0.000000e+00> : vector<8xf32>
      %14 = vector.multi_reduction <add>, %12, %cst_14 [0] : vector<224x8xf32> to vector<8xf32>
      %15 = vector.shape_cast %14 : vector<8xf32> to vector<1x8xf32>
      %16 = vector.shape_cast %15 : vector<1x8xf32> to vector<1x8xf32>
      %17 = vector.broadcast %16 : vector<1x8xf32> to vector<8x8xf32>
      %18 = arith.mulf %12, %12 : vector<224x8xf32>
      %cst_15 = arith.constant dense<0.000000e+00> : vector<8xf32>
      %19 = vector.multi_reduction <add>, %18, %cst_15 [0] : vector<224x8xf32> to vector<8xf32>
      %20 = vector.shape_cast %19 : vector<8xf32> to vector<1x8xf32>
      %21 = vector.shape_cast %20 : vector<1x8xf32> to vector<1x8xf32>
      %22 = vector.broadcast %21 : vector<1x8xf32> to vector<8x8xf32>
      %23 = tpu.iota {dimensions = array<i32: 0>} : vector<8x8xi32>
      %c0_i32_16 = arith.constant 0 : i32
      %24 = vector.broadcast %c0_i32_16 : i32 to vector<8x8xi32>
      %25 = arith.cmpi eq, %23, %24 : vector<8x8xi32>
      %c1_i32 = arith.constant 1 : i32
      %26 = vector.broadcast %c1_i32 : i32 to vector<8x8xi32>
      %27 = arith.cmpi eq, %23, %26 : vector<8x8xi32>
      %cst_17 = arith.constant 0.000000e+00 : f32
      %28 = vector.broadcast %cst_17 : f32 to vector<8x8xf32>
      %29 = arith.select %27, %22, %28 : vector<8x8xi1>, vector<8x8xf32>
      %30 = arith.select %25, %17, %29 : vector<8x8xi1>, vector<8x8xf32>
      %c0_18 = arith.constant 0 : index
      %c0_19 = arith.constant 0 : index
      %31 = vector.load %arg5[%c0_18, %c0_19] : memref<8x8xf32, #tpu.memory_space<vmem>>, vector<8x8xf32>
      tpu.vector_store %arg5[%c0_18, %c0_19], %30 {strides = array<i32>} : memref<8x8xf32, #tpu.memory_space<vmem>>, vector<8x8xf32>,
    } else {
    }
    return
  }
  func.func @transform_0(%arg0: i32, %arg1: i32) -> (i32, i32) {
    %c0_i32 = arith.constant 0 : i32
    return %arg0, %arg1 : i32, i32
  }
  func.func @transform_1(%arg0: i32, %arg1: i32) -> (i32, i32) {
    %c0_i32 = arith.constant 0 : i32
    %c0_i32_0 = arith.constant 0 : i32
    return %arg1, %c0_i32 : i32, i32
  }
  func.func @transform_2(%arg0: i32, %arg1: i32) -> (i32, i32) {
    %c0_i32 = arith.constant 0 : i32
    %c0_i32_0 = arith.constant 0 : i32
    return %arg0, %c0_i32 : i32, i32
  }
  func.func @transform_3(%arg0: i32, %arg1: i32) -> (i32, i32) {
    %c0_i32 = arith.constant 0 : i32
    %c0_i32_0 = arith.constant 0 : i32
    return %arg0, %c0_i32 : i32, i32
  }
}

module attributes {stable_mosaic.version = 11 : i64} {
  func.func @_bn_act_kernel(%arg0: i32, %arg1: memref<224x8xf32, #tpu.memory_space<vmem>>, %arg2: memref<1x8xf32, #tpu.memory_space<vmem>>, %arg3: memref<1x8xf32, #tpu.memory_space<vmem>>, %arg4: memref<224x8xf32, #tpu.memory_space<vmem>>) attributes {dimension_semantics = [#tpu.dimension_semantics<parallel>], iteration_bounds = array<i64: 1>, scalar_prefetch = 0 : i64, scratch_operands = 0 : i64, tpu.core_type = #tpu.core_type<tc>, window_params = [{transform_indices = @transform_0, window_bounds = array<i64: 224, 8>}, {pipeline_mode = #tpu.pipeline_mode<synchronous>, transform_indices = @transform_1, window_bounds = array<i64: 1, 8>}, {pipeline_mode = #tpu.pipeline_mode<synchronous>, transform_indices = @transform_2, window_bounds = array<i64: 1, 8>}, {transform_indices = @transform_3, window_bounds = array<i64: 224, 8>}]} {
    %c0 = arith.constant 0 : index
    %c0_0 = arith.constant 0 : index
    %0 = vector.load %arg1[%c0, %c0_0] : memref<224x8xf32, #tpu.memory_space<vmem>>, vector<224x8xf32>
    %c0_1 = arith.constant 0 : index
    %c0_2 = arith.constant 0 : index
    %1 = vector.load %arg2[%c0_1, %c0_2] : memref<1x8xf32, #tpu.memory_space<vmem>>, vector<1x8xf32>
    %2 = vector.broadcast %1 : vector<1x8xf32> to vector<224x8xf32>
    %3 = arith.mulf %0, %2 : vector<224x8xf32>
    %c0_3 = arith.constant 0 : index
    %c0_4 = arith.constant 0 : index
    %4 = vector.load %arg3[%c0_3, %c0_4] : memref<1x8xf32, #tpu.memory_space<vmem>>, vector<1x8xf32>
    %5 = vector.broadcast %4 : vector<1x8xf32> to vector<224x8xf32>
    %6 = arith.addf %3, %5 : vector<224x8xf32>
    %cst = arith.constant 0.000000e+00 : f32
    %7 = vector.broadcast %cst : f32 to vector<224x8xf32>
    %8 = arith.cmpf oge, %6, %7 : vector<224x8xf32>
    %cst_5 = arith.constant 0.00999999977 : f32
    %9 = vector.broadcast %cst_5 : f32 to vector<224x8xf32>
    %10 = arith.mulf %9, %6 : vector<224x8xf32>
    %11 = arith.select %8, %6, %10 : vector<224x8xi1>, vector<224x8xf32>
    %c0_6 = arith.constant 0 : index
    %c0_7 = arith.constant 0 : index
    %12 = vector.load %arg4[%c0_6, %c0_7] : memref<224x8xf32, #tpu.memory_space<vmem>>, vector<224x8xf32>
    tpu.vector_store %arg4[%c0_6, %c0_7], %11 {strides = array<i32>} : memref<224x8xf32, #tpu.memory_space<vmem>>, vector<224x8xf32>,
    return
  }
  func.func @transform_0(%arg0: i32) -> (i32, i32) {
    %c0_i32 = arith.constant 0 : i32
    %c0_i32_0 = arith.constant 0 : i32
    return %arg0, %c0_i32 : i32, i32
  }
  func.func @transform_1(%arg0: i32) -> (i32, i32) {
    %c0_i32 = arith.constant 0 : i32
    %c0_i32_0 = arith.constant 0 : i32
    %c0_i32_1 = arith.constant 0 : i32
    return %c0_i32, %c0_i32_0 : i32, i32
  }
  func.func @transform_2(%arg0: i32) -> (i32, i32) {
    %c0_i32 = arith.constant 0 : i32
    %c0_i32_0 = arith.constant 0 : i32
    %c0_i32_1 = arith.constant 0 : i32
    return %c0_i32, %c0_i32_0 : i32, i32
  }
  func.func @transform_3(%arg0: i32) -> (i32, i32) {
    %c0_i32 = arith.constant 0 : i32
    %c0_i32_0 = arith.constant 0 : i32
    return %arg0, %c0_i32 : i32, i32
  }
}

module attributes {stable_mosaic.version = 11 : i64} {
  func.func @_mm_stats_kernel(%arg0: i32, %arg1: i32, %arg2: memref<224x1024xbf16, #tpu.memory_space<vmem>>, %arg3: memref<1024x16xbf16, #tpu.memory_space<vmem>>, %arg4: memref<224x16xf32, #tpu.memory_space<vmem>>, %arg5: memref<8x16xf32, #tpu.memory_space<vmem>>, %arg6: memref<224x16xf32, #tpu.memory_space<vmem>>) attributes {dimension_semantics = [#tpu.dimension_semantics<parallel>, #tpu.dimension_semantics<arbitrary>], iteration_bounds = array<i64: 1, 1>, scalar_prefetch = 0 : i64, scratch_operands = 1 : i64, tpu.core_type = #tpu.core_type<tc>, window_params = [{transform_indices = @transform_0, window_bounds = array<i64: 224, 1024>}, {transform_indices = @transform_1, window_bounds = array<i64: 1024, 16>}, {transform_indices = @transform_2, window_bounds = array<i64: 224, 16>}, {transform_indices = @transform_3, window_bounds = array<i64: 8, 16>}]} {
    %c0_i32 = arith.constant 0 : i32
    %0 = arith.cmpi eq, %arg1, %c0_i32 : i32
    %1 = arith.extui %0 : i1 to i32
    %c0_i32_0 = arith.constant 0 : i32
    %2 = arith.cmpi ne, %1, %c0_i32_0 : i32
    scf.if %2 {
      %cst_10 = arith.constant 0.000000e+00 : f32
      %12 = vector.broadcast %cst_10 : f32 to vector<224x16xf32>
      %c0_11 = arith.constant 0 : index
      %c0_12 = arith.constant 0 : index
      %13 = vector.load %arg6[%c0_11, %c0_12] : memref<224x16xf32, #tpu.memory_space<vmem>>, vector<224x16xf32>
      tpu.vector_store %arg6[%c0_11, %c0_12], %12 {strides = array<i32>} : memref<224x16xf32, #tpu.memory_space<vmem>>, vector<224x16xf32>,
    } else {
    }
    %c0 = arith.constant 0 : index
    %c0_1 = arith.constant 0 : index
    %3 = vector.load %arg6[%c0, %c0_1] : memref<224x16xf32, #tpu.memory_space<vmem>>, vector<224x16xf32>
    %c0_2 = arith.constant 0 : index
    %c0_3 = arith.constant 0 : index
    %4 = vector.load %arg2[%c0_2, %c0_3] : memref<224x1024xbf16, #tpu.memory_space<vmem>>, vector<224x1024xbf16>
    %c0_4 = arith.constant 0 : index
    %c0_5 = arith.constant 0 : index
    %5 = vector.load %arg3[%c0_4, %c0_5] : memref<1024x16xbf16, #tpu.memory_space<vmem>>, vector<1024x16xbf16>
    %cst = arith.constant dense<0.000000e+00> : vector<224x16xf32>
    %6 = tpu.matmul %4, %5, %cst {dimension_numbers = #tpu.dot_dimension_numbers<[1], [0], [0], [1], [0, 0, 1, 1], [], []>} : vector<224x1024xbf16>, vector<1024x16xbf16>, vector<224x16xf32> -> vector<224x16xf32>
    %7 = arith.addf %3, %6 : vector<224x16xf32>
    %c0_6 = arith.constant 0 : index
    %c0_7 = arith.constant 0 : index
    %8 = vector.load %arg6[%c0_6, %c0_7] : memref<224x16xf32, #tpu.memory_space<vmem>>, vector<224x16xf32>
    tpu.vector_store %arg6[%c0_6, %c0_7], %7 {strides = array<i32>} : memref<224x16xf32, #tpu.memory_space<vmem>>, vector<224x16xf32>,
    %c0_i32_8 = arith.constant 0 : i32
    %9 = arith.cmpi eq, %arg1, %c0_i32_8 : i32
    %10 = arith.extui %9 : i1 to i32
    %c0_i32_9 = arith.constant 0 : i32
    %11 = arith.cmpi ne, %10, %c0_i32_9 : i32
    scf.if %11 {
      %c0_10 = arith.constant 0 : index
      %c0_11 = arith.constant 0 : index
      %12 = vector.load %arg6[%c0_10, %c0_11] : memref<224x16xf32, #tpu.memory_space<vmem>>, vector<224x16xf32>
      %c0_12 = arith.constant 0 : index
      %c0_13 = arith.constant 0 : index
      %13 = vector.load %arg4[%c0_12, %c0_13] : memref<224x16xf32, #tpu.memory_space<vmem>>, vector<224x16xf32>
      tpu.vector_store %arg4[%c0_12, %c0_13], %12 {strides = array<i32>} : memref<224x16xf32, #tpu.memory_space<vmem>>, vector<224x16xf32>,
      %cst_14 = arith.constant dense<0.000000e+00> : vector<16xf32>
      %14 = vector.multi_reduction <add>, %12, %cst_14 [0] : vector<224x16xf32> to vector<16xf32>
      %15 = vector.shape_cast %14 : vector<16xf32> to vector<1x16xf32>
      %16 = vector.shape_cast %15 : vector<1x16xf32> to vector<1x16xf32>
      %17 = vector.broadcast %16 : vector<1x16xf32> to vector<8x16xf32>
      %18 = arith.mulf %12, %12 : vector<224x16xf32>
      %cst_15 = arith.constant dense<0.000000e+00> : vector<16xf32>
      %19 = vector.multi_reduction <add>, %18, %cst_15 [0] : vector<224x16xf32> to vector<16xf32>
      %20 = vector.shape_cast %19 : vector<16xf32> to vector<1x16xf32>
      %21 = vector.shape_cast %20 : vector<1x16xf32> to vector<1x16xf32>
      %22 = vector.broadcast %21 : vector<1x16xf32> to vector<8x16xf32>
      %23 = tpu.iota {dimensions = array<i32: 0>} : vector<8x16xi32>
      %c0_i32_16 = arith.constant 0 : i32
      %24 = vector.broadcast %c0_i32_16 : i32 to vector<8x16xi32>
      %25 = arith.cmpi eq, %23, %24 : vector<8x16xi32>
      %c1_i32 = arith.constant 1 : i32
      %26 = vector.broadcast %c1_i32 : i32 to vector<8x16xi32>
      %27 = arith.cmpi eq, %23, %26 : vector<8x16xi32>
      %cst_17 = arith.constant 0.000000e+00 : f32
      %28 = vector.broadcast %cst_17 : f32 to vector<8x16xf32>
      %29 = arith.select %27, %22, %28 : vector<8x16xi1>, vector<8x16xf32>
      %30 = arith.select %25, %17, %29 : vector<8x16xi1>, vector<8x16xf32>
      %c0_18 = arith.constant 0 : index
      %c0_19 = arith.constant 0 : index
      %31 = vector.load %arg5[%c0_18, %c0_19] : memref<8x16xf32, #tpu.memory_space<vmem>>, vector<8x16xf32>
      tpu.vector_store %arg5[%c0_18, %c0_19], %30 {strides = array<i32>} : memref<8x16xf32, #tpu.memory_space<vmem>>, vector<8x16xf32>,
    } else {
    }
    return
  }
  func.func @transform_0(%arg0: i32, %arg1: i32) -> (i32, i32) {
    %c0_i32 = arith.constant 0 : i32
    return %arg0, %arg1 : i32, i32
  }
  func.func @transform_1(%arg0: i32, %arg1: i32) -> (i32, i32) {
    %c0_i32 = arith.constant 0 : i32
    %c0_i32_0 = arith.constant 0 : i32
    return %arg1, %c0_i32 : i32, i32
  }
  func.func @transform_2(%arg0: i32, %arg1: i32) -> (i32, i32) {
    %c0_i32 = arith.constant 0 : i32
    %c0_i32_0 = arith.constant 0 : i32
    return %arg0, %c0_i32 : i32, i32
  }
  func.func @transform_3(%arg0: i32, %arg1: i32) -> (i32, i32) {
    %c0_i32 = arith.constant 0 : i32
    %c0_i32_0 = arith.constant 0 : i32
    return %arg0, %c0_i32 : i32, i32
  }
}

module attributes {stable_mosaic.version = 11 : i64} {
  func.func @_bn_act_kernel(%arg0: i32, %arg1: memref<224x16xf32, #tpu.memory_space<vmem>>, %arg2: memref<1x16xf32, #tpu.memory_space<vmem>>, %arg3: memref<1x16xf32, #tpu.memory_space<vmem>>, %arg4: memref<224x16xf32, #tpu.memory_space<vmem>>) attributes {dimension_semantics = [#tpu.dimension_semantics<parallel>], iteration_bounds = array<i64: 1>, scalar_prefetch = 0 : i64, scratch_operands = 0 : i64, tpu.core_type = #tpu.core_type<tc>, window_params = [{transform_indices = @transform_0, window_bounds = array<i64: 224, 16>}, {pipeline_mode = #tpu.pipeline_mode<synchronous>, transform_indices = @transform_1, window_bounds = array<i64: 1, 16>}, {pipeline_mode = #tpu.pipeline_mode<synchronous>, transform_indices = @transform_2, window_bounds = array<i64: 1, 16>}, {transform_indices = @transform_3, window_bounds = array<i64: 224, 16>}]} {
    %c0 = arith.constant 0 : index
    %c0_0 = arith.constant 0 : index
    %0 = vector.load %arg1[%c0, %c0_0] : memref<224x16xf32, #tpu.memory_space<vmem>>, vector<224x16xf32>
    %c0_1 = arith.constant 0 : index
    %c0_2 = arith.constant 0 : index
    %1 = vector.load %arg2[%c0_1, %c0_2] : memref<1x16xf32, #tpu.memory_space<vmem>>, vector<1x16xf32>
    %2 = vector.broadcast %1 : vector<1x16xf32> to vector<224x16xf32>
    %3 = arith.mulf %0, %2 : vector<224x16xf32>
    %c0_3 = arith.constant 0 : index
    %c0_4 = arith.constant 0 : index
    %4 = vector.load %arg3[%c0_3, %c0_4] : memref<1x16xf32, #tpu.memory_space<vmem>>, vector<1x16xf32>
    %5 = vector.broadcast %4 : vector<1x16xf32> to vector<224x16xf32>
    %6 = arith.addf %3, %5 : vector<224x16xf32>
    %cst = arith.constant 0.000000e+00 : f32
    %7 = vector.broadcast %cst : f32 to vector<224x16xf32>
    %8 = arith.cmpf oge, %6, %7 : vector<224x16xf32>
    %cst_5 = arith.constant 0.00999999977 : f32
    %9 = vector.broadcast %cst_5 : f32 to vector<224x16xf32>
    %10 = arith.mulf %9, %6 : vector<224x16xf32>
    %11 = arith.select %8, %6, %10 : vector<224x16xi1>, vector<224x16xf32>
    %c0_6 = arith.constant 0 : index
    %c0_7 = arith.constant 0 : index
    %12 = vector.load %arg4[%c0_6, %c0_7] : memref<224x16xf32, #tpu.memory_space<vmem>>, vector<224x16xf32>
    tpu.vector_store %arg4[%c0_6, %c0_7], %11 {strides = array<i32>} : memref<224x16xf32, #tpu.memory_space<vmem>>, vector<224x16xf32>,
    return
  }
  func.func @transform_0(%arg0: i32) -> (i32, i32) {
    %c0_i32 = arith.constant 0 : i32
    %c0_i32_0 = arith.constant 0 : i32
    return %arg0, %c0_i32 : i32, i32
  }
  func.func @transform_1(%arg0: i32) -> (i32, i32) {
    %c0_i32 = arith.constant 0 : i32
    %c0_i32_0 = arith.constant 0 : i32
    %c0_i32_1 = arith.constant 0 : i32
    return %c0_i32, %c0_i32_0 : i32, i32
  }
  func.func @transform_2(%arg0: i32) -> (i32, i32) {
    %c0_i32 = arith.constant 0 : i32
    %c0_i32_0 = arith.constant 0 : i32
    %c0_i32_1 = arith.constant 0 : i32
    return %c0_i32, %c0_i32_0 : i32, i32
  }
  func.func @transform_3(%arg0: i32) -> (i32, i32) {
    %c0_i32 = arith.constant 0 : i32
    %c0_i32_0 = arith.constant 0 : i32
    return %arg0, %c0_i32 : i32, i32
  }
}

module attributes {stable_mosaic.version = 11 : i64} {
  func.func @_mm_stats_kernel(%arg0: i32, %arg1: i32, %arg2: memref<224x512xbf16, #tpu.memory_space<vmem>>, %arg3: memref<512x24xbf16, #tpu.memory_space<vmem>>, %arg4: memref<224x24xf32, #tpu.memory_space<vmem>>, %arg5: memref<8x24xf32, #tpu.memory_space<vmem>>, %arg6: memref<224x24xf32, #tpu.memory_space<vmem>>) attributes {dimension_semantics = [#tpu.dimension_semantics<parallel>, #tpu.dimension_semantics<arbitrary>], iteration_bounds = array<i64: 1, 1>, scalar_prefetch = 0 : i64, scratch_operands = 1 : i64, tpu.core_type = #tpu.core_type<tc>, window_params = [{transform_indices = @transform_0, window_bounds = array<i64: 224, 512>}, {transform_indices = @transform_1, window_bounds = array<i64: 512, 24>}, {transform_indices = @transform_2, window_bounds = array<i64: 224, 24>}, {transform_indices = @transform_3, window_bounds = array<i64: 8, 24>}]} {
    %c0_i32 = arith.constant 0 : i32
    %0 = arith.cmpi eq, %arg1, %c0_i32 : i32
    %1 = arith.extui %0 : i1 to i32
    %c0_i32_0 = arith.constant 0 : i32
    %2 = arith.cmpi ne, %1, %c0_i32_0 : i32
    scf.if %2 {
      %cst_10 = arith.constant 0.000000e+00 : f32
      %12 = vector.broadcast %cst_10 : f32 to vector<224x24xf32>
      %c0_11 = arith.constant 0 : index
      %c0_12 = arith.constant 0 : index
      %13 = vector.load %arg6[%c0_11, %c0_12] : memref<224x24xf32, #tpu.memory_space<vmem>>, vector<224x24xf32>
      tpu.vector_store %arg6[%c0_11, %c0_12], %12 {strides = array<i32>} : memref<224x24xf32, #tpu.memory_space<vmem>>, vector<224x24xf32>,
    } else {
    }
    %c0 = arith.constant 0 : index
    %c0_1 = arith.constant 0 : index
    %3 = vector.load %arg6[%c0, %c0_1] : memref<224x24xf32, #tpu.memory_space<vmem>>, vector<224x24xf32>
    %c0_2 = arith.constant 0 : index
    %c0_3 = arith.constant 0 : index
    %4 = vector.load %arg2[%c0_2, %c0_3] : memref<224x512xbf16, #tpu.memory_space<vmem>>, vector<224x512xbf16>
    %c0_4 = arith.constant 0 : index
    %c0_5 = arith.constant 0 : index
    %5 = vector.load %arg3[%c0_4, %c0_5] : memref<512x24xbf16, #tpu.memory_space<vmem>>, vector<512x24xbf16>
    %cst = arith.constant dense<0.000000e+00> : vector<224x24xf32>
    %6 = tpu.matmul %4, %5, %cst {dimension_numbers = #tpu.dot_dimension_numbers<[1], [0], [0], [1], [0, 0, 1, 1], [], []>} : vector<224x512xbf16>, vector<512x24xbf16>, vector<224x24xf32> -> vector<224x24xf32>
    %7 = arith.addf %3, %6 : vector<224x24xf32>
    %c0_6 = arith.constant 0 : index
    %c0_7 = arith.constant 0 : index
    %8 = vector.load %arg6[%c0_6, %c0_7] : memref<224x24xf32, #tpu.memory_space<vmem>>, vector<224x24xf32>
    tpu.vector_store %arg6[%c0_6, %c0_7], %7 {strides = array<i32>} : memref<224x24xf32, #tpu.memory_space<vmem>>, vector<224x24xf32>,
    %c0_i32_8 = arith.constant 0 : i32
    %9 = arith.cmpi eq, %arg1, %c0_i32_8 : i32
    %10 = arith.extui %9 : i1 to i32
    %c0_i32_9 = arith.constant 0 : i32
    %11 = arith.cmpi ne, %10, %c0_i32_9 : i32
    scf.if %11 {
      %c0_10 = arith.constant 0 : index
      %c0_11 = arith.constant 0 : index
      %12 = vector.load %arg6[%c0_10, %c0_11] : memref<224x24xf32, #tpu.memory_space<vmem>>, vector<224x24xf32>
      %c0_12 = arith.constant 0 : index
      %c0_13 = arith.constant 0 : index
      %13 = vector.load %arg4[%c0_12, %c0_13] : memref<224x24xf32, #tpu.memory_space<vmem>>, vector<224x24xf32>
      tpu.vector_store %arg4[%c0_12, %c0_13], %12 {strides = array<i32>} : memref<224x24xf32, #tpu.memory_space<vmem>>, vector<224x24xf32>,
      %cst_14 = arith.constant dense<0.000000e+00> : vector<24xf32>
      %14 = vector.multi_reduction <add>, %12, %cst_14 [0] : vector<224x24xf32> to vector<24xf32>
      %15 = vector.shape_cast %14 : vector<24xf32> to vector<1x24xf32>
      %16 = vector.shape_cast %15 : vector<1x24xf32> to vector<1x24xf32>
      %17 = vector.broadcast %16 : vector<1x24xf32> to vector<8x24xf32>
      %18 = arith.mulf %12, %12 : vector<224x24xf32>
      %cst_15 = arith.constant dense<0.000000e+00> : vector<24xf32>
      %19 = vector.multi_reduction <add>, %18, %cst_15 [0] : vector<224x24xf32> to vector<24xf32>
      %20 = vector.shape_cast %19 : vector<24xf32> to vector<1x24xf32>
      %21 = vector.shape_cast %20 : vector<1x24xf32> to vector<1x24xf32>
      %22 = vector.broadcast %21 : vector<1x24xf32> to vector<8x24xf32>
      %23 = tpu.iota {dimensions = array<i32: 0>} : vector<8x24xi32>
      %c0_i32_16 = arith.constant 0 : i32
      %24 = vector.broadcast %c0_i32_16 : i32 to vector<8x24xi32>
      %25 = arith.cmpi eq, %23, %24 : vector<8x24xi32>
      %c1_i32 = arith.constant 1 : i32
      %26 = vector.broadcast %c1_i32 : i32 to vector<8x24xi32>
      %27 = arith.cmpi eq, %23, %26 : vector<8x24xi32>
      %cst_17 = arith.constant 0.000000e+00 : f32
      %28 = vector.broadcast %cst_17 : f32 to vector<8x24xf32>
      %29 = arith.select %27, %22, %28 : vector<8x24xi1>, vector<8x24xf32>
      %30 = arith.select %25, %17, %29 : vector<8x24xi1>, vector<8x24xf32>
      %c0_18 = arith.constant 0 : index
      %c0_19 = arith.constant 0 : index
      %31 = vector.load %arg5[%c0_18, %c0_19] : memref<8x24xf32, #tpu.memory_space<vmem>>, vector<8x24xf32>
      tpu.vector_store %arg5[%c0_18, %c0_19], %30 {strides = array<i32>} : memref<8x24xf32, #tpu.memory_space<vmem>>, vector<8x24xf32>,
    } else {
    }
    return
  }
  func.func @transform_0(%arg0: i32, %arg1: i32) -> (i32, i32) {
    %c0_i32 = arith.constant 0 : i32
    return %arg0, %arg1 : i32, i32
  }
  func.func @transform_1(%arg0: i32, %arg1: i32) -> (i32, i32) {
    %c0_i32 = arith.constant 0 : i32
    %c0_i32_0 = arith.constant 0 : i32
    return %arg1, %c0_i32 : i32, i32
  }
  func.func @transform_2(%arg0: i32, %arg1: i32) -> (i32, i32) {
    %c0_i32 = arith.constant 0 : i32
    %c0_i32_0 = arith.constant 0 : i32
    return %arg0, %c0_i32 : i32, i32
  }
  func.func @transform_3(%arg0: i32, %arg1: i32) -> (i32, i32) {
    %c0_i32 = arith.constant 0 : i32
    %c0_i32_0 = arith.constant 0 : i32
    return %arg0, %c0_i32 : i32, i32
  }
}

module attributes {stable_mosaic.version = 11 : i64} {
  func.func @_bn_act_kernel(%arg0: i32, %arg1: memref<224x24xf32, #tpu.memory_space<vmem>>, %arg2: memref<1x24xf32, #tpu.memory_space<vmem>>, %arg3: memref<1x24xf32, #tpu.memory_space<vmem>>, %arg4: memref<224x24xf32, #tpu.memory_space<vmem>>) attributes {dimension_semantics = [#tpu.dimension_semantics<parallel>], iteration_bounds = array<i64: 1>, scalar_prefetch = 0 : i64, scratch_operands = 0 : i64, tpu.core_type = #tpu.core_type<tc>, window_params = [{transform_indices = @transform_0, window_bounds = array<i64: 224, 24>}, {pipeline_mode = #tpu.pipeline_mode<synchronous>, transform_indices = @transform_1, window_bounds = array<i64: 1, 24>}, {pipeline_mode = #tpu.pipeline_mode<synchronous>, transform_indices = @transform_2, window_bounds = array<i64: 1, 24>}, {transform_indices = @transform_3, window_bounds = array<i64: 224, 24>}]} {
    %c0 = arith.constant 0 : index
    %c0_0 = arith.constant 0 : index
    %0 = vector.load %arg1[%c0, %c0_0] : memref<224x24xf32, #tpu.memory_space<vmem>>, vector<224x24xf32>
    %c0_1 = arith.constant 0 : index
    %c0_2 = arith.constant 0 : index
    %1 = vector.load %arg2[%c0_1, %c0_2] : memref<1x24xf32, #tpu.memory_space<vmem>>, vector<1x24xf32>
    %2 = vector.broadcast %1 : vector<1x24xf32> to vector<224x24xf32>
    %3 = arith.mulf %0, %2 : vector<224x24xf32>
    %c0_3 = arith.constant 0 : index
    %c0_4 = arith.constant 0 : index
    %4 = vector.load %arg3[%c0_3, %c0_4] : memref<1x24xf32, #tpu.memory_space<vmem>>, vector<1x24xf32>
    %5 = vector.broadcast %4 : vector<1x24xf32> to vector<224x24xf32>
    %6 = arith.addf %3, %5 : vector<224x24xf32>
    %cst = arith.constant 0.000000e+00 : f32
    %7 = vector.broadcast %cst : f32 to vector<224x24xf32>
    %8 = arith.cmpf oge, %6, %7 : vector<224x24xf32>
    %cst_5 = arith.constant 0.00999999977 : f32
    %9 = vector.broadcast %cst_5 : f32 to vector<224x24xf32>
    %10 = arith.mulf %9, %6 : vector<224x24xf32>
    %11 = arith.select %8, %6, %10 : vector<224x24xi1>, vector<224x24xf32>
    %c0_6 = arith.constant 0 : index
    %c0_7 = arith.constant 0 : index
    %12 = vector.load %arg4[%c0_6, %c0_7] : memref<224x24xf32, #tpu.memory_space<vmem>>, vector<224x24xf32>
    tpu.vector_store %arg4[%c0_6, %c0_7], %11 {strides = array<i32>} : memref<224x24xf32, #tpu.memory_space<vmem>>, vector<224x24xf32>,
    return
  }
  func.func @transform_0(%arg0: i32) -> (i32, i32) {
    %c0_i32 = arith.constant 0 : i32
    %c0_i32_0 = arith.constant 0 : i32
    return %arg0, %c0_i32 : i32, i32
  }
  func.func @transform_1(%arg0: i32) -> (i32, i32) {
    %c0_i32 = arith.constant 0 : i32
    %c0_i32_0 = arith.constant 0 : i32
    %c0_i32_1 = arith.constant 0 : i32
    return %c0_i32, %c0_i32_0 : i32, i32
  }
  func.func @transform_2(%arg0: i32) -> (i32, i32) {
    %c0_i32 = arith.constant 0 : i32
    %c0_i32_0 = arith.constant 0 : i32
    %c0_i32_1 = arith.constant 0 : i32
    return %c0_i32, %c0_i32_0 : i32, i32
  }
  func.func @transform_3(%arg0: i32) -> (i32, i32) {
    %c0_i32 = arith.constant 0 : i32
    %c0_i32_0 = arith.constant 0 : i32
    return %arg0, %c0_i32 : i32, i32
  }
}

module attributes {stable_mosaic.version = 11 : i64} {
  func.func @_mm_fused_kernel(%arg0: i32, %arg1: i32, %arg2: memref<224x128xbf16, #tpu.memory_space<vmem>>, %arg3: memref<128x3xbf16, #tpu.memory_space<vmem>>, %arg4: memref<1x3xf32, #tpu.memory_space<vmem>>, %arg5: memref<224x3xf32, #tpu.memory_space<vmem>>, %arg6: memref<224x3xf32, #tpu.memory_space<vmem>>) attributes {dimension_semantics = [#tpu.dimension_semantics<parallel>, #tpu.dimension_semantics<arbitrary>], iteration_bounds = array<i64: 1, 1>, scalar_prefetch = 0 : i64, scratch_operands = 1 : i64, tpu.core_type = #tpu.core_type<tc>, window_params = [{transform_indices = @transform_0, window_bounds = array<i64: 224, 128>}, {transform_indices = @transform_1, window_bounds = array<i64: 128, 3>}, {pipeline_mode = #tpu.pipeline_mode<synchronous>, transform_indices = @transform_2, window_bounds = array<i64: 1, 3>}, {transform_indices = @transform_3, window_bounds = array<i64: 224, 3>}]} {
    %c0_i32 = arith.constant 0 : i32
    %0 = arith.cmpi eq, %arg1, %c0_i32 : i32
    %1 = arith.extui %0 : i1 to i32
    %c0_i32_0 = arith.constant 0 : i32
    %2 = arith.cmpi ne, %1, %c0_i32_0 : i32
    scf.if %2 {
      %cst_10 = arith.constant 0.000000e+00 : f32
      %12 = vector.broadcast %cst_10 : f32 to vector<224x3xf32>
      %c0_11 = arith.constant 0 : index
      %c0_12 = arith.constant 0 : index
      %13 = vector.load %arg6[%c0_11, %c0_12] : memref<224x3xf32, #tpu.memory_space<vmem>>, vector<224x3xf32>
      tpu.vector_store %arg6[%c0_11, %c0_12], %12 {strides = array<i32>} : memref<224x3xf32, #tpu.memory_space<vmem>>, vector<224x3xf32>,
    } else {
    }
    %c0 = arith.constant 0 : index
    %c0_1 = arith.constant 0 : index
    %3 = vector.load %arg6[%c0, %c0_1] : memref<224x3xf32, #tpu.memory_space<vmem>>, vector<224x3xf32>
    %c0_2 = arith.constant 0 : index
    %c0_3 = arith.constant 0 : index
    %4 = vector.load %arg2[%c0_2, %c0_3] : memref<224x128xbf16, #tpu.memory_space<vmem>>, vector<224x128xbf16>
    %c0_4 = arith.constant 0 : index
    %c0_5 = arith.constant 0 : index
    %5 = vector.load %arg3[%c0_4, %c0_5] : memref<128x3xbf16, #tpu.memory_space<vmem>>, vector<128x3xbf16>
    %cst = arith.constant dense<0.000000e+00> : vector<224x3xf32>
    %6 = tpu.matmul %4, %5, %cst {dimension_numbers = #tpu.dot_dimension_numbers<[1], [0], [0], [1], [0, 0, 1, 1], [], []>} : vector<224x128xbf16>, vector<128x3xbf16>, vector<224x3xf32> -> vector<224x3xf32>
    %7 = arith.addf %3, %6 : vector<224x3xf32>
    %c0_6 = arith.constant 0 : index
    %c0_7 = arith.constant 0 : index
    %8 = vector.load %arg6[%c0_6, %c0_7] : memref<224x3xf32, #tpu.memory_space<vmem>>, vector<224x3xf32>
    tpu.vector_store %arg6[%c0_6, %c0_7], %7 {strides = array<i32>} : memref<224x3xf32, #tpu.memory_space<vmem>>, vector<224x3xf32>,
    %c0_i32_8 = arith.constant 0 : i32
    %9 = arith.cmpi eq, %arg1, %c0_i32_8 : i32
    %10 = arith.extui %9 : i1 to i32
    %c0_i32_9 = arith.constant 0 : i32
    %11 = arith.cmpi ne, %10, %c0_i32_9 : i32
    scf.if %11 {
      %c0_10 = arith.constant 0 : index
      %c0_11 = arith.constant 0 : index
      %12 = vector.load %arg6[%c0_10, %c0_11] : memref<224x3xf32, #tpu.memory_space<vmem>>, vector<224x3xf32>
      %c0_12 = arith.constant 0 : index
      %c0_13 = arith.constant 0 : index
      %13 = vector.load %arg4[%c0_12, %c0_13] : memref<1x3xf32, #tpu.memory_space<vmem>>, vector<1x3xf32>
      %14 = vector.broadcast %13 : vector<1x3xf32> to vector<224x3xf32>
      %15 = arith.addf %12, %14 : vector<224x3xf32>
      %16 = math.tanh %15 : vector<224x3xf32>
      %c0_14 = arith.constant 0 : index
      %c0_15 = arith.constant 0 : index
      %17 = vector.load %arg5[%c0_14, %c0_15] : memref<224x3xf32, #tpu.memory_space<vmem>>, vector<224x3xf32>
      tpu.vector_store %arg5[%c0_14, %c0_15], %16 {strides = array<i32>} : memref<224x3xf32, #tpu.memory_space<vmem>>, vector<224x3xf32>,
    } else {
    }
    return
  }
  func.func @transform_0(%arg0: i32, %arg1: i32) -> (i32, i32) {
    %c0_i32 = arith.constant 0 : i32
    return %arg0, %arg1 : i32, i32
  }
  func.func @transform_1(%arg0: i32, %arg1: i32) -> (i32, i32) {
    %c0_i32 = arith.constant 0 : i32
    %c0_i32_0 = arith.constant 0 : i32
    return %arg1, %c0_i32 : i32, i32
  }
  func.func @transform_2(%arg0: i32, %arg1: i32) -> (i32, i32) {
    %c0_i32 = arith.constant 0 : i32
    %c0_i32_0 = arith.constant 0 : i32
    %c0_i32_1 = arith.constant 0 : i32
    return %c0_i32, %c0_i32_0 : i32, i32
  }
  func.func @transform_3(%arg0: i32, %arg1: i32) -> (i32, i32) {
    %c0_i32 = arith.constant 0 : i32
    %c0_i32_0 = arith.constant 0 : i32
    return %arg0, %c0_i32 : i32, i32
  }
}

</mosaic_0001>

<llo_original>
// kernel: hcnet_forward.18
$region0: #{hcnet_forward.18}
  #allocation0 [shape = 'u32[]', space=smem, size = 0x4, offset = 0x4, fixed_abs, tag = 'smem constant byte address 0x4 - core index']
  #allocation1 [shape = 'u32[72,128]{1,0:T(1,128)}', space=vmem, size = 0x9000, scoped, tag = 'internal scratch']
  %s0 = inlined_call_operand.vmem [shape: f32[768,10], index: 0, kind: input, shape index: {}]
  %s1 = inlined_call_operand.vmem [shape: f32[1,10], index: 1, kind: input, shape index: {}]
  %s2 = inlined_call_operand.vmem [shape: f32[1,10], index: 2, kind: input, shape index: {}]
  %s3 = inlined_call_operand.vmem [shape: f32[768,10], index: 3, kind: output, shape index: {}]
  %s4 = sld [smem:[#allocation0]]
  $region45: #{hcnet_forward.18} parent=0
    _
  %s6 = ssub.s32 1, %s4
  %s7 = scalar_select 0, %s6, %s4
  loop: start=0, step=1, limit=5
  $region2: #{hcnet_forward.18} parent=0 // loop_pre_header
    _
  $region3: #{hcnet_forward.18} parent=0 // loop_header
    %s9 = sphi 0, %s13
    %p10 = scmp.ge.s32.totalorder %s9, 5
    %s19 = sphi 0, %s21
    %s22 = sphi 0, %s19
    %s23 = sphi 0, %s22
    %s39 = sphi 0, %s23
    %s43 = sphi 0, %s43
    %s45 = sphi 0, %s43
    %s46 = sphi 0, %s45
    %s60 = sphi 0, %s46
    %s64 = sphi 0, %s64
    %s66 = sphi 0, %s64
    %s67 = sphi 0, %s66
    %s81 = sphi 0, %s67
    %s87 = sphi 0, %s89
    %s90 = sphi 0, %s87
    %s91 = sphi 0, %s90
    %s107 = sphi 0, %s91
  $region4: #{hcnet_forward.18} parent=0 // loop_header_branch
    %12 = sbr.rel (%p10) target = $region8
  $region5: #{hcnet_forward.18} parent=0 // loop_body
    %s14 = ssub.s32 %s9, 1
    %s15 = ssub.s32 %s9, 2
    %s16 = sadd.s32 %s9, 1
    %s17 = ssub.s32 %s9, %s16
    %p18 = scmp.eq.s32.totalorder %s17, 0
    %s20 = sadd.s32 %s19, 1
    %s21 = scalar_select %p18, %s19, %s20
    %p24 = pneg %p18
    %p25 = scmp.eq.s32.totalorder %s9, 2
    %p26 = por %p24, %p25
    %p27 = scmp.ne.s32.totalorder %s19, %s22
    %p28 = scmp.eq.s32.totalorder %s9, 0
    %p29 = por %p27, %p28
    %p30 = scmp.ne.s32.totalorder %s19, %s22
    %p31 = scmp.eq.s32.totalorder %s14, 2
    %p32 = por %p30, %p31
    %p33 = scmp.ne.s32.totalorder %s22, %s23
    %p34 = scmp.eq.s32.totalorder %s14, 0
    %p35 = por %p33, %p34
    %p36 = scmp.ne.s32.totalorder %s22, %s23
    %p37 = scmp.eq.s32.totalorder %s15, 2
    %p38 = por %p36, %p37
    %p40 = scmp.ne.s32.totalorder %s23, %s39
    %p41 = scmp.eq.s32.totalorder %s15, 0
    %p42 = por %p40, %p41
    %s44 = sadd.s32 %s43, 1
    %p47 = scmp.eq.s32.totalorder %s9, 2
    %p48 = scmp.ne.s32.totalorder %s43, %s45
    %p49 = scmp.eq.s32.totalorder %s9, 0
    %p50 = por %p48, %p49
    %p51 = scmp.ne.s32.totalorder %s43, %s45
    %p52 = scmp.eq.s32.totalorder %s14, 2
    %p53 = por %p51, %p52
    %p54 = scmp.ne.s32.totalorder %s45, %s46
    %p55 = scmp.eq.s32.totalorder %s14, 0
    %p56 = por %p54, %p55
    %p57 = scmp.ne.s32.totalorder %s45, %s46
    %p58 = scmp.eq.s32.totalorder %s15, 2
    %p59 = por %p57, %p58
    %p61 = scmp.ne.s32.totalorder %s46, %s60
    %p62 = scmp.eq.s32.totalorder %s15, 0
    %p63 = por %p61, %p62
    %s65 = sadd.s32 %s64, 1
    %p68 = scmp.eq.s32.totalorder %s9, 2
    %p69 = scmp.ne.s32.totalorder %s64, %s66
    %p70 = scmp.eq.s32.totalorder %s9, 0
    %p71 = por %p69, %p70
    %p72 = scmp.ne.s32.totalorder %s64, %s66
    %p73 = scmp.eq.s32.totalorder %s14, 2
    %p74 = por %p72, %p73
    %p75 = scmp.ne.s32.totalorder %s66, %s67
    %p76 = scmp.eq.s32.totalorder %s14, 0
    %p77 = por %p75, %p76
    %p78 = scmp.ne.s32.totalorder %s66, %s67
    %p79 = scmp.eq.s32.totalorder %s15, 2
    %p80 = por %p78, %p79
    %p82 = scmp.ne.s32.totalorder %s67, %s81
    %p83 = scmp.eq.s32.totalorder %s15, 0
    %p84 = por %p82, %p83
    %s85 = ssub.s32 %s9, %s16
    %p86 = scmp.eq.s32.totalorder %s85, 0
    %s88 = sadd.s32 %s87, 1
    %s89 = scalar_select %p86, %s87, %s88
    %p92 = pneg %p86
    %p93 = scmp.eq.s32.totalorder %s9, 2
    %p94 = por %p92, %p93
    %p95 = scmp.ne.s32.totalorder %s87, %s90
    %p96 = scmp.eq.s32.totalorder %s9, 0
    %p97 = por %p95, %p96
    %p98 = scmp.ne.s32.totalorder %s87, %s90
    %p99 = scmp.eq.s32.totalorder %s14, 2
    %p100 = por %p98, %p99
    %p101 = scmp.ne.s32.totalorder %s90, %s91
    %p102 = scmp.eq.s32.totalorder %s14, 0
    %p103 = por %p101, %p102
    %p104 = scmp.ne.s32.totalorder %s90, %s91
    %p105 = scmp.eq.s32.totalorder %s15, 2
    %p106 = por %p104, %p105
    %p108 = scmp.ne.s32.totalorder %s91, %s107
    %p109 = scmp.eq.s32.totalorder %s15, 0
    %p110 = por %p108, %p109
    %p111 = scmp.le.s32.totalorder 1, %s9
    %p112 = scmp.lt.s32.totalorder %s9, 4
    %p113 = pnand %p111, %p112
    %p114 = pneg %p113
    // Predicated region
    $region9: #{hcnet_forward.18} parent=5 // pred_check
      _
    $region10: #{hcnet_forward.18} parent=5 // pred_check_branch
      %116 = sbr.rel (%p113) target = $region12
    $region11: #{hcnet_forward.18} parent=5 // pred_region
      %s117 = ssub.s32 %s9, 1
      // Predicated region
      $region13: #{hcnet_forward.18} parent=11 // pred_check
        %p118 = pneg %p56
      $region14: #{hcnet_forward.18} parent=11 // pred_check_branch
        %120 = sbr.rel (%p118) target = $region16
      $region15: #{hcnet_forward.18} parent=11 // pred_region
        _
      $region16: #{hcnet_forward.18} parent=11 // pred_fallthru
        _
      // Predicated region
      $region17: #{hcnet_forward.18} parent=11 // pred_check
        %p121 = pneg %p77
      $region18: #{hcnet_forward.18} parent=11 // pred_check_branch
        %123 = sbr.rel (%p121) target = $region20
      $region19: #{hcnet_forward.18} parent=11 // pred_region
        _
      $region20: #{hcnet_forward.18} parent=11 // pred_fallthru
        _
    $region12: #{hcnet_forward.18} parent=5 // pred_fallthru
      _
    %p124 = scmp.lt.s32.totalorder %s9, 3
    // Predicated region
    $region21: #{hcnet_forward.18} parent=5 // pred_check
      %p125 = pneg %p124
    $region22: #{hcnet_forward.18} parent=5 // pred_check_branch
      %127 = sbr.rel (%p125) target = $region24
    $region23: #{hcnet_forward.18} parent=5 // pred_region
      // Predicated region
      $region25: #{hcnet_forward.18} parent=23 // pred_check
        %p128 = pneg %p29
      $region26: #{hcnet_forward.18} parent=23 // pred_check_branch
        %130 = sbr.rel (%p128) target = $region28
      $region27: #{hcnet_forward.18} parent=23 // pred_region
        %s131 = smul.u32 32, %s9
        %p132 = scmp.lt.s32.totalorder %s131, 95
        %s133 = scalar_select %p132, %s131, 95
        %s134 = smul.addr %s133, 8
        %s135 = scalar_lea.vmem %s0, %s134
        %s136 = smul.u32 32, %s9
      $region28: #{hcnet_forward.18} parent=23 // pred_fallthru
        _
    $region24: #{hcnet_forward.18} parent=5 // pred_fallthru
      _
    %p137 = scmp.le.s32.totalorder 1, %s9
    %p138 = scmp.lt.s32.totalorder %s9, 4
    %p139 = pnand %p137, %p138
    %p140 = pneg %p139
    // Predicated region
    $region29: #{hcnet_forward.18} parent=5 // pred_check
      _
    $region30: #{hcnet_forward.18} parent=5 // pred_check_branch
      %142 = sbr.rel (%p139) target = $region32
    $region31: #{hcnet_forward.18} parent=5 // pred_region
      %s143 = ssub.s32 %s9, 1
      %s144 = smul.u32 32, %s14
      %p145 = scmp.lt.s32.totalorder %s144, 95
      %s146 = scalar_select %p145, %s144, 95
      %s147 = smul.addr %s146, 8
      %s148 = scalar_lea.vmem %s0, %s147
      %p149 = pneg %p35
      %p150 = pneg %p32
      %p151 = pneg %p56
      %p152 = pneg %p53
      %p153 = pneg %p77
      %p154 = pneg %p74
      %p155 = pneg %p103
      %p156 = pneg %p100
      %s157 = smul.u32 32, %s14
      %p158 = scmp.lt.s32.totalorder %s157, 95
      %s159 = scalar_select %p158, %s157, 95
      %s160 = smul.addr %s159, 8
      %s161 = scalar_lea.vmem %s3, %s160
      %s162 = smul.u32 32, %s14
      %p163 = scmp.lt.s32.totalorder %s162, 95
      %s164 = scalar_select %p163, %s162, 95
      %s165 = smul.addr %s164, 8
      %s166 = scalar_lea.vmem %s0, %s165
      %s167 = smul.u32 32, %s14
      %s168 = smul.u32 32, %s14
      %p169 = scmp.lt.s32.totalorder %s168, 95
      %s170 = scalar_select %p169, %s168, 95
      %s171 = smul.addr %s170, 8
      %s172 = scalar_lea.vmem %s3, %s171
      %s173 = smul.u32 32, %s14
      %v174 = vld [vmem:[%s166] sm:$0xff]
      %v175 = vld [vmem:[%s166 + $0x8] sm:$0xff]
      %v176 = vld [vmem:[%s166 + $0x10] sm:$0xff]
      %v177 = vld [vmem:[%s166 + $0x18] sm:$0xff]
      %v178 = vld [vmem:[%s166 + $0x20] sm:$0xff]
      %v179 = vld [vmem:[%s166 + $0x28] sm:$0xff]
      %v180 = vld [vmem:[%s166 + $0x30] sm:$0xff]
      %v181 = vld [vmem:[%s166 + $0x38] sm:$0xff]
      %v182 = vld [vmem:[%s166 + $0x40] sm:$0xff]
      %v183 = vld [vmem:[%s166 + $0x48] sm:$0xff]
      %v184 = vld [vmem:[%s166 + $0x50] sm:$0xff]
      %v185 = vld [vmem:[%s166 + $0x58] sm:$0xff]
      %v186 = vld [vmem:[%s166 + $0x60] sm:$0xff]
      %v187 = vld [vmem:[%s166 + $0x68] sm:$0xff]
      %v188 = vld [vmem:[%s166 + $0x70] sm:$0xff]
      %v189 = vld [vmem:[%s166 + $0x78] sm:$0xff]
      %v190 = vld [vmem:[%s166 + $0x80] sm:$0xff]
      %v191 = vld [vmem:[%s166 + $0x88] sm:$0xff]
      %v192 = vld [vmem:[%s166 + $0x90] sm:$0xff]
      %v193 = vld [vmem:[%s166 + $0x98] sm:$0xff]
      %v194 = vld [vmem:[%s166 + $0xa0] sm:$0xff]
      %v195 = vld [vmem:[%s166 + $0xa8] sm:$0xff]
      %v196 = vld [vmem:[%s166 + $0xb0] sm:$0xff]
      %v197 = vld [vmem:[%s166 + $0xb8] sm:$0xff]
      %v198 = vld [vmem:[%s166 + $0xc0] sm:$0xff]
      %v199 = vld [vmem:[%s166 + $0xc8] sm:$0xff]
      %v200 = vld [vmem:[%s166 + $0xd0] sm:$0xff]
      %v201 = vld [vmem:[%s166 + $0xd8] sm:$0xff]
      %v202 = vld [vmem:[%s166 + $0xe0] sm:$0xff]
      %v203 = vld [vmem:[%s166 + $0xe8] sm:$0xff]
      %v204 = vld [vmem:[%s166 + $0xf0] sm:$0xff]
      %v205 = vld [vmem:[%s166 + $0xf8] sm:$0xff]
      %v206 = vld [vmem:[%s1] sm:$0x1]
      %v208 = vperm.slane %v206, 0
      %v210 = vmul.f32 %v174, %v208
      %v211 = vmul.f32 %v175, %v208
      %v212 = vmul.f32 %v176, %v208
      %v213 = vmul.f32 %v177, %v208
      %v214 = vmul.f32 %v178, %v208
      %v215 = vmul.f32 %v179, %v208
      %v216 = vmul.f32 %v180, %v208
      %v217 = vmul.f32 %v181, %v208
      %v218 = vmul.f32 %v182, %v208
      %v219 = vmul.f32 %v183, %v208
      %v220 = vmul.f32 %v184, %v208
      %v221 = vmul.f32 %v185, %v208
      %v222 = vmul.f32 %v186, %v208
      %v223 = vmul.f32 %v187, %v208
      %v224 = vmul.f32 %v188, %v208
      %v225 = vmul.f32 %v189, %v208
      %v226 = vmul.f32 %v190, %v208
      %v227 = vmul.f32 %v191, %v208
      %v228 = vmul.f32 %v192, %v208
      %v229 = vmul.f32 %v193, %v208
      %v230 = vmul.f32 %v194, %v208
      %v231 = vmul.f32 %v195, %v208
      %v232 = vmul.f32 %v196, %v208
      %v233 = vmul.f32 %v197, %v208
      %v234 = vmul.f32 %v198, %v208
      %v235 = vmul.f32 %v199, %v208
      %v236 = vmul.f32 %v200, %v208
      %v237 = vmul.f32 %v201, %v208
      %v238 = vmul.f32 %v202, %v208
      %v239 = vmul.f32 %v203, %v208
      %v240 = vmul.f32 %v204, %v208
      %v241 = vmul.f32 %v205, %v208
      %v242 = vld [vmem:[%s2] sm:$0x1]
      %v244 = vperm.slane %v242, 0
      %v246 = vadd.f32 %v210, %v244
      %v247 = vadd.f32 %v211, %v244
      %v248 = vadd.f32 %v212, %v244
      %v249 = vadd.f32 %v213, %v244
      %v250 = vadd.f32 %v214, %v244
      %v251 = vadd.f32 %v215, %v244
      %v252 = vadd.f32 %v216, %v244
      %v253 = vadd.f32 %v217, %v244
      %v254 = vadd.f32 %v218, %v244
      %v255 = vadd.f32 %v219, %v244
      %v256 = vadd.f32 %v220, %v244
      %v257 = vadd.f32 %v221, %v244
      %v258 = vadd.f32 %v222, %v244
      %v259 = vadd.f32 %v223, %v244
      %v260 = vadd.f32 %v224, %v244
      %v261 = vadd.f32 %v225, %v244
      %v262 = vadd.f32 %v226, %v244
      %v263 = vadd.f32 %v227, %v244
      %v264 = vadd.f32 %v228, %v244
      %v265 = vadd.f32 %v229, %v244
      %v266 = vadd.f32 %v230, %v244
      %v267 = vadd.f32 %v231, %v244
      %v268 = vadd.f32 %v232, %v244
      %v269 = vadd.f32 %v233, %v244
      %v270 = vadd.f32 %v234, %v244
      %v271 = vadd.f32 %v235, %v244
      %v272 = vadd.f32 %v236, %v244
      %v273 = vadd.f32 %v237, %v244
      %v274 = vadd.f32 %v238, %v244
      %v275 = vadd.f32 %v239, %v244
      %v276 = vadd.f32 %v240, %v244
      %v277 = vadd.f32 %v241, %v244
      %vm278 = vcmp.ge.f32.partialorder %v246, 0.0
      %vm279 = vcmp.ge.f32.partialorder %v247, 0.0
      %vm280 = vcmp.ge.f32.partialorder %v248, 0.0
      %vm281 = vcmp.ge.f32.partialorder %v249, 0.0
      %vm282 = vcmp.ge.f32.partialorder %v250, 0.0
      %vm283 = vcmp.ge.f32.partialorder %v251, 0.0
      %vm284 = vcmp.ge.f32.partialorder %v252, 0.0
      %vm285 = vcmp.ge.f32.partialorder %v253, 0.0
      %vm286 = vcmp.ge.f32.partialorder %v254, 0.0
      %vm287 = vcmp.ge.f32.partialorder %v255, 0.0
      %vm288 = vcmp.ge.f32.partialorder %v256, 0.0
      %vm289 = vcmp.ge.f32.partialorder %v257, 0.0
      %vm290 = vcmp.ge.f32.partialorder %v258, 0.0
      %vm291 = vcmp.ge.f32.partialorder %v259, 0.0
      %vm292 = vcmp.ge.f32.partialorder %v260, 0.0
      %vm293 = vcmp.ge.f32.partialorder %v261, 0.0
      %vm294 = vcmp.ge.f32.partialorder %v262, 0.0
      %vm295 = vcmp.ge.f32.partialorder %v263, 0.0
      %vm296 = vcmp.ge.f32.partialorder %v264, 0.0
      %vm297 = vcmp.ge.f32.partialorder %v265, 0.0
      %vm298 = vcmp.ge.f32.partialorder %v266, 0.0
      %vm299 = vcmp.ge.f32.partialorder %v267, 0.0
      %vm300 = vcmp.ge.f32.partialorder %v268, 0.0
      %vm301 = vcmp.ge.f32.partialorder %v269, 0.0
      %vm302 = vcmp.ge.f32.partialorder %v270, 0.0
      %vm303 = vcmp.ge.f32.partialorder %v271, 0.0
      %vm304 = vcmp.ge.f32.partialorder %v272, 0.0
      %vm305 = vcmp.ge.f32.partialorder %v273, 0.0
      %vm306 = vcmp.ge.f32.partialorder %v274, 0.0
      %vm307 = vcmp.ge.f32.partialorder %v275, 0.0
      %vm308 = vcmp.ge.f32.partialorder %v276, 0.0
      %vm309 = vcmp.ge.f32.partialorder %v277, 0.0
      %v310 = vmul.f32 %v246, 0.01
      %v311 = vmul.f32 %v247, 0.01
      %v312 = vmul.f32 %v248, 0.01
      %v313 = vmul.f32 %v249, 0.01
      %v314 = vmul.f32 %v250, 0.01
      %v315 = vmul.f32 %v251, 0.01
      %v316 = vmul.f32 %v252, 0.01
      %v317 = vmul.f32 %v253, 0.01
      %v318 = vmul.f32 %v254, 0.01
      %v319 = vmul.f32 %v255, 0.01
      %v320 = vmul.f32 %v256, 0.01
      %v321 = vmul.f32 %v257, 0.01
      %v322 = vmul.f32 %v258, 0.01
      %v323 = vmul.f32 %v259, 0.01
      %v324 = vmul.f32 %v260, 0.01
      %v325 = vmul.f32 %v261, 0.01
      %v326 = vmul.f32 %v262, 0.01
      %v327 = vmul.f32 %v263, 0.01
      %v328 = vmul.f32 %v264, 0.01
      %v329 = vmul.f32 %v265, 0.01
      %v330 = vmul.f32 %v266, 0.01
      %v331 = vmul.f32 %v267, 0.01
      %v332 = vmul.f32 %v268, 0.01
      %v333 = vmul.f32 %v269, 0.01
      %v334 = vmul.f32 %v270, 0.01
      %v335 = vmul.f32 %v271, 0.01
      %v336 = vmul.f32 %v272, 0.01
      %v337 = vmul.f32 %v273, 0.01
      %v338 = vmul.f32 %v274, 0.01
      %v339 = vmul.f32 %v275, 0.01
      %v340 = vmul.f32 %v276, 0.01
      %v341 = vmul.f32 %v277, 0.01
      %v342 = vsel %vm278, %v246, %v310
      %v343 = vsel %vm279, %v247, %v311
      %v344 = vsel %vm280, %v248, %v312
      %v345 = vsel %vm281, %v249, %v313
      %v346 = vsel %vm282, %v250, %v314
      %v347 = vsel %vm283, %v251, %v315
      %v348 = vsel %vm284, %v252, %v316
      %v349 = vsel %vm285, %v253, %v317
      %v350 = vsel %vm286, %v254, %v318
      %v351 = vsel %vm287, %v255, %v319
      %v352 = vsel %vm288, %v256, %v320
      %v353 = vsel %vm289, %v257, %v321
      %v354 = vsel %vm290, %v258, %v322
      %v355 = vsel %vm291, %v259, %v323
      %v356 = vsel %vm292, %v260, %v324
      %v357 = vsel %vm293, %v261, %v325
      %v358 = vsel %vm294, %v262, %v326
      %v359 = vsel %vm295, %v263, %v327
      %v360 = vsel %vm296, %v264, %v328
      %v361 = vsel %vm297, %v265, %v329
      %v362 = vsel %vm298, %v266, %v330
      %v363 = vsel %vm299, %v267, %v331
      %v364 = vsel %vm300, %v268, %v332
      %v365 = vsel %vm301, %v269, %v333
      %v366 = vsel %vm302, %v270, %v334
      %v367 = vsel %vm303, %v271, %v335
      %v368 = vsel %vm304, %v272, %v336
      %v369 = vsel %vm305, %v273, %v337
      %v370 = vsel %vm306, %v274, %v338
      %v371 = vsel %vm307, %v275, %v339
      %v372 = vsel %vm308, %v276, %v340
      %v373 = vsel %vm309, %v277, %v341
      %vm374 = vcmask 80896
      %375 = vst.msk [vmem:[%s172] sm:$0xff] %vm374, %v342
      %376 = vst.msk [vmem:[%s172 + $0x8] sm:$0xff] %vm374, %v343
      %377 = vst.msk [vmem:[%s172 + $0x10] sm:$0xff] %vm374, %v344
      %378 = vst.msk [vmem:[%s172 + $0x18] sm:$0xff] %vm374, %v345
      %379 = vst.msk [vmem:[%s172 + $0x20] sm:$0xff] %vm374, %v346
      %380 = vst.msk [vmem:[%s172 + $0x28] sm:$0xff] %vm374, %v347
      %381 = vst.msk [vmem:[%s172 + $0x30] sm:$0xff] %vm374, %v348
      %382 = vst.msk [vmem:[%s172 + $0x38] sm:$0xff] %vm374, %v349
      %383 = vst.msk [vmem:[%s172 + $0x40] sm:$0xff] %vm374, %v350
      %384 = vst.msk [vmem:[%s172 + $0x48] sm:$0xff] %vm374, %v351
      %385 = vst.msk [vmem:[%s172 + $0x50] sm:$0xff] %vm374, %v352
      %386 = vst.msk [vmem:[%s172 + $0x58] sm:$0xff] %vm374, %v353
      %387 = vst.msk [vmem:[%s172 + $0x60] sm:$0xff] %vm374, %v354
      %388 = vst.msk [vmem:[%s172 + $0x68] sm:$0xff] %vm374, %v355
      %389 = vst.msk [vmem:[%s172 + $0x70] sm:$0xff] %vm374, %v356
      %390 = vst.msk [vmem:[%s172 + $0x78] sm:$0xff] %vm374, %v357
      %391 = vst.msk [vmem:[%s172 + $0x80] sm:$0xff] %vm374, %v358
      %392 = vst.msk [vmem:[%s172 + $0x88] sm:$0xff] %vm374, %v359
      %393 = vst.msk [vmem:[%s172 + $0x90] sm:$0xff] %vm374, %v360
      %394 = vst.msk [vmem:[%s172 + $0x98] sm:$0xff] %vm374, %v361
      %395 = vst.msk [vmem:[%s172 + $0xa0] sm:$0xff] %vm374, %v362
      %396 = vst.msk [vmem:[%s172 + $0xa8] sm:$0xff] %vm374, %v363
      %397 = vst.msk [vmem:[%s172 + $0xb0] sm:$0xff] %vm374, %v364
      %398 = vst.msk [vmem:[%s172 + $0xb8] sm:$0xff] %vm374, %v365
      %399 = vst.msk [vmem:[%s172 + $0xc0] sm:$0xff] %vm374, %v366
      %400 = vst.msk [vmem:[%s172 + $0xc8] sm:$0xff] %vm374, %v367
      %401 = vst.msk [vmem:[%s172 + $0xd0] sm:$0xff] %vm374, %v368
      %402 = vst.msk [vmem:[%s172 + $0xd8] sm:$0xff] %vm374, %v369
      %403 = vst.msk [vmem:[%s172 + $0xe0] sm:$0xff] %vm374, %v370
      %404 = vst.msk [vmem:[%s172 + $0xe8] sm:$0xff] %vm374, %v371
      %405 = vst.msk [vmem:[%s172 + $0xf0] sm:$0xff] %vm374, %v372
      %406 = vst.msk [vmem:[%s172 + $0xf8] sm:$0xff] %vm374, %v373
      %s407 = smul.u32 32, %s14
      %p408 = scmp.lt.s32.totalorder %s407, 95
      %s409 = scalar_select %p408, %s407, 95
      %s410 = smul.addr %s409, 8
      %s411 = scalar_lea.vmem %s3, %s410
      // Predicated region
      $region33: #{hcnet_forward.18} parent=31 // pred_check
        %p412 = pneg %p100
      $region34: #{hcnet_forward.18} parent=31 // pred_check_branch
        %414 = sbr.rel (%p412) target = $region36
      $region35: #{hcnet_forward.18} parent=31 // pred_region
        %s415 = smul.u32 32, %s14
      $region36: #{hcnet_forward.18} parent=31 // pred_fallthru
        _
    $region32: #{hcnet_forward.18} parent=5 // pred_fallthru
      _
    %p416 = scmp.le.s32.totalorder 2, %s9
    // Predicated region
    $region37: #{hcnet_forward.18} parent=5 // pred_check
      %p417 = pneg %p416
    $region38: #{hcnet_forward.18} parent=5 // pred_check_branch
      %419 = sbr.rel (%p417) target = $region40
    $region39: #{hcnet_forward.18} parent=5 // pred_region
      %s420 = ssub.s32 %s9, 2
      // Predicated region
      $region41: #{hcnet_forward.18} parent=39 // pred_check
        %p421 = pneg %p106
      $region42: #{hcnet_forward.18} parent=39 // pred_check_branch
        %423 = sbr.rel (%p421) target = $region44
      $region43: #{hcnet_forward.18} parent=39 // pred_region
        %s424 = smul.u32 32, %s15
        %p425 = scmp.lt.s32.totalorder %s424, 95
        %s426 = scalar_select %p425, %s424, 95
        %s427 = smul.addr %s426, 8
        %s428 = scalar_lea.vmem %s3, %s427
      $region44: #{hcnet_forward.18} parent=39 // pred_fallthru
        _
    $region40: #{hcnet_forward.18} parent=5 // pred_fallthru
      _
  $region6: #{hcnet_forward.18} parent=0 // loop_footer
    %s13 = sadd.s32 1, %s9
  $region7: #{hcnet_forward.18} parent=0 // loop_footer_branch
    %8 = sbr.rel target = $region3
  $region8: #{hcnet_forward.18} parent=0 // loop_exit
    _

// kernel: hcnet_forward.17
$region0: #{hcnet_forward.17}
  #allocation0 [shape = 'u32[]', space=smem, size = 0x4, offset = 0x4, fixed_abs, tag = 'smem constant byte address 0x4 - core index']
  #allocation1 [shape = 'u32[72,128]{1,0:T(1,128)}', space=vmem, size = 0x9000, scoped, tag = 'internal scratch']
  #allocation2 [shape = 'f32[256,10]{1,0:T(8,128)}', space=vmem, size = 0x20000, scoped, tag = 'scratch operand']
  %s0 = inlined_call_operand.vmem [shape: bf16[768,128], index: 0, kind: input, shape index: {}]
  %s1 = inlined_call_operand.vmem [shape: bf16[128,10], index: 1, kind: input, shape index: {}]
  %s2 = inlined_call_operand.vmem [shape: f32[768,10], index: 2, kind: output, shape index: {0}]
  %s3 = inlined_call_operand.vmem [shape: f32[24,10], index: 3, kind: output, shape index: {1}]
  %4 = xla_tuple %s2, %s3
  %s5 = sld [smem:[#allocation0]]
  $region57: #{hcnet_forward.17} parent=0
    _
  %s7 = ssub.s32 1, %s5
  %s8 = scalar_select 0, %s7, %s5
  loop: start=0, step=1, limit=5
  $region2: #{hcnet_forward.17} parent=0 // loop_pre_header
    _
  $region3: #{hcnet_forward.17} parent=0 // loop_header
    %s10 = sphi 0, %s14
    %p11 = scmp.ge.s32.totalorder %s10, 5
    %s17 = sphi 0, %s29
    %s18 = sphi 0, %s25
    %s19 = sphi 0, %s17
    %s20 = sphi 0, %s18
    %s21 = sphi 0, %s19
    %s22 = sphi 0, %s20
    %s34 = sphi 0, %s36
    %s37 = sphi 0, %s34
    %s38 = sphi 0, %s37
    %s54 = sphi 0, %s38
    %s60 = sphi 0, %s62
    %s63 = sphi 0, %s60
    %s64 = sphi 0, %s63
    %s80 = sphi 0, %s64
    %s86 = sphi 0, %s88
    %s89 = sphi 0, %s86
    %s90 = sphi 0, %s89
    %s106 = sphi 0, %s90
    %s112 = sphi 0, %s114
    %s115 = sphi 0, %s112
    %s116 = sphi 0, %s115
    %s132 = sphi 0, %s116
  $region4: #{hcnet_forward.17} parent=0 // loop_header_branch
    %13 = sbr.rel (%p11) target = $region8
  $region5: #{hcnet_forward.17} parent=0 // loop_body
    %s15 = ssub.s32 %s10, 1
    %s16 = ssub.s32 %s10, 2
    %s23 = sadd.s32 1, %s18
    %p24 = scmp.ge.s32.totalorder %s23, 1
    %s25 = scalar_select %p24, 0, %s23
    %s26 = sadd.s32 1, %s17
    %s27 = scalar_select %p24, %s26, %s17
    %p28 = scmp.ge.s32.totalorder %s27, 3
    %s29 = scalar_select %p28, 0, %s27
    %s30 = ssub.s32 %s17, %s29
    %s31 = ssub.s32 %s18, %s25
    %s32 = sor.u32 %s30, %s31
    %p33 = scmp.eq.s32.totalorder %s32, 0
    %s35 = sadd.s32 %s34, 1
    %s36 = scalar_select %p33, %s34, %s35
    %p39 = pneg %p33
    %p40 = scmp.eq.s32.totalorder %s10, 2
    %p41 = por %p39, %p40
    %p42 = scmp.ne.s32.totalorder %s34, %s37
    %p43 = scmp.eq.s32.totalorder %s10, 0
    %p44 = por %p42, %p43
    %p45 = scmp.ne.s32.totalorder %s34, %s37
    %p46 = scmp.eq.s32.totalorder %s15, 2
    %p47 = por %p45, %p46
    %p48 = scmp.ne.s32.totalorder %s37, %s38
    %p49 = scmp.eq.s32.totalorder %s15, 0
    %p50 = por %p48, %p49
    %p51 = scmp.ne.s32.totalorder %s37, %s38
    %p52 = scmp.eq.s32.totalorder %s16, 2
    %p53 = por %p51, %p52
    %p55 = scmp.ne.s32.totalorder %s38, %s54
    %p56 = scmp.eq.s32.totalorder %s16, 0
    %p57 = por %p55, %p56
    %s58 = ssub.s32 %s18, %s25
    %p59 = scmp.eq.s32.totalorder %s58, 0
    %s61 = sadd.s32 %s60, 1
    %s62 = scalar_select %p59, %s60, %s61
    %p65 = pneg %p59
    %p66 = scmp.eq.s32.totalorder %s10, 2
    %p67 = por %p65, %p66
    %p68 = scmp.ne.s32.totalorder %s60, %s63
    %p69 = scmp.eq.s32.totalorder %s10, 0
    %p70 = por %p68, %p69
    %p71 = scmp.ne.s32.totalorder %s60, %s63
    %p72 = scmp.eq.s32.totalorder %s15, 2
    %p73 = por %p71, %p72
    %p74 = scmp.ne.s32.totalorder %s63, %s64
    %p75 = scmp.eq.s32.totalorder %s15, 0
    %p76 = por %p74, %p75
    %p77 = scmp.ne.s32.totalorder %s63, %s64
    %p78 = scmp.eq.s32.totalorder %s16, 2
    %p79 = por %p77, %p78
    %p81 = scmp.ne.s32.totalorder %s64, %s80
    %p82 = scmp.eq.s32.totalorder %s16, 0
    %p83 = por %p81, %p82
    %s84 = ssub.s32 %s17, %s29
    %p85 = scmp.eq.s32.totalorder %s84, 0
    %s87 = sadd.s32 %s86, 1
    %s88 = scalar_select %p85, %s86, %s87
    %p91 = pneg %p85
    %p92 = scmp.eq.s32.totalorder %s10, 2
    %p93 = por %p91, %p92
    %p94 = scmp.ne.s32.totalorder %s86, %s89
    %p95 = scmp.eq.s32.totalorder %s10, 0
    %p96 = por %p94, %p95
    %p97 = scmp.ne.s32.totalorder %s86, %s89
    %p98 = scmp.eq.s32.totalorder %s15, 2
    %p99 = por %p97, %p98
    %p100 = scmp.ne.s32.totalorder %s89, %s90
    %p101 = scmp.eq.s32.totalorder %s15, 0
    %p102 = por %p100, %p101
    %p103 = scmp.ne.s32.totalorder %s89, %s90
    %p104 = scmp.eq.s32.totalorder %s16, 2
    %p105 = por %p103, %p104
    %p107 = scmp.ne.s32.totalorder %s90, %s106
    %p108 = scmp.eq.s32.totalorder %s16, 0
    %p109 = por %p107, %p108
    %s110 = ssub.s32 %s17, %s29
    %p111 = scmp.eq.s32.totalorder %s110, 0
    %s113 = sadd.s32 %s112, 1
    %s114 = scalar_select %p111, %s112, %s113
    %p117 = pneg %p111
    %p118 = scmp.eq.s32.totalorder %s10, 2
    %p119 = por %p117, %p118
    %p120 = scmp.ne.s32.totalorder %s112, %s115
    %p121 = scmp.eq.s32.totalorder %s10, 0
    %p122 = por %p120, %p121
    %p123 = scmp.ne.s32.totalorder %s112, %s115
    %p124 = scmp.eq.s32.totalorder %s15, 2
    %p125 = por %p123, %p124
    %p126 = scmp.ne.s32.totalorder %s115, %s116
    %p127 = scmp.eq.s32.totalorder %s15, 0
    %p128 = por %p126, %p127
    %p129 = scmp.ne.s32.totalorder %s115, %s116
    %p130 = scmp.eq.s32.totalorder %s16, 2
    %p131 = por %p129, %p130
    %p133 = scmp.ne.s32.totalorder %s116, %s132
    %p134 = scmp.eq.s32.totalorder %s16, 0
    %p135 = por %p133, %p134
    %p136 = scmp.le.s32.totalorder 1, %s10
    %p137 = scmp.lt.s32.totalorder %s10, 4
    %p138 = pnand %p136, %p137
    %p139 = pneg %p138
    // Predicated region
    $region9: #{hcnet_forward.17} parent=5 // pred_check
      _
    $region10: #{hcnet_forward.17} parent=5 // pred_check_branch
      %141 = sbr.rel (%p138) target = $region12
    $region11: #{hcnet_forward.17} parent=5 // pred_region
      %s142 = ssub.s32 %s10, 1
      // Predicated region
      $region13: #{hcnet_forward.17} parent=11 // pred_check
        %p143 = pneg %p76
      $region14: #{hcnet_forward.17} parent=11 // pred_check_branch
        %145 = sbr.rel (%p143) target = $region16
      $region15: #{hcnet_forward.17} parent=11 // pred_region
        %s146 = smul.u32 16, %s20
        %p147 = scmp.lt.s32.totalorder %s146, 15
        %s148 = scalar_select %p147, %s146, 15
        %s149 = smul.addr %s148, 4
        %s150 = scalar_lea.vmem %s1, %s149
        %s151 = smul.u32 16, %s20
      $region16: #{hcnet_forward.17} parent=11 // pred_fallthru
        _
    $region12: #{hcnet_forward.17} parent=5 // pred_fallthru
      _
    %p152 = scmp.lt.s32.totalorder %s10, 3
    // Predicated region
    $region17: #{hcnet_forward.17} parent=5 // pred_check
      %p153 = pneg %p152
    $region18: #{hcnet_forward.17} parent=5 // pred_check_branch
      %155 = sbr.rel (%p153) target = $region20
    $region19: #{hcnet_forward.17} parent=5 // pred_region
      // Predicated region
      $region21: #{hcnet_forward.17} parent=19 // pred_check
        %p156 = pneg %p44
      $region22: #{hcnet_forward.17} parent=19 // pred_check_branch
        %158 = sbr.rel (%p156) target = $region24
      $region23: #{hcnet_forward.17} parent=19 // pred_region
        %s159 = smul.u32 32, %s17
        %p160 = scmp.lt.s32.totalorder %s159, 95
        %s161 = scalar_select %p160, %s159, 95
        %p162 = scmp.lt.s32.totalorder %s18, 0
        %s163 = scalar_select %p162, %s18, 0
        %s164 = sadd.s32 %s163, %s161
        %s165 = smul.addr %s164, 4
        %s166 = scalar_lea.vmem %s0, %s165
        %s167 = smul.u32 32, %s17
      $region24: #{hcnet_forward.17} parent=19 // pred_fallthru
        _
    $region20: #{hcnet_forward.17} parent=5 // pred_fallthru
      _
    %p168 = scmp.le.s32.totalorder 1, %s10
    %p169 = scmp.lt.s32.totalorder %s10, 4
    %p170 = pnand %p168, %p169
    %p171 = pneg %p170
    // Predicated region
    $region25: #{hcnet_forward.17} parent=5 // pred_check
      _
    $region26: #{hcnet_forward.17} parent=5 // pred_check_branch
      %173 = sbr.rel (%p170) target = $region28
    $region27: #{hcnet_forward.17} parent=5 // pred_region
      %s174 = ssub.s32 %s10, 1
      %s175 = smul.u32 32, %s19
      %p176 = scmp.lt.s32.totalorder %s175, 95
      %s177 = scalar_select %p176, %s175, 95
      %p178 = scmp.lt.s32.totalorder %s20, 0
      %s179 = scalar_select %p178, %s20, 0
      %s180 = sadd.s32 %s179, %s177
      %s181 = smul.addr %s180, 4
      %s182 = scalar_lea.vmem %s0, %s181
      %p183 = pneg %p50
      %p184 = pneg %p47
      %s185 = smul.u32 16, %s20
      %p186 = scmp.lt.s32.totalorder %s185, 15
      %s187 = scalar_select %p186, %s185, 15
      %s188 = smul.addr %s187, 4
      %s189 = scalar_lea.vmem %s1, %s188
      %p190 = pneg %p76
      %p191 = pneg %p73
      %p192 = pneg %p102
      %p193 = pneg %p99
      %s194 = smul.u32 32, %s19
      %p195 = scmp.lt.s32.totalorder %s194, 95
      %s196 = scalar_select %p195, %s194, 95
      %s197 = smul.addr %s196, 8
      %s198 = scalar_lea.vmem %s2, %s197
      %p199 = pneg %p128
      %p200 = pneg %p125
      %p201 = scmp.lt.s32.totalorder %s19, 2
      %s202 = scalar_select %p201, %s19, 2
      %s203 = smul.addr %s202, 8
      %s204 = scalar_lea.vmem %s3, %s203
      %s205 = smul.u32 32, %s19
      %p206 = scmp.lt.s32.totalorder %s205, 95
      %s207 = scalar_select %p206, %s205, 95
      %p208 = scmp.lt.s32.totalorder %s20, 0
      %s209 = scalar_select %p208, %s20, 0
      %s210 = sadd.s32 %s209, %s207
      %s211 = smul.addr %s210, 4
      %s212 = scalar_lea.vmem %s0, %s211
      %s213 = smul.u32 32, %s19
      %s214 = smul.u32 16, %s20
      %p215 = scmp.lt.s32.totalorder %s214, 15
      %s216 = scalar_select %p215, %s214, 15
      %s217 = smul.addr %s216, 4
      %s218 = scalar_lea.vmem %s1, %s217
      %s219 = smul.u32 16, %s20
      %s220 = smul.u32 32, %s19
      %p221 = scmp.lt.s32.totalorder %s220, 95
      %s222 = scalar_select %p221, %s220, 95
      %s223 = smul.addr %s222, 8
      %s224 = scalar_lea.vmem %s2, %s223
      %s225 = smul.u32 32, %s19
      %p226 = scmp.lt.s32.totalorder %s19, 2
      %s227 = scalar_select %p226, %s19, 2
      %s228 = smul.addr %s227, 8
      %s229 = scalar_lea.vmem %s3, %s228
      %p230 = scmp.eq.s32.totalorder %s20, 0
      // Predicated region
      $region29: #{hcnet_forward.17} parent=27 // pred_check
        %p231 = pneg %p230
      $region30: #{hcnet_forward.17} parent=27 // pred_check_branch
        %233 = sbr.rel (%p231) target = $region32
      $region31: #{hcnet_forward.17} parent=27 // pred_region
        %vm234 = vcmask 80896
        %235 = vst.msk [vmem:[#allocation2] sm:$0xff] %vm234, 0.0
        %236 = vst.msk [vmem:[#allocation2 + $0x8] sm:$0xff] %vm234, 0.0
        %237 = vst.msk [vmem:[#allocation2 + $0x10] sm:$0xff] %vm234, 0.0
        %238 = vst.msk [vmem:[#allocation2 + $0x18] sm:$0xff] %vm234, 0.0
        %239 = vst.msk [vmem:[#allocation2 + $0x20] sm:$0xff] %vm234, 0.0
        %240 = vst.msk [vmem:[#allocation2 + $0x28] sm:$0xff] %vm234, 0.0
        %241 = vst.msk [vmem:[#allocation2 + $0x30] sm:$0xff] %vm234, 0.0
        %242 = vst.msk [vmem:[#allocation2 + $0x38] sm:$0xff] %vm234, 0.0
        %243 = vst.msk [vmem:[#allocation2 + $0x40] sm:$0xff] %vm234, 0.0
        %244 = vst.msk [vmem:[#allocation2 + $0x48] sm:$0xff] %vm234, 0.0
        %245 = vst.msk [vmem:[#allocation2 + $0x50] sm:$0xff] %vm234, 0.0
        %246 = vst.msk [vmem:[#allocation2 + $0x58] sm:$0xff] %vm234, 0.0
        %247 = vst.msk [vmem:[#allocation2 + $0x60] sm:$0xff] %vm234, 0.0
        %248 = vst.msk [vmem:[#allocation2 + $0x68] sm:$0xff] %vm234, 0.0
        %249 = vst.msk [vmem:[#allocation2 + $0x70] sm:$0xff] %vm234, 0.0
        %250 = vst.msk [vmem:[#allocation2 + $0x78] sm:$0xff] %vm234, 0.0
        %251 = vst.msk [vmem:[#allocation2 + $0x80] sm:$0xff] %vm234, 0.0
        %252 = vst.msk [vmem:[#allocation2 + $0x88] sm:$0xff] %vm234, 0.0
        %253 = vst.msk [vmem:[#allocation2 + $0x90] sm:$0xff] %vm234, 0.0
        %254 = vst.msk [vmem:[#allocation2 + $0x98] sm:$0xff] %vm234, 0.0
        %255 = vst.msk [vmem:[#allocation2 + $0xa0] sm:$0xff] %vm234, 0.0
        %256 = vst.msk [vmem:[#allocation2 + $0xa8] sm:$0xff] %vm234, 0.0
        %257 = vst.msk [vmem:[#allocation2 + $0xb0] sm:$0xff] %vm234, 0.0
        %258 = vst.msk [vmem:[#allocation2 + $0xb8] sm:$0xff] %vm234, 0.0
        %259 = vst.msk [vmem:[#allocation2 + $0xc0] sm:$0xff] %vm234, 0.0
        %260 = vst.msk [vmem:[#allocation2 + $0xc8] sm:$0xff] %vm234, 0.0
        %261 = vst.msk [vmem:[#allocation2 + $0xd0] sm:$0xff] %vm234, 0.0
        %262 = vst.msk [vmem:[#allocation2 + $0xd8] sm:$0xff] %vm234, 0.0
        %263 = vst.msk [vmem:[#allocation2 + $0xe0] sm:$0xff] %vm234, 0.0
        %264 = vst.msk [vmem:[#allocation2 + $0xe8] sm:$0xff] %vm234, 0.0
        %265 = vst.msk [vmem:[#allocation2 + $0xf0] sm:$0xff] %vm234, 0.0
        %266 = vst.msk [vmem:[#allocation2 + $0xf8] sm:$0xff] %vm234, 0.0
      $region32: #{hcnet_forward.17} parent=27 // pred_fallthru
        _
      %v267 = vld [vmem:[#allocation2] sm:$0xff]
      %v268 = vld [vmem:[#allocation2 + $0x8] sm:$0xff]
      %v269 = vld [vmem:[#allocation2 + $0x10] sm:$0xff]
      %v270 = vld [vmem:[#allocation2 + $0x18] sm:$0xff]
      %v271 = vld [vmem:[#allocation2 + $0x20] sm:$0xff]
      %v272 = vld [vmem:[#allocation2 + $0x28] sm:$0xff]
      %v273 = vld [vmem:[#allocation2 + $0x30] sm:$0xff]
      %v274 = vld [vmem:[#allocation2 + $0x38] sm:$0xff]
      %v275 = vld [vmem:[#allocation2 + $0x40] sm:$0xff]
      %v276 = vld [vmem:[#allocation2 + $0x48] sm:$0xff]
      %v277 = vld [vmem:[#allocation2 + $0x50] sm:$0xff]
      %v278 = vld [vmem:[#allocation2 + $0x58] sm:$0xff]
      %v279 = vld [vmem:[#allocation2 + $0x60] sm:$0xff]
      %v280 = vld [vmem:[#allocation2 + $0x68] sm:$0xff]
      %v281 = vld [vmem:[#allocation2 + $0x70] sm:$0xff]
      %v282 = vld [vmem:[#allocation2 + $0x78] sm:$0xff]
      %v283 = vld [vmem:[#allocation2 + $0x80] sm:$0xff]
      %v284 = vld [vmem:[#allocation2 + $0x88] sm:$0xff]
      %v285 = vld [vmem:[#allocation2 + $0x90] sm:$0xff]
      %v286 = vld [vmem:[#allocation2 + $0x98] sm:$0xff]
      %v287 = vld [vmem:[#allocation2 + $0xa0] sm:$0xff]
      %v288 = vld [vmem:[#allocation2 + $0xa8] sm:$0xff]
      %v289 = vld [vmem:[#allocation2 + $0xb0] sm:$0xff]
      %v290 = vld [vmem:[#allocation2 + $0xb8] sm:$0xff]
      %v291 = vld [vmem:[#allocation2 + $0xc0] sm:$0xff]
      %v292 = vld [vmem:[#allocation2 + $0xc8] sm:$0xff]
      %v293 = vld [vmem:[#allocation2 + $0xd0] sm:$0xff]
      %v294 = vld [vmem:[#allocation2 + $0xd8] sm:$0xff]
      %v295 = vld [vmem:[#allocation2 + $0xe0] sm:$0xff]
      %v296 = vld [vmem:[#allocation2 + $0xe8] sm:$0xff]
      %v297 = vld [vmem:[#allocation2 + $0xf0] sm:$0xff]
      %v298 = vld [vmem:[#allocation2 + $0xf8] sm:$0xff]
      %v299 = vld [vmem:[%s212] sm:$0xf]
      %v300 = vld [vmem:[%s212 + $0x4] sm:$0xf]
      %v301 = vld [vmem:[%s212 + $0x8] sm:$0xf]
      %v302 = vld [vmem:[%s212 + $0xc] sm:$0xf]
      %v303 = vld [vmem:[%s212 + $0x10] sm:$0xf]
      %v304 = vld [vmem:[%s212 + $0x14] sm:$0xf]
      %v305 = vld [vmem:[%s212 + $0x18] sm:$0xf]
      %v306 = vld [vmem:[%s212 + $0x1c] sm:$0xf]
      %v307 = vld [vmem:[%s212 + $0x20] sm:$0xf]
      %v308 = vld [vmem:[%s212 + $0x24] sm:$0xf]
      %v309 = vld [vmem:[%s212 + $0x28] sm:$0xf]
      %v310 = vld [vmem:[%s212 + $0x2c] sm:$0xf]
      %v311 = vld [vmem:[%s212 + $0x30] sm:$0xf]
      %v312 = vld [vmem:[%s212 + $0x34] sm:$0xf]
      %v313 = vld [vmem:[%s212 + $0x38] sm:$0xf]
      %v314 = vld [vmem:[%s212 + $0x3c] sm:$0xf]
      %v315 = vld [vmem:[%s212 + $0x40] sm:$0xf]
      %v316 = vld [vmem:[%s212 + $0x44] sm:$0xf]
      %v317 = vld [vmem:[%s212 + $0x48] sm:$0xf]
      %v318 = vld [vmem:[%s212 + $0x4c] sm:$0xf]
      %v319 = vld [vmem:[%s212 + $0x50] sm:$0xf]
      %v320 = vld [vmem:[%s212 + $0x54] sm:$0xf]
      %v321 = vld [vmem:[%s212 + $0x58] sm:$0xf]
      %v322 = vld [vmem:[%s212 + $0x5c] sm:$0xf]
      %v323 = vld [vmem:[%s212 + $0x60] sm:$0xf]
      %v324 = vld [vmem:[%s212 + $0x64] sm:$0xf]
      %v325 = vld [vmem:[%s212 + $0x68] sm:$0xf]
      %v326 = vld [vmem:[%s212 + $0x6c] sm:$0xf]
      %v327 = vld [vmem:[%s212 + $0x70] sm:$0xf]
      %v328 = vld [vmem:[%s212 + $0x74] sm:$0xf]
      %v329 = vld [vmem:[%s212 + $0x78] sm:$0xf]
      %v330 = vld [vmem:[%s212 + $0x7c] sm:$0xf]
      %v331 = vld [vmem:[%s218] sm:$0xf]
      %v332 = vld [vmem:[%s218 + $0x4] sm:$0xf]
      %v333 = vld [vmem:[%s218 + $0x8] sm:$0xf]
      %v334 = vld [vmem:[%s218 + $0xc] sm:$0xf]
      %v335 = vld [vmem:[%s218 + $0x10] sm:$0xf]
      %v336 = vld [vmem:[%s218 + $0x14] sm:$0xf]
      %v337 = vld [vmem:[%s218 + $0x18] sm:$0xf]
      %v338 = vld [vmem:[%s218 + $0x1c] sm:$0xf]
      %v339 = vld [vmem:[%s218 + $0x20] sm:$0xf]
      %v340 = vld [vmem:[%s218 + $0x24] sm:$0xf]
      %v341 = vld [vmem:[%s218 + $0x28] sm:$0xf]
      %v342 = vld [vmem:[%s218 + $0x2c] sm:$0xf]
      %v343 = vld [vmem:[%s218 + $0x30] sm:$0xf]
      %v344 = vld [vmem:[%s218 + $0x34] sm:$0xf]
      %v345 = vld [vmem:[%s218 + $0x38] sm:$0xf]
      %v346 = vld [vmem:[%s218 + $0x3c] sm:$0xf]
      %v379 = vunpack.c.l.b16 %v299
      %v380 = vunpack.c.l.b16 %v300
      %v381 = vunpack.c.l.b16 %v301
      %v382 = vunpack.c.l.b16 %v302
      %v383 = vunpack.c.l.b16 %v303
      %v384 = vunpack.c.l.b16 %v304
      %v385 = vunpack.c.l.b16 %v305
      %v386 = vunpack.c.l.b16 %v306
      %v387 = vunpack.c.l.b16 %v307
      %v388 = vunpack.c.l.b16 %v308
      %v389 = vunpack.c.l.b16 %v309
      %v390 = vunpack.c.l.b16 %v310
      %v391 = vunpack.c.l.b16 %v311
      %v392 = vunpack.c.l.b16 %v312
      %v393 = vunpack.c.l.b16 %v313
      %v394 = vunpack.c.l.b16 %v314
      %v395 = vunpack.c.l.b16 %v315
      %v396 = vunpack.c.l.b16 %v316
      %v397 = vunpack.c.l.b16 %v317
      %v398 = vunpack.c.l.b16 %v318
      %v399 = vunpack.c.l.b16 %v319
      %v400 = vunpack.c.l.b16 %v320
      %v401 = vunpack.c.l.b16 %v321
      %v402 = vunpack.c.l.b16 %v322
      %v403 = vunpack.c.l.b16 %v323
      %v404 = vunpack.c.l.b16 %v324
      %v405 = vunpack.c.l.b16 %v325
      %v406 = vunpack.c.l.b16 %v326
      %v407 = vunpack.c.l.b16 %v327
      %v408 = vunpack.c.l.b16 %v328
      %v409 = vunpack.c.l.b16 %v329
      %v410 = vunpack.c.l.b16 %v330
      %v411 = vpack.c.b16 %v380, %v379
      %v412 = vpack.c.b16 %v382, %v381
      %v413 = vpack.c.b16 %v384, %v383
      %v414 = vpack.c.b16 %v386, %v385
      %v415 = vpack.c.b16 %v388, %v387
      %v416 = vpack.c.b16 %v390, %v389
      %v417 = vpack.c.b16 %v392, %v391
      %v418 = vpack.c.b16 %v394, %v393
      %v419 = vpack.c.b16 %v396, %v395
      %v420 = vpack.c.b16 %v398, %v397
      %v421 = vpack.c.b16 %v400, %v399
      %v422 = vpack.c.b16 %v402, %v401
      %v423 = vpack.c.b16 %v404, %v403
      %v424 = vpack.c.b16 %v406, %v405
      %v425 = vpack.c.b16 %v408, %v407
      %v426 = vpack.c.b16 %v410, %v409
      %v459 = vunpack.c.l.b16 %v331
      %v460 = vunpack.c.l.b16 %v332
      %v461 = vunpack.c.l.b16 %v333
      %v462 = vunpack.c.l.b16 %v334
      %v463 = vunpack.c.l.b16 %v335
      %v464 = vunpack.c.l.b16 %v336
      %v465 = vunpack.c.l.b16 %v337
      %v466 = vunpack.c.l.b16 %v338
      %v467 = vunpack.c.l.b16 %v339
      %v468 = vunpack.c.l.b16 %v340
      %v469 = vunpack.c.l.b16 %v341
      %v470 = vunpack.c.l.b16 %v342
      %v471 = vunpack.c.l.b16 %v343
      %v472 = vunpack.c.l.b16 %v344
      %v473 = vunpack.c.l.b16 %v345
      %v474 = vunpack.c.l.b16 %v346
      %v475 = vpack.c.b16 %v460, %v459
      %v476 = vpack.c.b16 %v462, %v461
      %v477 = vpack.c.b16 %v464, %v463
      %v478 = vpack.c.b16 %v466, %v465
      %v479 = vpack.c.b16 %v468, %v467
      %v480 = vpack.c.b16 %v470, %v469
      %v481 = vpack.c.b16 %v472, %v471
      %v482 = vpack.c.b16 %v474, %v473
      %491 = vmatpush.bf16.msra.mxu0 %v482
      %492 = vmatpush.bf16.msra.mxu0 %v481
      %493 = vmatpush.bf16.msra.mxu0 %v480
      %494 = vmatpush.bf16.msra.mxu0 %v479
      %495 = vmatpush.bf16.msra.mxu0 %v478
      %496 = vmatpush.bf16.msra.mxu0 %v477
      %497 = vmatpush.bf16.msra.mxu0 %v476
      %498 = vmatpush.bf16.msra.mxu0 %v475
      %499 = vmatmul.bf16.gmra.mxu0 %v411
      %v500 = vpop.f32.mrf.mxu0
      %v501 = vadd.f32 0.0, %v500
      %v502 = vpop.f32.mrf.mxu0
      %v503 = vadd.f32 0.0, %v502
      %504 = vmatmul.bf16.gmra.mxu0 %v412
      %v505 = vpop.f32.mrf.mxu0
      %v506 = vadd.f32 0.0, %v505
      %v507 = vpop.f32.mrf.mxu0
      %v508 = vadd.f32 0.0, %v507
      %509 = vmatmul.bf16.gmra.mxu0 %v413
      %v510 = vpop.f32.mrf.mxu0
      %v511 = vadd.f32 0.0, %v510
      %v512 = vpop.f32.mrf.mxu0
      %v513 = vadd.f32 0.0, %v512
      %514 = vmatmul.bf16.gmra.mxu0 %v414
      %v515 = vpop.f32.mrf.mxu0
      %v516 = vadd.f32 0.0, %v515
      %v517 = vpop.f32.mrf.mxu0
      %v518 = vadd.f32 0.0, %v517
      %519 = vmatmul.bf16.gmra.mxu0 %v415
      %v520 = vpop.f32.mrf.mxu0
      %v521 = vadd.f32 0.0, %v520
      %v522 = vpop.f32.mrf.mxu0
      %v523 = vadd.f32 0.0, %v522
      %524 = vmatmul.bf16.gmra.mxu0 %v416
      %v525 = vpop.f32.mrf.mxu0
      %v526 = vadd.f32 0.0, %v525
      %v527 = vpop.f32.mrf.mxu0
      %v528 = vadd.f32 0.0, %v527
      %529 = vmatmul.bf16.gmra.mxu0 %v417
      %v530 = vpop.f32.mrf.mxu0
      %v531 = vadd.f32 0.0, %v530
      %v532 = vpop.f32.mrf.mxu0
      %v533 = vadd.f32 0.0, %v532
      %534 = vmatmul.bf16.gmra.mxu0 %v418
      %v535 = vpop.f32.mrf.mxu0
      %v536 = vadd.f32 0.0, %v535
      %v537 = vpop.f32.mrf.mxu0
      %v538 = vadd.f32 0.0, %v537
      %539 = vmatmul.bf16.gmra.mxu0 %v419
      %v540 = vpop.f32.mrf.mxu0
      %v541 = vadd.f32 0.0, %v540
      %v542 = vpop.f32.mrf.mxu0
      %v543 = vadd.f32 0.0, %v542
      %544 = vmatmul.bf16.gmra.mxu0 %v420
      %v545 = vpop.f32.mrf.mxu0
      %v546 = vadd.f32 0.0, %v545
      %v547 = vpop.f32.mrf.mxu0
      %v548 = vadd.f32 0.0, %v547
      %549 = vmatmul.bf16.gmra.mxu0 %v421
      %v550 = vpop.f32.mrf.mxu0
      %v551 = vadd.f32 0.0, %v550
      %v552 = vpop.f32.mrf.mxu0
      %v553 = vadd.f32 0.0, %v552
      %554 = vmatmul.bf16.gmra.mxu0 %v422
      %v555 = vpop.f32.mrf.mxu0
      %v556 = vadd.f32 0.0, %v555
      %v557 = vpop.f32.mrf.mxu0
      %v558 = vadd.f32 0.0, %v557
      %559 = vmatmul.bf16.gmra.mxu0 %v423
      %v560 = vpop.f32.mrf.mxu0
      %v561 = vadd.f32 0.0, %v560
      %v562 = vpop.f32.mrf.mxu0
      %v563 = vadd.f32 0.0, %v562
      %564 = vmatmul.bf16.gmra.mxu0 %v424
      %v565 = vpop.f32.mrf.mxu0
      %v566 = vadd.f32 0.0, %v565
      %v567 = vpop.f32.mrf.mxu0
      %v568 = vadd.f32 0.0, %v567
      %569 = vmatmul.bf16.gmra.mxu0 %v425
      %v570 = vpop.f32.mrf.mxu0
      %v571 = vadd.f32 0.0, %v570
      %v572 = vpop.f32.mrf.mxu0
      %v573 = vadd.f32 0.0, %v572
      %574 = vmatmul.bf16.gmra.mxu0 %v426
      %v575 = vpop.f32.mrf.mxu0
      %v576 = vadd.f32 0.0, %v575
      %v577 = vpop.f32.mrf.mxu0
      %v578 = vadd.f32 0.0, %v577
      %579 = vdwg.mxu0
      %v580 = vadd.f32 %v267, %v501
      %v581 = vadd.f32 %v268, %v503
      %v582 = vadd.f32 %v269, %v506
      %v583 = vadd.f32 %v270, %v508
      %v584 = vadd.f32 %v271, %v511
      %v585 = vadd.f32 %v272, %v513
      %v586 = vadd.f32 %v273, %v516
      %v587 = vadd.f32 %v274, %v518
      %v588 = vadd.f32 %v275, %v521
      %v589 = vadd.f32 %v276, %v523
      %v590 = vadd.f32 %v277, %v526
      %v591 = vadd.f32 %v278, %v528
      %v592 = vadd.f32 %v279, %v531
      %v593 = vadd.f32 %v280, %v533
      %v594 = vadd.f32 %v281, %v536
      %v595 = vadd.f32 %v282, %v538
      %v596 = vadd.f32 %v283, %v541
      %v597 = vadd.f32 %v284, %v543
      %v598 = vadd.f32 %v285, %v546
      %v599 = vadd.f32 %v286, %v548
      %v600 = vadd.f32 %v287, %v551
      %v601 = vadd.f32 %v288, %v553
      %v602 = vadd.f32 %v289, %v556
      %v603 = vadd.f32 %v290, %v558
      %v604 = vadd.f32 %v291, %v561
      %v605 = vadd.f32 %v292, %v563
      %v606 = vadd.f32 %v293, %v566
      %v607 = vadd.f32 %v294, %v568
      %v608 = vadd.f32 %v295, %v571
      %v609 = vadd.f32 %v296, %v573
      %v610 = vadd.f32 %v297, %v576
      %v611 = vadd.f32 %v298, %v578
      %vm612 = vcmask 80896
      %613 = vst.msk [vmem:[#allocation2] sm:$0xff] %vm612, %v580
      %614 = vst.msk [vmem:[#allocation2 + $0x8] sm:$0xff] %vm612, %v581
      %615 = vst.msk [vmem:[#allocation2 + $0x10] sm:$0xff] %vm612, %v582
      %616 = vst.msk [vmem:[#allocation2 + $0x18] sm:$0xff] %vm612, %v583
      %617 = vst.msk [vmem:[#allocation2 + $0x20] sm:$0xff] %vm612, %v584
      %618 = vst.msk [vmem:[#allocation2 + $0x28] sm:$0xff] %vm612, %v585
      %619 = vst.msk [vmem:[#allocation2 + $0x30] sm:$0xff] %vm612, %v586
      %620 = vst.msk [vmem:[#allocation2 + $0x38] sm:$0xff] %vm612, %v587
      %621 = vst.msk [vmem:[#allocation2 + $0x40] sm:$0xff] %vm612, %v588
      %622 = vst.msk [vmem:[#allocation2 + $0x48] sm:$0xff] %vm612, %v589
      %623 = vst.msk [vmem:[#allocation2 + $0x50] sm:$0xff] %vm612, %v590
      %624 = vst.msk [vmem:[#allocation2 + $0x58] sm:$0xff] %vm612, %v591
      %625 = vst.msk [vmem:[#allocation2 + $0x60] sm:$0xff] %vm612, %v592
      %626 = vst.msk [vmem:[#allocation2 + $0x68] sm:$0xff] %vm612, %v593
      %627 = vst.msk [vmem:[#allocation2 + $0x70] sm:$0xff] %vm612, %v594
      %628 = vst.msk [vmem:[#allocation2 + $0x78] sm:$0xff] %vm612, %v595
      %629 = vst.msk [vmem:[#allocation2 + $0x80] sm:$0xff] %vm612, %v596
      %630 = vst.msk [vmem:[#allocation2 + $0x88] sm:$0xff] %vm612, %v597
      %631 = vst.msk [vmem:[#allocation2 + $0x90] sm:$0xff] %vm612, %v598
      %632 = vst.msk [vmem:[#allocation2 + $0x98] sm:$0xff] %vm612, %v599
      %633 = vst.msk [vmem:[#allocation2 + $0xa0] sm:$0xff] %vm612, %v600
      %634 = vst.msk [vmem:[#allocation2 + $0xa8] sm:$0xff] %vm612, %v601
      %635 = vst.msk [vmem:[#allocation2 + $0xb0] sm:$0xff] %vm612, %v602
      %636 = vst.msk [vmem:[#allocation2 + $0xb8] sm:$0xff] %vm612, %v603
      %637 = vst.msk [vmem:[#allocation2 + $0xc0] sm:$0xff] %vm612, %v604
      %638 = vst.msk [vmem:[#allocation2 + $0xc8] sm:$0xff] %vm612, %v605
      %639 = vst.msk [vmem:[#allocation2 + $0xd0] sm:$0xff] %vm612, %v606
      %640 = vst.msk [vmem:[#allocation2 + $0xd8] sm:$0xff] %vm612, %v607
      %641 = vst.msk [vmem:[#allocation2 + $0xe0] sm:$0xff] %vm612, %v608
      %642 = vst.msk [vmem:[#allocation2 + $0xe8] sm:$0xff] %vm612, %v609
      %643 = vst.msk [vmem:[#allocation2 + $0xf0] sm:$0xff] %vm612, %v610
      %644 = vst.msk [vmem:[#allocation2 + $0xf8] sm:$0xff] %vm612, %v611
      // Predicated region
      $region33: #{hcnet_forward.17} parent=27 // pred_check
        %p645 = pneg %p230
      $region34: #{hcnet_forward.17} parent=27 // pred_check_branch
        %647 = sbr.rel (%p645) target = $region36
      $region35: #{hcnet_forward.17} parent=27 // pred_region
        %v648 = vld [vmem:[#allocation2] sm:$0xff]
        %v649 = vld [vmem:[#allocation2 + $0x8] sm:$0xff]
        %v650 = vld [vmem:[#allocation2 + $0x10] sm:$0xff]
        %v651 = vld [vmem:[#allocation2 + $0x18] sm:$0xff]
        %v652 = vld [vmem:[#allocation2 + $0x20] sm:$0xff]
        %v653 = vld [vmem:[#allocation2 + $0x28] sm:$0xff]
        %v654 = vld [vmem:[#allocation2 + $0x30] sm:$0xff]
        %v655 = vld [vmem:[#allocation2 + $0x38] sm:$0xff]
        %v656 = vld [vmem:[#allocation2 + $0x40] sm:$0xff]
        %v657 = vld [vmem:[#allocation2 + $0x48] sm:$0xff]
        %v658 = vld [vmem:[#allocation2 + $0x50] sm:$0xff]
        %v659 = vld [vmem:[#allocation2 + $0x58] sm:$0xff]
        %v660 = vld [vmem:[#allocation2 + $0x60] sm:$0xff]
        %v661 = vld [vmem:[#allocation2 + $0x68] sm:$0xff]
        %v662 = vld [vmem:[#allocation2 + $0x70] sm:$0xff]
        %v663 = vld [vmem:[#allocation2 + $0x78] sm:$0xff]
        %v664 = vld [vmem:[#allocation2 + $0x80] sm:$0xff]
        %v665 = vld [vmem:[#allocation2 + $0x88] sm:$0xff]
        %v666 = vld [vmem:[#allocation2 + $0x90] sm:$0xff]
        %v667 = vld [vmem:[#allocation2 + $0x98] sm:$0xff]
        %v668 = vld [vmem:[#allocation2 + $0xa0] sm:$0xff]
        %v669 = vld [vmem:[#allocation2 + $0xa8] sm:$0xff]
        %v670 = vld [vmem:[#allocation2 + $0xb0] sm:$0xff]
        %v671 = vld [vmem:[#allocation2 + $0xb8] sm:$0xff]
        %v672 = vld [vmem:[#allocation2 + $0xc0] sm:$0xff]
        %v673 = vld [vmem:[#allocation2 + $0xc8] sm:$0xff]
        %v674 = vld [vmem:[#allocation2 + $0xd0] sm:$0xff]
        %v675 = vld [vmem:[#allocation2 + $0xd8] sm:$0xff]
        %v676 = vld [vmem:[#allocation2 + $0xe0] sm:$0xff]
        %v677 = vld [vmem:[#allocation2 + $0xe8] sm:$0xff]
        %v678 = vld [vmem:[#allocation2 + $0xf0] sm:$0xff]
        %v679 = vld [vmem:[#allocation2 + $0xf8] sm:$0xff]
        %680 = vst.msk [vmem:[%s224] sm:$0xff] %vm612, %v648
        %681 = vst.msk [vmem:[%s224 + $0x8] sm:$0xff] %vm612, %v649
        %682 = vst.msk [vmem:[%s224 + $0x10] sm:$0xff] %vm612, %v650
        %683 = vst.msk [vmem:[%s224 + $0x18] sm:$0xff] %vm612, %v651
        %684 = vst.msk [vmem:[%s224 + $0x20] sm:$0xff] %vm612, %v652
        %685 = vst.msk [vmem:[%s224 + $0x28] sm:$0xff] %vm612, %v653
        %686 = vst.msk [vmem:[%s224 + $0x30] sm:$0xff] %vm612, %v654
        %687 = vst.msk [vmem:[%s224 + $0x38] sm:$0xff] %vm612, %v655
        %688 = vst.msk [vmem:[%s224 + $0x40] sm:$0xff] %vm612, %v656
        %689 = vst.msk [vmem:[%s224 + $0x48] sm:$0xff] %vm612, %v657
        %690 = vst.msk [vmem:[%s224 + $0x50] sm:$0xff] %vm612, %v658
        %691 = vst.msk [vmem:[%s224 + $0x58] sm:$0xff] %vm612, %v659
        %692 = vst.msk [vmem:[%s224 + $0x60] sm:$0xff] %vm612, %v660
        %693 = vst.msk [vmem:[%s224 + $0x68] sm:$0xff] %vm612, %v661
        %694 = vst.msk [vmem:[%s224 + $0x70] sm:$0xff] %vm612, %v662
        %695 = vst.msk [vmem:[%s224 + $0x78] sm:$0xff] %vm612, %v663
        %696 = vst.msk [vmem:[%s224 + $0x80] sm:$0xff] %vm612, %v664
        %697 = vst.msk [vmem:[%s224 + $0x88] sm:$0xff] %vm612, %v665
        %698 = vst.msk [vmem:[%s224 + $0x90] sm:$0xff] %vm612, %v666
        %699 = vst.msk [vmem:[%s224 + $0x98] sm:$0xff] %vm612, %v667
        %700 = vst.msk [vmem:[%s224 + $0xa0] sm:$0xff] %vm612, %v668
        %701 = vst.msk [vmem:[%s224 + $0xa8] sm:$0xff] %vm612, %v669
        %702 = vst.msk [vmem:[%s224 + $0xb0] sm:$0xff] %vm612, %v670
        %703 = vst.msk [vmem:[%s224 + $0xb8] sm:$0xff] %vm612, %v671
        %704 = vst.msk [vmem:[%s224 + $0xc0] sm:$0xff] %vm612, %v672
        %705 = vst.msk [vmem:[%s224 + $0xc8] sm:$0xff] %vm612, %v673
        %706 = vst.msk [vmem:[%s224 + $0xd0] sm:$0xff] %vm612, %v674
        %707 = vst.msk [vmem:[%s224 + $0xd8] sm:$0xff] %vm612, %v675
        %708 = vst.msk [vmem:[%s224 + $0xe0] sm:$0xff] %vm612, %v676
        %709 = vst.msk [vmem:[%s224 + $0xe8] sm:$0xff] %vm612, %v677
        %710 = vst.msk [vmem:[%s224 + $0xf0] sm:$0xff] %vm612, %v678
        %711 = vst.msk [vmem:[%s224 + $0xf8] sm:$0xff] %vm612, %v679
        %v712 = vsel %vm612, %v648, 0.0
        %v713 = vsel %vm612, %v649, 0.0
        %v714 = vadd.f32 %v712, %v713
        %v715 = vsel %vm612, %v650, 0.0
        %v716 = vadd.f32 %v714, %v715
        %v717 = vsel %vm612, %v651, 0.0
        %v718 = vadd.f32 %v716, %v717
        %v719 = vsel %vm612, %v652, 0.0
        %v720 = vadd.f32 %v718, %v719
        %v721 = vsel %vm612, %v653, 0.0
        %v722 = vadd.f32 %v720, %v721
        %v723 = vsel %vm612, %v654, 0.0
        %v724 = vadd.f32 %v722, %v723
        %v725 = vsel %vm612, %v655, 0.0
        %v726 = vadd.f32 %v724, %v725
        %v727 = vsel %vm612, %v656, 0.0
        %v728 = vadd.f32 %v726, %v727
        %v729 = vsel %vm612, %v657, 0.0
        %v730 = vadd.f32 %v728, %v729
        %v731 = vsel %vm612, %v658, 0.0
        %v732 = vadd.f32 %v730, %v731
        %v733 = vsel %vm612, %v659, 0.0
        %v734 = vadd.f32 %v732, %v733
        %v735 = vsel %vm612, %v660, 0.0
        %v736 = vadd.f32 %v734, %v735
        %v737 = vsel %vm612, %v661, 0.0
        %v738 = vadd.f32 %v736, %v737
        %v739 = vsel %vm612, %v662, 0.0
        %v740 = vadd.f32 %v738, %v739
        %v741 = vsel %vm612, %v663, 0.0
        %v742 = vadd.f32 %v740, %v741
        %v743 = vsel %vm612, %v664, 0.0
        %v744 = vadd.f32 %v742, %v743
        %v745 = vsel %vm612, %v665, 0.0
        %v746 = vadd.f32 %v744, %v745
        %v747 = vsel %vm612, %v666, 0.0
        %v748 = vadd.f32 %v746, %v747
        %v749 = vsel %vm612, %v667, 0.0
        %v750 = vadd.f32 %v748, %v749
        %v751 = vsel %vm612, %v668, 0.0
        %v752 = vadd.f32 %v750, %v751
        %v753 = vsel %vm612, %v669, 0.0
        %v754 = vadd.f32 %v752, %v753
        %v755 = vsel %vm612, %v670, 0.0
        %v756 = vadd.f32 %v754, %v755
        %v757 = vsel %vm612, %v671, 0.0
        %v758 = vadd.f32 %v756, %v757
        %v759 = vsel %vm612, %v672, 0.0
        %v760 = vadd.f32 %v758, %v759
        %v761 = vsel %vm612, %v673, 0.0
        %v762 = vadd.f32 %v760, %v761
        %v763 = vsel %vm612, %v674, 0.0
        %v764 = vadd.f32 %v762, %v763
        %v765 = vsel %vm612, %v675, 0.0
        %v766 = vadd.f32 %v764, %v765
        %v767 = vsel %vm612, %v676, 0.0
        %v768 = vadd.f32 %v766, %v767
        %v769 = vsel %vm612, %v677, 0.0
        %v770 = vadd.f32 %v768, %v769
        %v771 = vsel %vm612, %v678, 0.0
        %v772 = vadd.f32 %v770, %v771
        %v773 = vsel %vm612, %v679, 0.0
        %v774 = vadd.f32 %v772, %v773
        %v775 = vrot.slane %v774, 4
        %v776 = vadd.f32 %v774, %v775
        %v777 = vrot.slane %v776, 2
        %v778 = vadd.f32 %v776, %v777
        %v779 = vrot.slane %v778, 1
        %v780 = vadd.f32 %v778, %v779
        %v781 = vmul.f32 %v648, %v648
        %v782 = vmul.f32 %v649, %v649
        %v783 = vmul.f32 %v650, %v650
        %v784 = vmul.f32 %v651, %v651
        %v785 = vmul.f32 %v652, %v652
        %v786 = vmul.f32 %v653, %v653
        %v787 = vmul.f32 %v654, %v654
        %v788 = vmul.f32 %v655, %v655
        %v789 = vmul.f32 %v656, %v656
        %v790 = vmul.f32 %v657, %v657
        %v791 = vmul.f32 %v658, %v658
        %v792 = vmul.f32 %v659, %v659
        %v793 = vmul.f32 %v660, %v660
        %v794 = vmul.f32 %v661, %v661
        %v795 = vmul.f32 %v662, %v662
        %v796 = vmul.f32 %v663, %v663
        %v797 = vmul.f32 %v664, %v664
        %v798 = vmul.f32 %v665, %v665
        %v799 = vmul.f32 %v666, %v666
        %v800 = vmul.f32 %v667, %v667
        %v801 = vmul.f32 %v668, %v668
        %v802 = vmul.f32 %v669, %v669
        %v803 = vmul.f32 %v670, %v670
        %v804 = vmul.f32 %v671, %v671
        %v805 = vmul.f32 %v672, %v672
        %v806 = vmul.f32 %v673, %v673
        %v807 = vmul.f32 %v674, %v674
        %v808 = vmul.f32 %v675, %v675
        %v809 = vmul.f32 %v676, %v676
        %v810 = vmul.f32 %v677, %v677
        %v811 = vmul.f32 %v678, %v678
        %v812 = vmul.f32 %v679, %v679
        %v813 = vsel %vm612, %v781, 0.0
        %v814 = vsel %vm612, %v782, 0.0
        %v815 = vadd.f32 %v813, %v814
        %v816 = vsel %vm612, %v783, 0.0
        %v817 = vadd.f32 %v815, %v816
        %v818 = vsel %vm612, %v784, 0.0
        %v819 = vadd.f32 %v817, %v818
        %v820 = vsel %vm612, %v785, 0.0
        %v821 = vadd.f32 %v819, %v820
        %v822 = vsel %vm612, %v786, 0.0
        %v823 = vadd.f32 %v821, %v822
        %v824 = vsel %vm612, %v787, 0.0
        %v825 = vadd.f32 %v823, %v824
        %v826 = vsel %vm612, %v788, 0.0
        %v827 = vadd.f32 %v825, %v826
        %v828 = vsel %vm612, %v789, 0.0
        %v829 = vadd.f32 %v827, %v828
        %v830 = vsel %vm612, %v790, 0.0
        %v831 = vadd.f32 %v829, %v830
        %v832 = vsel %vm612, %v791, 0.0
        %v833 = vadd.f32 %v831, %v832
        %v834 = vsel %vm612, %v792, 0.0
        %v835 = vadd.f32 %v833, %v834
        %v836 = vsel %vm612, %v793, 0.0
        %v837 = vadd.f32 %v835, %v836
        %v838 = vsel %vm612, %v794, 0.0
        %v839 = vadd.f32 %v837, %v838
        %v840 = vsel %vm612, %v795, 0.0
        %v841 = vadd.f32 %v839, %v840
        %v842 = vsel %vm612, %v796, 0.0
        %v843 = vadd.f32 %v841, %v842
        %v844 = vsel %vm612, %v797, 0.0
        %v845 = vadd.f32 %v843, %v844
        %v846 = vsel %vm612, %v798, 0.0
        %v847 = vadd.f32 %v845, %v846
        %v848 = vsel %vm612, %v799, 0.0
        %v849 = vadd.f32 %v847, %v848
        %v850 = vsel %vm612, %v800, 0.0
        %v851 = vadd.f32 %v849, %v850
        %v852 = vsel %vm612, %v801, 0.0
        %v853 = vadd.f32 %v851, %v852
        %v854 = vsel %vm612, %v802, 0.0
        %v855 = vadd.f32 %v853, %v854
        %v856 = vsel %vm612, %v803, 0.0
        %v857 = vadd.f32 %v855, %v856
        %v858 = vsel %vm612, %v804, 0.0
        %v859 = vadd.f32 %v857, %v858
        %v860 = vsel %vm612, %v805, 0.0
        %v861 = vadd.f32 %v859, %v860
        %v862 = vsel %vm612, %v806, 0.0
        %v863 = vadd.f32 %v861, %v862
        %v864 = vsel %vm612, %v807, 0.0
        %v865 = vadd.f32 %v863, %v864
        %v866 = vsel %vm612, %v808, 0.0
        %v867 = vadd.f32 %v865, %v866
        %v868 = vsel %vm612, %v809, 0.0
        %v869 = vadd.f32 %v867, %v868
        %v870 = vsel %vm612, %v810, 0.0
        %v871 = vadd.f32 %v869, %v870
        %v872 = vsel %vm612, %v811, 0.0
        %v873 = vadd.f32 %v871, %v872
        %v874 = vsel %vm612, %v812, 0.0
        %v875 = vadd.f32 %v873, %v874
        %v876 = vrot.slane %v875, 4
        %v877 = vadd.f32 %v875, %v876
        %v878 = vrot.slane %v877, 2
        %v879 = vadd.f32 %v877, %v878
        %v880 = vrot.slane %v879, 1
        %v881 = vadd.f32 %v879, %v880
        %v882 = vlaneseq
        %v883 = vshrl.u32 %v882, 7
        %vm884 = vcmp.eq.s32.totalorder %v883, 0
        %vm885 = vcmp.eq.s32.totalorder %v883, 1
        %v886 = vsel %vm885, %v881, 0.0
        %v887 = vsel %vm884, %v780, %v886
        %888 = vst.msk [vmem:[%s229] sm:$0xff] %vm612, %v887
      $region36: #{hcnet_forward.17} parent=27 // pred_fallthru
        _
      %s889 = smul.u32 32, %s19
      %p890 = scmp.lt.s32.totalorder %s889, 95
      %s891 = scalar_select %p890, %s889, 95
      %s892 = smul.addr %s891, 8
      %s893 = scalar_lea.vmem %s2, %s892
      %p894 = scmp.lt.s32.totalorder %s19, 2
      %s895 = scalar_select %p894, %s19, 2
      %s896 = smul.addr %s895, 8
      %s897 = scalar_lea.vmem %s3, %s896
      // Predicated region
      $region37: #{hcnet_forward.17} parent=27 // pred_check
        %p898 = pneg %p99
      $region38: #{hcnet_forward.17} parent=27 // pred_check_branch
        %900 = sbr.rel (%p898) target = $region40
      $region39: #{hcnet_forward.17} parent=27 // pred_region
        %s901 = smul.u32 32, %s19
      $region40: #{hcnet_forward.17} parent=27 // pred_fallthru
        _
      // Predicated region
      $region41: #{hcnet_forward.17} parent=27 // pred_check
        %p902 = pneg %p125
      $region42: #{hcnet_forward.17} parent=27 // pred_check_branch
        %904 = sbr.rel (%p902) target = $region44
      $region43: #{hcnet_forward.17} parent=27 // pred_region
        _
      $region44: #{hcnet_forward.17} parent=27 // pred_fallthru
        _
    $region28: #{hcnet_forward.17} parent=5 // pred_fallthru
      _
    %p905 = scmp.le.s32.totalorder 2, %s10
    // Predicated region
    $region45: #{hcnet_forward.17} parent=5 // pred_check
      %p906 = pneg %p905
    $region46: #{hcnet_forward.17} parent=5 // pred_check_branch
      %908 = sbr.rel (%p906) target = $region48
    $region47: #{hcnet_forward.17} parent=5 // pred_region
      %s909 = ssub.s32 %s10, 2
      // Predicated region
      $region49: #{hcnet_forward.17} parent=47 // pred_check
        %p910 = pneg %p105
      $region50: #{hcnet_forward.17} parent=47 // pred_check_branch
        %912 = sbr.rel (%p910) target = $region52
      $region51: #{hcnet_forward.17} parent=47 // pred_region
        %s913 = smul.u32 32, %s21
        %p914 = scmp.lt.s32.totalorder %s913, 95
        %s915 = scalar_select %p914, %s913, 95
        %s916 = smul.addr %s915, 8
        %s917 = scalar_lea.vmem %s2, %s916
      $region52: #{hcnet_forward.17} parent=47 // pred_fallthru
        _
      // Predicated region
      $region53: #{hcnet_forward.17} parent=47 // pred_check
        %p918 = pneg %p131
      $region54: #{hcnet_forward.17} parent=47 // pred_check_branch
        %920 = sbr.rel (%p918) target = $region56
      $region55: #{hcnet_forward.17} parent=47 // pred_region
        %p921 = scmp.lt.s32.totalorder %s21, 2
        %s922 = scalar_select %p921, %s21, 2
        %s923 = smul.addr %s922, 8
        %s924 = scalar_lea.vmem %s3, %s923
      $region56: #{hcnet_forward.17} parent=47 // pred_fallthru
        _
    $region48: #{hcnet_forward.17} parent=5 // pred_fallthru
      _
  $region6: #{hcnet_forward.17} parent=0 // loop_footer
    %s14 = sadd.s32 1, %s10
  $region7: #{hcnet_forward.17} parent=0 // loop_footer_branch
    %9 = sbr.rel target = $region3
  $region8: #{hcnet_forward.17} parent=0 // loop_exit
    _

// kernel: hcnet_forward.20
$region0: #{hcnet_forward.20}
  #allocation0 [shape = 'u32[]', space=smem, size = 0x4, offset = 0x4, fixed_abs, tag = 'smem constant byte address 0x4 - core index']
  #allocation1 [shape = 'u32[72,128]{1,0:T(1,128)}', space=vmem, size = 0x9000, scoped, tag = 'internal scratch']
  %s0 = inlined_call_operand.vmem [shape: f32[32,8], index: 0, kind: input, shape index: {}]
  %s1 = inlined_call_operand.vmem [shape: f32[1,8], index: 1, kind: input, shape index: {}]
  %s2 = inlined_call_operand.vmem [shape: f32[1,8], index: 2, kind: input, shape index: {}]
  %s3 = inlined_call_operand.vmem [shape: f32[32,8], index: 3, kind: output, shape index: {}]
  %s4 = sld [smem:[#allocation0]]
  $region22: #{hcnet_forward.20} parent=0
    _
  %s6 = ssub.s32 1, %s4
  %s7 = scalar_select 0, %s6, %s4
  // Predicated region
  $region2: #{hcnet_forward.20} parent=0 // pred_check
    _
  $region3: #{hcnet_forward.20} parent=0 // pred_check_branch
    %9 = sbr.rel (0) target = $region5
  $region4: #{hcnet_forward.20} parent=0 // pred_region
    _
  $region5: #{hcnet_forward.20} parent=0 // pred_fallthru
    _
  // Predicated region
  $region6: #{hcnet_forward.20} parent=0 // pred_check
    _
  $region7: #{hcnet_forward.20} parent=0 // pred_check_branch
    %11 = sbr.rel (0) target = $region9
  $region8: #{hcnet_forward.20} parent=0 // pred_region
    _
  $region9: #{hcnet_forward.20} parent=0 // pred_fallthru
    _
  // Predicated region
  $region10: #{hcnet_forward.20} parent=0 // pred_check
    _
  $region11: #{hcnet_forward.20} parent=0 // pred_check_branch
    %13 = sbr.rel (0) target = $region13
  $region12: #{hcnet_forward.20} parent=0 // pred_region
    _
  $region13: #{hcnet_forward.20} parent=0 // pred_fallthru
    _
  %v14 = vld [vmem:[%s0] sm:$0xff]
  %v15 = vld [vmem:[%s0 + $0x8] sm:$0xff]
  %v16 = vld [vmem:[%s0 + $0x10] sm:$0xff]
  %v17 = vld [vmem:[%s0 + $0x18] sm:$0xff]
  %v18 = vld [vmem:[%s1] sm:$0x1]
  %v20 = vperm.slane %v18, 0
  %v22 = vmul.f32 %v14, %v20
  %v23 = vmul.f32 %v15, %v20
  %v24 = vmul.f32 %v16, %v20
  %v25 = vmul.f32 %v17, %v20
  %v26 = vld [vmem:[%s2] sm:$0x1]
  %v28 = vperm.slane %v26, 0
  %v30 = vadd.f32 %v22, %v28
  %v31 = vadd.f32 %v23, %v28
  %v32 = vadd.f32 %v24, %v28
  %v33 = vadd.f32 %v25, %v28
  %vm34 = vcmp.ge.f32.partialorder %v30, 0.0
  %vm35 = vcmp.ge.f32.partialorder %v31, 0.0
  %vm36 = vcmp.ge.f32.partialorder %v32, 0.0
  %vm37 = vcmp.ge.f32.partialorder %v33, 0.0
  %v38 = vmul.f32 %v30, 0.01
  %v39 = vmul.f32 %v31, 0.01
  %v40 = vmul.f32 %v32, 0.01
  %v41 = vmul.f32 %v33, 0.01
  %v42 = vsel %vm34, %v30, %v38
  %v43 = vsel %vm35, %v31, %v39
  %v44 = vsel %vm36, %v32, %v40
  %v45 = vsel %vm37, %v33, %v41
  %vm46 = vcmask 64512
  %47 = vst.msk [vmem:[%s3] sm:$0xff] %vm46, %v42
  %48 = vst.msk [vmem:[%s3 + $0x8] sm:$0xff] %vm46, %v43
  %49 = vst.msk [vmem:[%s3 + $0x10] sm:$0xff] %vm46, %v44
  %50 = vst.msk [vmem:[%s3 + $0x18] sm:$0xff] %vm46, %v45
  // Predicated region
  $region14: #{hcnet_forward.20} parent=0 // pred_check
    _
  $region15: #{hcnet_forward.20} parent=0 // pred_check_branch
    %52 = sbr.rel (0) target = $region17
  $region16: #{hcnet_forward.20} parent=0 // pred_region
    _
  $region17: #{hcnet_forward.20} parent=0 // pred_fallthru
    _
  // Predicated region
  $region18: #{hcnet_forward.20} parent=0 // pred_check
    _
  $region19: #{hcnet_forward.20} parent=0 // pred_check_branch
    %54 = sbr.rel (0) target = $region21
  $region20: #{hcnet_forward.20} parent=0 // pred_region
    _
  $region21: #{hcnet_forward.20} parent=0 // pred_fallthru
    _

// kernel: hcnet_forward.19
$region0: #{hcnet_forward.19}
  #allocation0 [shape = 'u32[]', space=smem, size = 0x4, offset = 0x4, fixed_abs, tag = 'smem constant byte address 0x4 - core index']
  #allocation1 [shape = 'u32[72,128]{1,0:T(1,128)}', space=vmem, size = 0x9000, scoped, tag = 'internal scratch']
  #allocation2 [shape = 'f32[32,8]{1,0:T(8,128)}', space=vmem, size = 0x4000, scoped, tag = 'scratch operand']
  %s0 = inlined_call_operand.vmem [shape: bf16[32,384], index: 0, kind: input, shape index: {}]
  %s1 = inlined_call_operand.vmem [shape: bf16[384,8], index: 1, kind: input, shape index: {}]
  %s2 = inlined_call_operand.vmem [shape: f32[32,8], index: 2, kind: output, shape index: {0}]
  %s3 = inlined_call_operand.vmem [shape: f32[8,8], index: 3, kind: output, shape index: {1}]
  %4 = xla_tuple %s2, %s3
  %s5 = sld [smem:[#allocation0]]
  $region34: #{hcnet_forward.19} parent=0
    _
  %s7 = ssub.s32 1, %s5
  %s8 = scalar_select 0, %s7, %s5
  // Predicated region
  $region2: #{hcnet_forward.19} parent=0 // pred_check
    _
  $region3: #{hcnet_forward.19} parent=0 // pred_check_branch
    %10 = sbr.rel (0) target = $region5
  $region4: #{hcnet_forward.19} parent=0 // pred_region
    _
  $region5: #{hcnet_forward.19} parent=0 // pred_fallthru
    _
  // Predicated region
  $region6: #{hcnet_forward.19} parent=0 // pred_check
    _
  $region7: #{hcnet_forward.19} parent=0 // pred_check_branch
    %12 = sbr.rel (0) target = $region9
  $region8: #{hcnet_forward.19} parent=0 // pred_region
    _
  $region9: #{hcnet_forward.19} parent=0 // pred_fallthru
    _
  %p13 = scmp.eq.s32.totalorder 0, 0
  // Predicated region
  $region10: #{hcnet_forward.19} parent=0 // pred_check
    %p14 = pneg %p13
  $region11: #{hcnet_forward.19} parent=0 // pred_check_branch
    %16 = sbr.rel (%p14) target = $region13
  $region12: #{hcnet_forward.19} parent=0 // pred_region
    %vm17 = vcmask 64512
    %18 = vst.msk [vmem:[#allocation2] sm:$0xff] %vm17, 0.0
    %19 = vst.msk [vmem:[#allocation2 + $0x8] sm:$0xff] %vm17, 0.0
    %20 = vst.msk [vmem:[#allocation2 + $0x10] sm:$0xff] %vm17, 0.0
    %21 = vst.msk [vmem:[#allocation2 + $0x18] sm:$0xff] %vm17, 0.0
  $region13: #{hcnet_forward.19} parent=0 // pred_fallthru
    _
  %v22 = vld [vmem:[#allocation2] sm:$0xff]
  %v23 = vld [vmem:[#allocation2 + $0x8] sm:$0xff]
  %v24 = vld [vmem:[#allocation2 + $0x10] sm:$0xff]
  %v25 = vld [vmem:[#allocation2 + $0x18] sm:$0xff]
  %v26 = vld [vmem:[%s0] sm:$0xff]
  %v27 = vld [vmem:[%s0 + $0x8] sm:$0xf]
  %v28 = vld [vmem:[%s0 + $0xc] sm:$0xff]
  %v29 = vld [vmem:[%s0 + $0x14] sm:$0xf]
  %v30 = vld [vmem:[%s0 + $0x18] sm:$0xff]
  %v31 = vld [vmem:[%s0 + $0x20] sm:$0xf]
  %v32 = vld [vmem:[%s0 + $0x24] sm:$0xff]
  %v33 = vld [vmem:[%s0 + $0x2c] sm:$0xf]
  %v34 = vld [vmem:[%s1] sm:$0xf]
  %v35 = vld [vmem:[%s1 + $0x4] sm:$0xf]
  %v36 = vld [vmem:[%s1 + $0x8] sm:$0xf]
  %v37 = vld [vmem:[%s1 + $0xc] sm:$0xf]
  %v38 = vld [vmem:[%s1 + $0x10] sm:$0xf]
  %v39 = vld [vmem:[%s1 + $0x14] sm:$0xf]
  %v40 = vld [vmem:[%s1 + $0x18] sm:$0xf]
  %v41 = vld [vmem:[%s1 + $0x1c] sm:$0xf]
  %v42 = vld [vmem:[%s1 + $0x20] sm:$0xf]
  %v43 = vld [vmem:[%s1 + $0x24] sm:$0xf]
  %v44 = vld [vmem:[%s1 + $0x28] sm:$0xf]
  %v45 = vld [vmem:[%s1 + $0x2c] sm:$0xf]
  %v46 = vld [vmem:[%s1 + $0x30] sm:$0xf]
  %v47 = vld [vmem:[%s1 + $0x34] sm:$0xf]
  %v48 = vld [vmem:[%s1 + $0x38] sm:$0xf]
  %v49 = vld [vmem:[%s1 + $0x3c] sm:$0xf]
  %v50 = vld [vmem:[%s1 + $0x40] sm:$0xf]
  %v51 = vld [vmem:[%s1 + $0x44] sm:$0xf]
  %v52 = vld [vmem:[%s1 + $0x48] sm:$0xf]
  %v53 = vld [vmem:[%s1 + $0x4c] sm:$0xf]
  %v54 = vld [vmem:[%s1 + $0x50] sm:$0xf]
  %v55 = vld [vmem:[%s1 + $0x54] sm:$0xf]
  %v56 = vld [vmem:[%s1 + $0x58] sm:$0xf]
  %v57 = vld [vmem:[%s1 + $0x5c] sm:$0xf]
  %v58 = vld [vmem:[%s1 + $0x60] sm:$0xf]
  %v59 = vld [vmem:[%s1 + $0x64] sm:$0xf]
  %v60 = vld [vmem:[%s1 + $0x68] sm:$0xf]
  %v61 = vld [vmem:[%s1 + $0x6c] sm:$0xf]
  %v62 = vld [vmem:[%s1 + $0x70] sm:$0xf]
  %v63 = vld [vmem:[%s1 + $0x74] sm:$0xf]
  %v64 = vld [vmem:[%s1 + $0x78] sm:$0xf]
  %v65 = vld [vmem:[%s1 + $0x7c] sm:$0xf]
  %v66 = vld [vmem:[%s1 + $0x80] sm:$0xf]
  %v67 = vld [vmem:[%s1 + $0x84] sm:$0xf]
  %v68 = vld [vmem:[%s1 + $0x88] sm:$0xf]
  %v69 = vld [vmem:[%s1 + $0x8c] sm:$0xf]
  %v70 = vld [vmem:[%s1 + $0x90] sm:$0xf]
  %v71 = vld [vmem:[%s1 + $0x94] sm:$0xf]
  %v72 = vld [vmem:[%s1 + $0x98] sm:$0xf]
  %v73 = vld [vmem:[%s1 + $0x9c] sm:$0xf]
  %v74 = vld [vmem:[%s1 + $0xa0] sm:$0xf]
  %v75 = vld [vmem:[%s1 + $0xa4] sm:$0xf]
  %v76 = vld [vmem:[%s1 + $0xa8] sm:$0xf]
  %v77 = vld [vmem:[%s1 + $0xac] sm:$0xf]
  %v78 = vld [vmem:[%s1 + $0xb0] sm:$0xf]
  %v79 = vld [vmem:[%s1 + $0xb4] sm:$0xf]
  %v80 = vld [vmem:[%s1 + $0xb8] sm:$0xf]
  %v81 = vld [vmem:[%s1 + $0xbc] sm:$0xf]
  %v90 = vunpack.c.l.b16 %v26
  %v91 = vunpack.c.h.b16 %v26
  %v92 = vunpack.c.l.b16 %v27
  %v93 = vunpack.c.l.b16 %v28
  %v94 = vunpack.c.h.b16 %v28
  %v95 = vunpack.c.l.b16 %v29
  %v96 = vunpack.c.l.b16 %v30
  %v97 = vunpack.c.h.b16 %v30
  %v98 = vunpack.c.l.b16 %v31
  %v99 = vunpack.c.l.b16 %v32
  %v100 = vunpack.c.h.b16 %v32
  %v101 = vunpack.c.l.b16 %v33
  %v102 = vpack.c.b16 %v93, %v90
  %v103 = vpack.c.b16 %v94, %v91
  %v104 = vpack.c.b16 %v95, %v92
  %v105 = vpack.c.b16 %v99, %v96
  %v106 = vpack.c.b16 %v100, %v97
  %v107 = vpack.c.b16 %v101, %v98
  %v162 = vunpack.c.l.b16 %v34
  %v163 = vunpack.c.l.b16 %v35
  %v164 = vunpack.c.l.b16 %v36
  %v165 = vunpack.c.l.b16 %v37
  %v166 = vunpack.c.l.b16 %v38
  %v167 = vunpack.c.l.b16 %v39
  %v168 = vunpack.c.l.b16 %v40
  %v169 = vunpack.c.l.b16 %v41
  %v170 = vunpack.c.l.b16 %v42
  %v171 = vunpack.c.l.b16 %v43
  %v172 = vunpack.c.l.b16 %v44
  %v173 = vunpack.c.l.b16 %v45
  %v174 = vunpack.c.l.b16 %v46
  %v175 = vunpack.c.l.b16 %v47
  %v176 = vunpack.c.l.b16 %v48
  %v177 = vunpack.c.l.b16 %v49
  %v178 = vunpack.c.l.b16 %v50
  %v179 = vunpack.c.l.b16 %v51
  %v180 = vunpack.c.l.b16 %v52
  %v181 = vunpack.c.l.b16 %v53
  %v182 = vunpack.c.l.b16 %v54
  %v183 = vunpack.c.l.b16 %v55
  %v184 = vunpack.c.l.b16 %v56
  %v185 = vunpack.c.l.b16 %v57
  %v186 = vunpack.c.l.b16 %v58
  %v187 = vunpack.c.l.b16 %v59
  %v188 = vunpack.c.l.b16 %v60
  %v189 = vunpack.c.l.b16 %v61
  %v190 = vunpack.c.l.b16 %v62
  %v191 = vunpack.c.l.b16 %v63
  %v192 = vunpack.c.l.b16 %v64
  %v193 = vunpack.c.l.b16 %v65
  %v194 = vunpack.c.l.b16 %v66
  %v195 = vunpack.c.l.b16 %v67
  %v196 = vunpack.c.l.b16 %v68
  %v197 = vunpack.c.l.b16 %v69
  %v198 = vunpack.c.l.b16 %v70
  %v199 = vunpack.c.l.b16 %v71
  %v200 = vunpack.c.l.b16 %v72
  %v201 = vunpack.c.l.b16 %v73
  %v202 = vunpack.c.l.b16 %v74
  %v203 = vunpack.c.l.b16 %v75
  %v204 = vunpack.c.l.b16 %v76
  %v205 = vunpack.c.l.b16 %v77
  %v206 = vunpack.c.l.b16 %v78
  %v207 = vunpack.c.l.b16 %v79
  %v208 = vunpack.c.l.b16 %v80
  %v209 = vunpack.c.l.b16 %v81
  %v210 = vpack.c.b16 %v163, %v162
  %v211 = vpack.c.b16 %v165, %v164
  %v212 = vpack.c.b16 %v167, %v166
  %v213 = vpack.c.b16 %v169, %v168
  %v214 = vpack.c.b16 %v171, %v170
  %v215 = vpack.c.b16 %v173, %v172
  %v216 = vpack.c.b16 %v175, %v174
  %v217 = vpack.c.b16 %v177, %v176
  %v218 = vpack.c.b16 %v179, %v178
  %v219 = vpack.c.b16 %v181, %v180
  %v220 = vpack.c.b16 %v183, %v182
  %v221 = vpack.c.b16 %v185, %v184
  %v222 = vpack.c.b16 %v187, %v186
  %v223 = vpack.c.b16 %v189, %v188
  %v224 = vpack.c.b16 %v191, %v190
  %v225 = vpack.c.b16 %v193, %v192
  %v226 = vpack.c.b16 %v195, %v194
  %v227 = vpack.c.b16 %v197, %v196
  %v228 = vpack.c.b16 %v199, %v198
  %v229 = vpack.c.b16 %v201, %v200
  %v230 = vpack.c.b16 %v203, %v202
  %v231 = vpack.c.b16 %v205, %v204
  %v232 = vpack.c.b16 %v207, %v206
  %v233 = vpack.c.b16 %v209, %v208
  %258 = vmatpush.bf16.msra.mxu0 %v217
  %259 = vmatpush.bf16.msra.mxu0 %v216
  %260 = vmatpush.bf16.msra.mxu0 %v215
  %261 = vmatpush.bf16.msra.mxu0 %v214
  %262 = vmatpush.bf16.msra.mxu0 %v213
  %263 = vmatpush.bf16.msra.mxu0 %v212
  %264 = vmatpush.bf16.msra.mxu0 %v211
  %265 = vmatpush.bf16.msra.mxu0 %v210
  %266 = vmatmul.bf16.gmra.mxu0 %v102
  %v267 = vpop.f32.mrf.mxu0
  %v268 = vadd.f32 0.0, %v267
  %v269 = vpop.f32.mrf.mxu0
  %v270 = vadd.f32 0.0, %v269
  %271 = vmatmul.bf16.gmra.mxu0 %v105
  %v272 = vpop.f32.mrf.mxu0
  %v273 = vadd.f32 0.0, %v272
  %v274 = vpop.f32.mrf.mxu0
  %v275 = vadd.f32 0.0, %v274
  %276 = vdwg.mxu0
  %277 = vmatpush.bf16.msra.mxu0 %v225
  %278 = vmatpush.bf16.msra.mxu0 %v224
  %279 = vmatpush.bf16.msra.mxu0 %v223
  %280 = vmatpush.bf16.msra.mxu0 %v222
  %281 = vmatpush.bf16.msra.mxu0 %v221
  %282 = vmatpush.bf16.msra.mxu0 %v220
  %283 = vmatpush.bf16.msra.mxu0 %v219
  %284 = vmatpush.bf16.msra.mxu0 %v218
  %285 = vmatmul.bf16.gmra.mxu0 %v103
  %v286 = vpop.f32.mrf.mxu0
  %v287 = vadd.f32 %v268, %v286
  %v288 = vpop.f32.mrf.mxu0
  %v289 = vadd.f32 %v270, %v288
  %290 = vmatmul.bf16.gmra.mxu0 %v106
  %v291 = vpop.f32.mrf.mxu0
  %v292 = vadd.f32 %v273, %v291
  %v293 = vpop.f32.mrf.mxu0
  %v294 = vadd.f32 %v275, %v293
  %295 = vdwg.mxu0
  %296 = vmatpush.bf16.msra.mxu0 %v233
  %297 = vmatpush.bf16.msra.mxu0 %v232
  %298 = vmatpush.bf16.msra.mxu0 %v231
  %299 = vmatpush.bf16.msra.mxu0 %v230
  %300 = vmatpush.bf16.msra.mxu0 %v229
  %301 = vmatpush.bf16.msra.mxu0 %v228
  %302 = vmatpush.bf16.msra.mxu0 %v227
  %303 = vmatpush.bf16.msra.mxu0 %v226
  %304 = vmatmul.bf16.gmra.mxu0 %v104
  %v305 = vpop.f32.mrf.mxu0
  %v306 = vadd.f32 %v287, %v305
  %v307 = vpop.f32.mrf.mxu0
  %v308 = vadd.f32 %v289, %v307
  %309 = vmatmul.bf16.gmra.mxu0 %v107
  %v310 = vpop.f32.mrf.mxu0
  %v311 = vadd.f32 %v292, %v310
  %v312 = vpop.f32.mrf.mxu0
  %v313 = vadd.f32 %v294, %v312
  %314 = vdwg.mxu0
  %v315 = vadd.f32 %v22, %v306
  %v316 = vadd.f32 %v23, %v308
  %v317 = vadd.f32 %v24, %v311
  %v318 = vadd.f32 %v25, %v313
  %vm319 = vcmask 64512
  %320 = vst.msk [vmem:[#allocation2] sm:$0xff] %vm319, %v315
  %321 = vst.msk [vmem:[#allocation2 + $0x8] sm:$0xff] %vm319, %v316
  %322 = vst.msk [vmem:[#allocation2 + $0x10] sm:$0xff] %vm319, %v317
  %323 = vst.msk [vmem:[#allocation2 + $0x18] sm:$0xff] %vm319, %v318
  // Predicated region
  $region14: #{hcnet_forward.19} parent=0 // pred_check
    %p324 = pneg %p13
  $region15: #{hcnet_forward.19} parent=0 // pred_check_branch
    %326 = sbr.rel (%p324) target = $region17
  $region16: #{hcnet_forward.19} parent=0 // pred_region
    %v327 = vld [vmem:[#allocation2] sm:$0xff]
    %v328 = vld [vmem:[#allocation2 + $0x8] sm:$0xff]
    %v329 = vld [vmem:[#allocation2 + $0x10] sm:$0xff]
    %v330 = vld [vmem:[#allocation2 + $0x18] sm:$0xff]
    %331 = vst.msk [vmem:[%s2] sm:$0xff] %vm319, %v327
    %332 = vst.msk [vmem:[%s2 + $0x8] sm:$0xff] %vm319, %v328
    %333 = vst.msk [vmem:[%s2 + $0x10] sm:$0xff] %vm319, %v329
    %334 = vst.msk [vmem:[%s2 + $0x18] sm:$0xff] %vm319, %v330
    %v335 = vsel %vm319, %v327, 0.0
    %v336 = vsel %vm319, %v328, 0.0
    %v337 = vadd.f32 %v335, %v336
    %v338 = vsel %vm319, %v329, 0.0
    %v339 = vadd.f32 %v337, %v338
    %v340 = vsel %vm319, %v330, 0.0
    %v341 = vadd.f32 %v339, %v340
    %v342 = vrot.slane %v341, 4
    %v343 = vadd.f32 %v341, %v342
    %v344 = vrot.slane %v343, 2
    %v345 = vadd.f32 %v343, %v344
    %v346 = vrot.slane %v345, 1
    %v347 = vadd.f32 %v345, %v346
    %v348 = vmul.f32 %v327, %v327
    %v349 = vmul.f32 %v328, %v328
    %v350 = vmul.f32 %v329, %v329
    %v351 = vmul.f32 %v330, %v330
    %v352 = vsel %vm319, %v348, 0.0
    %v353 = vsel %vm319, %v349, 0.0
    %v354 = vadd.f32 %v352, %v353
    %v355 = vsel %vm319, %v350, 0.0
    %v356 = vadd.f32 %v354, %v355
    %v357 = vsel %vm319, %v351, 0.0
    %v358 = vadd.f32 %v356, %v357
    %v359 = vrot.slane %v358, 4
    %v360 = vadd.f32 %v358, %v359
    %v361 = vrot.slane %v360, 2
    %v362 = vadd.f32 %v360, %v361
    %v363 = vrot.slane %v362, 1
    %v364 = vadd.f32 %v362, %v363
    %v365 = vlaneseq
    %v366 = vshrl.u32 %v365, 7
    %vm367 = vcmp.eq.s32.totalorder %v366, 0
    %vm368 = vcmp.eq.s32.totalorder %v366, 1
    %v369 = vsel %vm368, %v364, 0.0
    %v370 = vsel %vm367, %v347, %v369
    %371 = vst.msk [vmem:[%s3] sm:$0xff] %vm319, %v370
  $region17: #{hcnet_forward.19} parent=0 // pred_fallthru
    _
  // Predicated region
  $region18: #{hcnet_forward.19} parent=0 // pred_check
    _
  $region19: #{hcnet_forward.19} parent=0 // pred_check_branch
    %373 = sbr.rel (0) target = $region21
  $region20: #{hcnet_forward.19} parent=0 // pred_region
    _
  $region21: #{hcnet_forward.19} parent=0 // pred_fallthru
    _
  // Predicated region
  $region22: #{hcnet_forward.19} parent=0 // pred_check
    _
  $region23: #{hcnet_forward.19} parent=0 // pred_check_branch
    %375 = sbr.rel (0) target = $region25
  $region24: #{hcnet_forward.19} parent=0 // pred_region
    _
  $region25: #{hcnet_forward.19} parent=0 // pred_fallthru
    _
  // Predicated region
  $region26: #{hcnet_forward.19} parent=0 // pred_check
    _
  $region27: #{hcnet_forward.19} parent=0 // pred_check_branch
    %377 = sbr.rel (0) target = $region29
  $region28: #{hcnet_forward.19} parent=0 // pred_region
    _
  $region29: #{hcnet_forward.19} parent=0 // pred_fallthru
    _
  // Predicated region
  $region30: #{hcnet_forward.19} parent=0 // pred_check
    _
  $region31: #{hcnet_forward.19} parent=0 // pred_check_branch
    %379 = sbr.rel (0) target = $region33
  $region32: #{hcnet_forward.19} parent=0 // pred_region
    _
  $region33: #{hcnet_forward.19} parent=0 // pred_fallthru
    _

// kernel: hcnet_forward.21
$region0: #{hcnet_forward.21}
  #allocation0 [shape = 'u32[]', space=smem, size = 0x4, offset = 0x4, fixed_abs, tag = 'smem constant byte address 0x4 - core index']
  #allocation1 [shape = 'u32[72,128]{1,0:T(1,128)}', space=vmem, size = 0x9000, scoped, tag = 'internal scratch']
  #allocation2 [shape = 'f32[32,8]{1,0:T(8,128)}', space=vmem, size = 0x4000, scoped, tag = 'scratch operand']
  %s0 = inlined_call_operand.vmem [shape: bf16[32,3072], index: 0, kind: input, shape index: {}]
  %s1 = inlined_call_operand.vmem [shape: bf16[3072,8], index: 1, kind: input, shape index: {}]
  %s2 = inlined_call_operand.vmem [shape: f32[1,8], index: 2, kind: input, shape index: {}]
  %s3 = inlined_call_operand.vmem [shape: f32[32,8], index: 3, kind: output, shape index: {}]
  %s4 = sld [smem:[#allocation0]]
  $region76: #{hcnet_forward.21} parent=0
    _
  %s6 = ssub.s32 1, %s4
  %s7 = scalar_select 0, %s6, %s4
  $region1: #{hcnet_forward.21} parent=0
    #allocation3 [shape = 'u8[131072]{0}', space=vmem, size = 0x20000, scoped, tag = 'input window, operand 0']
    loop: start=0, step=1, limit=5
    $region2: #{hcnet_forward.21} parent=1 // loop_pre_header
      _
    $region3: #{hcnet_forward.21} parent=1 // loop_header
      %s9 = sphi 0, %s13
      %p10 = scmp.ge.s32.totalorder %s9, 5
      %s16 = sphi 0, %s28
      %s17 = sphi 0, %s24
      %s18 = sphi 0, %s16
      %s19 = sphi 0, %s17
      %s20 = sphi 0, %s18
      %s21 = sphi 0, %s19
      %s33 = sphi 0, %s35
      %s36 = sphi 0, %s33
      %s37 = sphi 0, %s36
      %s53 = sphi 0, %s37
      %s59 = sphi 0, %s61
      %s62 = sphi 0, %s59
      %s63 = sphi 0, %s62
      %s79 = sphi 0, %s63
      %s83 = sphi 0, %s83
      %s85 = sphi 0, %s83
      %s86 = sphi 0, %s85
      %s100 = sphi 0, %s86
      %s106 = sphi 0, %s108
      %s109 = sphi 0, %s106
      %s110 = sphi 0, %s109
      %s126 = sphi 0, %s110
    $region4: #{hcnet_forward.21} parent=1 // loop_header_branch
      %12 = sbr.rel (%p10) target = $region8
    $region5: #{hcnet_forward.21} parent=1 // loop_body
      %s14 = ssub.s32 %s9, 1
      %s15 = ssub.s32 %s9, 2
      %s22 = sadd.s32 1, %s17
      %p23 = scmp.ge.s32.totalorder %s22, 3
      %s24 = scalar_select %p23, 0, %s22
      %s25 = sadd.s32 1, %s16
      %s26 = scalar_select %p23, %s25, %s16
      %p27 = scmp.ge.s32.totalorder %s26, 1
      %s28 = scalar_select %p27, 0, %s26
      %s29 = ssub.s32 %s16, %s28
      %s30 = ssub.s32 %s17, %s24
      %s31 = sor.u32 %s29, %s30
      %p32 = scmp.eq.s32.totalorder %s31, 0
      %s34 = sadd.s32 %s33, 1
      %s35 = scalar_select %p32, %s33, %s34
      %p38 = pneg %p32
      %p39 = scmp.eq.s32.totalorder %s9, 2
      %p40 = por %p38, %p39
      %p41 = scmp.ne.s32.totalorder %s33, %s36
      %p42 = scmp.eq.s32.totalorder %s9, 0
      %p43 = por %p41, %p42
      %p44 = scmp.ne.s32.totalorder %s33, %s36
      %p45 = scmp.eq.s32.totalorder %s14, 2
      %p46 = por %p44, %p45
      %p47 = scmp.ne.s32.totalorder %s36, %s37
      %p48 = scmp.eq.s32.totalorder %s14, 0
      %p49 = por %p47, %p48
      %p50 = scmp.ne.s32.totalorder %s36, %s37
      %p51 = scmp.eq.s32.totalorder %s15, 2
      %p52 = por %p50, %p51
      %p54 = scmp.ne.s32.totalorder %s37, %s53
      %p55 = scmp.eq.s32.totalorder %s15, 0
      %p56 = por %p54, %p55
      %s57 = ssub.s32 %s17, %s24
      %p58 = scmp.eq.s32.totalorder %s57, 0
      %s60 = sadd.s32 %s59, 1
      %s61 = scalar_select %p58, %s59, %s60
      %p64 = pneg %p58
      %p65 = scmp.eq.s32.totalorder %s9, 2
      %p66 = por %p64, %p65
      %p67 = scmp.ne.s32.totalorder %s59, %s62
      %p68 = scmp.eq.s32.totalorder %s9, 0
      %p69 = por %p67, %p68
      %p70 = scmp.ne.s32.totalorder %s59, %s62
      %p71 = scmp.eq.s32.totalorder %s14, 2
      %p72 = por %p70, %p71
      %p73 = scmp.ne.s32.totalorder %s62, %s63
      %p74 = scmp.eq.s32.totalorder %s14, 0
      %p75 = por %p73, %p74
      %p76 = scmp.ne.s32.totalorder %s62, %s63
      %p77 = scmp.eq.s32.totalorder %s15, 2
      %p78 = por %p76, %p77
      %p80 = scmp.ne.s32.totalorder %s63, %s79
      %p81 = scmp.eq.s32.totalorder %s15, 0
      %p82 = por %p80, %p81
      %s84 = sadd.s32 %s83, 1
      %p87 = scmp.eq.s32.totalorder %s9, 2
      %p88 = scmp.ne.s32.totalorder %s83, %s85
      %p89 = scmp.eq.s32.totalorder %s9, 0
      %p90 = por %p88, %p89
      %p91 = scmp.ne.s32.totalorder %s83, %s85
      %p92 = scmp.eq.s32.totalorder %s14, 2
      %p93 = por %p91, %p92
      %p94 = scmp.ne.s32.totalorder %s85, %s86
      %p95 = scmp.eq.s32.totalorder %s14, 0
      %p96 = por %p94, %p95
      %p97 = scmp.ne.s32.totalorder %s85, %s86
      %p98 = scmp.eq.s32.totalorder %s15, 2
      %p99 = por %p97, %p98
      %p101 = scmp.ne.s32.totalorder %s86, %s100
      %p102 = scmp.eq.s32.totalorder %s15, 0
      %p103 = por %p101, %p102
      %s104 = ssub.s32 %s16, %s28
      %p105 = scmp.eq.s32.totalorder %s104, 0
      %s107 = sadd.s32 %s106, 1
      %s108 = scalar_select %p105, %s106, %s107
      %p111 = pneg %p105
      %p112 = scmp.eq.s32.totalorder %s9, 2
      %p113 = por %p111, %p112
      %p114 = scmp.ne.s32.totalorder %s106, %s109
      %p115 = scmp.eq.s32.totalorder %s9, 0
      %p116 = por %p114, %p115
      %p117 = scmp.ne.s32.totalorder %s106, %s109
      %p118 = scmp.eq.s32.totalorder %s14, 2
      %p119 = por %p117, %p118
      %p120 = scmp.ne.s32.totalorder %s109, %s110
      %p121 = scmp.eq.s32.totalorder %s14, 0
      %p122 = por %p120, %p121
      %p123 = scmp.ne.s32.totalorder %s109, %s110
      %p124 = scmp.eq.s32.totalorder %s15, 2
      %p125 = por %p123, %p124
      %p127 = scmp.ne.s32.totalorder %s110, %s126
      %p128 = scmp.eq.s32.totalorder %s15, 0
      %p129 = por %p127, %p128
      %p130 = scmp.le.s32.totalorder 1, %s9
      %p131 = scmp.lt.s32.totalorder %s9, 4
      %p132 = pnand %p130, %p131
      %p133 = pneg %p132
      // Predicated region
      $region9: #{hcnet_forward.21} parent=5 // pred_check
        _
      $region10: #{hcnet_forward.21} parent=5 // pred_check_branch
        %135 = sbr.rel (%p132) target = $region12
      $region11: #{hcnet_forward.21} parent=5 // pred_region
        %s136 = ssub.s32 %s9, 1
        // Predicated region
        $region13: #{hcnet_forward.21} parent=11 // pred_check
          %p137 = pneg %p96
        $region14: #{hcnet_forward.21} parent=11 // pred_check_branch
          %139 = sbr.rel (%p137) target = $region16
        $region15: #{hcnet_forward.21} parent=11 // pred_region
          _
        $region16: #{hcnet_forward.21} parent=11 // pred_fallthru
          _
      $region12: #{hcnet_forward.21} parent=5 // pred_fallthru
        _
      %p140 = scmp.lt.s32.totalorder %s9, 3
      // Predicated region
      $region17: #{hcnet_forward.21} parent=5 // pred_check
        %p141 = pneg %p140
      $region18: #{hcnet_forward.21} parent=5 // pred_check_branch
        %143 = sbr.rel (%p141) target = $region20
      $region19: #{hcnet_forward.21} parent=5 // pred_region
        // Predicated region
        $region21: #{hcnet_forward.21} parent=19 // pred_check
          %p144 = pneg %p43
        $region22: #{hcnet_forward.21} parent=19 // pred_check_branch
          %146 = sbr.rel (%p144) target = $region24
        $region23: #{hcnet_forward.21} parent=19 // pred_region
          %s147 = sand.u32 %s33, 1
          %s148 = sand.u32 %s33, 1
          %s149 = smul.addr %s148, 128
          %s150 = scalar_lea.vmem [#allocation3], %s149
          %s151 = smul.u32 4, %s16
          %s152 = smul.u32 8, %s17
          %s153 = smul.addr %s151, 24
          %s154 = sadd.s32 %s152, %s153
          %s155 = smul.addr %s154, 4
          %s156 = scalar_lea.vmem %s0, %s155
          // Predicated region
          $region25: #{hcnet_forward.21} parent=23 // pred_check
            _
          $region26: #{hcnet_forward.21} parent=23 // pred_check_branch
            %158 = sbr.rel (0) target = $region28
          $region27: #{hcnet_forward.21} parent=23 // pred_region
            // Predicated region
            $region29: #{hcnet_forward.21} parent=27 // pred_check
              _
            $region30: #{hcnet_forward.21} parent=27 // pred_check_branch
              %160 = sbr.rel (0) target = $region32
            $region31: #{hcnet_forward.21} parent=27 // pred_region
              loop: start=0, step=1, limit=1
              $region33: #{hcnet_forward.21} parent=31 // loop_pre_header
                _
              $region34: #{hcnet_forward.21} parent=31 // loop_header
                %s162 = sphi 0, %s166
                %p163 = scmp.ge.s32.totalorder %s162, 1
                %s167 = sphi %s156, %s156
                %s168 = sphi %s150, %s150
              $region35: #{hcnet_forward.21} parent=31 // loop_header_branch
                %165 = sbr.rel (%p163) target = $region39
              $region36: #{hcnet_forward.21} parent=31 // loop_body
                %v169 = vld [vmem:[%s167] sm:$0xff]
                %170 = vst [vmem:[%s168] sm:$0xff] %v169
                %v171 = vld [vmem:[%s167 + $0x8] sm:$0xff]
                %172 = vst [vmem:[%s168 + $0x8] sm:$0xff] %v171
                %v173 = vld [vmem:[%s167 + $0x10] sm:$0xff]
                %174 = vst [vmem:[%s168 + $0x10] sm:$0xff] %v173
                %v175 = vld [vmem:[%s167 + $0x18] sm:$0xff]
                %176 = vst [vmem:[%s168 + $0x18] sm:$0xff] %v175
                %v177 = vld [vmem:[%s167 + $0x60] sm:$0xff]
                %178 = vst [vmem:[%s168 + $0x20] sm:$0xff] %v177
                %v179 = vld [vmem:[%s167 + $0x68] sm:$0xff]
                %180 = vst [vmem:[%s168 + $0x28] sm:$0xff] %v179
                %v181 = vld [vmem:[%s167 + $0x70] sm:$0xff]
                %182 = vst [vmem:[%s168 + $0x30] sm:$0xff] %v181
                %v183 = vld [vmem:[%s167 + $0x78] sm:$0xff]
                %184 = vst [vmem:[%s168 + $0x38] sm:$0xff] %v183
                %v185 = vld [vmem:[%s167 + $0xc0] sm:$0xff]
                %186 = vst [vmem:[%s168 + $0x40] sm:$0xff] %v185
                %v187 = vld [vmem:[%s167 + $0xc8] sm:$0xff]
                %188 = vst [vmem:[%s168 + $0x48] sm:$0xff] %v187
                %v189 = vld [vmem:[%s167 + $0xd0] sm:$0xff]
                %190 = vst [vmem:[%s168 + $0x50] sm:$0xff] %v189
                %v191 = vld [vmem:[%s167 + $0xd8] sm:$0xff]
                %192 = vst [vmem:[%s168 + $0x58] sm:$0xff] %v191
                %v193 = vld [vmem:[%s167 + $0x120] sm:$0xff]
                %194 = vst [vmem:[%s168 + $0x60] sm:$0xff] %v193
                %v195 = vld [vmem:[%s167 + $0x128] sm:$0xff]
                %196 = vst [vmem:[%s168 + $0x68] sm:$0xff] %v195
                %v197 = vld [vmem:[%s167 + $0x130] sm:$0xff]
                %198 = vst [vmem:[%s168 + $0x70] sm:$0xff] %v197
                %v199 = vld [vmem:[%s167 + $0x138] sm:$0xff]
                %200 = vst [vmem:[%s168 + $0x78] sm:$0xff] %v199
              $region37: #{hcnet_forward.21} parent=31 // loop_footer
                %s166 = sadd.s32 1, %s162
              $region38: #{hcnet_forward.21} parent=31 // loop_footer_branch
                %161 = sbr.rel target = $region34
              $region39: #{hcnet_forward.21} parent=31 // loop_exit
                _
            $region32: #{hcnet_forward.21} parent=27 // pred_fallthru
              _
            // Predicated region
            $region40: #{hcnet_forward.21} parent=27 // pred_check
              _
            $region41: #{hcnet_forward.21} parent=27 // pred_check_branch
              %202 = sbr.rel target = $region43
            $region42: #{hcnet_forward.21} parent=27 // pred_region
              _
            $region43: #{hcnet_forward.21} parent=27 // pred_fallthru
              _
          $region28: #{hcnet_forward.21} parent=23 // pred_fallthru
            _
          %203 = vnop
        $region24: #{hcnet_forward.21} parent=19 // pred_fallthru
          _
        // Predicated region
        $region44: #{hcnet_forward.21} parent=19 // pred_check
          %p204 = pneg %p69
        $region45: #{hcnet_forward.21} parent=19 // pred_check_branch
          %206 = sbr.rel (%p204) target = $region47
        $region46: #{hcnet_forward.21} parent=19 // pred_region
          %s207 = smul.u32 128, %s17
          %p208 = scmp.lt.s32.totalorder %s207, 383
          %s209 = scalar_select %p208, %s207, 383
          %s210 = smul.addr %s209, 4
          %s211 = scalar_lea.vmem %s1, %s210
          %s212 = smul.u32 128, %s17
        $region47: #{hcnet_forward.21} parent=19 // pred_fallthru
          _
      $region20: #{hcnet_forward.21} parent=5 // pred_fallthru
        _
      %p213 = scmp.le.s32.totalorder 1, %s9
      %p214 = scmp.lt.s32.totalorder %s9, 4
      %p215 = pnand %p213, %p214
      %p216 = pneg %p215
      // Predicated region
      $region48: #{hcnet_forward.21} parent=5 // pred_check
        _
      $region49: #{hcnet_forward.21} parent=5 // pred_check_branch
        %218 = sbr.rel (%p215) target = $region51
      $region50: #{hcnet_forward.21} parent=5 // pred_region
        %s219 = ssub.s32 %s9, 1
        %s220 = sand.u32 %s36, 1
        %s221 = sand.u32 %s36, 1
        %s222 = smul.addr %s221, 128
        %s223 = scalar_lea.vmem [#allocation3], %s222
        // Predicated region
        $region52: #{hcnet_forward.21} parent=50 // pred_check
          %p224 = pneg %p49
        $region53: #{hcnet_forward.21} parent=50 // pred_check_branch
          %226 = sbr.rel (%p224) target = $region55
        $region54: #{hcnet_forward.21} parent=50 // pred_region
          _
        $region55: #{hcnet_forward.21} parent=50 // pred_fallthru
          _
        %s227 = sand.u32 %s36, 1
        %s228 = sand.u32 %s36, 1
        %s229 = smul.addr %s228, 128
        %s230 = scalar_lea.vmem [#allocation3], %s229
        %p231 = pneg %p49
        %p232 = pneg %p46
        %s233 = smul.u32 128, %s19
        %p234 = scmp.lt.s32.totalorder %s233, 383
        %s235 = scalar_select %p234, %s233, 383
        %s236 = smul.addr %s235, 4
        %s237 = scalar_lea.vmem %s1, %s236
        %p238 = pneg %p75
        %p239 = pneg %p72
        %p240 = pneg %p96
        %p241 = pneg %p93
        %p242 = pneg %p122
        %p243 = pneg %p119
        %s244 = smul.u32 4, %s18
        %p245 = scmp.lt.s32.totalorder %s244, 3
        %s246 = scalar_select %p245, %s244, 3
        %s247 = smul.addr %s246, 8
        %s248 = scalar_lea.vmem %s3, %s247
        %s249 = smul.u32 4, %s18
        %s250 = smul.u32 8, %s19
        %s251 = smul.u32 128, %s19
        %p252 = scmp.lt.s32.totalorder %s251, 383
        %s253 = scalar_select %p252, %s251, 383
        %s254 = smul.addr %s253, 4
        %s255 = scalar_lea.vmem %s1, %s254
        %s256 = smul.u32 128, %s19
        %s257 = smul.u32 4, %s18
        %p258 = scmp.lt.s32.totalorder %s257, 3
        %s259 = scalar_select %p258, %s257, 3
        %s260 = smul.addr %s259, 8
        %s261 = scalar_lea.vmem %s3, %s260
        %s262 = smul.u32 4, %s18
        %p263 = scmp.eq.s32.totalorder %s19, 0
        // Predicated region
        $region56: #{hcnet_forward.21} parent=50 // pred_check
          %p264 = pneg %p263
        $region57: #{hcnet_forward.21} parent=50 // pred_check_branch
          %266 = sbr.rel (%p264) target = $region59
        $region58: #{hcnet_forward.21} parent=50 // pred_region
          %vm267 = vcmask 64512
          %268 = vst.msk [vmem:[#allocation2] sm:$0xff] %vm267, 0.0
          %269 = vst.msk [vmem:[#allocation2 + $0x8] sm:$0xff] %vm267, 0.0
          %270 = vst.msk [vmem:[#allocation2 + $0x10] sm:$0xff] %vm267, 0.0
          %271 = vst.msk [vmem:[#allocation2 + $0x18] sm:$0xff] %vm267, 0.0
        $region59: #{hcnet_forward.21} parent=50 // pred_fallthru
          _
        %v272 = vld [vmem:[#allocation2] sm:$0xff]
        %v273 = vld [vmem:[#allocation2 + $0x8] sm:$0xff]
        %v274 = vld [vmem:[#allocation2 + $0x10] sm:$0xff]
        %v275 = vld [vmem:[#allocation2 + $0x18] sm:$0xff]
        %v276 = vld [vmem:[%s223] sm:$0xff]
        %v277 = vld [vmem:[%s223 + $0x8] sm:$0xff]
        %v278 = vld [vmem:[%s223 + $0x10] sm:$0xff]
        %v279 = vld [vmem:[%s223 + $0x18] sm:$0xff]
        %v280 = vld [vmem:[%s223 + $0x20] sm:$0xff]
        %v281 = vld [vmem:[%s223 + $0x28] sm:$0xff]
        %v282 = vld [vmem:[%s223 + $0x30] sm:$0xff]
        %v283 = vld [vmem:[%s223 + $0x38] sm:$0xff]
        %v284 = vld [vmem:[%s223 + $0x40] sm:$0xff]
        %v285 = vld [vmem:[%s223 + $0x48] sm:$0xff]
        %v286 = vld [vmem:[%s223 + $0x50] sm:$0xff]
        %v287 = vld [vmem:[%s223 + $0x58] sm:$0xff]
        %v288 = vld [vmem:[%s223 + $0x60] sm:$0xff]
        %v289 = vld [vmem:[%s223 + $0x68] sm:$0xff]
        %v290 = vld [vmem:[%s223 + $0x70] sm:$0xff]
        %v291 = vld [vmem:[%s223 + $0x78] sm:$0xff]
        %v292 = vld [vmem:[%s255] sm:$0xf]
        %v293 = vld [vmem:[%s255 + $0x4] sm:$0xf]
        %v294 = vld [vmem:[%s255 + $0x8] sm:$0xf]
        %v295 = vld [vmem:[%s255 + $0xc] sm:$0xf]
        %v296 = vld [vmem:[%s255 + $0x10] sm:$0xf]
        %v297 = vld [vmem:[%s255 + $0x14] sm:$0xf]
        %v298 = vld [vmem:[%s255 + $0x18] sm:$0xf]
        %v299 = vld [vmem:[%s255 + $0x1c] sm:$0xf]
        %v300 = vld [vmem:[%s255 + $0x20] sm:$0xf]
        %v301 = vld [vmem:[%s255 + $0x24] sm:$0xf]
        %v302 = vld [vmem:[%s255 + $0x28] sm:$0xf]
        %v303 = vld [vmem:[%s255 + $0x2c] sm:$0xf]
        %v304 = vld [vmem:[%s255 + $0x30] sm:$0xf]
        %v305 = vld [vmem:[%s255 + $0x34] sm:$0xf]
        %v306 = vld [vmem:[%s255 + $0x38] sm:$0xf]
        %v307 = vld [vmem:[%s255 + $0x3c] sm:$0xf]
        %v308 = vld [vmem:[%s255 + $0x40] sm:$0xf]
        %v309 = vld [vmem:[%s255 + $0x44] sm:$0xf]
        %v310 = vld [vmem:[%s255 + $0x48] sm:$0xf]
        %v311 = vld [vmem:[%s255 + $0x4c] sm:$0xf]
        %v312 = vld [vmem:[%s255 + $0x50] sm:$0xf]
        %v313 = vld [vmem:[%s255 + $0x54] sm:$0xf]
        %v314 = vld [vmem:[%s255 + $0x58] sm:$0xf]
        %v315 = vld [vmem:[%s255 + $0x5c] sm:$0xf]
        %v316 = vld [vmem:[%s255 + $0x60] sm:$0xf]
        %v317 = vld [vmem:[%s255 + $0x64] sm:$0xf]
        %v318 = vld [vmem:[%s255 + $0x68] sm:$0xf]
        %v319 = vld [vmem:[%s255 + $0x6c] sm:$0xf]
        %v320 = vld [vmem:[%s255 + $0x70] sm:$0xf]
        %v321 = vld [vmem:[%s255 + $0x74] sm:$0xf]
        %v322 = vld [vmem:[%s255 + $0x78] sm:$0xf]
        %v323 = vld [vmem:[%s255 + $0x7c] sm:$0xf]
        %v324 = vld [vmem:[%s255 + $0x80] sm:$0xf]
        %v325 = vld [vmem:[%s255 + $0x84] sm:$0xf]
        %v326 = vld [vmem:[%s255 + $0x88] sm:$0xf]
        %v327 = vld [vmem:[%s255 + $0x8c] sm:$0xf]
        %v328 = vld [vmem:[%s255 + $0x90] sm:$0xf]
        %v329 = vld [vmem:[%s255 + $0x94] sm:$0xf]
        %v330 = vld [vmem:[%s255 + $0x98] sm:$0xf]
        %v331 = vld [vmem:[%s255 + $0x9c] sm:$0xf]
        %v332 = vld [vmem:[%s255 + $0xa0] sm:$0xf]
        %v333 = vld [vmem:[%s255 + $0xa4] sm:$0xf]
        %v334 = vld [vmem:[%s255 + $0xa8] sm:$0xf]
        %v335 = vld [vmem:[%s255 + $0xac] sm:$0xf]
        %v336 = vld [vmem:[%s255 + $0xb0] sm:$0xf]
        %v337 = vld [vmem:[%s255 + $0xb4] sm:$0xf]
        %v338 = vld [vmem:[%s255 + $0xb8] sm:$0xf]
        %v339 = vld [vmem:[%s255 + $0xbc] sm:$0xf]
        %v340 = vld [vmem:[%s255 + $0xc0] sm:$0xf]
        %v341 = vld [vmem:[%s255 + $0xc4] sm:$0xf]
        %v342 = vld [vmem:[%s255 + $0xc8] sm:$0xf]
        %v343 = vld [vmem:[%s255 + $0xcc] sm:$0xf]
        %v344 = vld [vmem:[%s255 + $0xd0] sm:$0xf]
        %v345 = vld [vmem:[%s255 + $0xd4] sm:$0xf]
        %v346 = vld [vmem:[%s255 + $0xd8] sm:$0xf]
        %v347 = vld [vmem:[%s255 + $0xdc] sm:$0xf]
        %v348 = vld [vmem:[%s255 + $0xe0] sm:$0xf]
        %v349 = vld [vmem:[%s255 + $0xe4] sm:$0xf]
        %v350 = vld [vmem:[%s255 + $0xe8] sm:$0xf]
        %v351 = vld [vmem:[%s255 + $0xec] sm:$0xf]
        %v352 = vld [vmem:[%s255 + $0xf0] sm:$0xf]
        %v353 = vld [vmem:[%s255 + $0xf4] sm:$0xf]
        %v354 = vld [vmem:[%s255 + $0xf8] sm:$0xf]
        %v355 = vld [vmem:[%s255 + $0xfc] sm:$0xf]
        %v356 = vld [vmem:[%s255 + $0x100] sm:$0xf]
        %v357 = vld [vmem:[%s255 + $0x104] sm:$0xf]
        %v358 = vld [vmem:[%s255 + $0x108] sm:$0xf]
        %v359 = vld [vmem:[%s255 + $0x10c] sm:$0xf]
        %v360 = vld [vmem:[%s255 + $0x110] sm:$0xf]
        %v361 = vld [vmem:[%s255 + $0x114] sm:$0xf]
        %v362 = vld [vmem:[%s255 + $0x118] sm:$0xf]
        %v363 = vld [vmem:[%s255 + $0x11c] sm:$0xf]
        %v364 = vld [vmem:[%s255 + $0x120] sm:$0xf]
        %v365 = vld [vmem:[%s255 + $0x124] sm:$0xf]
        %v366 = vld [vmem:[%s255 + $0x128] sm:$0xf]
        %v367 = vld [vmem:[%s255 + $0x12c] sm:$0xf]
        %v368 = vld [vmem:[%s255 + $0x130] sm:$0xf]
        %v369 = vld [vmem:[%s255 + $0x134] sm:$0xf]
        %v370 = vld [vmem:[%s255 + $0x138] sm:$0xf]
        %v371 = vld [vmem:[%s255 + $0x13c] sm:$0xf]
        %v372 = vld [vmem:[%s255 + $0x140] sm:$0xf]
        %v373 = vld [vmem:[%s255 + $0x144] sm:$0xf]
        %v374 = vld [vmem:[%s255 + $0x148] sm:$0xf]
        %v375 = vld [vmem:[%s255 + $0x14c] sm:$0xf]
        %v376 = vld [vmem:[%s255 + $0x150] sm:$0xf]
        %v377 = vld [vmem:[%s255 + $0x154] sm:$0xf]
        %v378 = vld [vmem:[%s255 + $0x158] sm:$0xf]
        %v379 = vld [vmem:[%s255 + $0x15c] sm:$0xf]
        %v380 = vld [vmem:[%s255 + $0x160] sm:$0xf]
        %v381 = vld [vmem:[%s255 + $0x164] sm:$0xf]
        %v382 = vld [vmem:[%s255 + $0x168] sm:$0xf]
        %v383 = vld [vmem:[%s255 + $0x16c] sm:$0xf]
        %v384 = vld [vmem:[%s255 + $0x170] sm:$0xf]
        %v385 = vld [vmem:[%s255 + $0x174] sm:$0xf]
        %v386 = vld [vmem:[%s255 + $0x178] sm:$0xf]
        %v387 = vld [vmem:[%s255 + $0x17c] sm:$0xf]
        %v388 = vld [vmem:[%s255 + $0x180] sm:$0xf]
        %v389 = vld [vmem:[%s255 + $0x184] sm:$0xf]
        %v390 = vld [vmem:[%s255 + $0x188] sm:$0xf]
        %v391 = vld [vmem:[%s255 + $0x18c] sm:$0xf]
        %v392 = vld [vmem:[%s255 + $0x190] sm:$0xf]
        %v393 = vld [vmem:[%s255 + $0x194] sm:$0xf]
        %v394 = vld [vmem:[%s255 + $0x198] sm:$0xf]
        %v395 = vld [vmem:[%s255 + $0x19c] sm:$0xf]
        %v396 = vld [vmem:[%s255 + $0x1a0] sm:$0xf]
        %v397 = vld [vmem:[%s255 + $0x1a4] sm:$0xf]
        %v398 = vld [vmem:[%s255 + $0x1a8] sm:$0xf]
        %v399 = vld [vmem:[%s255 + $0x1ac] sm:$0xf]
        %v400 = vld [vmem:[%s255 + $0x1b0] sm:$0xf]
        %v401 = vld [vmem:[%s255 + $0x1b4] sm:$0xf]
        %v402 = vld [vmem:[%s255 + $0x1b8] sm:$0xf]
        %v403 = vld [vmem:[%s255 + $0x1bc] sm:$0xf]
        %v404 = vld [vmem:[%s255 + $0x1c0] sm:$0xf]
        %v405 = vld [vmem:[%s255 + $0x1c4] sm:$0xf]
        %v406 = vld [vmem:[%s255 + $0x1c8] sm:$0xf]
        %v407 = vld [vmem:[%s255 + $0x1cc] sm:$0xf]
        %v408 = vld [vmem:[%s255 + $0x1d0] sm:$0xf]
        %v409 = vld [vmem:[%s255 + $0x1d4] sm:$0xf]
        %v410 = vld [vmem:[%s255 + $0x1d8] sm:$0xf]
        %v411 = vld [vmem:[%s255 + $0x1dc] sm:$0xf]
        %v412 = vld [vmem:[%s255 + $0x1e0] sm:$0xf]
        %v413 = vld [vmem:[%s255 + $0x1e4] sm:$0xf]
        %v414 = vld [vmem:[%s255 + $0x1e8] sm:$0xf]
        %v415 = vld [vmem:[%s255 + $0x1ec] sm:$0xf]
        %v416 = vld [vmem:[%s255 + $0x1f0] sm:$0xf]
        %v417 = vld [vmem:[%s255 + $0x1f4] sm:$0xf]
        %v418 = vld [vmem:[%s255 + $0x1f8] sm:$0xf]
        %v419 = vld [vmem:[%s255 + $0x1fc] sm:$0xf]
        %v436 = vunpack.c.l.b16 %v276
        %v437 = vunpack.c.h.b16 %v276
        %v438 = vunpack.c.l.b16 %v277
        %v439 = vunpack.c.h.b16 %v277
        %v440 = vunpack.c.l.b16 %v278
        %v441 = vunpack.c.h.b16 %v278
        %v442 = vunpack.c.l.b16 %v279
        %v443 = vunpack.c.h.b16 %v279
        %v444 = vunpack.c.l.b16 %v280
        %v445 = vunpack.c.h.b16 %v280
        %v446 = vunpack.c.l.b16 %v281
        %v447 = vunpack.c.h.b16 %v281
        %v448 = vunpack.c.l.b16 %v282
        %v449 = vunpack.c.h.b16 %v282
        %v450 = vunpack.c.l.b16 %v283
        %v451 = vunpack.c.h.b16 %v283
        %v452 = vunpack.c.l.b16 %v284
        %v453 = vunpack.c.h.b16 %v284
        %v454 = vunpack.c.l.b16 %v285
        %v455 = vunpack.c.h.b16 %v285
        %v456 = vunpack.c.l.b16 %v286
        %v457 = vunpack.c.h.b16 %v286
        %v458 = vunpack.c.l.b16 %v287
        %v459 = vunpack.c.h.b16 %v287
        %v460 = vunpack.c.l.b16 %v288
        %v461 = vunpack.c.h.b16 %v288
        %v462 = vunpack.c.l.b16 %v289
        %v463 = vunpack.c.h.b16 %v289
        %v464 = vunpack.c.l.b16 %v290
        %v465 = vunpack.c.h.b16 %v290
        %v466 = vunpack.c.l.b16 %v291
        %v467 = vunpack.c.h.b16 %v291
        %v468 = vpack.c.b16 %v444, %v436
        %v469 = vpack.c.b16 %v445, %v437
        %v470 = vpack.c.b16 %v446, %v438
        %v471 = vpack.c.b16 %v447, %v439
        %v472 = vpack.c.b16 %v448, %v440
        %v473 = vpack.c.b16 %v449, %v441
        %v474 = vpack.c.b16 %v450, %v442
        %v475 = vpack.c.b16 %v451, %v443
        %v476 = vpack.c.b16 %v460, %v452
        %v477 = vpack.c.b16 %v461, %v453
        %v478 = vpack.c.b16 %v462, %v454
        %v479 = vpack.c.b16 %v463, %v455
        %v480 = vpack.c.b16 %v464, %v456
        %v481 = vpack.c.b16 %v465, %v457
        %v482 = vpack.c.b16 %v466, %v458
        %v483 = vpack.c.b16 %v467, %v459
        %v628 = vunpack.c.l.b16 %v292
        %v629 = vunpack.c.l.b16 %v293
        %v630 = vunpack.c.l.b16 %v294
        %v631 = vunpack.c.l.b16 %v295
        %v632 = vunpack.c.l.b16 %v296
        %v633 = vunpack.c.l.b16 %v297
        %v634 = vunpack.c.l.b16 %v298
        %v635 = vunpack.c.l.b16 %v299
        %v636 = vunpack.c.l.b16 %v300
        %v637 = vunpack.c.l.b16 %v301
        %v638 = vunpack.c.l.b16 %v302
        %v639 = vunpack.c.l.b16 %v303
        %v640 = vunpack.c.l.b16 %v304
        %v641 = vunpack.c.l.b16 %v305
        %v642 = vunpack.c.l.b16 %v306
        %v643 = vunpack.c.l.b16 %v307
        %v644 = vunpack.c.l.b16 %v308
        %v645 = vunpack.c.l.b16 %v309
        %v646 = vunpack.c.l.b16 %v310
        %v647 = vunpack.c.l.b16 %v311
        %v648 = vunpack.c.l.b16 %v312
        %v649 = vunpack.c.l.b16 %v313
        %v650 = vunpack.c.l.b16 %v314
        %v651 = vunpack.c.l.b16 %v315
        %v652 = vunpack.c.l.b16 %v316
        %v653 = vunpack.c.l.b16 %v317
        %v654 = vunpack.c.l.b16 %v318
        %v655 = vunpack.c.l.b16 %v319
        %v656 = vunpack.c.l.b16 %v320
        %v657 = vunpack.c.l.b16 %v321
        %v658 = vunpack.c.l.b16 %v322
        %v659 = vunpack.c.l.b16 %v323
        %v660 = vunpack.c.l.b16 %v324
        %v661 = vunpack.c.l.b16 %v325
        %v662 = vunpack.c.l.b16 %v326
        %v663 = vunpack.c.l.b16 %v327
        %v664 = vunpack.c.l.b16 %v328
        %v665 = vunpack.c.l.b16 %v329
        %v666 = vunpack.c.l.b16 %v330
        %v667 = vunpack.c.l.b16 %v331
        %v668 = vunpack.c.l.b16 %v332
        %v669 = vunpack.c.l.b16 %v333
        %v670 = vunpack.c.l.b16 %v334
        %v671 = vunpack.c.l.b16 %v335
        %v672 = vunpack.c.l.b16 %v336
        %v673 = vunpack.c.l.b16 %v337
        %v674 = vunpack.c.l.b16 %v338
        %v675 = vunpack.c.l.b16 %v339
        %v676 = vunpack.c.l.b16 %v340
        %v677 = vunpack.c.l.b16 %v341
        %v678 = vunpack.c.l.b16 %v342
        %v679 = vunpack.c.l.b16 %v343
        %v680 = vunpack.c.l.b16 %v344
        %v681 = vunpack.c.l.b16 %v345
        %v682 = vunpack.c.l.b16 %v346
        %v683 = vunpack.c.l.b16 %v347
        %v684 = vunpack.c.l.b16 %v348
        %v685 = vunpack.c.l.b16 %v349
        %v686 = vunpack.c.l.b16 %v350
        %v687 = vunpack.c.l.b16 %v351
        %v688 = vunpack.c.l.b16 %v352
        %v689 = vunpack.c.l.b16 %v353
        %v690 = vunpack.c.l.b16 %v354
        %v691 = vunpack.c.l.b16 %v355
        %v692 = vunpack.c.l.b16 %v356
        %v693 = vunpack.c.l.b16 %v357
        %v694 = vunpack.c.l.b16 %v358
        %v695 = vunpack.c.l.b16 %v359
        %v696 = vunpack.c.l.b16 %v360
        %v697 = vunpack.c.l.b16 %v361
        %v698 = vunpack.c.l.b16 %v362
        %v699 = vunpack.c.l.b16 %v363
        %v700 = vunpack.c.l.b16 %v364
        %v701 = vunpack.c.l.b16 %v365
        %v702 = vunpack.c.l.b16 %v366
        %v703 = vunpack.c.l.b16 %v367
        %v704 = vunpack.c.l.b16 %v368
        %v705 = vunpack.c.l.b16 %v369
        %v706 = vunpack.c.l.b16 %v370
        %v707 = vunpack.c.l.b16 %v371
        %v708 = vunpack.c.l.b16 %v372
        %v709 = vunpack.c.l.b16 %v373
        %v710 = vunpack.c.l.b16 %v374
        %v711 = vunpack.c.l.b16 %v375
        %v712 = vunpack.c.l.b16 %v376
        %v713 = vunpack.c.l.b16 %v377
        %v714 = vunpack.c.l.b16 %v378
        %v715 = vunpack.c.l.b16 %v379
        %v716 = vunpack.c.l.b16 %v380
        %v717 = vunpack.c.l.b16 %v381
        %v718 = vunpack.c.l.b16 %v382
        %v719 = vunpack.c.l.b16 %v383
        %v720 = vunpack.c.l.b16 %v384
        %v721 = vunpack.c.l.b16 %v385
        %v722 = vunpack.c.l.b16 %v386
        %v723 = vunpack.c.l.b16 %v387
        %v724 = vunpack.c.l.b16 %v388
        %v725 = vunpack.c.l.b16 %v389
        %v726 = vunpack.c.l.b16 %v390
        %v727 = vunpack.c.l.b16 %v391
        %v728 = vunpack.c.l.b16 %v392
        %v729 = vunpack.c.l.b16 %v393
        %v730 = vunpack.c.l.b16 %v394
        %v731 = vunpack.c.l.b16 %v395
        %v732 = vunpack.c.l.b16 %v396
        %v733 = vunpack.c.l.b16 %v397
        %v734 = vunpack.c.l.b16 %v398
        %v735 = vunpack.c.l.b16 %v399
        %v736 = vunpack.c.l.b16 %v400
        %v737 = vunpack.c.l.b16 %v401
        %v738 = vunpack.c.l.b16 %v402
        %v739 = vunpack.c.l.b16 %v403
        %v740 = vunpack.c.l.b16 %v404
        %v741 = vunpack.c.l.b16 %v405
        %v742 = vunpack.c.l.b16 %v406
        %v743 = vunpack.c.l.b16 %v407
        %v744 = vunpack.c.l.b16 %v408
        %v745 = vunpack.c.l.b16 %v409
        %v746 = vunpack.c.l.b16 %v410
        %v747 = vunpack.c.l.b16 %v411
        %v748 = vunpack.c.l.b16 %v412
        %v749 = vunpack.c.l.b16 %v413
        %v750 = vunpack.c.l.b16 %v414
        %v751 = vunpack.c.l.b16 %v415
        %v752 = vunpack.c.l.b16 %v416
        %v753 = vunpack.c.l.b16 %v417
        %v754 = vunpack.c.l.b16 %v418
        %v755 = vunpack.c.l.b16 %v419
        %v756 = vpack.c.b16 %v629, %v628
        %v757 = vpack.c.b16 %v631, %v630
        %v758 = vpack.c.b16 %v633, %v632
        %v759 = vpack.c.b16 %v635, %v634
        %v760 = vpack.c.b16 %v637, %v636
        %v761 = vpack.c.b16 %v639, %v638
        %v762 = vpack.c.b16 %v641, %v640
        %v763 = vpack.c.b16 %v643, %v642
        %v764 = vpack.c.b16 %v645, %v644
        %v765 = vpack.c.b16 %v647, %v646
        %v766 = vpack.c.b16 %v649, %v648
        %v767 = vpack.c.b16 %v651, %v650
        %v768 = vpack.c.b16 %v653, %v652
        %v769 = vpack.c.b16 %v655, %v654
        %v770 = vpack.c.b16 %v657, %v656
        %v771 = vpack.c.b16 %v659, %v658
        %v772 = vpack.c.b16 %v661, %v660
        %v773 = vpack.c.b16 %v663, %v662
        %v774 = vpack.c.b16 %v665, %v664
        %v775 = vpack.c.b16 %v667, %v666
        %v776 = vpack.c.b16 %v669, %v668
        %v777 = vpack.c.b16 %v671, %v670
        %v778 = vpack.c.b16 %v673, %v672
        %v779 = vpack.c.b16 %v675, %v674
        %v780 = vpack.c.b16 %v677, %v676
        %v781 = vpack.c.b16 %v679, %v678
        %v782 = vpack.c.b16 %v681, %v680
        %v783 = vpack.c.b16 %v683, %v682
        %v784 = vpack.c.b16 %v685, %v684
        %v785 = vpack.c.b16 %v687, %v686
        %v786 = vpack.c.b16 %v689, %v688
        %v787 = vpack.c.b16 %v691, %v690
        %v788 = vpack.c.b16 %v693, %v692
        %v789 = vpack.c.b16 %v695, %v694
        %v790 = vpack.c.b16 %v697, %v696
        %v791 = vpack.c.b16 %v699, %v698
        %v792 = vpack.c.b16 %v701, %v700
        %v793 = vpack.c.b16 %v703, %v702
        %v794 = vpack.c.b16 %v705, %v704
        %v795 = vpack.c.b16 %v707, %v706
        %v796 = vpack.c.b16 %v709, %v708
        %v797 = vpack.c.b16 %v711, %v710
        %v798 = vpack.c.b16 %v713, %v712
        %v799 = vpack.c.b16 %v715, %v714
        %v800 = vpack.c.b16 %v717, %v716
        %v801 = vpack.c.b16 %v719, %v718
        %v802 = vpack.c.b16 %v721, %v720
        %v803 = vpack.c.b16 %v723, %v722
        %v804 = vpack.c.b16 %v725, %v724
        %v805 = vpack.c.b16 %v727, %v726
        %v806 = vpack.c.b16 %v729, %v728
        %v807 = vpack.c.b16 %v731, %v730
        %v808 = vpack.c.b16 %v733, %v732
        %v809 = vpack.c.b16 %v735, %v734
        %v810 = vpack.c.b16 %v737, %v736
        %v811 = vpack.c.b16 %v739, %v738
        %v812 = vpack.c.b16 %v741, %v740
        %v813 = vpack.c.b16 %v743, %v742
        %v814 = vpack.c.b16 %v745, %v744
        %v815 = vpack.c.b16 %v747, %v746
        %v816 = vpack.c.b16 %v749, %v748
        %v817 = vpack.c.b16 %v751, %v750
        %v818 = vpack.c.b16 %v753, %v752
        %v819 = vpack.c.b16 %v755, %v754
        %884 = vmatpush.bf16.msra.mxu0 %v763
        %885 = vmatpush.bf16.msra.mxu0 %v762
        %886 = vmatpush.bf16.msra.mxu0 %v761
        %887 = vmatpush.bf16.msra.mxu0 %v760
        %888 = vmatpush.bf16.msra.mxu0 %v759
        %889 = vmatpush.bf16.msra.mxu0 %v758
        %890 = vmatpush.bf16.msra.mxu0 %v757
        %891 = vmatpush.bf16.msra.mxu0 %v756
        %892 = vmatmul.bf16.gmra.mxu0 %v468
        %v893 = vpop.f32.mrf.mxu0
        %v894 = vadd.f32 0.0, %v893
        %v895 = vpop.f32.mrf.mxu0
        %v896 = vadd.f32 0.0, %v895
        %897 = vmatmul.bf16.gmra.mxu0 %v476
        %v898 = vpop.f32.mrf.mxu0
        %v899 = vadd.f32 0.0, %v898
        %v900 = vpop.f32.mrf.mxu0
        %v901 = vadd.f32 0.0, %v900
        %902 = vdwg.mxu0
        %903 = vmatpush.bf16.msra.mxu0 %v771
        %904 = vmatpush.bf16.msra.mxu0 %v770
        %905 = vmatpush.bf16.msra.mxu0 %v769
        %906 = vmatpush.bf16.msra.mxu0 %v768
        %907 = vmatpush.bf16.msra.mxu0 %v767
        %908 = vmatpush.bf16.msra.mxu0 %v766
        %909 = vmatpush.bf16.msra.mxu0 %v765
        %910 = vmatpush.bf16.msra.mxu0 %v764
        %911 = vmatmul.bf16.gmra.mxu0 %v469
        %v912 = vpop.f32.mrf.mxu0
        %v913 = vadd.f32 %v894, %v912
        %v914 = vpop.f32.mrf.mxu0
        %v915 = vadd.f32 %v896, %v914
        %916 = vmatmul.bf16.gmra.mxu0 %v477
        %v917 = vpop.f32.mrf.mxu0
        %v918 = vadd.f32 %v899, %v917
        %v919 = vpop.f32.mrf.mxu0
        %v920 = vadd.f32 %v901, %v919
        %921 = vdwg.mxu0
        %922 = vmatpush.bf16.msra.mxu0 %v779
        %923 = vmatpush.bf16.msra.mxu0 %v778
        %924 = vmatpush.bf16.msra.mxu0 %v777
        %925 = vmatpush.bf16.msra.mxu0 %v776
        %926 = vmatpush.bf16.msra.mxu0 %v775
        %927 = vmatpush.bf16.msra.mxu0 %v774
        %928 = vmatpush.bf16.msra.mxu0 %v773
        %929 = vmatpush.bf16.msra.mxu0 %v772
        %930 = vmatmul.bf16.gmra.mxu0 %v470
        %v931 = vpop.f32.mrf.mxu0
        %v932 = vadd.f32 %v913, %v931
        %v933 = vpop.f32.mrf.mxu0
        %v934 = vadd.f32 %v915, %v933
        %935 = vmatmul.bf16.gmra.mxu0 %v478
        %v936 = vpop.f32.mrf.mxu0
        %v937 = vadd.f32 %v918, %v936
        %v938 = vpop.f32.mrf.mxu0
        %v939 = vadd.f32 %v920, %v938
        %940 = vdwg.mxu0
        %941 = vmatpush.bf16.msra.mxu0 %v787
        %942 = vmatpush.bf16.msra.mxu0 %v786
        %943 = vmatpush.bf16.msra.mxu0 %v785
        %944 = vmatpush.bf16.msra.mxu0 %v784
        %945 = vmatpush.bf16.msra.mxu0 %v783
        %946 = vmatpush.bf16.msra.mxu0 %v782
        %947 = vmatpush.bf16.msra.mxu0 %v781
        %948 = vmatpush.bf16.msra.mxu0 %v780
        %949 = vmatmul.bf16.gmra.mxu0 %v471
        %v950 = vpop.f32.mrf.mxu0
        %v951 = vadd.f32 %v932, %v950
        %v952 = vpop.f32.mrf.mxu0
        %v953 = vadd.f32 %v934, %v952
        %954 = vmatmul.bf16.gmra.mxu0 %v479
        %v955 = vpop.f32.mrf.mxu0
        %v956 = vadd.f32 %v937, %v955
        %v957 = vpop.f32.mrf.mxu0
        %v958 = vadd.f32 %v939, %v957
        %959 = vdwg.mxu0
        %960 = vmatpush.bf16.msra.mxu0 %v795
        %961 = vmatpush.bf16.msra.mxu0 %v794
        %962 = vmatpush.bf16.msra.mxu0 %v793
        %963 = vmatpush.bf16.msra.mxu0 %v792
        %964 = vmatpush.bf16.msra.mxu0 %v791
        %965 = vmatpush.bf16.msra.mxu0 %v790
        %966 = vmatpush.bf16.msra.mxu0 %v789
        %967 = vmatpush.bf16.msra.mxu0 %v788
        %968 = vmatmul.bf16.gmra.mxu0 %v472
        %v969 = vpop.f32.mrf.mxu0
        %v970 = vadd.f32 %v951, %v969
        %v971 = vpop.f32.mrf.mxu0
        %v972 = vadd.f32 %v953, %v971
        %973 = vmatmul.bf16.gmra.mxu0 %v480
        %v974 = vpop.f32.mrf.mxu0
        %v975 = vadd.f32 %v956, %v974
        %v976 = vpop.f32.mrf.mxu0
        %v977 = vadd.f32 %v958, %v976
        %978 = vdwg.mxu0
        %979 = vmatpush.bf16.msra.mxu0 %v803
        %980 = vmatpush.bf16.msra.mxu0 %v802
        %981 = vmatpush.bf16.msra.mxu0 %v801
        %982 = vmatpush.bf16.msra.mxu0 %v800
        %983 = vmatpush.bf16.msra.mxu0 %v799
        %984 = vmatpush.bf16.msra.mxu0 %v798
        %985 = vmatpush.bf16.msra.mxu0 %v797
        %986 = vmatpush.bf16.msra.mxu0 %v796
        %987 = vmatmul.bf16.gmra.mxu0 %v473
        %v988 = vpop.f32.mrf.mxu0
        %v989 = vadd.f32 %v970, %v988
        %v990 = vpop.f32.mrf.mxu0
        %v991 = vadd.f32 %v972, %v990
        %992 = vmatmul.bf16.gmra.mxu0 %v481
        %v993 = vpop.f32.mrf.mxu0
        %v994 = vadd.f32 %v975, %v993
        %v995 = vpop.f32.mrf.mxu0
        %v996 = vadd.f32 %v977, %v995
        %997 = vdwg.mxu0
        %998 = vmatpush.bf16.msra.mxu0 %v811
        %999 = vmatpush.bf16.msra.mxu0 %v810
        %1000 = vmatpush.bf16.msra.mxu0 %v809
        %1001 = vmatpush.bf16.msra.mxu0 %v808
        %1002 = vmatpush.bf16.msra.mxu0 %v807
        %1003 = vmatpush.bf16.msra.mxu0 %v806
        %1004 = vmatpush.bf16.msra.mxu0 %v805
        %1005 = vmatpush.bf16.msra.mxu0 %v804
        %1006 = vmatmul.bf16.gmra.mxu0 %v474
        %v1007 = vpop.f32.mrf.mxu0
        %v1008 = vadd.f32 %v989, %v1007
        %v1009 = vpop.f32.mrf.mxu0
        %v1010 = vadd.f32 %v991, %v1009
        %1011 = vmatmul.bf16.gmra.mxu0 %v482
        %v1012 = vpop.f32.mrf.mxu0
        %v1013 = vadd.f32 %v994, %v1012
        %v1014 = vpop.f32.mrf.mxu0
        %v1015 = vadd.f32 %v996, %v1014
        %1016 = vdwg.mxu0
        %1017 = vmatpush.bf16.msra.mxu0 %v819
        %1018 = vmatpush.bf16.msra.mxu0 %v818
        %1019 = vmatpush.bf16.msra.mxu0 %v817
        %1020 = vmatpush.bf16.msra.mxu0 %v816
        %1021 = vmatpush.bf16.msra.mxu0 %v815
        %1022 = vmatpush.bf16.msra.mxu0 %v814
        %1023 = vmatpush.bf16.msra.mxu0 %v813
        %1024 = vmatpush.bf16.msra.mxu0 %v812
        %1025 = vmatmul.bf16.gmra.mxu0 %v475
        %v1026 = vpop.f32.mrf.mxu0
        %v1027 = vadd.f32 %v1008, %v1026
        %v1028 = vpop.f32.mrf.mxu0
        %v1029 = vadd.f32 %v1010, %v1028
        %1030 = vmatmul.bf16.gmra.mxu0 %v483
        %v1031 = vpop.f32.mrf.mxu0
        %v1032 = vadd.f32 %v1013, %v1031
        %v1033 = vpop.f32.mrf.mxu0
        %v1034 = vadd.f32 %v1015, %v1033
        %1035 = vdwg.mxu0
        %v1036 = vadd.f32 %v272, %v1027
        %v1037 = vadd.f32 %v273, %v1029
        %v1038 = vadd.f32 %v274, %v1032
        %v1039 = vadd.f32 %v275, %v1034
        %vm1040 = vcmask 64512
        %1041 = vst.msk [vmem:[#allocation2] sm:$0xff] %vm1040, %v1036
        %1042 = vst.msk [vmem:[#allocation2 + $0x8] sm:$0xff] %vm1040, %v1037
        %1043 = vst.msk [vmem:[#allocation2 + $0x10] sm:$0xff] %vm1040, %v1038
        %1044 = vst.msk [vmem:[#allocation2 + $0x18] sm:$0xff] %vm1040, %v1039
        %p1045 = scmp.eq.s32.totalorder %s19, 2
        // Predicated region
        $region60: #{hcnet_forward.21} parent=50 // pred_check
          %p1046 = pneg %p1045
        $region61: #{hcnet_forward.21} parent=50 // pred_check_branch
          %1048 = sbr.rel (%p1046) target = $region63
        $region62: #{hcnet_forward.21} parent=50 // pred_region
          %v1049 = vld [vmem:[#allocation2] sm:$0xff]
          %v1050 = vld [vmem:[#allocation2 + $0x8] sm:$0xff]
          %v1051 = vld [vmem:[#allocation2 + $0x10] sm:$0xff]
          %v1052 = vld [vmem:[#allocation2 + $0x18] sm:$0xff]
          %v1053 = vld [vmem:[%s2] sm:$0x1]
          %v1055 = vperm.slane %v1053, 0
          %v1057 = vadd.f32 %v1049, %v1055
          %v1058 = vadd.f32 %v1050, %v1055
          %v1059 = vadd.f32 %v1051, %v1055
          %v1060 = vadd.f32 %v1052, %v1055
          %1061 = vst.msk [vmem:[%s261] sm:$0xff] %vm1040, %v1057
          %1062 = vst.msk [vmem:[%s261 + $0x8] sm:$0xff] %vm1040, %v1058
          %1063 = vst.msk [vmem:[%s261 + $0x10] sm:$0xff] %vm1040, %v1059
          %1064 = vst.msk [vmem:[%s261 + $0x18] sm:$0xff] %vm1040, %v1060
        $region63: #{hcnet_forward.21} parent=50 // pred_fallthru
          _
        %s1065 = smul.u32 4, %s18
        %p1066 = scmp.lt.s32.totalorder %s1065, 3
        %s1067 = scalar_select %p1066, %s1065, 3
        %s1068 = smul.addr %s1067, 8
        %s1069 = scalar_lea.vmem %s3, %s1068
        // Predicated region
        $region64: #{hcnet_forward.21} parent=50 // pred_check
          %p1070 = pneg %p119
        $region65: #{hcnet_forward.21} parent=50 // pred_check_branch
          %1072 = sbr.rel (%p1070) target = $region67
        $region66: #{hcnet_forward.21} parent=50 // pred_region
          %s1073 = smul.u32 4, %s18
        $region67: #{hcnet_forward.21} parent=50 // pred_fallthru
          _
        // Predicated region
        $region68: #{hcnet_forward.21} parent=50 // pred_check
          %p1074 = pneg %p119
        $region69: #{hcnet_forward.21} parent=50 // pred_check_branch
          %1076 = sbr.rel (%p1074) target = $region71
        $region70: #{hcnet_forward.21} parent=50 // pred_region
          %s1077 = smul.u32 4, %s18
          %p1078 = scmp.lt.s32.totalorder %s1077, 3
          %s1079 = scalar_select %p1078, %s1077, 3
          %s1080 = smul.addr %s1079, 8
          %s1081 = scalar_lea.vmem %s3, %s1080
        $region71: #{hcnet_forward.21} parent=50 // pred_fallthru
          _
      $region51: #{hcnet_forward.21} parent=5 // pred_fallthru
        _
      %p1082 = scmp.le.s32.totalorder 2, %s9
      // Predicated region
      $region72: #{hcnet_forward.21} parent=5 // pred_check
        %p1083 = pneg %p1082
      $region73: #{hcnet_forward.21} parent=5 // pred_check_branch
        %1085 = sbr.rel (%p1083) target = $region75
      $region74: #{hcnet_forward.21} parent=5 // pred_region
        %s1086 = ssub.s32 %s9, 2
      $region75: #{hcnet_forward.21} parent=5 // pred_fallthru
        _
    $region6: #{hcnet_forward.21} parent=1 // loop_footer
      %s13 = sadd.s32 1, %s9
    $region7: #{hcnet_forward.21} parent=1 // loop_footer_branch
      %8 = sbr.rel target = $region3
    $region8: #{hcnet_forward.21} parent=1 // loop_exit
      _

// kernel: hcnet_forward.22
$region0: #{hcnet_forward.22}
  #allocation0 [shape = 'u32[]', space=smem, size = 0x4, offset = 0x4, fixed_abs, tag = 'smem constant byte address 0x4 - core index']
  #allocation1 [shape = 'u32[72,128]{1,0:T(1,128)}', space=vmem, size = 0x9000, scoped, tag = 'internal scratch']
  #allocation2 [shape = 'f32[32,8]{1,0:T(8,128)}', space=vmem, size = 0x4000, scoped, tag = 'scratch operand']
  %s0 = inlined_call_operand.vmem [shape: bf16[32,3072], index: 0, kind: input, shape index: {}]
  %s1 = inlined_call_operand.vmem [shape: bf16[3072,8], index: 1, kind: input, shape index: {}]
  %s2 = inlined_call_operand.vmem [shape: f32[32,8], index: 2, kind: input, shape index: {}]
  %s3 = inlined_call_operand.vmem [shape: f32[32,8], index: 3, kind: input, shape index: {}]
  %s4 = inlined_call_operand.vmem [shape: f32[32,8], index: 4, kind: output, shape index: {}]
  %s5 = sld [smem:[#allocation0]]
  $region80: #{hcnet_forward.22} parent=0
    _
  %s7 = ssub.s32 1, %s5
  %s8 = scalar_select 0, %s7, %s5
  $region1: #{hcnet_forward.22} parent=0
    #allocation3 [shape = 'u8[131072]{0}', space=vmem, size = 0x20000, scoped, tag = 'input window, operand 0']
    loop: start=0, step=1, limit=5
    $region2: #{hcnet_forward.22} parent=1 // loop_pre_header
      _
    $region3: #{hcnet_forward.22} parent=1 // loop_header
      %s10 = sphi 0, %s14
      %p11 = scmp.ge.s32.totalorder %s10, 5
      %s17 = sphi 0, %s29
      %s18 = sphi 0, %s25
      %s19 = sphi 0, %s17
      %s20 = sphi 0, %s18
      %s21 = sphi 0, %s19
      %s22 = sphi 0, %s20
      %s34 = sphi 0, %s36
      %s37 = sphi 0, %s34
      %s38 = sphi 0, %s37
      %s54 = sphi 0, %s38
      %s60 = sphi 0, %s62
      %s63 = sphi 0, %s60
      %s64 = sphi 0, %s63
      %s80 = sphi 0, %s64
      %s86 = sphi 0, %s88
      %s89 = sphi 0, %s86
      %s90 = sphi 0, %s89
      %s106 = sphi 0, %s90
      %s112 = sphi 0, %s114
      %s115 = sphi 0, %s112
      %s116 = sphi 0, %s115
      %s132 = sphi 0, %s116
      %s138 = sphi 0, %s140
      %s141 = sphi 0, %s138
      %s142 = sphi 0, %s141
      %s158 = sphi 0, %s142
    $region4: #{hcnet_forward.22} parent=1 // loop_header_branch
      %13 = sbr.rel (%p11) target = $region8
    $region5: #{hcnet_forward.22} parent=1 // loop_body
      %s15 = ssub.s32 %s10, 1
      %s16 = ssub.s32 %s10, 2
      %s23 = sadd.s32 1, %s18
      %p24 = scmp.ge.s32.totalorder %s23, 3
      %s25 = scalar_select %p24, 0, %s23
      %s26 = sadd.s32 1, %s17
      %s27 = scalar_select %p24, %s26, %s17
      %p28 = scmp.ge.s32.totalorder %s27, 1
      %s29 = scalar_select %p28, 0, %s27
      %s30 = ssub.s32 %s17, %s29
      %s31 = ssub.s32 %s18, %s25
      %s32 = sor.u32 %s30, %s31
      %p33 = scmp.eq.s32.totalorder %s32, 0
      %s35 = sadd.s32 %s34, 1
      %s36 = scalar_select %p33, %s34, %s35
      %p39 = pneg %p33
      %p40 = scmp.eq.s32.totalorder %s10, 2
      %p41 = por %p39, %p40
      %p42 = scmp.ne.s32.totalorder %s34, %s37
      %p43 = scmp.eq.s32.totalorder %s10, 0
      %p44 = por %p42, %p43
      %p45 = scmp.ne.s32.totalorder %s34, %s37
      %p46 = scmp.eq.s32.totalorder %s15, 2
      %p47 = por %p45, %p46
      %p48 = scmp.ne.s32.totalorder %s37, %s38
      %p49 = scmp.eq.s32.totalorder %s15, 0
      %p50 = por %p48, %p49
      %p51 = scmp.ne.s32.totalorder %s37, %s38
      %p52 = scmp.eq.s32.totalorder %s16, 2
      %p53 = por %p51, %p52
      %p55 = scmp.ne.s32.totalorder %s38, %s54
      %p56 = scmp.eq.s32.totalorder %s16, 0
      %p57 = por %p55, %p56
      %s58 = ssub.s32 %s18, %s25
      %p59 = scmp.eq.s32.totalorder %s58, 0
      %s61 = sadd.s32 %s60, 1
      %s62 = scalar_select %p59, %s60, %s61
      %p65 = pneg %p59
      %p66 = scmp.eq.s32.totalorder %s10, 2
      %p67 = por %p65, %p66
      %p68 = scmp.ne.s32.totalorder %s60, %s63
      %p69 = scmp.eq.s32.totalorder %s10, 0
      %p70 = por %p68, %p69
      %p71 = scmp.ne.s32.totalorder %s60, %s63
      %p72 = scmp.eq.s32.totalorder %s15, 2
      %p73 = por %p71, %p72
      %p74 = scmp.ne.s32.totalorder %s63, %s64
      %p75 = scmp.eq.s32.totalorder %s15, 0
      %p76 = por %p74, %p75
      %p77 = scmp.ne.s32.totalorder %s63, %s64
      %p78 = scmp.eq.s32.totalorder %s16, 2
      %p79 = por %p77, %p78
      %p81 = scmp.ne.s32.totalorder %s64, %s80
      %p82 = scmp.eq.s32.totalorder %s16, 0
      %p83 = por %p81, %p82
      %s84 = ssub.s32 %s17, %s29
      %p85 = scmp.eq.s32.totalorder %s84, 0
      %s87 = sadd.s32 %s86, 1
      %s88 = scalar_select %p85, %s86, %s87
      %p91 = pneg %p85
      %p92 = scmp.eq.s32.totalorder %s10, 2
      %p93 = por %p91, %p92
      %p94 = scmp.ne.s32.totalorder %s86, %s89
      %p95 = scmp.eq.s32.totalorder %s10, 0
      %p96 = por %p94, %p95
      %p97 = scmp.ne.s32.totalorder %s86, %s89
      %p98 = scmp.eq.s32.totalorder %s15, 2
      %p99 = por %p97, %p98
      %p100 = scmp.ne.s32.totalorder %s89, %s90
      %p101 = scmp.eq.s32.totalorder %s15, 0
      %p102 = por %p100, %p101
      %p103 = scmp.ne.s32.totalorder %s89, %s90
      %p104 = scmp.eq.s32.totalorder %s16, 2
      %p105 = por %p103, %p104
      %p107 = scmp.ne.s32.totalorder %s90, %s106
      %p108 = scmp.eq.s32.totalorder %s16, 0
      %p109 = por %p107, %p108
      %s110 = ssub.s32 %s17, %s29
      %p111 = scmp.eq.s32.totalorder %s110, 0
      %s113 = sadd.s32 %s112, 1
      %s114 = scalar_select %p111, %s112, %s113
      %p117 = pneg %p111
      %p118 = scmp.eq.s32.totalorder %s10, 2
      %p119 = por %p117, %p118
      %p120 = scmp.ne.s32.totalorder %s112, %s115
      %p121 = scmp.eq.s32.totalorder %s10, 0
      %p122 = por %p120, %p121
      %p123 = scmp.ne.s32.totalorder %s112, %s115
      %p124 = scmp.eq.s32.totalorder %s15, 2
      %p125 = por %p123, %p124
      %p126 = scmp.ne.s32.totalorder %s115, %s116
      %p127 = scmp.eq.s32.totalorder %s15, 0
      %p128 = por %p126, %p127
      %p129 = scmp.ne.s32.totalorder %s115, %s116
      %p130 = scmp.eq.s32.totalorder %s16, 2
      %p131 = por %p129, %p130
      %p133 = scmp.ne.s32.totalorder %s116, %s132
      %p134 = scmp.eq.s32.totalorder %s16, 0
      %p135 = por %p133, %p134
      %s136 = ssub.s32 %s17, %s29
      %p137 = scmp.eq.s32.totalorder %s136, 0
      %s139 = sadd.s32 %s138, 1
      %s140 = scalar_select %p137, %s138, %s139
      %p143 = pneg %p137
      %p144 = scmp.eq.s32.totalorder %s10, 2
      %p145 = por %p143, %p144
      %p146 = scmp.ne.s32.totalorder %s138, %s141
      %p147 = scmp.eq.s32.totalorder %s10, 0
      %p148 = por %p146, %p147
      %p149 = scmp.ne.s32.totalorder %s138, %s141
      %p150 = scmp.eq.s32.totalorder %s15, 2
      %p151 = por %p149, %p150
      %p152 = scmp.ne.s32.totalorder %s141, %s142
      %p153 = scmp.eq.s32.totalorder %s15, 0
      %p154 = por %p152, %p153
      %p155 = scmp.ne.s32.totalorder %s141, %s142
      %p156 = scmp.eq.s32.totalorder %s16, 2
      %p157 = por %p155, %p156
      %p159 = scmp.ne.s32.totalorder %s142, %s158
      %p160 = scmp.eq.s32.totalorder %s16, 0
      %p161 = por %p159, %p160
      %p162 = scmp.le.s32.totalorder 1, %s10
      %p163 = scmp.lt.s32.totalorder %s10, 4
      %p164 = pnand %p162, %p163
      %p165 = pneg %p164
      // Predicated region
      $region9: #{hcnet_forward.22} parent=5 // pred_check
        _
      $region10: #{hcnet_forward.22} parent=5 // pred_check_branch
        %167 = sbr.rel (%p164) target = $region12
      $region11: #{hcnet_forward.22} parent=5 // pred_region
        %s168 = ssub.s32 %s10, 1
        // Predicated region
        $region13: #{hcnet_forward.22} parent=11 // pred_check
          %p169 = pneg %p102
        $region14: #{hcnet_forward.22} parent=11 // pred_check_branch
          %171 = sbr.rel (%p169) target = $region16
        $region15: #{hcnet_forward.22} parent=11 // pred_region
          %s172 = smul.u32 4, %s19
          %p173 = scmp.lt.s32.totalorder %s172, 3
          %s174 = scalar_select %p173, %s172, 3
          %s175 = smul.addr %s174, 8
          %s176 = scalar_lea.vmem %s2, %s175
          %s177 = smul.u32 4, %s19
        $region16: #{hcnet_forward.22} parent=11 // pred_fallthru
          _
        // Predicated region
        $region17: #{hcnet_forward.22} parent=11 // pred_check
          %p178 = pneg %p128
        $region18: #{hcnet_forward.22} parent=11 // pred_check_branch
          %180 = sbr.rel (%p178) target = $region20
        $region19: #{hcnet_forward.22} parent=11 // pred_region
          %s181 = smul.u32 4, %s19
          %p182 = scmp.lt.s32.totalorder %s181, 3
          %s183 = scalar_select %p182, %s181, 3
          %s184 = smul.addr %s183, 8
          %s185 = scalar_lea.vmem %s3, %s184
          %s186 = smul.u32 4, %s19
        $region20: #{hcnet_forward.22} parent=11 // pred_fallthru
          _
      $region12: #{hcnet_forward.22} parent=5 // pred_fallthru
        _
      %p187 = scmp.lt.s32.totalorder %s10, 3
      // Predicated region
      $region21: #{hcnet_forward.22} parent=5 // pred_check
        %p188 = pneg %p187
      $region22: #{hcnet_forward.22} parent=5 // pred_check_branch
        %190 = sbr.rel (%p188) target = $region24
      $region23: #{hcnet_forward.22} parent=5 // pred_region
        // Predicated region
        $region25: #{hcnet_forward.22} parent=23 // pred_check
          %p191 = pneg %p44
        $region26: #{hcnet_forward.22} parent=23 // pred_check_branch
          %193 = sbr.rel (%p191) target = $region28
        $region27: #{hcnet_forward.22} parent=23 // pred_region
          %s194 = sand.u32 %s34, 1
          %s195 = sand.u32 %s34, 1
          %s196 = smul.addr %s195, 128
          %s197 = scalar_lea.vmem [#allocation3], %s196
          %s198 = smul.u32 4, %s17
          %s199 = smul.u32 8, %s18
          %s200 = smul.addr %s198, 24
          %s201 = sadd.s32 %s199, %s200
          %s202 = smul.addr %s201, 4
          %s203 = scalar_lea.vmem %s0, %s202
          // Predicated region
          $region29: #{hcnet_forward.22} parent=27 // pred_check
            _
          $region30: #{hcnet_forward.22} parent=27 // pred_check_branch
            %205 = sbr.rel (0) target = $region32
          $region31: #{hcnet_forward.22} parent=27 // pred_region
            // Predicated region
            $region33: #{hcnet_forward.22} parent=31 // pred_check
              _
            $region34: #{hcnet_forward.22} parent=31 // pred_check_branch
              %207 = sbr.rel (0) target = $region36
            $region35: #{hcnet_forward.22} parent=31 // pred_region
              loop: start=0, step=1, limit=1
              $region37: #{hcnet_forward.22} parent=35 // loop_pre_header
                _
              $region38: #{hcnet_forward.22} parent=35 // loop_header
                %s209 = sphi 0, %s213
                %p210 = scmp.ge.s32.totalorder %s209, 1
                %s214 = sphi %s203, %s203
                %s215 = sphi %s197, %s197
              $region39: #{hcnet_forward.22} parent=35 // loop_header_branch
                %212 = sbr.rel (%p210) target = $region43
              $region40: #{hcnet_forward.22} parent=35 // loop_body
                %v216 = vld [vmem:[%s214] sm:$0xff]
                %217 = vst [vmem:[%s215] sm:$0xff] %v216
                %v218 = vld [vmem:[%s214 + $0x8] sm:$0xff]
                %219 = vst [vmem:[%s215 + $0x8] sm:$0xff] %v218
                %v220 = vld [vmem:[%s214 + $0x10] sm:$0xff]
                %221 = vst [vmem:[%s215 + $0x10] sm:$0xff] %v220
                %v222 = vld [vmem:[%s214 + $0x18] sm:$0xff]
                %223 = vst [vmem:[%s215 + $0x18] sm:$0xff] %v222
                %v224 = vld [vmem:[%s214 + $0x60] sm:$0xff]
                %225 = vst [vmem:[%s215 + $0x20] sm:$0xff] %v224
                %v226 = vld [vmem:[%s214 + $0x68] sm:$0xff]
                %227 = vst [vmem:[%s215 + $0x28] sm:$0xff] %v226
                %v228 = vld [vmem:[%s214 + $0x70] sm:$0xff]
                %229 = vst [vmem:[%s215 + $0x30] sm:$0xff] %v228
                %v230 = vld [vmem:[%s214 + $0x78] sm:$0xff]
                %231 = vst [vmem:[%s215 + $0x38] sm:$0xff] %v230
                %v232 = vld [vmem:[%s214 + $0xc0] sm:$0xff]
                %233 = vst [vmem:[%s215 + $0x40] sm:$0xff] %v232
                %v234 = vld [vmem:[%s214 + $0xc8] sm:$0xff]
                %235 = vst [vmem:[%s215 + $0x48] sm:$0xff] %v234
                %v236 = vld [vmem:[%s214 + $0xd0] sm:$0xff]
                %237 = vst [vmem:[%s215 + $0x50] sm:$0xff] %v236
                %v238 = vld [vmem:[%s214 + $0xd8] sm:$0xff]
                %239 = vst [vmem:[%s215 + $0x58] sm:$0xff] %v238
                %v240 = vld [vmem:[%s214 + $0x120] sm:$0xff]
                %241 = vst [vmem:[%s215 + $0x60] sm:$0xff] %v240
                %v242 = vld [vmem:[%s214 + $0x128] sm:$0xff]
                %243 = vst [vmem:[%s215 + $0x68] sm:$0xff] %v242
                %v244 = vld [vmem:[%s214 + $0x130] sm:$0xff]
                %245 = vst [vmem:[%s215 + $0x70] sm:$0xff] %v244
                %v246 = vld [vmem:[%s214 + $0x138] sm:$0xff]
                %247 = vst [vmem:[%s215 + $0x78] sm:$0xff] %v246
              $region41: #{hcnet_forward.22} parent=35 // loop_footer
                %s213 = sadd.s32 1, %s209
              $region42: #{hcnet_forward.22} parent=35 // loop_footer_branch
                %208 = sbr.rel target = $region38
              $region43: #{hcnet_forward.22} parent=35 // loop_exit
                _
            $region36: #{hcnet_forward.22} parent=31 // pred_fallthru
              _
            // Predicated region
            $region44: #{hcnet_forward.22} parent=31 // pred_check
              _
            $region45: #{hcnet_forward.22} parent=31 // pred_check_branch
              %249 = sbr.rel target = $region47
            $region46: #{hcnet_forward.22} parent=31 // pred_region
              _
            $region47: #{hcnet_forward.22} parent=31 // pred_fallthru
              _
          $region32: #{hcnet_forward.22} parent=27 // pred_fallthru
            _
          %250 = vnop
        $region28: #{hcnet_forward.22} parent=23 // pred_fallthru
          _
        // Predicated region
        $region48: #{hcnet_forward.22} parent=23 // pred_check
          %p251 = pneg %p70
        $region49: #{hcnet_forward.22} parent=23 // pred_check_branch
          %253 = sbr.rel (%p251) target = $region51
        $region50: #{hcnet_forward.22} parent=23 // pred_region
          %s254 = smul.u32 128, %s18
          %p255 = scmp.lt.s32.totalorder %s254, 383
          %s256 = scalar_select %p255, %s254, 383
          %s257 = smul.addr %s256, 4
          %s258 = scalar_lea.vmem %s1, %s257
          %s259 = smul.u32 128, %s18
        $region51: #{hcnet_forward.22} parent=23 // pred_fallthru
          _
      $region24: #{hcnet_forward.22} parent=5 // pred_fallthru
        _
      %p260 = scmp.le.s32.totalorder 1, %s10
      %p261 = scmp.lt.s32.totalorder %s10, 4
      %p262 = pnand %p260, %p261
      %p263 = pneg %p262
      // Predicated region
      $region52: #{hcnet_forward.22} parent=5 // pred_check
        _
      $region53: #{hcnet_forward.22} parent=5 // pred_check_branch
        %265 = sbr.rel (%p262) target = $region55
      $region54: #{hcnet_forward.22} parent=5 // pred_region
        %s266 = ssub.s32 %s10, 1
        %s267 = sand.u32 %s37, 1
        %s268 = sand.u32 %s37, 1
        %s269 = smul.addr %s268, 128
        %s270 = scalar_lea.vmem [#allocation3], %s269
        // Predicated region
        $region56: #{hcnet_forward.22} parent=54 // pred_check
          %p271 = pneg %p50
        $region57: #{hcnet_forward.22} parent=54 // pred_check_branch
          %273 = sbr.rel (%p271) target = $region59
        $region58: #{hcnet_forward.22} parent=54 // pred_region
          _
        $region59: #{hcnet_forward.22} parent=54 // pred_fallthru
          _
        %s274 = sand.u32 %s37, 1
        %s275 = sand.u32 %s37, 1
        %s276 = smul.addr %s275, 128
        %s277 = scalar_lea.vmem [#allocation3], %s276
        %p278 = pneg %p50
        %p279 = pneg %p47
        %s280 = smul.u32 128, %s20
        %p281 = scmp.lt.s32.totalorder %s280, 383
        %s282 = scalar_select %p281, %s280, 383
        %s283 = smul.addr %s282, 4
        %s284 = scalar_lea.vmem %s1, %s283
        %p285 = pneg %p76
        %p286 = pneg %p73
        %s287 = smul.u32 4, %s19
        %p288 = scmp.lt.s32.totalorder %s287, 3
        %s289 = scalar_select %p288, %s287, 3
        %s290 = smul.addr %s289, 8
        %s291 = scalar_lea.vmem %s2, %s290
        %p292 = pneg %p102
        %p293 = pneg %p99
        %s294 = smul.u32 4, %s19
        %p295 = scmp.lt.s32.totalorder %s294, 3
        %s296 = scalar_select %p295, %s294, 3
        %s297 = smul.addr %s296, 8
        %s298 = scalar_lea.vmem %s3, %s297
        %p299 = pneg %p128
        %p300 = pneg %p125
        %p301 = pneg %p154
        %p302 = pneg %p151
        %s303 = smul.u32 4, %s19
        %p304 = scmp.lt.s32.totalorder %s303, 3
        %s305 = scalar_select %p304, %s303, 3
        %s306 = smul.addr %s305, 8
        %s307 = scalar_lea.vmem %s4, %s306
        %s308 = smul.u32 4, %s19
        %s309 = smul.u32 8, %s20
        %s310 = smul.u32 128, %s20
        %p311 = scmp.lt.s32.totalorder %s310, 383
        %s312 = scalar_select %p311, %s310, 383
        %s313 = smul.addr %s312, 4
        %s314 = scalar_lea.vmem %s1, %s313
        %s315 = smul.u32 128, %s20
        %s316 = smul.u32 4, %s19
        %p317 = scmp.lt.s32.totalorder %s316, 3
        %s318 = scalar_select %p317, %s316, 3
        %s319 = smul.addr %s318, 8
        %s320 = scalar_lea.vmem %s2, %s319
        %s321 = smul.u32 4, %s19
        %s322 = smul.u32 4, %s19
        %p323 = scmp.lt.s32.totalorder %s322, 3
        %s324 = scalar_select %p323, %s322, 3
        %s325 = smul.addr %s324, 8
        %s326 = scalar_lea.vmem %s3, %s325
        %s327 = smul.u32 4, %s19
        %s328 = smul.u32 4, %s19
        %p329 = scmp.lt.s32.totalorder %s328, 3
        %s330 = scalar_select %p329, %s328, 3
        %s331 = smul.addr %s330, 8
        %s332 = scalar_lea.vmem %s4, %s331
        %s333 = smul.u32 4, %s19
        %p334 = scmp.eq.s32.totalorder %s20, 0
        // Predicated region
        $region60: #{hcnet_forward.22} parent=54 // pred_check
          %p335 = pneg %p334
        $region61: #{hcnet_forward.22} parent=54 // pred_check_branch
          %337 = sbr.rel (%p335) target = $region63
        $region62: #{hcnet_forward.22} parent=54 // pred_region
          %vm338 = vcmask 64512
          %339 = vst.msk [vmem:[#allocation2] sm:$0xff] %vm338, 0.0
          %340 = vst.msk [vmem:[#allocation2 + $0x8] sm:$0xff] %vm338, 0.0
          %341 = vst.msk [vmem:[#allocation2 + $0x10] sm:$0xff] %vm338, 0.0
          %342 = vst.msk [vmem:[#allocation2 + $0x18] sm:$0xff] %vm338, 0.0
        $region63: #{hcnet_forward.22} parent=54 // pred_fallthru
          _
        %v343 = vld [vmem:[#allocation2] sm:$0xff]
        %v344 = vld [vmem:[#allocation2 + $0x8] sm:$0xff]
        %v345 = vld [vmem:[#allocation2 + $0x10] sm:$0xff]
        %v346 = vld [vmem:[#allocation2 + $0x18] sm:$0xff]
        %v347 = vld [vmem:[%s270] sm:$0xff]
        %v348 = vld [vmem:[%s270 + $0x8] sm:$0xff]
        %v349 = vld [vmem:[%s270 + $0x10] sm:$0xff]
        %v350 = vld [vmem:[%s270 + $0x18] sm:$0xff]
        %v351 = vld [vmem:[%s270 + $0x20] sm:$0xff]
        %v352 = vld [vmem:[%s270 + $0x28] sm:$0xff]
        %v353 = vld [vmem:[%s270 + $0x30] sm:$0xff]
        %v354 = vld [vmem:[%s270 + $0x38] sm:$0xff]
        %v355 = vld [vmem:[%s270 + $0x40] sm:$0xff]
        %v356 = vld [vmem:[%s270 + $0x48] sm:$0xff]
        %v357 = vld [vmem:[%s270 + $0x50] sm:$0xff]
        %v358 = vld [vmem:[%s270 + $0x58] sm:$0xff]
        %v359 = vld [vmem:[%s270 + $0x60] sm:$0xff]
        %v360 = vld [vmem:[%s270 + $0x68] sm:$0xff]
        %v361 = vld [vmem:[%s270 + $0x70] sm:$0xff]
        %v362 = vld [vmem:[%s270 + $0x78] sm:$0xff]
        %v363 = vld [vmem:[%s314] sm:$0xf]
        %v364 = vld [vmem:[%s314 + $0x4] sm:$0xf]
        %v365 = vld [vmem:[%s314 + $0x8] sm:$0xf]
        %v366 = vld [vmem:[%s314 + $0xc] sm:$0xf]
        %v367 = vld [vmem:[%s314 + $0x10] sm:$0xf]
        %v368 = vld [vmem:[%s314 + $0x14] sm:$0xf]
        %v369 = vld [vmem:[%s314 + $0x18] sm:$0xf]
        %v370 = vld [vmem:[%s314 + $0x1c] sm:$0xf]
        %v371 = vld [vmem:[%s314 + $0x20] sm:$0xf]
        %v372 = vld [vmem:[%s314 + $0x24] sm:$0xf]
        %v373 = vld [vmem:[%s314 + $0x28] sm:$0xf]
        %v374 = vld [vmem:[%s314 + $0x2c] sm:$0xf]
        %v375 = vld [vmem:[%s314 + $0x30] sm:$0xf]
        %v376 = vld [vmem:[%s314 + $0x34] sm:$0xf]
        %v377 = vld [vmem:[%s314 + $0x38] sm:$0xf]
        %v378 = vld [vmem:[%s314 + $0x3c] sm:$0xf]
        %v379 = vld [vmem:[%s314 + $0x40] sm:$0xf]
        %v380 = vld [vmem:[%s314 + $0x44] sm:$0xf]
        %v381 = vld [vmem:[%s314 + $0x48] sm:$0xf]
        %v382 = vld [vmem:[%s314 + $0x4c] sm:$0xf]
        %v383 = vld [vmem:[%s314 + $0x50] sm:$0xf]
        %v384 = vld [vmem:[%s314 + $0x54] sm:$0xf]
        %v385 = vld [vmem:[%s314 + $0x58] sm:$0xf]
        %v386 = vld [vmem:[%s314 + $0x5c] sm:$0xf]
        %v387 = vld [vmem:[%s314 + $0x60] sm:$0xf]
        %v388 = vld [vmem:[%s314 + $0x64] sm:$0xf]
        %v389 = vld [vmem:[%s314 + $0x68] sm:$0xf]
        %v390 = vld [vmem:[%s314 + $0x6c] sm:$0xf]
        %v391 = vld [vmem:[%s314 + $0x70] sm:$0xf]
        %v392 = vld [vmem:[%s314 + $0x74] sm:$0xf]
        %v393 = vld [vmem:[%s314 + $0x78] sm:$0xf]
        %v394 = vld [vmem:[%s314 + $0x7c] sm:$0xf]
        %v395 = vld [vmem:[%s314 + $0x80] sm:$0xf]
        %v396 = vld [vmem:[%s314 + $0x84] sm:$0xf]
        %v397 = vld [vmem:[%s314 + $0x88] sm:$0xf]
        %v398 = vld [vmem:[%s314 + $0x8c] sm:$0xf]
        %v399 = vld [vmem:[%s314 + $0x90] sm:$0xf]
        %v400 = vld [vmem:[%s314 + $0x94] sm:$0xf]
        %v401 = vld [vmem:[%s314 + $0x98] sm:$0xf]
        %v402 = vld [vmem:[%s314 + $0x9c] sm:$0xf]
        %v403 = vld [vmem:[%s314 + $0xa0] sm:$0xf]
        %v404 = vld [vmem:[%s314 + $0xa4] sm:$0xf]
        %v405 = vld [vmem:[%s314 + $0xa8] sm:$0xf]
        %v406 = vld [vmem:[%s314 + $0xac] sm:$0xf]
        %v407 = vld [vmem:[%s314 + $0xb0] sm:$0xf]
        %v408 = vld [vmem:[%s314 + $0xb4] sm:$0xf]
        %v409 = vld [vmem:[%s314 + $0xb8] sm:$0xf]
        %v410 = vld [vmem:[%s314 + $0xbc] sm:$0xf]
        %v411 = vld [vmem:[%s314 + $0xc0] sm:$0xf]
        %v412 = vld [vmem:[%s314 + $0xc4] sm:$0xf]
        %v413 = vld [vmem:[%s314 + $0xc8] sm:$0xf]
        %v414 = vld [vmem:[%s314 + $0xcc] sm:$0xf]
        %v415 = vld [vmem:[%s314 + $0xd0] sm:$0xf]
        %v416 = vld [vmem:[%s314 + $0xd4] sm:$0xf]
        %v417 = vld [vmem:[%s314 + $0xd8] sm:$0xf]
        %v418 = vld [vmem:[%s314 + $0xdc] sm:$0xf]
        %v419 = vld [vmem:[%s314 + $0xe0] sm:$0xf]
        %v420 = vld [vmem:[%s314 + $0xe4] sm:$0xf]
        %v421 = vld [vmem:[%s314 + $0xe8] sm:$0xf]
        %v422 = vld [vmem:[%s314 + $0xec] sm:$0xf]
        %v423 = vld [vmem:[%s314 + $0xf0] sm:$0xf]
        %v424 = vld [vmem:[%s314 + $0xf4] sm:$0xf]
        %v425 = vld [vmem:[%s314 + $0xf8] sm:$0xf]
        %v426 = vld [vmem:[%s314 + $0xfc] sm:$0xf]
        %v427 = vld [vmem:[%s314 + $0x100] sm:$0xf]
        %v428 = vld [vmem:[%s314 + $0x104] sm:$0xf]
        %v429 = vld [vmem:[%s314 + $0x108] sm:$0xf]
        %v430 = vld [vmem:[%s314 + $0x10c] sm:$0xf]
        %v431 = vld [vmem:[%s314 + $0x110] sm:$0xf]
        %v432 = vld [vmem:[%s314 + $0x114] sm:$0xf]
        %v433 = vld [vmem:[%s314 + $0x118] sm:$0xf]
        %v434 = vld [vmem:[%s314 + $0x11c] sm:$0xf]
        %v435 = vld [vmem:[%s314 + $0x120] sm:$0xf]
        %v436 = vld [vmem:[%s314 + $0x124] sm:$0xf]
        %v437 = vld [vmem:[%s314 + $0x128] sm:$0xf]
        %v438 = vld [vmem:[%s314 + $0x12c] sm:$0xf]
        %v439 = vld [vmem:[%s314 + $0x130] sm:$0xf]
        %v440 = vld [vmem:[%s314 + $0x134] sm:$0xf]
        %v441 = vld [vmem:[%s314 + $0x138] sm:$0xf]
        %v442 = vld [vmem:[%s314 + $0x13c] sm:$0xf]
        %v443 = vld [vmem:[%s314 + $0x140] sm:$0xf]
        %v444 = vld [vmem:[%s314 + $0x144] sm:$0xf]
        %v445 = vld [vmem:[%s314 + $0x148] sm:$0xf]
        %v446 = vld [vmem:[%s314 + $0x14c] sm:$0xf]
        %v447 = vld [vmem:[%s314 + $0x150] sm:$0xf]
        %v448 = vld [vmem:[%s314 + $0x154] sm:$0xf]
        %v449 = vld [vmem:[%s314 + $0x158] sm:$0xf]
        %v450 = vld [vmem:[%s314 + $0x15c] sm:$0xf]
        %v451 = vld [vmem:[%s314 + $0x160] sm:$0xf]
        %v452 = vld [vmem:[%s314 + $0x164] sm:$0xf]
        %v453 = vld [vmem:[%s314 + $0x168] sm:$0xf]
        %v454 = vld [vmem:[%s314 + $0x16c] sm:$0xf]
        %v455 = vld [vmem:[%s314 + $0x170] sm:$0xf]
        %v456 = vld [vmem:[%s314 + $0x174] sm:$0xf]
        %v457 = vld [vmem:[%s314 + $0x178] sm:$0xf]
        %v458 = vld [vmem:[%s314 + $0x17c] sm:$0xf]
        %v459 = vld [vmem:[%s314 + $0x180] sm:$0xf]
        %v460 = vld [vmem:[%s314 + $0x184] sm:$0xf]
        %v461 = vld [vmem:[%s314 + $0x188] sm:$0xf]
        %v462 = vld [vmem:[%s314 + $0x18c] sm:$0xf]
        %v463 = vld [vmem:[%s314 + $0x190] sm:$0xf]
        %v464 = vld [vmem:[%s314 + $0x194] sm:$0xf]
        %v465 = vld [vmem:[%s314 + $0x198] sm:$0xf]
        %v466 = vld [vmem:[%s314 + $0x19c] sm:$0xf]
        %v467 = vld [vmem:[%s314 + $0x1a0] sm:$0xf]
        %v468 = vld [vmem:[%s314 + $0x1a4] sm:$0xf]
        %v469 = vld [vmem:[%s314 + $0x1a8] sm:$0xf]
        %v470 = vld [vmem:[%s314 + $0x1ac] sm:$0xf]
        %v471 = vld [vmem:[%s314 + $0x1b0] sm:$0xf]
        %v472 = vld [vmem:[%s314 + $0x1b4] sm:$0xf]
        %v473 = vld [vmem:[%s314 + $0x1b8] sm:$0xf]
        %v474 = vld [vmem:[%s314 + $0x1bc] sm:$0xf]
        %v475 = vld [vmem:[%s314 + $0x1c0] sm:$0xf]
        %v476 = vld [vmem:[%s314 + $0x1c4] sm:$0xf]
        %v477 = vld [vmem:[%s314 + $0x1c8] sm:$0xf]
        %v478 = vld [vmem:[%s314 + $0x1cc] sm:$0xf]
        %v479 = vld [vmem:[%s314 + $0x1d0] sm:$0xf]
        %v480 = vld [vmem:[%s314 + $0x1d4] sm:$0xf]
        %v481 = vld [vmem:[%s314 + $0x1d8] sm:$0xf]
        %v482 = vld [vmem:[%s314 + $0x1dc] sm:$0xf]
        %v483 = vld [vmem:[%s314 + $0x1e0] sm:$0xf]
        %v484 = vld [vmem:[%s314 + $0x1e4] sm:$0xf]
        %v485 = vld [vmem:[%s314 + $0x1e8] sm:$0xf]
        %v486 = vld [vmem:[%s314 + $0x1ec] sm:$0xf]
        %v487 = vld [vmem:[%s314 + $0x1f0] sm:$0xf]
        %v488 = vld [vmem:[%s314 + $0x1f4] sm:$0xf]
        %v489 = vld [vmem:[%s314 + $0x1f8] sm:$0xf]
        %v490 = vld [vmem:[%s314 + $0x1fc] sm:$0xf]
        %v507 = vunpack.c.l.b16 %v347
        %v508 = vunpack.c.h.b16 %v347
        %v509 = vunpack.c.l.b16 %v348
        %v510 = vunpack.c.h.b16 %v348
        %v511 = vunpack.c.l.b16 %v349
        %v512 = vunpack.c.h.b16 %v349
        %v513 = vunpack.c.l.b16 %v350
        %v514 = vunpack.c.h.b16 %v350
        %v515 = vunpack.c.l.b16 %v351
        %v516 = vunpack.c.h.b16 %v351
        %v517 = vunpack.c.l.b16 %v352
        %v518 = vunpack.c.h.b16 %v352
        %v519 = vunpack.c.l.b16 %v353
        %v520 = vunpack.c.h.b16 %v353
        %v521 = vunpack.c.l.b16 %v354
        %v522 = vunpack.c.h.b16 %v354
        %v523 = vunpack.c.l.b16 %v355
        %v524 = vunpack.c.h.b16 %v355
        %v525 = vunpack.c.l.b16 %v356
        %v526 = vunpack.c.h.b16 %v356
        %v527 = vunpack.c.l.b16 %v357
        %v528 = vunpack.c.h.b16 %v357
        %v529 = vunpack.c.l.b16 %v358
        %v530 = vunpack.c.h.b16 %v358
        %v531 = vunpack.c.l.b16 %v359
        %v532 = vunpack.c.h.b16 %v359
        %v533 = vunpack.c.l.b16 %v360
        %v534 = vunpack.c.h.b16 %v360
        %v535 = vunpack.c.l.b16 %v361
        %v536 = vunpack.c.h.b16 %v361
        %v537 = vunpack.c.l.b16 %v362
        %v538 = vunpack.c.h.b16 %v362
        %v539 = vpack.c.b16 %v515, %v507
        %v540 = vpack.c.b16 %v516, %v508
        %v541 = vpack.c.b16 %v517, %v509
        %v542 = vpack.c.b16 %v518, %v510
        %v543 = vpack.c.b16 %v519, %v511
        %v544 = vpack.c.b16 %v520, %v512
        %v545 = vpack.c.b16 %v521, %v513
        %v546 = vpack.c.b16 %v522, %v514
        %v547 = vpack.c.b16 %v531, %v523
        %v548 = vpack.c.b16 %v532, %v524
        %v549 = vpack.c.b16 %v533, %v525
        %v550 = vpack.c.b16 %v534, %v526
        %v551 = vpack.c.b16 %v535, %v527
        %v552 = vpack.c.b16 %v536, %v528
        %v553 = vpack.c.b16 %v537, %v529
        %v554 = vpack.c.b16 %v538, %v530
        %v699 = vunpack.c.l.b16 %v363
        %v700 = vunpack.c.l.b16 %v364
        %v701 = vunpack.c.l.b16 %v365
        %v702 = vunpack.c.l.b16 %v366
        %v703 = vunpack.c.l.b16 %v367
        %v704 = vunpack.c.l.b16 %v368
        %v705 = vunpack.c.l.b16 %v369
        %v706 = vunpack.c.l.b16 %v370
        %v707 = vunpack.c.l.b16 %v371
        %v708 = vunpack.c.l.b16 %v372
        %v709 = vunpack.c.l.b16 %v373
        %v710 = vunpack.c.l.b16 %v374
        %v711 = vunpack.c.l.b16 %v375
        %v712 = vunpack.c.l.b16 %v376
        %v713 = vunpack.c.l.b16 %v377
        %v714 = vunpack.c.l.b16 %v378
        %v715 = vunpack.c.l.b16 %v379
        %v716 = vunpack.c.l.b16 %v380
        %v717 = vunpack.c.l.b16 %v381
        %v718 = vunpack.c.l.b16 %v382
        %v719 = vunpack.c.l.b16 %v383
        %v720 = vunpack.c.l.b16 %v384
        %v721 = vunpack.c.l.b16 %v385
        %v722 = vunpack.c.l.b16 %v386
        %v723 = vunpack.c.l.b16 %v387
        %v724 = vunpack.c.l.b16 %v388
        %v725 = vunpack.c.l.b16 %v389
        %v726 = vunpack.c.l.b16 %v390
        %v727 = vunpack.c.l.b16 %v391
        %v728 = vunpack.c.l.b16 %v392
        %v729 = vunpack.c.l.b16 %v393
        %v730 = vunpack.c.l.b16 %v394
        %v731 = vunpack.c.l.b16 %v395
        %v732 = vunpack.c.l.b16 %v396
        %v733 = vunpack.c.l.b16 %v397
        %v734 = vunpack.c.l.b16 %v398
        %v735 = vunpack.c.l.b16 %v399
        %v736 = vunpack.c.l.b16 %v400
        %v737 = vunpack.c.l.b16 %v401
        %v738 = vunpack.c.l.b16 %v402
        %v739 = vunpack.c.l.b16 %v403
        %v740 = vunpack.c.l.b16 %v404
        %v741 = vunpack.c.l.b16 %v405
        %v742 = vunpack.c.l.b16 %v406
        %v743 = vunpack.c.l.b16 %v407
        %v744 = vunpack.c.l.b16 %v408
        %v745 = vunpack.c.l.b16 %v409
        %v746 = vunpack.c.l.b16 %v410
        %v747 = vunpack.c.l.b16 %v411
        %v748 = vunpack.c.l.b16 %v412
        %v749 = vunpack.c.l.b16 %v413
        %v750 = vunpack.c.l.b16 %v414
        %v751 = vunpack.c.l.b16 %v415
        %v752 = vunpack.c.l.b16 %v416
        %v753 = vunpack.c.l.b16 %v417
        %v754 = vunpack.c.l.b16 %v418
        %v755 = vunpack.c.l.b16 %v419
        %v756 = vunpack.c.l.b16 %v420
        %v757 = vunpack.c.l.b16 %v421
        %v758 = vunpack.c.l.b16 %v422
        %v759 = vunpack.c.l.b16 %v423
        %v760 = vunpack.c.l.b16 %v424
        %v761 = vunpack.c.l.b16 %v425
        %v762 = vunpack.c.l.b16 %v426
        %v763 = vunpack.c.l.b16 %v427
        %v764 = vunpack.c.l.b16 %v428
        %v765 = vunpack.c.l.b16 %v429
        %v766 = vunpack.c.l.b16 %v430
        %v767 = vunpack.c.l.b16 %v431
        %v768 = vunpack.c.l.b16 %v432
        %v769 = vunpack.c.l.b16 %v433
        %v770 = vunpack.c.l.b16 %v434
        %v771 = vunpack.c.l.b16 %v435
        %v772 = vunpack.c.l.b16 %v436
        %v773 = vunpack.c.l.b16 %v437
        %v774 = vunpack.c.l.b16 %v438
        %v775 = vunpack.c.l.b16 %v439
        %v776 = vunpack.c.l.b16 %v440
        %v777 = vunpack.c.l.b16 %v441
        %v778 = vunpack.c.l.b16 %v442
        %v779 = vunpack.c.l.b16 %v443
        %v780 = vunpack.c.l.b16 %v444
        %v781 = vunpack.c.l.b16 %v445
        %v782 = vunpack.c.l.b16 %v446
        %v783 = vunpack.c.l.b16 %v447
        %v784 = vunpack.c.l.b16 %v448
        %v785 = vunpack.c.l.b16 %v449
        %v786 = vunpack.c.l.b16 %v450
        %v787 = vunpack.c.l.b16 %v451
        %v788 = vunpack.c.l.b16 %v452
        %v789 = vunpack.c.l.b16 %v453
        %v790 = vunpack.c.l.b16 %v454
        %v791 = vunpack.c.l.b16 %v455
        %v792 = vunpack.c.l.b16 %v456
        %v793 = vunpack.c.l.b16 %v457
        %v794 = vunpack.c.l.b16 %v458
        %v795 = vunpack.c.l.b16 %v459
        %v796 = vunpack.c.l.b16 %v460
        %v797 = vunpack.c.l.b16 %v461
        %v798 = vunpack.c.l.b16 %v462
        %v799 = vunpack.c.l.b16 %v463
        %v800 = vunpack.c.l.b16 %v464
        %v801 = vunpack.c.l.b16 %v465
        %v802 = vunpack.c.l.b16 %v466
        %v803 = vunpack.c.l.b16 %v467
        %v804 = vunpack.c.l.b16 %v468
        %v805 = vunpack.c.l.b16 %v469
        %v806 = vunpack.c.l.b16 %v470
        %v807 = vunpack.c.l.b16 %v471
        %v808 = vunpack.c.l.b16 %v472
        %v809 = vunpack.c.l.b16 %v473
        %v810 = vunpack.c.l.b16 %v474
        %v811 = vunpack.c.l.b16 %v475
        %v812 = vunpack.c.l.b16 %v476
        %v813 = vunpack.c.l.b16 %v477
        %v814 = vunpack.c.l.b16 %v478
        %v815 = vunpack.c.l.b16 %v479
        %v816 = vunpack.c.l.b16 %v480
        %v817 = vunpack.c.l.b16 %v481
        %v818 = vunpack.c.l.b16 %v482
        %v819 = vunpack.c.l.b16 %v483
        %v820 = vunpack.c.l.b16 %v484
        %v821 = vunpack.c.l.b16 %v485
        %v822 = vunpack.c.l.b16 %v486
        %v823 = vunpack.c.l.b16 %v487
        %v824 = vunpack.c.l.b16 %v488
        %v825 = vunpack.c.l.b16 %v489
        %v826 = vunpack.c.l.b16 %v490
        %v827 = vpack.c.b16 %v700, %v699
        %v828 = vpack.c.b16 %v702, %v701
        %v829 = vpack.c.b16 %v704, %v703
        %v830 = vpack.c.b16 %v706, %v705
        %v831 = vpack.c.b16 %v708, %v707
        %v832 = vpack.c.b16 %v710, %v709
        %v833 = vpack.c.b16 %v712, %v711
        %v834 = vpack.c.b16 %v714, %v713
        %v835 = vpack.c.b16 %v716, %v715
        %v836 = vpack.c.b16 %v718, %v717
        %v837 = vpack.c.b16 %v720, %v719
        %v838 = vpack.c.b16 %v722, %v721
        %v839 = vpack.c.b16 %v724, %v723
        %v840 = vpack.c.b16 %v726, %v725
        %v841 = vpack.c.b16 %v728, %v727
        %v842 = vpack.c.b16 %v730, %v729
        %v843 = vpack.c.b16 %v732, %v731
        %v844 = vpack.c.b16 %v734, %v733
        %v845 = vpack.c.b16 %v736, %v735
        %v846 = vpack.c.b16 %v738, %v737
        %v847 = vpack.c.b16 %v740, %v739
        %v848 = vpack.c.b16 %v742, %v741
        %v849 = vpack.c.b16 %v744, %v743
        %v850 = vpack.c.b16 %v746, %v745
        %v851 = vpack.c.b16 %v748, %v747
        %v852 = vpack.c.b16 %v750, %v749
        %v853 = vpack.c.b16 %v752, %v751
        %v854 = vpack.c.b16 %v754, %v753
        %v855 = vpack.c.b16 %v756, %v755
        %v856 = vpack.c.b16 %v758, %v757
        %v857 = vpack.c.b16 %v760, %v759
        %v858 = vpack.c.b16 %v762, %v761
        %v859 = vpack.c.b16 %v764, %v763
        %v860 = vpack.c.b16 %v766, %v765
        %v861 = vpack.c.b16 %v768, %v767
        %v862 = vpack.c.b16 %v770, %v769
        %v863 = vpack.c.b16 %v772, %v771
        %v864 = vpack.c.b16 %v774, %v773
        %v865 = vpack.c.b16 %v776, %v775
        %v866 = vpack.c.b16 %v778, %v777
        %v867 = vpack.c.b16 %v780, %v779
        %v868 = vpack.c.b16 %v782, %v781
        %v869 = vpack.c.b16 %v784, %v783
        %v870 = vpack.c.b16 %v786, %v785
        %v871 = vpack.c.b16 %v788, %v787
        %v872 = vpack.c.b16 %v790, %v789
        %v873 = vpack.c.b16 %v792, %v791
        %v874 = vpack.c.b16 %v794, %v793
        %v875 = vpack.c.b16 %v796, %v795
        %v876 = vpack.c.b16 %v798, %v797
        %v877 = vpack.c.b16 %v800, %v799
        %v878 = vpack.c.b16 %v802, %v801
        %v879 = vpack.c.b16 %v804, %v803
        %v880 = vpack.c.b16 %v806, %v805
        %v881 = vpack.c.b16 %v808, %v807
        %v882 = vpack.c.b16 %v810, %v809
        %v883 = vpack.c.b16 %v812, %v811
        %v884 = vpack.c.b16 %v814, %v813
        %v885 = vpack.c.b16 %v816, %v815
        %v886 = vpack.c.b16 %v818, %v817
        %v887 = vpack.c.b16 %v820, %v819
        %v888 = vpack.c.b16 %v822, %v821
        %v889 = vpack.c.b16 %v824, %v823
        %v890 = vpack.c.b16 %v826, %v825
        %955 = vmatpush.bf16.msra.mxu0 %v834
        %956 = vmatpush.bf16.msra.mxu0 %v833
        %957 = vmatpush.bf16.msra.mxu0 %v832
        %958 = vmatpush.bf16.msra.mxu0 %v831
        %959 = vmatpush.bf16.msra.mxu0 %v830
        %960 = vmatpush.bf16.msra.mxu0 %v829
        %961 = vmatpush.bf16.msra.mxu0 %v828
        %962 = vmatpush.bf16.msra.mxu0 %v827
        %963 = vmatmul.bf16.gmra.mxu0 %v539
        %v964 = vpop.f32.mrf.mxu0
        %v965 = vadd.f32 0.0, %v964
        %v966 = vpop.f32.mrf.mxu0
        %v967 = vadd.f32 0.0, %v966
        %968 = vmatmul.bf16.gmra.mxu0 %v547
        %v969 = vpop.f32.mrf.mxu0
        %v970 = vadd.f32 0.0, %v969
        %v971 = vpop.f32.mrf.mxu0
        %v972 = vadd.f32 0.0, %v971
        %973 = vdwg.mxu0
        %974 = vmatpush.bf16.msra.mxu0 %v842
        %975 = vmatpush.bf16.msra.mxu0 %v841
        %976 = vmatpush.bf16.msra.mxu0 %v840
        %977 = vmatpush.bf16.msra.mxu0 %v839
        %978 = vmatpush.bf16.msra.mxu0 %v838
        %979 = vmatpush.bf16.msra.mxu0 %v837
        %980 = vmatpush.bf16.msra.mxu0 %v836
        %981 = vmatpush.bf16.msra.mxu0 %v835
        %982 = vmatmul.bf16.gmra.mxu0 %v540
        %v983 = vpop.f32.mrf.mxu0
        %v984 = vadd.f32 %v965, %v983
        %v985 = vpop.f32.mrf.mxu0
        %v986 = vadd.f32 %v967, %v985
        %987 = vmatmul.bf16.gmra.mxu0 %v548
        %v988 = vpop.f32.mrf.mxu0
        %v989 = vadd.f32 %v970, %v988
        %v990 = vpop.f32.mrf.mxu0
        %v991 = vadd.f32 %v972, %v990
        %992 = vdwg.mxu0
        %993 = vmatpush.bf16.msra.mxu0 %v850
        %994 = vmatpush.bf16.msra.mxu0 %v849
        %995 = vmatpush.bf16.msra.mxu0 %v848
        %996 = vmatpush.bf16.msra.mxu0 %v847
        %997 = vmatpush.bf16.msra.mxu0 %v846
        %998 = vmatpush.bf16.msra.mxu0 %v845
        %999 = vmatpush.bf16.msra.mxu0 %v844
        %1000 = vmatpush.bf16.msra.mxu0 %v843
        %1001 = vmatmul.bf16.gmra.mxu0 %v541
        %v1002 = vpop.f32.mrf.mxu0
        %v1003 = vadd.f32 %v984, %v1002
        %v1004 = vpop.f32.mrf.mxu0
        %v1005 = vadd.f32 %v986, %v1004
        %1006 = vmatmul.bf16.gmra.mxu0 %v549
        %v1007 = vpop.f32.mrf.mxu0
        %v1008 = vadd.f32 %v989, %v1007
        %v1009 = vpop.f32.mrf.mxu0
        %v1010 = vadd.f32 %v991, %v1009
        %1011 = vdwg.mxu0
        %1012 = vmatpush.bf16.msra.mxu0 %v858
        %1013 = vmatpush.bf16.msra.mxu0 %v857
        %1014 = vmatpush.bf16.msra.mxu0 %v856
        %1015 = vmatpush.bf16.msra.mxu0 %v855
        %1016 = vmatpush.bf16.msra.mxu0 %v854
        %1017 = vmatpush.bf16.msra.mxu0 %v853
        %1018 = vmatpush.bf16.msra.mxu0 %v852
        %1019 = vmatpush.bf16.msra.mxu0 %v851
        %1020 = vmatmul.bf16.gmra.mxu0 %v542
        %v1021 = vpop.f32.mrf.mxu0
        %v1022 = vadd.f32 %v1003, %v1021
        %v1023 = vpop.f32.mrf.mxu0
        %v1024 = vadd.f32 %v1005, %v1023
        %1025 = vmatmul.bf16.gmra.mxu0 %v550
        %v1026 = vpop.f32.mrf.mxu0
        %v1027 = vadd.f32 %v1008, %v1026
        %v1028 = vpop.f32.mrf.mxu0
        %v1029 = vadd.f32 %v1010, %v1028
        %1030 = vdwg.mxu0
        %1031 = vmatpush.bf16.msra.mxu0 %v866
        %1032 = vmatpush.bf16.msra.mxu0 %v865
        %1033 = vmatpush.bf16.msra.mxu0 %v864
        %1034 = vmatpush.bf16.msra.mxu0 %v863
        %1035 = vmatpush.bf16.msra.mxu0 %v862
        %1036 = vmatpush.bf16.msra.mxu0 %v861
        %1037 = vmatpush.bf16.msra.mxu0 %v860
        %1038 = vmatpush.bf16.msra.mxu0 %v859
        %1039 = vmatmul.bf16.gmra.mxu0 %v543
        %v1040 = vpop.f32.mrf.mxu0
        %v1041 = vadd.f32 %v1022, %v1040
        %v1042 = vpop.f32.mrf.mxu0
        %v1043 = vadd.f32 %v1024, %v1042
        %1044 = vmatmul.bf16.gmra.mxu0 %v551
        %v1045 = vpop.f32.mrf.mxu0
        %v1046 = vadd.f32 %v1027, %v1045
        %v1047 = vpop.f32.mrf.mxu0
        %v1048 = vadd.f32 %v1029, %v1047
        %1049 = vdwg.mxu0
        %1050 = vmatpush.bf16.msra.mxu0 %v874
        %1051 = vmatpush.bf16.msra.mxu0 %v873
        %1052 = vmatpush.bf16.msra.mxu0 %v872
        %1053 = vmatpush.bf16.msra.mxu0 %v871
        %1054 = vmatpush.bf16.msra.mxu0 %v870
        %1055 = vmatpush.bf16.msra.mxu0 %v869
        %1056 = vmatpush.bf16.msra.mxu0 %v868
        %1057 = vmatpush.bf16.msra.mxu0 %v867
        %1058 = vmatmul.bf16.gmra.mxu0 %v544
        %v1059 = vpop.f32.mrf.mxu0
        %v1060 = vadd.f32 %v1041, %v1059
        %v1061 = vpop.f32.mrf.mxu0
        %v1062 = vadd.f32 %v1043, %v1061
        %1063 = vmatmul.bf16.gmra.mxu0 %v552
        %v1064 = vpop.f32.mrf.mxu0
        %v1065 = vadd.f32 %v1046, %v1064
        %v1066 = vpop.f32.mrf.mxu0
        %v1067 = vadd.f32 %v1048, %v1066
        %1068 = vdwg.mxu0
        %1069 = vmatpush.bf16.msra.mxu0 %v882
        %1070 = vmatpush.bf16.msra.mxu0 %v881
        %1071 = vmatpush.bf16.msra.mxu0 %v880
        %1072 = vmatpush.bf16.msra.mxu0 %v879
        %1073 = vmatpush.bf16.msra.mxu0 %v878
        %1074 = vmatpush.bf16.msra.mxu0 %v877
        %1075 = vmatpush.bf16.msra.mxu0 %v876
        %1076 = vmatpush.bf16.msra.mxu0 %v875
        %1077 = vmatmul.bf16.gmra.mxu0 %v545
        %v1078 = vpop.f32.mrf.mxu0
        %v1079 = vadd.f32 %v1060, %v1078
        %v1080 = vpop.f32.mrf.mxu0
        %v1081 = vadd.f32 %v1062, %v1080
        %1082 = vmatmul.bf16.gmra.mxu0 %v553
        %v1083 = vpop.f32.mrf.mxu0
        %v1084 = vadd.f32 %v1065, %v1083
        %v1085 = vpop.f32.mrf.mxu0
        %v1086 = vadd.f32 %v1067, %v1085
        %1087 = vdwg.mxu0
        %1088 = vmatpush.bf16.msra.mxu0 %v890
        %1089 = vmatpush.bf16.msra.mxu0 %v889
        %1090 = vmatpush.bf16.msra.mxu0 %v888
        %1091 = vmatpush.bf16.msra.mxu0 %v887
        %1092 = vmatpush.bf16.msra.mxu0 %v886
        %1093 = vmatpush.bf16.msra.mxu0 %v885
        %1094 = vmatpush.bf16.msra.mxu0 %v884
        %1095 = vmatpush.bf16.msra.mxu0 %v883
        %1096 = vmatmul.bf16.gmra.mxu0 %v546
        %v1097 = vpop.f32.mrf.mxu0
        %v1098 = vadd.f32 %v1079, %v1097
        %v1099 = vpop.f32.mrf.mxu0
        %v1100 = vadd.f32 %v1081, %v1099
        %1101 = vmatmul.bf16.gmra.mxu0 %v554
        %v1102 = vpop.f32.mrf.mxu0
        %v1103 = vadd.f32 %v1084, %v1102
        %v1104 = vpop.f32.mrf.mxu0
        %v1105 = vadd.f32 %v1086, %v1104
        %1106 = vdwg.mxu0
        %v1107 = vadd.f32 %v343, %v1098
        %v1108 = vadd.f32 %v344, %v1100
        %v1109 = vadd.f32 %v345, %v1103
        %v1110 = vadd.f32 %v346, %v1105
        %vm1111 = vcmask 64512
        %1112 = vst.msk [vmem:[#allocation2] sm:$0xff] %vm1111, %v1107
        %1113 = vst.msk [vmem:[#allocation2 + $0x8] sm:$0xff] %vm1111, %v1108
        %1114 = vst.msk [vmem:[#allocation2 + $0x10] sm:$0xff] %vm1111, %v1109
        %1115 = vst.msk [vmem:[#allocation2 + $0x18] sm:$0xff] %vm1111, %v1110
        %p1116 = scmp.eq.s32.totalorder %s20, 2
        // Predicated region
        $region64: #{hcnet_forward.22} parent=54 // pred_check
          %p1117 = pneg %p1116
        $region65: #{hcnet_forward.22} parent=54 // pred_check_branch
          %1119 = sbr.rel (%p1117) target = $region67
        $region66: #{hcnet_forward.22} parent=54 // pred_region
          %v1120 = vld [vmem:[#allocation2] sm:$0xff]
          %v1121 = vld [vmem:[#allocation2 + $0x8] sm:$0xff]
          %v1122 = vld [vmem:[#allocation2 + $0x10] sm:$0xff]
          %v1123 = vld [vmem:[#allocation2 + $0x18] sm:$0xff]
          %v1124 = vld [vmem:[%s320] sm:$0xff]
          %v1125 = vld [vmem:[%s320 + $0x8] sm:$0xff]
          %v1126 = vld [vmem:[%s320 + $0x10] sm:$0xff]
          %v1127 = vld [vmem:[%s320 + $0x18] sm:$0xff]
          %v1128 = vadd.f32 %v1120, %v1124
          %v1129 = vadd.f32 %v1121, %v1125
          %v1130 = vadd.f32 %v1122, %v1126
          %v1131 = vadd.f32 %v1123, %v1127
          %v1132 = vtanh.pop %v1128
          %v1133 = vtanh.pop %v1129
          %v1134 = vtanh.pop %v1130
          %v1135 = vtanh.pop %v1131
          %v1136 = vld [vmem:[%s326] sm:$0xff]
          %v1137 = vld [vmem:[%s326 + $0x8] sm:$0xff]
          %v1138 = vld [vmem:[%s326 + $0x10] sm:$0xff]
          %v1139 = vld [vmem:[%s326 + $0x18] sm:$0xff]
          %v1140 = vadd.f32 %v1132, %v1136
          %v1141 = vadd.f32 %v1133, %v1137
          %v1142 = vadd.f32 %v1134, %v1138
          %v1143 = vadd.f32 %v1135, %v1139
          %1144 = vst.msk [vmem:[%s332] sm:$0xff] %vm1111, %v1140
          %1145 = vst.msk [vmem:[%s332 + $0x8] sm:$0xff] %vm1111, %v1141
          %1146 = vst.msk [vmem:[%s332 + $0x10] sm:$0xff] %vm1111, %v1142
          %1147 = vst.msk [vmem:[%s332 + $0x18] sm:$0xff] %vm1111, %v1143
        $region67: #{hcnet_forward.22} parent=54 // pred_fallthru
          _
        %s1148 = smul.u32 4, %s19
        %p1149 = scmp.lt.s32.totalorder %s1148, 3
        %s1150 = scalar_select %p1149, %s1148, 3
        %s1151 = smul.addr %s1150, 8
        %s1152 = scalar_lea.vmem %s4, %s1151
        // Predicated region
        $region68: #{hcnet_forward.22} parent=54 // pred_check
          %p1153 = pneg %p151
        $region69: #{hcnet_forward.22} parent=54 // pred_check_branch
          %1155 = sbr.rel (%p1153) target = $region71
        $region70: #{hcnet_forward.22} parent=54 // pred_region
          %s1156 = smul.u32 4, %s19
        $region71: #{hcnet_forward.22} parent=54 // pred_fallthru
          _
        // Predicated region
        $region72: #{hcnet_forward.22} parent=54 // pred_check
          %p1157 = pneg %p151
        $region73: #{hcnet_forward.22} parent=54 // pred_check_branch
          %1159 = sbr.rel (%p1157) target = $region75
        $region74: #{hcnet_forward.22} parent=54 // pred_region
          %s1160 = smul.u32 4, %s19
          %p1161 = scmp.lt.s32.totalorder %s1160, 3
          %s1162 = scalar_select %p1161, %s1160, 3
          %s1163 = smul.addr %s1162, 8
          %s1164 = scalar_lea.vmem %s4, %s1163
        $region75: #{hcnet_forward.22} parent=54 // pred_fallthru
          _
      $region55: #{hcnet_forward.22} parent=5 // pred_fallthru
        _
      %p1165 = scmp.le.s32.totalorder 2, %s10
      // Predicated region
      $region76: #{hcnet_forward.22} parent=5 // pred_check
        %p1166 = pneg %p1165
      $region77: #{hcnet_forward.22} parent=5 // pred_check_branch
        %1168 = sbr.rel (%p1166) target = $region79
      $region78: #{hcnet_forward.22} parent=5 // pred_region
        %s1169 = ssub.s32 %s10, 2
      $region79: #{hcnet_forward.22} parent=5 // pred_fallthru
        _
    $region6: #{hcnet_forward.22} parent=1 // loop_footer
      %s14 = sadd.s32 1, %s10
    $region7: #{hcnet_forward.22} parent=1 // loop_footer_branch
      %9 = sbr.rel target = $region3
    $region8: #{hcnet_forward.22} parent=1 // loop_exit
      _

// kernel: hcnet_forward.27
$region0: #{hcnet_forward.27}
  #allocation0 [shape = 'u32[]', space=smem, size = 0x4, offset = 0x4, fixed_abs, tag = 'smem constant byte address 0x4 - core index']
  #allocation1 [shape = 'u32[72,128]{1,0:T(1,128)}', space=vmem, size = 0x9000, scoped, tag = 'internal scratch']
  #allocation2 [shape = 'f32[224,8]{1,0:T(8,128)}', space=vmem, size = 0x1c000, scoped, tag = 'scratch operand']
  %s0 = inlined_call_operand.vmem [shape: bf16[224,256], index: 0, kind: input, shape index: {}]
  %s1 = inlined_call_operand.vmem [shape: bf16[256,8], index: 1, kind: input, shape index: {}]
  %s2 = inlined_call_operand.vmem [shape: f32[224,8], index: 2, kind: output, shape index: {0}]
  %s3 = inlined_call_operand.vmem [shape: f32[8,8], index: 3, kind: output, shape index: {1}]
  %4 = xla_tuple %s2, %s3
  %s5 = sld [smem:[#allocation0]]
  $region34: #{hcnet_forward.27} parent=0
    _
  %s7 = ssub.s32 1, %s5
  %s8 = scalar_select 0, %s7, %s5
  // Predicated region
  $region2: #{hcnet_forward.27} parent=0 // pred_check
    _
  $region3: #{hcnet_forward.27} parent=0 // pred_check_branch
    %10 = sbr.rel (0) target = $region5
  $region4: #{hcnet_forward.27} parent=0 // pred_region
    _
  $region5: #{hcnet_forward.27} parent=0 // pred_fallthru
    _
  // Predicated region
  $region6: #{hcnet_forward.27} parent=0 // pred_check
    _
  $region7: #{hcnet_forward.27} parent=0 // pred_check_branch
    %12 = sbr.rel (0) target = $region9
  $region8: #{hcnet_forward.27} parent=0 // pred_region
    _
  $region9: #{hcnet_forward.27} parent=0 // pred_fallthru
    _
  %p13 = scmp.eq.s32.totalorder 0, 0
  // Predicated region
  $region10: #{hcnet_forward.27} parent=0 // pred_check
    %p14 = pneg %p13
  $region11: #{hcnet_forward.27} parent=0 // pred_check_branch
    %16 = sbr.rel (%p14) target = $region13
  $region12: #{hcnet_forward.27} parent=0 // pred_region
    %vm17 = vcmask 64512
    %18 = vst.msk [vmem:[#allocation2] sm:$0xff] %vm17, 0.0
    %19 = vst.msk [vmem:[#allocation2 + $0x8] sm:$0xff] %vm17, 0.0
    %20 = vst.msk [vmem:[#allocation2 + $0x10] sm:$0xff] %vm17, 0.0
    %21 = vst.msk [vmem:[#allocation2 + $0x18] sm:$0xff] %vm17, 0.0
    %22 = vst.msk [vmem:[#allocation2 + $0x20] sm:$0xff] %vm17, 0.0
    %23 = vst.msk [vmem:[#allocation2 + $0x28] sm:$0xff] %vm17, 0.0
    %24 = vst.msk [vmem:[#allocation2 + $0x30] sm:$0xff] %vm17, 0.0
    %25 = vst.msk [vmem:[#allocation2 + $0x38] sm:$0xff] %vm17, 0.0
    %26 = vst.msk [vmem:[#allocation2 + $0x40] sm:$0xff] %vm17, 0.0
    %27 = vst.msk [vmem:[#allocation2 + $0x48] sm:$0xff] %vm17, 0.0
    %28 = vst.msk [vmem:[#allocation2 + $0x50] sm:$0xff] %vm17, 0.0
    %29 = vst.msk [vmem:[#allocation2 + $0x58] sm:$0xff] %vm17, 0.0
    %30 = vst.msk [vmem:[#allocation2 + $0x60] sm:$0xff] %vm17, 0.0
    %31 = vst.msk [vmem:[#allocation2 + $0x68] sm:$0xff] %vm17, 0.0
    %32 = vst.msk [vmem:[#allocation2 + $0x70] sm:$0xff] %vm17, 0.0
    %33 = vst.msk [vmem:[#allocation2 + $0x78] sm:$0xff] %vm17, 0.0
    %34 = vst.msk [vmem:[#allocation2 + $0x80] sm:$0xff] %vm17, 0.0
    %35 = vst.msk [vmem:[#allocation2 + $0x88] sm:$0xff] %vm17, 0.0
    %36 = vst.msk [vmem:[#allocation2 + $0x90] sm:$0xff] %vm17, 0.0
    %37 = vst.msk [vmem:[#allocation2 + $0x98] sm:$0xff] %vm17, 0.0
    %38 = vst.msk [vmem:[#allocation2 + $0xa0] sm:$0xff] %vm17, 0.0
    %39 = vst.msk [vmem:[#allocation2 + $0xa8] sm:$0xff] %vm17, 0.0
    %40 = vst.msk [vmem:[#allocation2 + $0xb0] sm:$0xff] %vm17, 0.0
    %41 = vst.msk [vmem:[#allocation2 + $0xb8] sm:$0xff] %vm17, 0.0
    %42 = vst.msk [vmem:[#allocation2 + $0xc0] sm:$0xff] %vm17, 0.0
    %43 = vst.msk [vmem:[#allocation2 + $0xc8] sm:$0xff] %vm17, 0.0
    %44 = vst.msk [vmem:[#allocation2 + $0xd0] sm:$0xff] %vm17, 0.0
    %45 = vst.msk [vmem:[#allocation2 + $0xd8] sm:$0xff] %vm17, 0.0
  $region13: #{hcnet_forward.27} parent=0 // pred_fallthru
    _
  %v46 = vld [vmem:[#allocation2] sm:$0xff]
  %v47 = vld [vmem:[#allocation2 + $0x8] sm:$0xff]
  %v48 = vld [vmem:[#allocation2 + $0x10] sm:$0xff]
  %v49 = vld [vmem:[#allocation2 + $0x18] sm:$0xff]
  %v50 = vld [vmem:[#allocation2 + $0x20] sm:$0xff]
  %v51 = vld [vmem:[#allocation2 + $0x28] sm:$0xff]
  %v52 = vld [vmem:[#allocation2 + $0x30] sm:$0xff]
  %v53 = vld [vmem:[#allocation2 + $0x38] sm:$0xff]
  %v54 = vld [vmem:[#allocation2 + $0x40] sm:$0xff]
  %v55 = vld [vmem:[#allocation2 + $0x48] sm:$0xff]
  %v56 = vld [vmem:[#allocation2 + $0x50] sm:$0xff]
  %v57 = vld [vmem:[#allocation2 + $0x58] sm:$0xff]
  %v58 = vld [vmem:[#allocation2 + $0x60] sm:$0xff]
  %v59 = vld [vmem:[#allocation2 + $0x68] sm:$0xff]
  %v60 = vld [vmem:[#allocation2 + $0x70] sm:$0xff]
  %v61 = vld [vmem:[#allocation2 + $0x78] sm:$0xff]
  %v62 = vld [vmem:[#allocation2 + $0x80] sm:$0xff]
  %v63 = vld [vmem:[#allocation2 + $0x88] sm:$0xff]
  %v64 = vld [vmem:[#allocation2 + $0x90] sm:$0xff]
  %v65 = vld [vmem:[#allocation2 + $0x98] sm:$0xff]
  %v66 = vld [vmem:[#allocation2 + $0xa0] sm:$0xff]
  %v67 = vld [vmem:[#allocation2 + $0xa8] sm:$0xff]
  %v68 = vld [vmem:[#allocation2 + $0xb0] sm:$0xff]
  %v69 = vld [vmem:[#allocation2 + $0xb8] sm:$0xff]
  %v70 = vld [vmem:[#allocation2 + $0xc0] sm:$0xff]
  %v71 = vld [vmem:[#allocation2 + $0xc8] sm:$0xff]
  %v72 = vld [vmem:[#allocation2 + $0xd0] sm:$0xff]
  %v73 = vld [vmem:[#allocation2 + $0xd8] sm:$0xff]
  %v74 = vld [vmem:[%s0] sm:$0xff]
  %v75 = vld [vmem:[%s0 + $0x8] sm:$0xff]
  %v76 = vld [vmem:[%s0 + $0x10] sm:$0xff]
  %v77 = vld [vmem:[%s0 + $0x18] sm:$0xff]
  %v78 = vld [vmem:[%s0 + $0x20] sm:$0xff]
  %v79 = vld [vmem:[%s0 + $0x28] sm:$0xff]
  %v80 = vld [vmem:[%s0 + $0x30] sm:$0xff]
  %v81 = vld [vmem:[%s0 + $0x38] sm:$0xff]
  %v82 = vld [vmem:[%s0 + $0x40] sm:$0xff]
  %v83 = vld [vmem:[%s0 + $0x48] sm:$0xff]
  %v84 = vld [vmem:[%s0 + $0x50] sm:$0xff]
  %v85 = vld [vmem:[%s0 + $0x58] sm:$0xff]
  %v86 = vld [vmem:[%s0 + $0x60] sm:$0xff]
  %v87 = vld [vmem:[%s0 + $0x68] sm:$0xff]
  %v88 = vld [vmem:[%s0 + $0x70] sm:$0xff]
  %v89 = vld [vmem:[%s0 + $0x78] sm:$0xff]
  %v90 = vld [vmem:[%s0 + $0x80] sm:$0xff]
  %v91 = vld [vmem:[%s0 + $0x88] sm:$0xff]
  %v92 = vld [vmem:[%s0 + $0x90] sm:$0xff]
  %v93 = vld [vmem:[%s0 + $0x98] sm:$0xff]
  %v94 = vld [vmem:[%s0 + $0xa0] sm:$0xff]
  %v95 = vld [vmem:[%s0 + $0xa8] sm:$0xff]
  %v96 = vld [vmem:[%s0 + $0xb0] sm:$0xff]
  %v97 = vld [vmem:[%s0 + $0xb8] sm:$0xff]
  %v98 = vld [vmem:[%s0 + $0xc0] sm:$0xff]
  %v99 = vld [vmem:[%s0 + $0xc8] sm:$0xff]
  %v100 = vld [vmem:[%s0 + $0xd0] sm:$0xff]
  %v101 = vld [vmem:[%s0 + $0xd8] sm:$0xff]
  %v102 = vld [vmem:[%s1] sm:$0xf]
  %v103 = vld [vmem:[%s1 + $0x4] sm:$0xf]
  %v104 = vld [vmem:[%s1 + $0x8] sm:$0xf]
  %v105 = vld [vmem:[%s1 + $0xc] sm:$0xf]
  %v106 = vld [vmem:[%s1 + $0x10] sm:$0xf]
  %v107 = vld [vmem:[%s1 + $0x14] sm:$0xf]
  %v108 = vld [vmem:[%s1 + $0x18] sm:$0xf]
  %v109 = vld [vmem:[%s1 + $0x1c] sm:$0xf]
  %v110 = vld [vmem:[%s1 + $0x20] sm:$0xf]
  %v111 = vld [vmem:[%s1 + $0x24] sm:$0xf]
  %v112 = vld [vmem:[%s1 + $0x28] sm:$0xf]
  %v113 = vld [vmem:[%s1 + $0x2c] sm:$0xf]
  %v114 = vld [vmem:[%s1 + $0x30] sm:$0xf]
  %v115 = vld [vmem:[%s1 + $0x34] sm:$0xf]
  %v116 = vld [vmem:[%s1 + $0x38] sm:$0xf]
  %v117 = vld [vmem:[%s1 + $0x3c] sm:$0xf]
  %v118 = vld [vmem:[%s1 + $0x40] sm:$0xf]
  %v119 = vld [vmem:[%s1 + $0x44] sm:$0xf]
  %v120 = vld [vmem:[%s1 + $0x48] sm:$0xf]
  %v121 = vld [vmem:[%s1 + $0x4c] sm:$0xf]
  %v122 = vld [vmem:[%s1 + $0x50] sm:$0xf]
  %v123 = vld [vmem:[%s1 + $0x54] sm:$0xf]
  %v124 = vld [vmem:[%s1 + $0x58] sm:$0xf]
  %v125 = vld [vmem:[%s1 + $0x5c] sm:$0xf]
  %v126 = vld [vmem:[%s1 + $0x60] sm:$0xf]
  %v127 = vld [vmem:[%s1 + $0x64] sm:$0xf]
  %v128 = vld [vmem:[%s1 + $0x68] sm:$0xf]
  %v129 = vld [vmem:[%s1 + $0x6c] sm:$0xf]
  %v130 = vld [vmem:[%s1 + $0x70] sm:$0xf]
  %v131 = vld [vmem:[%s1 + $0x74] sm:$0xf]
  %v132 = vld [vmem:[%s1 + $0x78] sm:$0xf]
  %v133 = vld [vmem:[%s1 + $0x7c] sm:$0xf]
  %v162 = vunpack.c.l.b16 %v74
  %v163 = vunpack.c.h.b16 %v74
  %v164 = vunpack.c.l.b16 %v75
  %v165 = vunpack.c.h.b16 %v75
  %v166 = vunpack.c.l.b16 %v76
  %v167 = vunpack.c.h.b16 %v76
  %v168 = vunpack.c.l.b16 %v77
  %v169 = vunpack.c.h.b16 %v77
  %v170 = vunpack.c.l.b16 %v78
  %v171 = vunpack.c.h.b16 %v78
  %v172 = vunpack.c.l.b16 %v79
  %v173 = vunpack.c.h.b16 %v79
  %v174 = vunpack.c.l.b16 %v80
  %v175 = vunpack.c.h.b16 %v80
  %v176 = vunpack.c.l.b16 %v81
  %v177 = vunpack.c.h.b16 %v81
  %v178 = vunpack.c.l.b16 %v82
  %v179 = vunpack.c.h.b16 %v82
  %v180 = vunpack.c.l.b16 %v83
  %v181 = vunpack.c.h.b16 %v83
  %v182 = vunpack.c.l.b16 %v84
  %v183 = vunpack.c.h.b16 %v84
  %v184 = vunpack.c.l.b16 %v85
  %v185 = vunpack.c.h.b16 %v85
  %v186 = vunpack.c.l.b16 %v86
  %v187 = vunpack.c.h.b16 %v86
  %v188 = vunpack.c.l.b16 %v87
  %v189 = vunpack.c.h.b16 %v87
  %v190 = vunpack.c.l.b16 %v88
  %v191 = vunpack.c.h.b16 %v88
  %v192 = vunpack.c.l.b16 %v89
  %v193 = vunpack.c.h.b16 %v89
  %v194 = vunpack.c.l.b16 %v90
  %v195 = vunpack.c.h.b16 %v90
  %v196 = vunpack.c.l.b16 %v91
  %v197 = vunpack.c.h.b16 %v91
  %v198 = vunpack.c.l.b16 %v92
  %v199 = vunpack.c.h.b16 %v92
  %v200 = vunpack.c.l.b16 %v93
  %v201 = vunpack.c.h.b16 %v93
  %v202 = vunpack.c.l.b16 %v94
  %v203 = vunpack.c.h.b16 %v94
  %v204 = vunpack.c.l.b16 %v95
  %v205 = vunpack.c.h.b16 %v95
  %v206 = vunpack.c.l.b16 %v96
  %v207 = vunpack.c.h.b16 %v96
  %v208 = vunpack.c.l.b16 %v97
  %v209 = vunpack.c.h.b16 %v97
  %v210 = vunpack.c.l.b16 %v98
  %v211 = vunpack.c.h.b16 %v98
  %v212 = vunpack.c.l.b16 %v99
  %v213 = vunpack.c.h.b16 %v99
  %v214 = vunpack.c.l.b16 %v100
  %v215 = vunpack.c.h.b16 %v100
  %v216 = vunpack.c.l.b16 %v101
  %v217 = vunpack.c.h.b16 %v101
  %v218 = vpack.c.b16 %v164, %v162
  %v219 = vpack.c.b16 %v165, %v163
  %v220 = vpack.c.b16 %v168, %v166
  %v221 = vpack.c.b16 %v169, %v167
  %v222 = vpack.c.b16 %v172, %v170
  %v223 = vpack.c.b16 %v173, %v171
  %v224 = vpack.c.b16 %v176, %v174
  %v225 = vpack.c.b16 %v177, %v175
  %v226 = vpack.c.b16 %v180, %v178
  %v227 = vpack.c.b16 %v181, %v179
  %v228 = vpack.c.b16 %v184, %v182
  %v229 = vpack.c.b16 %v185, %v183
  %v230 = vpack.c.b16 %v188, %v186
  %v231 = vpack.c.b16 %v189, %v187
  %v232 = vpack.c.b16 %v192, %v190
  %v233 = vpack.c.b16 %v193, %v191
  %v234 = vpack.c.b16 %v196, %v194
  %v235 = vpack.c.b16 %v197, %v195
  %v236 = vpack.c.b16 %v200, %v198
  %v237 = vpack.c.b16 %v201, %v199
  %v238 = vpack.c.b16 %v204, %v202
  %v239 = vpack.c.b16 %v205, %v203
  %v240 = vpack.c.b16 %v208, %v206
  %v241 = vpack.c.b16 %v209, %v207
  %v242 = vpack.c.b16 %v212, %v210
  %v243 = vpack.c.b16 %v213, %v211
  %v244 = vpack.c.b16 %v216, %v214
  %v245 = vpack.c.b16 %v217, %v215
  %v306 = vunpack.c.l.b16 %v102
  %v307 = vunpack.c.l.b16 %v103
  %v308 = vunpack.c.l.b16 %v104
  %v309 = vunpack.c.l.b16 %v105
  %v310 = vunpack.c.l.b16 %v106
  %v311 = vunpack.c.l.b16 %v107
  %v312 = vunpack.c.l.b16 %v108
  %v313 = vunpack.c.l.b16 %v109
  %v314 = vunpack.c.l.b16 %v110
  %v315 = vunpack.c.l.b16 %v111
  %v316 = vunpack.c.l.b16 %v112
  %v317 = vunpack.c.l.b16 %v113
  %v318 = vunpack.c.l.b16 %v114
  %v319 = vunpack.c.l.b16 %v115
  %v320 = vunpack.c.l.b16 %v116
  %v321 = vunpack.c.l.b16 %v117
  %v322 = vunpack.c.l.b16 %v118
  %v323 = vunpack.c.l.b16 %v119
  %v324 = vunpack.c.l.b16 %v120
  %v325 = vunpack.c.l.b16 %v121
  %v326 = vunpack.c.l.b16 %v122
  %v327 = vunpack.c.l.b16 %v123
  %v328 = vunpack.c.l.b16 %v124
  %v329 = vunpack.c.l.b16 %v125
  %v330 = vunpack.c.l.b16 %v126
  %v331 = vunpack.c.l.b16 %v127
  %v332 = vunpack.c.l.b16 %v128
  %v333 = vunpack.c.l.b16 %v129
  %v334 = vunpack.c.l.b16 %v130
  %v335 = vunpack.c.l.b16 %v131
  %v336 = vunpack.c.l.b16 %v132
  %v337 = vunpack.c.l.b16 %v133
  %v338 = vpack.c.b16 %v307, %v306
  %v339 = vpack.c.b16 %v309, %v308
  %v340 = vpack.c.b16 %v311, %v310
  %v341 = vpack.c.b16 %v313, %v312
  %v342 = vpack.c.b16 %v315, %v314
  %v343 = vpack.c.b16 %v317, %v316
  %v344 = vpack.c.b16 %v319, %v318
  %v345 = vpack.c.b16 %v321, %v320
  %v346 = vpack.c.b16 %v323, %v322
  %v347 = vpack.c.b16 %v325, %v324
  %v348 = vpack.c.b16 %v327, %v326
  %v349 = vpack.c.b16 %v329, %v328
  %v350 = vpack.c.b16 %v331, %v330
  %v351 = vpack.c.b16 %v333, %v332
  %v352 = vpack.c.b16 %v335, %v334
  %v353 = vpack.c.b16 %v337, %v336
  %370 = vmatpush.bf16.msra.mxu0 %v345
  %371 = vmatpush.bf16.msra.mxu0 %v344
  %372 = vmatpush.bf16.msra.mxu0 %v343
  %373 = vmatpush.bf16.msra.mxu0 %v342
  %374 = vmatpush.bf16.msra.mxu0 %v341
  %375 = vmatpush.bf16.msra.mxu0 %v340
  %376 = vmatpush.bf16.msra.mxu0 %v339
  %377 = vmatpush.bf16.msra.mxu0 %v338
  %378 = vmatmul.bf16.gmra.mxu0 %v218
  %v379 = vpop.f32.mrf.mxu0
  %v380 = vadd.f32 0.0, %v379
  %v381 = vpop.f32.mrf.mxu0
  %v382 = vadd.f32 0.0, %v381
  %383 = vmatmul.bf16.gmra.mxu0 %v220
  %v384 = vpop.f32.mrf.mxu0
  %v385 = vadd.f32 0.0, %v384
  %v386 = vpop.f32.mrf.mxu0
  %v387 = vadd.f32 0.0, %v386
  %388 = vmatmul.bf16.gmra.mxu0 %v222
  %v389 = vpop.f32.mrf.mxu0
  %v390 = vadd.f32 0.0, %v389
  %v391 = vpop.f32.mrf.mxu0
  %v392 = vadd.f32 0.0, %v391
  %393 = vmatmul.bf16.gmra.mxu0 %v224
  %v394 = vpop.f32.mrf.mxu0
  %v395 = vadd.f32 0.0, %v394
  %v396 = vpop.f32.mrf.mxu0
  %v397 = vadd.f32 0.0, %v396
  %398 = vmatmul.bf16.gmra.mxu0 %v226
  %v399 = vpop.f32.mrf.mxu0
  %v400 = vadd.f32 0.0, %v399
  %v401 = vpop.f32.mrf.mxu0
  %v402 = vadd.f32 0.0, %v401
  %403 = vmatmul.bf16.gmra.mxu0 %v228
  %v404 = vpop.f32.mrf.mxu0
  %v405 = vadd.f32 0.0, %v404
  %v406 = vpop.f32.mrf.mxu0
  %v407 = vadd.f32 0.0, %v406
  %408 = vmatmul.bf16.gmra.mxu0 %v230
  %v409 = vpop.f32.mrf.mxu0
  %v410 = vadd.f32 0.0, %v409
  %v411 = vpop.f32.mrf.mxu0
  %v412 = vadd.f32 0.0, %v411
  %413 = vmatmul.bf16.gmra.mxu0 %v232
  %v414 = vpop.f32.mrf.mxu0
  %v415 = vadd.f32 0.0, %v414
  %v416 = vpop.f32.mrf.mxu0
  %v417 = vadd.f32 0.0, %v416
  %418 = vmatmul.bf16.gmra.mxu0 %v234
  %v419 = vpop.f32.mrf.mxu0
  %v420 = vadd.f32 0.0, %v419
  %v421 = vpop.f32.mrf.mxu0
  %v422 = vadd.f32 0.0, %v421
  %423 = vmatmul.bf16.gmra.mxu0 %v236
  %v424 = vpop.f32.mrf.mxu0
  %v425 = vadd.f32 0.0, %v424
  %v426 = vpop.f32.mrf.mxu0
  %v427 = vadd.f32 0.0, %v426
  %428 = vmatmul.bf16.gmra.mxu0 %v238
  %v429 = vpop.f32.mrf.mxu0
  %v430 = vadd.f32 0.0, %v429
  %v431 = vpop.f32.mrf.mxu0
  %v432 = vadd.f32 0.0, %v431
  %433 = vmatmul.bf16.gmra.mxu0 %v240
  %v434 = vpop.f32.mrf.mxu0
  %v435 = vadd.f32 0.0, %v434
  %v436 = vpop.f32.mrf.mxu0
  %v437 = vadd.f32 0.0, %v436
  %438 = vmatmul.bf16.gmra.mxu0 %v242
  %v439 = vpop.f32.mrf.mxu0
  %v440 = vadd.f32 0.0, %v439
  %v441 = vpop.f32.mrf.mxu0
  %v442 = vadd.f32 0.0, %v441
  %443 = vmatmul.bf16.gmra.mxu0 %v244
  %v444 = vpop.f32.mrf.mxu0
  %v445 = vadd.f32 0.0, %v444
  %v446 = vpop.f32.mrf.mxu0
  %v447 = vadd.f32 0.0, %v446
  %448 = vdwg.mxu0
  %449 = vmatpush.bf16.msra.mxu0 %v353
  %450 = vmatpush.bf16.msra.mxu0 %v352
  %451 = vmatpush.bf16.msra.mxu0 %v351
  %452 = vmatpush.bf16.msra.mxu0 %v350
  %453 = vmatpush.bf16.msra.mxu0 %v349
  %454 = vmatpush.bf16.msra.mxu0 %v348
  %455 = vmatpush.bf16.msra.mxu0 %v347
  %456 = vmatpush.bf16.msra.mxu0 %v346
  %457 = vmatmul.bf16.gmra.mxu0 %v219
  %v458 = vpop.f32.mrf.mxu0
  %v459 = vadd.f32 %v380, %v458
  %v460 = vpop.f32.mrf.mxu0
  %v461 = vadd.f32 %v382, %v460
  %462 = vmatmul.bf16.gmra.mxu0 %v221
  %v463 = vpop.f32.mrf.mxu0
  %v464 = vadd.f32 %v385, %v463
  %v465 = vpop.f32.mrf.mxu0
  %v466 = vadd.f32 %v387, %v465
  %467 = vmatmul.bf16.gmra.mxu0 %v223
  %v468 = vpop.f32.mrf.mxu0
  %v469 = vadd.f32 %v390, %v468
  %v470 = vpop.f32.mrf.mxu0
  %v471 = vadd.f32 %v392, %v470
  %472 = vmatmul.bf16.gmra.mxu0 %v225
  %v473 = vpop.f32.mrf.mxu0
  %v474 = vadd.f32 %v395, %v473
  %v475 = vpop.f32.mrf.mxu0
  %v476 = vadd.f32 %v397, %v475
  %477 = vmatmul.bf16.gmra.mxu0 %v227
  %v478 = vpop.f32.mrf.mxu0
  %v479 = vadd.f32 %v400, %v478
  %v480 = vpop.f32.mrf.mxu0
  %v481 = vadd.f32 %v402, %v480
  %482 = vmatmul.bf16.gmra.mxu0 %v229
  %v483 = vpop.f32.mrf.mxu0
  %v484 = vadd.f32 %v405, %v483
  %v485 = vpop.f32.mrf.mxu0
  %v486 = vadd.f32 %v407, %v485
  %487 = vmatmul.bf16.gmra.mxu0 %v231
  %v488 = vpop.f32.mrf.mxu0
  %v489 = vadd.f32 %v410, %v488
  %v490 = vpop.f32.mrf.mxu0
  %v491 = vadd.f32 %v412, %v490
  %492 = vmatmul.bf16.gmra.mxu0 %v233
  %v493 = vpop.f32.mrf.mxu0
  %v494 = vadd.f32 %v415, %v493
  %v495 = vpop.f32.mrf.mxu0
  %v496 = vadd.f32 %v417, %v495
  %497 = vmatmul.bf16.gmra.mxu0 %v235
  %v498 = vpop.f32.mrf.mxu0
  %v499 = vadd.f32 %v420, %v498
  %v500 = vpop.f32.mrf.mxu0
  %v501 = vadd.f32 %v422, %v500
  %502 = vmatmul.bf16.gmra.mxu0 %v237
  %v503 = vpop.f32.mrf.mxu0
  %v504 = vadd.f32 %v425, %v503
  %v505 = vpop.f32.mrf.mxu0
  %v506 = vadd.f32 %v427, %v505
  %507 = vmatmul.bf16.gmra.mxu0 %v239
  %v508 = vpop.f32.mrf.mxu0
  %v509 = vadd.f32 %v430, %v508
  %v510 = vpop.f32.mrf.mxu0
  %v511 = vadd.f32 %v432, %v510
  %512 = vmatmul.bf16.gmra.mxu0 %v241
  %v513 = vpop.f32.mrf.mxu0
  %v514 = vadd.f32 %v435, %v513
  %v515 = vpop.f32.mrf.mxu0
  %v516 = vadd.f32 %v437, %v515
  %517 = vmatmul.bf16.gmra.mxu0 %v243
  %v518 = vpop.f32.mrf.mxu0
  %v519 = vadd.f32 %v440, %v518
  %v520 = vpop.f32.mrf.mxu0
  %v521 = vadd.f32 %v442, %v520
  %522 = vmatmul.bf16.gmra.mxu0 %v245
  %v523 = vpop.f32.mrf.mxu0
  %v524 = vadd.f32 %v445, %v523
  %v525 = vpop.f32.mrf.mxu0
  %v526 = vadd.f32 %v447, %v525
  %527 = vdwg.mxu0
  %v528 = vadd.f32 %v46, %v459
  %v529 = vadd.f32 %v47, %v461
  %v530 = vadd.f32 %v48, %v464
  %v531 = vadd.f32 %v49, %v466
  %v532 = vadd.f32 %v50, %v469
  %v533 = vadd.f32 %v51, %v471
  %v534 = vadd.f32 %v52, %v474
  %v535 = vadd.f32 %v53, %v476
  %v536 = vadd.f32 %v54, %v479
  %v537 = vadd.f32 %v55, %v481
  %v538 = vadd.f32 %v56, %v484
  %v539 = vadd.f32 %v57, %v486
  %v540 = vadd.f32 %v58, %v489
  %v541 = vadd.f32 %v59, %v491
  %v542 = vadd.f32 %v60, %v494
  %v543 = vadd.f32 %v61, %v496
  %v544 = vadd.f32 %v62, %v499
  %v545 = vadd.f32 %v63, %v501
  %v546 = vadd.f32 %v64, %v504
  %v547 = vadd.f32 %v65, %v506
  %v548 = vadd.f32 %v66, %v509
  %v549 = vadd.f32 %v67, %v511
  %v550 = vadd.f32 %v68, %v514
  %v551 = vadd.f32 %v69, %v516
  %v552 = vadd.f32 %v70, %v519
  %v553 = vadd.f32 %v71, %v521
  %v554 = vadd.f32 %v72, %v524
  %v555 = vadd.f32 %v73, %v526
  %vm556 = vcmask 64512
  %557 = vst.msk [vmem:[#allocation2] sm:$0xff] %vm556, %v528
  %558 = vst.msk [vmem:[#allocation2 + $0x8] sm:$0xff] %vm556, %v529
  %559 = vst.msk [vmem:[#allocation2 + $0x10] sm:$0xff] %vm556, %v530
  %560 = vst.msk [vmem:[#allocation2 + $0x18] sm:$0xff] %vm556, %v531
  %561 = vst.msk [vmem:[#allocation2 + $0x20] sm:$0xff] %vm556, %v532
  %562 = vst.msk [vmem:[#allocation2 + $0x28] sm:$0xff] %vm556, %v533
  %563 = vst.msk [vmem:[#allocation2 + $0x30] sm:$0xff] %vm556, %v534
  %564 = vst.msk [vmem:[#allocation2 + $0x38] sm:$0xff] %vm556, %v535
  %565 = vst.msk [vmem:[#allocation2 + $0x40] sm:$0xff] %vm556, %v536
  %566 = vst.msk [vmem:[#allocation2 + $0x48] sm:$0xff] %vm556, %v537
  %567 = vst.msk [vmem:[#allocation2 + $0x50] sm:$0xff] %vm556, %v538
  %568 = vst.msk [vmem:[#allocation2 + $0x58] sm:$0xff] %vm556, %v539
  %569 = vst.msk [vmem:[#allocation2 + $0x60] sm:$0xff] %vm556, %v540
  %570 = vst.msk [vmem:[#allocation2 + $0x68] sm:$0xff] %vm556, %v541
  %571 = vst.msk [vmem:[#allocation2 + $0x70] sm:$0xff] %vm556, %v542
  %572 = vst.msk [vmem:[#allocation2 + $0x78] sm:$0xff] %vm556, %v543
  %573 = vst.msk [vmem:[#allocation2 + $0x80] sm:$0xff] %vm556, %v544
  %574 = vst.msk [vmem:[#allocation2 + $0x88] sm:$0xff] %vm556, %v545
  %575 = vst.msk [vmem:[#allocation2 + $0x90] sm:$0xff] %vm556, %v546
  %576 = vst.msk [vmem:[#allocation2 + $0x98] sm:$0xff] %vm556, %v547
  %577 = vst.msk [vmem:[#allocation2 + $0xa0] sm:$0xff] %vm556, %v548
  %578 = vst.msk [vmem:[#allocation2 + $0xa8] sm:$0xff] %vm556, %v549
  %579 = vst.msk [vmem:[#allocation2 + $0xb0] sm:$0xff] %vm556, %v550
  %580 = vst.msk [vmem:[#allocation2 + $0xb8] sm:$0xff] %vm556, %v551
  %581 = vst.msk [vmem:[#allocation2 + $0xc0] sm:$0xff] %vm556, %v552
  %582 = vst.msk [vmem:[#allocation2 + $0xc8] sm:$0xff] %vm556, %v553
  %583 = vst.msk [vmem:[#allocation2 + $0xd0] sm:$0xff] %vm556, %v554
  %584 = vst.msk [vmem:[#allocation2 + $0xd8] sm:$0xff] %vm556, %v555
  // Predicated region
  $region14: #{hcnet_forward.27} parent=0 // pred_check
    %p585 = pneg %p13
  $region15: #{hcnet_forward.27} parent=0 // pred_check_branch
    %587 = sbr.rel (%p585) target = $region17
  $region16: #{hcnet_forward.27} parent=0 // pred_region
    %v588 = vld [vmem:[#allocation2] sm:$0xff]
    %v589 = vld [vmem:[#allocation2 + $0x8] sm:$0xff]
    %v590 = vld [vmem:[#allocation2 + $0x10] sm:$0xff]
    %v591 = vld [vmem:[#allocation2 + $0x18] sm:$0xff]
    %v592 = vld [vmem:[#allocation2 + $0x20] sm:$0xff]
    %v593 = vld [vmem:[#allocation2 + $0x28] sm:$0xff]
    %v594 = vld [vmem:[#allocation2 + $0x30] sm:$0xff]
    %v595 = vld [vmem:[#allocation2 + $0x38] sm:$0xff]
    %v596 = vld [vmem:[#allocation2 + $0x40] sm:$0xff]
    %v597 = vld [vmem:[#allocation2 + $0x48] sm:$0xff]
    %v598 = vld [vmem:[#allocation2 + $0x50] sm:$0xff]
    %v599 = vld [vmem:[#allocation2 + $0x58] sm:$0xff]
    %v600 = vld [vmem:[#allocation2 + $0x60] sm:$0xff]
    %v601 = vld [vmem:[#allocation2 + $0x68] sm:$0xff]
    %v602 = vld [vmem:[#allocation2 + $0x70] sm:$0xff]
    %v603 = vld [vmem:[#allocation2 + $0x78] sm:$0xff]
    %v604 = vld [vmem:[#allocation2 + $0x80] sm:$0xff]
    %v605 = vld [vmem:[#allocation2 + $0x88] sm:$0xff]
    %v606 = vld [vmem:[#allocation2 + $0x90] sm:$0xff]
    %v607 = vld [vmem:[#allocation2 + $0x98] sm:$0xff]
    %v608 = vld [vmem:[#allocation2 + $0xa0] sm:$0xff]
    %v609 = vld [vmem:[#allocation2 + $0xa8] sm:$0xff]
    %v610 = vld [vmem:[#allocation2 + $0xb0] sm:$0xff]
    %v611 = vld [vmem:[#allocation2 + $0xb8] sm:$0xff]
    %v612 = vld [vmem:[#allocation2 + $0xc0] sm:$0xff]
    %v613 = vld [vmem:[#allocation2 + $0xc8] sm:$0xff]
    %v614 = vld [vmem:[#allocation2 + $0xd0] sm:$0xff]
    %v615 = vld [vmem:[#allocation2 + $0xd8] sm:$0xff]
    %616 = vst.msk [vmem:[%s2] sm:$0xff] %vm556, %v588
    %617 = vst.msk [vmem:[%s2 + $0x8] sm:$0xff] %vm556, %v589
    %618 = vst.msk [vmem:[%s2 + $0x10] sm:$0xff] %vm556, %v590
    %619 = vst.msk [vmem:[%s2 + $0x18] sm:$0xff] %vm556, %v591
    %620 = vst.msk [vmem:[%s2 + $0x20] sm:$0xff] %vm556, %v592
    %621 = vst.msk [vmem:[%s2 + $0x28] sm:$0xff] %vm556, %v593
    %622 = vst.msk [vmem:[%s2 + $0x30] sm:$0xff] %vm556, %v594
    %623 = vst.msk [vmem:[%s2 + $0x38] sm:$0xff] %vm556, %v595
    %624 = vst.msk [vmem:[%s2 + $0x40] sm:$0xff] %vm556, %v596
    %625 = vst.msk [vmem:[%s2 + $0x48] sm:$0xff] %vm556, %v597
    %626 = vst.msk [vmem:[%s2 + $0x50] sm:$0xff] %vm556, %v598
    %627 = vst.msk [vmem:[%s2 + $0x58] sm:$0xff] %vm556, %v599
    %628 = vst.msk [vmem:[%s2 + $0x60] sm:$0xff] %vm556, %v600
    %629 = vst.msk [vmem:[%s2 + $0x68] sm:$0xff] %vm556, %v601
    %630 = vst.msk [vmem:[%s2 + $0x70] sm:$0xff] %vm556, %v602
    %631 = vst.msk [vmem:[%s2 + $0x78] sm:$0xff] %vm556, %v603
    %632 = vst.msk [vmem:[%s2 + $0x80] sm:$0xff] %vm556, %v604
    %633 = vst.msk [vmem:[%s2 + $0x88] sm:$0xff] %vm556, %v605
    %634 = vst.msk [vmem:[%s2 + $0x90] sm:$0xff] %vm556, %v606
    %635 = vst.msk [vmem:[%s2 + $0x98] sm:$0xff] %vm556, %v607
    %636 = vst.msk [vmem:[%s2 + $0xa0] sm:$0xff] %vm556, %v608
    %637 = vst.msk [vmem:[%s2 + $0xa8] sm:$0xff] %vm556, %v609
    %638 = vst.msk [vmem:[%s2 + $0xb0] sm:$0xff] %vm556, %v610
    %639 = vst.msk [vmem:[%s2 + $0xb8] sm:$0xff] %vm556, %v611
    %640 = vst.msk [vmem:[%s2 + $0xc0] sm:$0xff] %vm556, %v612
    %641 = vst.msk [vmem:[%s2 + $0xc8] sm:$0xff] %vm556, %v613
    %642 = vst.msk [vmem:[%s2 + $0xd0] sm:$0xff] %vm556, %v614
    %643 = vst.msk [vmem:[%s2 + $0xd8] sm:$0xff] %vm556, %v615
    %v644 = vsel %vm556, %v588, 0.0
    %v645 = vsel %vm556, %v589, 0.0
    %v646 = vadd.f32 %v644, %v645
    %v647 = vsel %vm556, %v590, 0.0
    %v648 = vadd.f32 %v646, %v647
    %v649 = vsel %vm556, %v591, 0.0
    %v650 = vadd.f32 %v648, %v649
    %v651 = vsel %vm556, %v592, 0.0
    %v652 = vadd.f32 %v650, %v651
    %v653 = vsel %vm556, %v593, 0.0
    %v654 = vadd.f32 %v652, %v653
    %v655 = vsel %vm556, %v594, 0.0
    %v656 = vadd.f32 %v654, %v655
    %v657 = vsel %vm556, %v595, 0.0
    %v658 = vadd.f32 %v656, %v657
    %v659 = vsel %vm556, %v596, 0.0
    %v660 = vadd.f32 %v658, %v659
    %v661 = vsel %vm556, %v597, 0.0
    %v662 = vadd.f32 %v660, %v661
    %v663 = vsel %vm556, %v598, 0.0
    %v664 = vadd.f32 %v662, %v663
    %v665 = vsel %vm556, %v599, 0.0
    %v666 = vadd.f32 %v664, %v665
    %v667 = vsel %vm556, %v600, 0.0
    %v668 = vadd.f32 %v666, %v667
    %v669 = vsel %vm556, %v601, 0.0
    %v670 = vadd.f32 %v668, %v669
    %v671 = vsel %vm556, %v602, 0.0
    %v672 = vadd.f32 %v670, %v671
    %v673 = vsel %vm556, %v603, 0.0
    %v674 = vadd.f32 %v672, %v673
    %v675 = vsel %vm556, %v604, 0.0
    %v676 = vadd.f32 %v674, %v675
    %v677 = vsel %vm556, %v605, 0.0
    %v678 = vadd.f32 %v676, %v677
    %v679 = vsel %vm556, %v606, 0.0
    %v680 = vadd.f32 %v678, %v679
    %v681 = vsel %vm556, %v607, 0.0
    %v682 = vadd.f32 %v680, %v681
    %v683 = vsel %vm556, %v608, 0.0
    %v684 = vadd.f32 %v682, %v683
    %v685 = vsel %vm556, %v609, 0.0
    %v686 = vadd.f32 %v684, %v685
    %v687 = vsel %vm556, %v610, 0.0
    %v688 = vadd.f32 %v686, %v687
    %v689 = vsel %vm556, %v611, 0.0
    %v690 = vadd.f32 %v688, %v689
    %v691 = vsel %vm556, %v612, 0.0
    %v692 = vadd.f32 %v690, %v691
    %v693 = vsel %vm556, %v613, 0.0
    %v694 = vadd.f32 %v692, %v693
    %v695 = vsel %vm556, %v614, 0.0
    %v696 = vadd.f32 %v694, %v695
    %v697 = vsel %vm556, %v615, 0.0
    %v698 = vadd.f32 %v696, %v697
    %v699 = vrot.slane %v698, 4
    %v700 = vadd.f32 %v698, %v699
    %v701 = vrot.slane %v700, 2
    %v702 = vadd.f32 %v700, %v701
    %v703 = vrot.slane %v702, 1
    %v704 = vadd.f32 %v702, %v703
    %v705 = vmul.f32 %v588, %v588
    %v706 = vmul.f32 %v589, %v589
    %v707 = vmul.f32 %v590, %v590
    %v708 = vmul.f32 %v591, %v591
    %v709 = vmul.f32 %v592, %v592
    %v710 = vmul.f32 %v593, %v593
    %v711 = vmul.f32 %v594, %v594
    %v712 = vmul.f32 %v595, %v595
    %v713 = vmul.f32 %v596, %v596
    %v714 = vmul.f32 %v597, %v597
    %v715 = vmul.f32 %v598, %v598
    %v716 = vmul.f32 %v599, %v599
    %v717 = vmul.f32 %v600, %v600
    %v718 = vmul.f32 %v601, %v601
    %v719 = vmul.f32 %v602, %v602
    %v720 = vmul.f32 %v603, %v603
    %v721 = vmul.f32 %v604, %v604
    %v722 = vmul.f32 %v605, %v605
    %v723 = vmul.f32 %v606, %v606
    %v724 = vmul.f32 %v607, %v607
    %v725 = vmul.f32 %v608, %v608
    %v726 = vmul.f32 %v609, %v609
    %v727 = vmul.f32 %v610, %v610
    %v728 = vmul.f32 %v611, %v611
    %v729 = vmul.f32 %v612, %v612
    %v730 = vmul.f32 %v613, %v613
    %v731 = vmul.f32 %v614, %v614
    %v732 = vmul.f32 %v615, %v615
    %v733 = vsel %vm556, %v705, 0.0
    %v734 = vsel %vm556, %v706, 0.0
    %v735 = vadd.f32 %v733, %v734
    %v736 = vsel %vm556, %v707, 0.0
    %v737 = vadd.f32 %v735, %v736
    %v738 = vsel %vm556, %v708, 0.0
    %v739 = vadd.f32 %v737, %v738
    %v740 = vsel %vm556, %v709, 0.0
    %v741 = vadd.f32 %v739, %v740
    %v742 = vsel %vm556, %v710, 0.0
    %v743 = vadd.f32 %v741, %v742
    %v744 = vsel %vm556, %v711, 0.0
    %v745 = vadd.f32 %v743, %v744
    %v746 = vsel %vm556, %v712, 0.0
    %v747 = vadd.f32 %v745, %v746
    %v748 = vsel %vm556, %v713, 0.0
    %v749 = vadd.f32 %v747, %v748
    %v750 = vsel %vm556, %v714, 0.0
    %v751 = vadd.f32 %v749, %v750
    %v752 = vsel %vm556, %v715, 0.0
    %v753 = vadd.f32 %v751, %v752
    %v754 = vsel %vm556, %v716, 0.0
    %v755 = vadd.f32 %v753, %v754
    %v756 = vsel %vm556, %v717, 0.0
    %v757 = vadd.f32 %v755, %v756
    %v758 = vsel %vm556, %v718, 0.0
    %v759 = vadd.f32 %v757, %v758
    %v760 = vsel %vm556, %v719, 0.0
    %v761 = vadd.f32 %v759, %v760
    %v762 = vsel %vm556, %v720, 0.0
    %v763 = vadd.f32 %v761, %v762
    %v764 = vsel %vm556, %v721, 0.0
    %v765 = vadd.f32 %v763, %v764
    %v766 = vsel %vm556, %v722, 0.0
    %v767 = vadd.f32 %v765, %v766
    %v768 = vsel %vm556, %v723, 0.0
    %v769 = vadd.f32 %v767, %v768
    %v770 = vsel %vm556, %v724, 0.0
    %v771 = vadd.f32 %v769, %v770
    %v772 = vsel %vm556, %v725, 0.0
    %v773 = vadd.f32 %v771, %v772
    %v774 = vsel %vm556, %v726, 0.0
    %v775 = vadd.f32 %v773, %v774
    %v776 = vsel %vm556, %v727, 0.0
    %v777 = vadd.f32 %v775, %v776
    %v778 = vsel %vm556, %v728, 0.0
    %v779 = vadd.f32 %v777, %v778
    %v780 = vsel %vm556, %v729, 0.0
    %v781 = vadd.f32 %v779, %v780
    %v782 = vsel %vm556, %v730, 0.0
    %v783 = vadd.f32 %v781, %v782
    %v784 = vsel %vm556, %v731, 0.0
    %v785 = vadd.f32 %v783, %v784
    %v786 = vsel %vm556, %v732, 0.0
    %v787 = vadd.f32 %v785, %v786
    %v788 = vrot.slane %v787, 4
    %v789 = vadd.f32 %v787, %v788
    %v790 = vrot.slane %v789, 2
    %v791 = vadd.f32 %v789, %v790
    %v792 = vrot.slane %v791, 1
    %v793 = vadd.f32 %v791, %v792
    %v794 = vlaneseq
    %v795 = vshrl.u32 %v794, 7
    %vm796 = vcmp.eq.s32.totalorder %v795, 0
    %vm797 = vcmp.eq.s32.totalorder %v795, 1
    %v798 = vsel %vm797, %v793, 0.0
    %v799 = vsel %vm796, %v704, %v798
    %800 = vst.msk [vmem:[%s3] sm:$0xff] %vm556, %v799
  $region17: #{hcnet_forward.27} parent=0 // pred_fallthru
    _
  // Predicated region
  $region18: #{hcnet_forward.27} parent=0 // pred_check
    _
  $region19: #{hcnet_forward.27} parent=0 // pred_check_branch
    %802 = sbr.rel (0) target = $region21
  $region20: #{hcnet_forward.27} parent=0 // pred_region
    _
  $region21: #{hcnet_forward.27} parent=0 // pred_fallthru
    _
  // Predicated region
  $region22: #{hcnet_forward.27} parent=0 // pred_check
    _
  $region23: #{hcnet_forward.27} parent=0 // pred_check_branch
    %804 = sbr.rel (0) target = $region25
  $region24: #{hcnet_forward.27} parent=0 // pred_region
    _
  $region25: #{hcnet_forward.27} parent=0 // pred_fallthru
    _
  // Predicated region
  $region26: #{hcnet_forward.27} parent=0 // pred_check
    _
  $region27: #{hcnet_forward.27} parent=0 // pred_check_branch
    %806 = sbr.rel (0) target = $region29
  $region28: #{hcnet_forward.27} parent=0 // pred_region
    _
  $region29: #{hcnet_forward.27} parent=0 // pred_fallthru
    _
  // Predicated region
  $region30: #{hcnet_forward.27} parent=0 // pred_check
    _
  $region31: #{hcnet_forward.27} parent=0 // pred_check_branch
    %808 = sbr.rel (0) target = $region33
  $region32: #{hcnet_forward.27} parent=0 // pred_region
    _
  $region33: #{hcnet_forward.27} parent=0 // pred_fallthru
    _

// kernel: hcnet_forward.28
$region0: #{hcnet_forward.28}
  #allocation0 [shape = 'u32[]', space=smem, size = 0x4, offset = 0x4, fixed_abs, tag = 'smem constant byte address 0x4 - core index']
  #allocation1 [shape = 'u32[72,128]{1,0:T(1,128)}', space=vmem, size = 0x9000, scoped, tag = 'internal scratch']
  %s0 = inlined_call_operand.vmem [shape: f32[224,8], index: 0, kind: input, shape index: {}]
  %s1 = inlined_call_operand.vmem [shape: f32[1,8], index: 1, kind: input, shape index: {}]
  %s2 = inlined_call_operand.vmem [shape: f32[1,8], index: 2, kind: input, shape index: {}]
  %s3 = inlined_call_operand.vmem [shape: f32[224,8], index: 3, kind: output, shape index: {}]
  %s4 = sld [smem:[#allocation0]]
  $region22: #{hcnet_forward.28} parent=0
    _
  %s6 = ssub.s32 1, %s4
  %s7 = scalar_select 0, %s6, %s4
  // Predicated region
  $region2: #{hcnet_forward.28} parent=0 // pred_check
    _
  $region3: #{hcnet_forward.28} parent=0 // pred_check_branch
    %9 = sbr.rel (0) target = $region5
  $region4: #{hcnet_forward.28} parent=0 // pred_region
    _
  $region5: #{hcnet_forward.28} parent=0 // pred_fallthru
    _
  // Predicated region
  $region6: #{hcnet_forward.28} parent=0 // pred_check
    _
  $region7: #{hcnet_forward.28} parent=0 // pred_check_branch
    %11 = sbr.rel (0) target = $region9
  $region8: #{hcnet_forward.28} parent=0 // pred_region
    _
  $region9: #{hcnet_forward.28} parent=0 // pred_fallthru
    _
  // Predicated region
  $region10: #{hcnet_forward.28} parent=0 // pred_check
    _
  $region11: #{hcnet_forward.28} parent=0 // pred_check_branch
    %13 = sbr.rel (0) target = $region13
  $region12: #{hcnet_forward.28} parent=0 // pred_region
    _
  $region13: #{hcnet_forward.28} parent=0 // pred_fallthru
    _
  %v14 = vld [vmem:[%s0] sm:$0xff]
  %v15 = vld [vmem:[%s0 + $0x8] sm:$0xff]
  %v16 = vld [vmem:[%s0 + $0x10] sm:$0xff]
  %v17 = vld [vmem:[%s0 + $0x18] sm:$0xff]
  %v18 = vld [vmem:[%s0 + $0x20] sm:$0xff]
  %v19 = vld [vmem:[%s0 + $0x28] sm:$0xff]
  %v20 = vld [vmem:[%s0 + $0x30] sm:$0xff]
  %v21 = vld [vmem:[%s0 + $0x38] sm:$0xff]
  %v22 = vld [vmem:[%s0 + $0x40] sm:$0xff]
  %v23 = vld [vmem:[%s0 + $0x48] sm:$0xff]
  %v24 = vld [vmem:[%s0 + $0x50] sm:$0xff]
  %v25 = vld [vmem:[%s0 + $0x58] sm:$0xff]
  %v26 = vld [vmem:[%s0 + $0x60] sm:$0xff]
  %v27 = vld [vmem:[%s0 + $0x68] sm:$0xff]
  %v28 = vld [vmem:[%s0 + $0x70] sm:$0xff]
  %v29 = vld [vmem:[%s0 + $0x78] sm:$0xff]
  %v30 = vld [vmem:[%s0 + $0x80] sm:$0xff]
  %v31 = vld [vmem:[%s0 + $0x88] sm:$0xff]
  %v32 = vld [vmem:[%s0 + $0x90] sm:$0xff]
  %v33 = vld [vmem:[%s0 + $0x98] sm:$0xff]
  %v34 = vld [vmem:[%s0 + $0xa0] sm:$0xff]
  %v35 = vld [vmem:[%s0 + $0xa8] sm:$0xff]
  %v36 = vld [vmem:[%s0 + $0xb0] sm:$0xff]
  %v37 = vld [vmem:[%s0 + $0xb8] sm:$0xff]
  %v38 = vld [vmem:[%s0 + $0xc0] sm:$0xff]
  %v39 = vld [vmem:[%s0 + $0xc8] sm:$0xff]
  %v40 = vld [vmem:[%s0 + $0xd0] sm:$0xff]
  %v41 = vld [vmem:[%s0 + $0xd8] sm:$0xff]
  %v42 = vld [vmem:[%s1] sm:$0x1]
  %v44 = vperm.slane %v42, 0
  %v46 = vmul.f32 %v14, %v44
  %v47 = vmul.f32 %v15, %v44
  %v48 = vmul.f32 %v16, %v44
  %v49 = vmul.f32 %v17, %v44
  %v50 = vmul.f32 %v18, %v44
  %v51 = vmul.f32 %v19, %v44
  %v52 = vmul.f32 %v20, %v44
  %v53 = vmul.f32 %v21, %v44
  %v54 = vmul.f32 %v22, %v44
  %v55 = vmul.f32 %v23, %v44
  %v56 = vmul.f32 %v24, %v44
  %v57 = vmul.f32 %v25, %v44
  %v58 = vmul.f32 %v26, %v44
  %v59 = vmul.f32 %v27, %v44
  %v60 = vmul.f32 %v28, %v44
  %v61 = vmul.f32 %v29, %v44
  %v62 = vmul.f32 %v30, %v44
  %v63 = vmul.f32 %v31, %v44
  %v64 = vmul.f32 %v32, %v44
  %v65 = vmul.f32 %v33, %v44
  %v66 = vmul.f32 %v34, %v44
  %v67 = vmul.f32 %v35, %v44
  %v68 = vmul.f32 %v36, %v44
  %v69 = vmul.f32 %v37, %v44
  %v70 = vmul.f32 %v38, %v44
  %v71 = vmul.f32 %v39, %v44
  %v72 = vmul.f32 %v40, %v44
  %v73 = vmul.f32 %v41, %v44
  %v74 = vld [vmem:[%s2] sm:$0x1]
  %v76 = vperm.slane %v74, 0
  %v78 = vadd.f32 %v46, %v76
  %v79 = vadd.f32 %v47, %v76
  %v80 = vadd.f32 %v48, %v76
  %v81 = vadd.f32 %v49, %v76
  %v82 = vadd.f32 %v50, %v76
  %v83 = vadd.f32 %v51, %v76
  %v84 = vadd.f32 %v52, %v76
  %v85 = vadd.f32 %v53, %v76
  %v86 = vadd.f32 %v54, %v76
  %v87 = vadd.f32 %v55, %v76
  %v88 = vadd.f32 %v56, %v76
  %v89 = vadd.f32 %v57, %v76
  %v90 = vadd.f32 %v58, %v76
  %v91 = vadd.f32 %v59, %v76
  %v92 = vadd.f32 %v60, %v76
  %v93 = vadd.f32 %v61, %v76
  %v94 = vadd.f32 %v62, %v76
  %v95 = vadd.f32 %v63, %v76
  %v96 = vadd.f32 %v64, %v76
  %v97 = vadd.f32 %v65, %v76
  %v98 = vadd.f32 %v66, %v76
  %v99 = vadd.f32 %v67, %v76
  %v100 = vadd.f32 %v68, %v76
  %v101 = vadd.f32 %v69, %v76
  %v102 = vadd.f32 %v70, %v76
  %v103 = vadd.f32 %v71, %v76
  %v104 = vadd.f32 %v72, %v76
  %v105 = vadd.f32 %v73, %v76
  %vm106 = vcmp.ge.f32.partialorder %v78, 0.0
  %vm107 = vcmp.ge.f32.partialorder %v79, 0.0
  %vm108 = vcmp.ge.f32.partialorder %v80, 0.0
  %vm109 = vcmp.ge.f32.partialorder %v81, 0.0
  %vm110 = vcmp.ge.f32.partialorder %v82, 0.0
  %vm111 = vcmp.ge.f32.partialorder %v83, 0.0
  %vm112 = vcmp.ge.f32.partialorder %v84, 0.0
  %vm113 = vcmp.ge.f32.partialorder %v85, 0.0
  %vm114 = vcmp.ge.f32.partialorder %v86, 0.0
  %vm115 = vcmp.ge.f32.partialorder %v87, 0.0
  %vm116 = vcmp.ge.f32.partialorder %v88, 0.0
  %vm117 = vcmp.ge.f32.partialorder %v89, 0.0
  %vm118 = vcmp.ge.f32.partialorder %v90, 0.0
  %vm119 = vcmp.ge.f32.partialorder %v91, 0.0
  %vm120 = vcmp.ge.f32.partialorder %v92, 0.0
  %vm121 = vcmp.ge.f32.partialorder %v93, 0.0
  %vm122 = vcmp.ge.f32.partialorder %v94, 0.0
  %vm123 = vcmp.ge.f32.partialorder %v95, 0.0
  %vm124 = vcmp.ge.f32.partialorder %v96, 0.0
  %vm125 = vcmp.ge.f32.partialorder %v97, 0.0
  %vm126 = vcmp.ge.f32.partialorder %v98, 0.0
  %vm127 = vcmp.ge.f32.partialorder %v99, 0.0
  %vm128 = vcmp.ge.f32.partialorder %v100, 0.0
  %vm129 = vcmp.ge.f32.partialorder %v101, 0.0
  %vm130 = vcmp.ge.f32.partialorder %v102, 0.0
  %vm131 = vcmp.ge.f32.partialorder %v103, 0.0
  %vm132 = vcmp.ge.f32.partialorder %v104, 0.0
  %vm133 = vcmp.ge.f32.partialorder %v105, 0.0
  %v134 = vmul.f32 %v78, 0.01
  %v135 = vmul.f32 %v79, 0.01
  %v136 = vmul.f32 %v80, 0.01
  %v137 = vmul.f32 %v81, 0.01
  %v138 = vmul.f32 %v82, 0.01
  %v139 = vmul.f32 %v83, 0.01
  %v140 = vmul.f32 %v84, 0.01
  %v141 = vmul.f32 %v85, 0.01
  %v142 = vmul.f32 %v86, 0.01
  %v143 = vmul.f32 %v87, 0.01
  %v144 = vmul.f32 %v88, 0.01
  %v145 = vmul.f32 %v89, 0.01
  %v146 = vmul.f32 %v90, 0.01
  %v147 = vmul.f32 %v91, 0.01
  %v148 = vmul.f32 %v92, 0.01
  %v149 = vmul.f32 %v93, 0.01
  %v150 = vmul.f32 %v94, 0.01
  %v151 = vmul.f32 %v95, 0.01
  %v152 = vmul.f32 %v96, 0.01
  %v153 = vmul.f32 %v97, 0.01
  %v154 = vmul.f32 %v98, 0.01
  %v155 = vmul.f32 %v99, 0.01
  %v156 = vmul.f32 %v100, 0.01
  %v157 = vmul.f32 %v101, 0.01
  %v158 = vmul.f32 %v102, 0.01
  %v159 = vmul.f32 %v103, 0.01
  %v160 = vmul.f32 %v104, 0.01
  %v161 = vmul.f32 %v105, 0.01
  %v162 = vsel %vm106, %v78, %v134
  %v163 = vsel %vm107, %v79, %v135
  %v164 = vsel %vm108, %v80, %v136
  %v165 = vsel %vm109, %v81, %v137
  %v166 = vsel %vm110, %v82, %v138
  %v167 = vsel %vm111, %v83, %v139
  %v168 = vsel %vm112, %v84, %v140
  %v169 = vsel %vm113, %v85, %v141
  %v170 = vsel %vm114, %v86, %v142
  %v171 = vsel %vm115, %v87, %v143
  %v172 = vsel %vm116, %v88, %v144
  %v173 = vsel %vm117, %v89, %v145
  %v174 = vsel %vm118, %v90, %v146
  %v175 = vsel %vm119, %v91, %v147
  %v176 = vsel %vm120, %v92, %v148
  %v177 = vsel %vm121, %v93, %v149
  %v178 = vsel %vm122, %v94, %v150
  %v179 = vsel %vm123, %v95, %v151
  %v180 = vsel %vm124, %v96, %v152
  %v181 = vsel %vm125, %v97, %v153
  %v182 = vsel %vm126, %v98, %v154
  %v183 = vsel %vm127, %v99, %v155
  %v184 = vsel %vm128, %v100, %v156
  %v185 = vsel %vm129, %v101, %v157
  %v186 = vsel %vm130, %v102, %v158
  %v187 = vsel %vm131, %v103, %v159
  %v188 = vsel %vm132, %v104, %v160
  %v189 = vsel %vm133, %v105, %v161
  %vm190 = vcmask 64512
  %191 = vst.msk [vmem:[%s3] sm:$0xff] %vm190, %v162
  %192 = vst.msk [vmem:[%s3 + $0x8] sm:$0xff] %vm190, %v163
  %193 = vst.msk [vmem:[%s3 + $0x10] sm:$0xff] %vm190, %v164
  %194 = vst.msk [vmem:[%s3 + $0x18] sm:$0xff] %vm190, %v165
  %195 = vst.msk [vmem:[%s3 + $0x20] sm:$0xff] %vm190, %v166
  %196 = vst.msk [vmem:[%s3 + $0x28] sm:$0xff] %vm190, %v167
  %197 = vst.msk [vmem:[%s3 + $0x30] sm:$0xff] %vm190, %v168
  %198 = vst.msk [vmem:[%s3 + $0x38] sm:$0xff] %vm190, %v169
  %199 = vst.msk [vmem:[%s3 + $0x40] sm:$0xff] %vm190, %v170
  %200 = vst.msk [vmem:[%s3 + $0x48] sm:$0xff] %vm190, %v171
  %201 = vst.msk [vmem:[%s3 + $0x50] sm:$0xff] %vm190, %v172
  %202 = vst.msk [vmem:[%s3 + $0x58] sm:$0xff] %vm190, %v173
  %203 = vst.msk [vmem:[%s3 + $0x60] sm:$0xff] %vm190, %v174
  %204 = vst.msk [vmem:[%s3 + $0x68] sm:$0xff] %vm190, %v175
  %205 = vst.msk [vmem:[%s3 + $0x70] sm:$0xff] %vm190, %v176
  %206 = vst.msk [vmem:[%s3 + $0x78] sm:$0xff] %vm190, %v177
  %207 = vst.msk [vmem:[%s3 + $0x80] sm:$0xff] %vm190, %v178
  %208 = vst.msk [vmem:[%s3 + $0x88] sm:$0xff] %vm190, %v179
  %209 = vst.msk [vmem:[%s3 + $0x90] sm:$0xff] %vm190, %v180
  %210 = vst.msk [vmem:[%s3 + $0x98] sm:$0xff] %vm190, %v181
  %211 = vst.msk [vmem:[%s3 + $0xa0] sm:$0xff] %vm190, %v182
  %212 = vst.msk [vmem:[%s3 + $0xa8] sm:$0xff] %vm190, %v183
  %213 = vst.msk [vmem:[%s3 + $0xb0] sm:$0xff] %vm190, %v184
  %214 = vst.msk [vmem:[%s3 + $0xb8] sm:$0xff] %vm190, %v185
  %215 = vst.msk [vmem:[%s3 + $0xc0] sm:$0xff] %vm190, %v186
  %216 = vst.msk [vmem:[%s3 + $0xc8] sm:$0xff] %vm190, %v187
  %217 = vst.msk [vmem:[%s3 + $0xd0] sm:$0xff] %vm190, %v188
  %218 = vst.msk [vmem:[%s3 + $0xd8] sm:$0xff] %vm190, %v189
  // Predicated region
  $region14: #{hcnet_forward.28} parent=0 // pred_check
    _
  $region15: #{hcnet_forward.28} parent=0 // pred_check_branch
    %220 = sbr.rel (0) target = $region17
  $region16: #{hcnet_forward.28} parent=0 // pred_region
    _
  $region17: #{hcnet_forward.28} parent=0 // pred_fallthru
    _
  // Predicated region
  $region18: #{hcnet_forward.28} parent=0 // pred_check
    _
  $region19: #{hcnet_forward.28} parent=0 // pred_check_branch
    %222 = sbr.rel (0) target = $region21
  $region20: #{hcnet_forward.28} parent=0 // pred_region
    _
  $region21: #{hcnet_forward.28} parent=0 // pred_fallthru
    _

// kernel: hcnet_forward.29
$region0: #{hcnet_forward.29}
  #allocation0 [shape = 'u32[]', space=smem, size = 0x4, offset = 0x4, fixed_abs, tag = 'smem constant byte address 0x4 - core index']
  #allocation1 [shape = 'u32[72,128]{1,0:T(1,128)}', space=vmem, size = 0x9000, scoped, tag = 'internal scratch']
  #allocation2 [shape = 'f32[224,16]{1,0:T(8,128)}', space=vmem, size = 0x1c000, scoped, tag = 'scratch operand']
  %s0 = inlined_call_operand.vmem [shape: bf16[224,1024], index: 0, kind: input, shape index: {}]
  %s1 = inlined_call_operand.vmem [shape: bf16[1024,16], index: 1, kind: input, shape index: {}]
  %s2 = inlined_call_operand.vmem [shape: f32[224,16], index: 2, kind: output, shape index: {0}]
  %s3 = inlined_call_operand.vmem [shape: f32[8,16], index: 3, kind: output, shape index: {1}]
  %4 = xla_tuple %s2, %s3
  %s5 = sld [smem:[#allocation0]]
  $region34: #{hcnet_forward.29} parent=0
    _
  %s7 = ssub.s32 1, %s5
  %s8 = scalar_select 0, %s7, %s5
  // Predicated region
  $region2: #{hcnet_forward.29} parent=0 // pred_check
    _
  $region3: #{hcnet_forward.29} parent=0 // pred_check_branch
    %10 = sbr.rel (0) target = $region5
  $region4: #{hcnet_forward.29} parent=0 // pred_region
    _
  $region5: #{hcnet_forward.29} parent=0 // pred_fallthru
    _
  // Predicated region
  $region6: #{hcnet_forward.29} parent=0 // pred_check
    _
  $region7: #{hcnet_forward.29} parent=0 // pred_check_branch
    %12 = sbr.rel (0) target = $region9
  $region8: #{hcnet_forward.29} parent=0 // pred_region
    _
  $region9: #{hcnet_forward.29} parent=0 // pred_fallthru
    _
  %p13 = scmp.eq.s32.totalorder 0, 0
  // Predicated region
  $region10: #{hcnet_forward.29} parent=0 // pred_check
    %p14 = pneg %p13
  $region11: #{hcnet_forward.29} parent=0 // pred_check_branch
    %16 = sbr.rel (%p14) target = $region13
  $region12: #{hcnet_forward.29} parent=0 // pred_region
    %vm17 = vcmask 130048
    %18 = vst.msk [vmem:[#allocation2] sm:$0xff] %vm17, 0.0
    %19 = vst.msk [vmem:[#allocation2 + $0x8] sm:$0xff] %vm17, 0.0
    %20 = vst.msk [vmem:[#allocation2 + $0x10] sm:$0xff] %vm17, 0.0
    %21 = vst.msk [vmem:[#allocation2 + $0x18] sm:$0xff] %vm17, 0.0
    %22 = vst.msk [vmem:[#allocation2 + $0x20] sm:$0xff] %vm17, 0.0
    %23 = vst.msk [vmem:[#allocation2 + $0x28] sm:$0xff] %vm17, 0.0
    %24 = vst.msk [vmem:[#allocation2 + $0x30] sm:$0xff] %vm17, 0.0
    %25 = vst.msk [vmem:[#allocation2 + $0x38] sm:$0xff] %vm17, 0.0
    %26 = vst.msk [vmem:[#allocation2 + $0x40] sm:$0xff] %vm17, 0.0
    %27 = vst.msk [vmem:[#allocation2 + $0x48] sm:$0xff] %vm17, 0.0
    %28 = vst.msk [vmem:[#allocation2 + $0x50] sm:$0xff] %vm17, 0.0
    %29 = vst.msk [vmem:[#allocation2 + $0x58] sm:$0xff] %vm17, 0.0
    %30 = vst.msk [vmem:[#allocation2 + $0x60] sm:$0xff] %vm17, 0.0
    %31 = vst.msk [vmem:[#allocation2 + $0x68] sm:$0xff] %vm17, 0.0
    %32 = vst.msk [vmem:[#allocation2 + $0x70] sm:$0xff] %vm17, 0.0
    %33 = vst.msk [vmem:[#allocation2 + $0x78] sm:$0xff] %vm17, 0.0
    %34 = vst.msk [vmem:[#allocation2 + $0x80] sm:$0xff] %vm17, 0.0
    %35 = vst.msk [vmem:[#allocation2 + $0x88] sm:$0xff] %vm17, 0.0
    %36 = vst.msk [vmem:[#allocation2 + $0x90] sm:$0xff] %vm17, 0.0
    %37 = vst.msk [vmem:[#allocation2 + $0x98] sm:$0xff] %vm17, 0.0
    %38 = vst.msk [vmem:[#allocation2 + $0xa0] sm:$0xff] %vm17, 0.0
    %39 = vst.msk [vmem:[#allocation2 + $0xa8] sm:$0xff] %vm17, 0.0
    %40 = vst.msk [vmem:[#allocation2 + $0xb0] sm:$0xff] %vm17, 0.0
    %41 = vst.msk [vmem:[#allocation2 + $0xb8] sm:$0xff] %vm17, 0.0
    %42 = vst.msk [vmem:[#allocation2 + $0xc0] sm:$0xff] %vm17, 0.0
    %43 = vst.msk [vmem:[#allocation2 + $0xc8] sm:$0xff] %vm17, 0.0
    %44 = vst.msk [vmem:[#allocation2 + $0xd0] sm:$0xff] %vm17, 0.0
    %45 = vst.msk [vmem:[#allocation2 + $0xd8] sm:$0xff] %vm17, 0.0
  $region13: #{hcnet_forward.29} parent=0 // pred_fallthru
    _
  %v46 = vld [vmem:[#allocation2] sm:$0xff]
  %v47 = vld [vmem:[#allocation2 + $0x8] sm:$0xff]
  %v48 = vld [vmem:[#allocation2 + $0x10] sm:$0xff]
  %v49 = vld [vmem:[#allocation2 + $0x18] sm:$0xff]
  %v50 = vld [vmem:[#allocation2 + $0x20] sm:$0xff]
  %v51 = vld [vmem:[#allocation2 + $0x28] sm:$0xff]
  %v52 = vld [vmem:[#allocation2 + $0x30] sm:$0xff]
  %v53 = vld [vmem:[#allocation2 + $0x38] sm:$0xff]
  %v54 = vld [vmem:[#allocation2 + $0x40] sm:$0xff]
  %v55 = vld [vmem:[#allocation2 + $0x48] sm:$0xff]
  %v56 = vld [vmem:[#allocation2 + $0x50] sm:$0xff]
  %v57 = vld [vmem:[#allocation2 + $0x58] sm:$0xff]
  %v58 = vld [vmem:[#allocation2 + $0x60] sm:$0xff]
  %v59 = vld [vmem:[#allocation2 + $0x68] sm:$0xff]
  %v60 = vld [vmem:[#allocation2 + $0x70] sm:$0xff]
  %v61 = vld [vmem:[#allocation2 + $0x78] sm:$0xff]
  %v62 = vld [vmem:[#allocation2 + $0x80] sm:$0xff]
  %v63 = vld [vmem:[#allocation2 + $0x88] sm:$0xff]
  %v64 = vld [vmem:[#allocation2 + $0x90] sm:$0xff]
  %v65 = vld [vmem:[#allocation2 + $0x98] sm:$0xff]
  %v66 = vld [vmem:[#allocation2 + $0xa0] sm:$0xff]
  %v67 = vld [vmem:[#allocation2 + $0xa8] sm:$0xff]
  %v68 = vld [vmem:[#allocation2 + $0xb0] sm:$0xff]
  %v69 = vld [vmem:[#allocation2 + $0xb8] sm:$0xff]
  %v70 = vld [vmem:[#allocation2 + $0xc0] sm:$0xff]
  %v71 = vld [vmem:[#allocation2 + $0xc8] sm:$0xff]
  %v72 = vld [vmem:[#allocation2 + $0xd0] sm:$0xff]
  %v73 = vld [vmem:[#allocation2 + $0xd8] sm:$0xff]
  %v74 = vld [vmem:[%s0] sm:$0xff]
  %v75 = vld [vmem:[%s0 + $0x8] sm:$0xff]
  %v76 = vld [vmem:[%s0 + $0x10] sm:$0xff]
  %v77 = vld [vmem:[%s0 + $0x18] sm:$0xff]
  %v78 = vld [vmem:[%s0 + $0x20] sm:$0xff]
  %v79 = vld [vmem:[%s0 + $0x28] sm:$0xff]
  %v80 = vld [vmem:[%s0 + $0x30] sm:$0xff]
  %v81 = vld [vmem:[%s0 + $0x38] sm:$0xff]
  %v82 = vld [vmem:[%s0 + $0x40] sm:$0xff]
  %v83 = vld [vmem:[%s0 + $0x48] sm:$0xff]
  %v84 = vld [vmem:[%s0 + $0x50] sm:$0xff]
  %v85 = vld [vmem:[%s0 + $0x58] sm:$0xff]
  %v86 = vld [vmem:[%s0 + $0x60] sm:$0xff]
  %v87 = vld [vmem:[%s0 + $0x68] sm:$0xff]
  %v88 = vld [vmem:[%s0 + $0x70] sm:$0xff]
  %v89 = vld [vmem:[%s0 + $0x78] sm:$0xff]
  %v90 = vld [vmem:[%s0 + $0x80] sm:$0xff]
  %v91 = vld [vmem:[%s0 + $0x88] sm:$0xff]
  %v92 = vld [vmem:[%s0 + $0x90] sm:$0xff]
  %v93 = vld [vmem:[%s0 + $0x98] sm:$0xff]
  %v94 = vld [vmem:[%s0 + $0xa0] sm:$0xff]
  %v95 = vld [vmem:[%s0 + $0xa8] sm:$0xff]
  %v96 = vld [vmem:[%s0 + $0xb0] sm:$0xff]
  %v97 = vld [vmem:[%s0 + $0xb8] sm:$0xff]
  %v98 = vld [vmem:[%s0 + $0xc0] sm:$0xff]
  %v99 = vld [vmem:[%s0 + $0xc8] sm:$0xff]
  %v100 = vld [vmem:[%s0 + $0xd0] sm:$0xff]
  %v101 = vld [vmem:[%s0 + $0xd8] sm:$0xff]
  %v102 = vld [vmem:[%s0 + $0xe0] sm:$0xff]
  %v103 = vld [vmem:[%s0 + $0xe8] sm:$0xff]
  %v104 = vld [vmem:[%s0 + $0xf0] sm:$0xff]
  %v105 = vld [vmem:[%s0 + $0xf8] sm:$0xff]
  %v106 = vld [vmem:[%s0 + $0x100] sm:$0xff]
  %v107 = vld [vmem:[%s0 + $0x108] sm:$0xff]
  %v108 = vld [vmem:[%s0 + $0x110] sm:$0xff]
  %v109 = vld [vmem:[%s0 + $0x118] sm:$0xff]
  %v110 = vld [vmem:[%s0 + $0x120] sm:$0xff]
  %v111 = vld [vmem:[%s0 + $0x128] sm:$0xff]
  %v112 = vld [vmem:[%s0 + $0x130] sm:$0xff]
  %v113 = vld [vmem:[%s0 + $0x138] sm:$0xff]
  %v114 = vld [vmem:[%s0 + $0x140] sm:$0xff]
  %v115 = vld [vmem:[%s0 + $0x148] sm:$0xff]
  %v116 = vld [vmem:[%s0 + $0x150] sm:$0xff]
  %v117 = vld [vmem:[%s0 + $0x158] sm:$0xff]
  %v118 = vld [vmem:[%s0 + $0x160] sm:$0xff]
  %v119 = vld [vmem:[%s0 + $0x168] sm:$0xff]
  %v120 = vld [vmem:[%s0 + $0x170] sm:$0xff]
  %v121 = vld [vmem:[%s0 + $0x178] sm:$0xff]
  %v122 = vld [vmem:[%s0 + $0x180] sm:$0xff]
  %v123 = vld [vmem:[%s0 + $0x188] sm:$0xff]
  %v124 = vld [vmem:[%s0 + $0x190] sm:$0xff]
  %v125 = vld [vmem:[%s0 + $0x198] sm:$0xff]
  %v126 = vld [vmem:[%s0 + $0x1a0] sm:$0xff]
  %v127 = vld [vmem:[%s0 + $0x1a8] sm:$0xff]
  %v128 = vld [vmem:[%s0 + $0x1b0] sm:$0xff]
  %v129 = vld [vmem:[%s0 + $0x1b8] sm:$0xff]
  %v130 = vld [vmem:[%s0 + $0x1c0] sm:$0xff]
  %v131 = vld [vmem:[%s0 + $0x1c8] sm:$0xff]
  %v132 = vld [vmem:[%s0 + $0x1d0] sm:$0xff]
  %v133 = vld [vmem:[%s0 + $0x1d8] sm:$0xff]
  %v134 = vld [vmem:[%s0 + $0x1e0] sm:$0xff]
  %v135 = vld [vmem:[%s0 + $0x1e8] sm:$0xff]
  %v136 = vld [vmem:[%s0 + $0x1f0] sm:$0xff]
  %v137 = vld [vmem:[%s0 + $0x1f8] sm:$0xff]
  %v138 = vld [vmem:[%s0 + $0x200] sm:$0xff]
  %v139 = vld [vmem:[%s0 + $0x208] sm:$0xff]
  %v140 = vld [vmem:[%s0 + $0x210] sm:$0xff]
  %v141 = vld [vmem:[%s0 + $0x218] sm:$0xff]
  %v142 = vld [vmem:[%s0 + $0x220] sm:$0xff]
  %v143 = vld [vmem:[%s0 + $0x228] sm:$0xff]
  %v144 = vld [vmem:[%s0 + $0x230] sm:$0xff]
  %v145 = vld [vmem:[%s0 + $0x238] sm:$0xff]
  %v146 = vld [vmem:[%s0 + $0x240] sm:$0xff]
  %v147 = vld [vmem:[%s0 + $0x248] sm:$0xff]
  %v148 = vld [vmem:[%s0 + $0x250] sm:$0xff]
  %v149 = vld [vmem:[%s0 + $0x258] sm:$0xff]
  %v150 = vld [vmem:[%s0 + $0x260] sm:$0xff]
  %v151 = vld [vmem:[%s0 + $0x268] sm:$0xff]
  %v152 = vld [vmem:[%s0 + $0x270] sm:$0xff]
  %v153 = vld [vmem:[%s0 + $0x278] sm:$0xff]
  %v154 = vld [vmem:[%s0 + $0x280] sm:$0xff]
  %v155 = vld [vmem:[%s0 + $0x288] sm:$0xff]
  %v156 = vld [vmem:[%s0 + $0x290] sm:$0xff]
  %v157 = vld [vmem:[%s0 + $0x298] sm:$0xff]
  %v158 = vld [vmem:[%s0 + $0x2a0] sm:$0xff]
  %v159 = vld [vmem:[%s0 + $0x2a8] sm:$0xff]
  %v160 = vld [vmem:[%s0 + $0x2b0] sm:$0xff]
  %v161 = vld [vmem:[%s0 + $0x2b8] sm:$0xff]
  %v162 = vld [vmem:[%s0 + $0x2c0] sm:$0xff]
  %v163 = vld [vmem:[%s0 + $0x2c8] sm:$0xff]
  %v164 = vld [vmem:[%s0 + $0x2d0] sm:$0xff]
  %v165 = vld [vmem:[%s0 + $0x2d8] sm:$0xff]
  %v166 = vld [vmem:[%s0 + $0x2e0] sm:$0xff]
  %v167 = vld [vmem:[%s0 + $0x2e8] sm:$0xff]
  %v168 = vld [vmem:[%s0 + $0x2f0] sm:$0xff]
  %v169 = vld [vmem:[%s0 + $0x2f8] sm:$0xff]
  %v170 = vld [vmem:[%s0 + $0x300] sm:$0xff]
  %v171 = vld [vmem:[%s0 + $0x308] sm:$0xff]
  %v172 = vld [vmem:[%s0 + $0x310] sm:$0xff]
  %v173 = vld [vmem:[%s0 + $0x318] sm:$0xff]
  %v174 = vld [vmem:[%s0 + $0x320] sm:$0xff]
  %v175 = vld [vmem:[%s0 + $0x328] sm:$0xff]
  %v176 = vld [vmem:[%s0 + $0x330] sm:$0xff]
  %v177 = vld [vmem:[%s0 + $0x338] sm:$0xff]
  %v178 = vld [vmem:[%s0 + $0x340] sm:$0xff]
  %v179 = vld [vmem:[%s0 + $0x348] sm:$0xff]
  %v180 = vld [vmem:[%s0 + $0x350] sm:$0xff]
  %v181 = vld [vmem:[%s0 + $0x358] sm:$0xff]
  %v182 = vld [vmem:[%s0 + $0x360] sm:$0xff]
  %v183 = vld [vmem:[%s0 + $0x368] sm:$0xff]
  %v184 = vld [vmem:[%s0 + $0x370] sm:$0xff]
  %v185 = vld [vmem:[%s0 + $0x378] sm:$0xff]
  %v186 = vld [vmem:[%s1] sm:$0xf]
  %v187 = vld [vmem:[%s1 + $0x4] sm:$0xf]
  %v188 = vld [vmem:[%s1 + $0x8] sm:$0xf]
  %v189 = vld [vmem:[%s1 + $0xc] sm:$0xf]
  %v190 = vld [vmem:[%s1 + $0x10] sm:$0xf]
  %v191 = vld [vmem:[%s1 + $0x14] sm:$0xf]
  %v192 = vld [vmem:[%s1 + $0x18] sm:$0xf]
  %v193 = vld [vmem:[%s1 + $0x1c] sm:$0xf]
  %v194 = vld [vmem:[%s1 + $0x20] sm:$0xf]
  %v195 = vld [vmem:[%s1 + $0x24] sm:$0xf]
  %v196 = vld [vmem:[%s1 + $0x28] sm:$0xf]
  %v197 = vld [vmem:[%s1 + $0x2c] sm:$0xf]
  %v198 = vld [vmem:[%s1 + $0x30] sm:$0xf]
  %v199 = vld [vmem:[%s1 + $0x34] sm:$0xf]
  %v200 = vld [vmem:[%s1 + $0x38] sm:$0xf]
  %v201 = vld [vmem:[%s1 + $0x3c] sm:$0xf]
  %v202 = vld [vmem:[%s1 + $0x40] sm:$0xf]
  %v203 = vld [vmem:[%s1 + $0x44] sm:$0xf]
  %v204 = vld [vmem:[%s1 + $0x48] sm:$0xf]
  %v205 = vld [vmem:[%s1 + $0x4c] sm:$0xf]
  %v206 = vld [vmem:[%s1 + $0x50] sm:$0xf]
  %v207 = vld [vmem:[%s1 + $0x54] sm:$0xf]
  %v208 = vld [vmem:[%s1 + $0x58] sm:$0xf]
  %v209 = vld [vmem:[%s1 + $0x5c] sm:$0xf]
  %v210 = vld [vmem:[%s1 + $0x60] sm:$0xf]
  %v211 = vld [vmem:[%s1 + $0x64] sm:$0xf]
  %v212 = vld [vmem:[%s1 + $0x68] sm:$0xf]
  %v213 = vld [vmem:[%s1 + $0x6c] sm:$0xf]
  %v214 = vld [vmem:[%s1 + $0x70] sm:$0xf]
  %v215 = vld [vmem:[%s1 + $0x74] sm:$0xf]
  %v216 = vld [vmem:[%s1 + $0x78] sm:$0xf]
  %v217 = vld [vmem:[%s1 + $0x7c] sm:$0xf]
  %v218 = vld [vmem:[%s1 + $0x80] sm:$0xf]
  %v219 = vld [vmem:[%s1 + $0x84] sm:$0xf]
  %v220 = vld [vmem:[%s1 + $0x88] sm:$0xf]
  %v221 = vld [vmem:[%s1 + $0x8c] sm:$0xf]
  %v222 = vld [vmem:[%s1 + $0x90] sm:$0xf]
  %v223 = vld [vmem:[%s1 + $0x94] sm:$0xf]
  %v224 = vld [vmem:[%s1 + $0x98] sm:$0xf]
  %v225 = vld [vmem:[%s1 + $0x9c] sm:$0xf]
  %v226 = vld [vmem:[%s1 + $0xa0] sm:$0xf]
  %v227 = vld [vmem:[%s1 + $0xa4] sm:$0xf]
  %v228 = vld [vmem:[%s1 + $0xa8] sm:$0xf]
  %v229 = vld [vmem:[%s1 + $0xac] sm:$0xf]
  %v230 = vld [vmem:[%s1 + $0xb0] sm:$0xf]
  %v231 = vld [vmem:[%s1 + $0xb4] sm:$0xf]
  %v232 = vld [vmem:[%s1 + $0xb8] sm:$0xf]
  %v233 = vld [vmem:[%s1 + $0xbc] sm:$0xf]
  %v234 = vld [vmem:[%s1 + $0xc0] sm:$0xf]
  %v235 = vld [vmem:[%s1 + $0xc4] sm:$0xf]
  %v236 = vld [vmem:[%s1 + $0xc8] sm:$0xf]
  %v237 = vld [vmem:[%s1 + $0xcc] sm:$0xf]
  %v238 = vld [vmem:[%s1 + $0xd0] sm:$0xf]
  %v239 = vld [vmem:[%s1 + $0xd4] sm:$0xf]
  %v240 = vld [vmem:[%s1 + $0xd8] sm:$0xf]
  %v241 = vld [vmem:[%s1 + $0xdc] sm:$0xf]
  %v242 = vld [vmem:[%s1 + $0xe0] sm:$0xf]
  %v243 = vld [vmem:[%s1 + $0xe4] sm:$0xf]
  %v244 = vld [vmem:[%s1 + $0xe8] sm:$0xf]
  %v245 = vld [vmem:[%s1 + $0xec] sm:$0xf]
  %v246 = vld [vmem:[%s1 + $0xf0] sm:$0xf]
  %v247 = vld [vmem:[%s1 + $0xf4] sm:$0xf]
  %v248 = vld [vmem:[%s1 + $0xf8] sm:$0xf]
  %v249 = vld [vmem:[%s1 + $0xfc] sm:$0xf]
  %v250 = vld [vmem:[%s1 + $0x100] sm:$0xf]
  %v251 = vld [vmem:[%s1 + $0x104] sm:$0xf]
  %v252 = vld [vmem:[%s1 + $0x108] sm:$0xf]
  %v253 = vld [vmem:[%s1 + $0x10c] sm:$0xf]
  %v254 = vld [vmem:[%s1 + $0x110] sm:$0xf]
  %v255 = vld [vmem:[%s1 + $0x114] sm:$0xf]
  %v256 = vld [vmem:[%s1 + $0x118] sm:$0xf]
  %v257 = vld [vmem:[%s1 + $0x11c] sm:$0xf]
  %v258 = vld [vmem:[%s1 + $0x120] sm:$0xf]
  %v259 = vld [vmem:[%s1 + $0x124] sm:$0xf]
  %v260 = vld [vmem:[%s1 + $0x128] sm:$0xf]
  %v261 = vld [vmem:[%s1 + $0x12c] sm:$0xf]
  %v262 = vld [vmem:[%s1 + $0x130] sm:$0xf]
  %v263 = vld [vmem:[%s1 + $0x134] sm:$0xf]
  %v264 = vld [vmem:[%s1 + $0x138] sm:$0xf]
  %v265 = vld [vmem:[%s1 + $0x13c] sm:$0xf]
  %v266 = vld [vmem:[%s1 + $0x140] sm:$0xf]
  %v267 = vld [vmem:[%s1 + $0x144] sm:$0xf]
  %v268 = vld [vmem:[%s1 + $0x148] sm:$0xf]
  %v269 = vld [vmem:[%s1 + $0x14c] sm:$0xf]
  %v270 = vld [vmem:[%s1 + $0x150] sm:$0xf]
  %v271 = vld [vmem:[%s1 + $0x154] sm:$0xf]
  %v272 = vld [vmem:[%s1 + $0x158] sm:$0xf]
  %v273 = vld [vmem:[%s1 + $0x15c] sm:$0xf]
  %v274 = vld [vmem:[%s1 + $0x160] sm:$0xf]
  %v275 = vld [vmem:[%s1 + $0x164] sm:$0xf]
  %v276 = vld [vmem:[%s1 + $0x168] sm:$0xf]
  %v277 = vld [vmem:[%s1 + $0x16c] sm:$0xf]
  %v278 = vld [vmem:[%s1 + $0x170] sm:$0xf]
  %v279 = vld [vmem:[%s1 + $0x174] sm:$0xf]
  %v280 = vld [vmem:[%s1 + $0x178] sm:$0xf]
  %v281 = vld [vmem:[%s1 + $0x17c] sm:$0xf]
  %v282 = vld [vmem:[%s1 + $0x180] sm:$0xf]
  %v283 = vld [vmem:[%s1 + $0x184] sm:$0xf]
  %v284 = vld [vmem:[%s1 + $0x188] sm:$0xf]
  %v285 = vld [vmem:[%s1 + $0x18c] sm:$0xf]
  %v286 = vld [vmem:[%s1 + $0x190] sm:$0xf]
  %v287 = vld [vmem:[%s1 + $0x194] sm:$0xf]
  %v288 = vld [vmem:[%s1 + $0x198] sm:$0xf]
  %v289 = vld [vmem:[%s1 + $0x19c] sm:$0xf]
  %v290 = vld [vmem:[%s1 + $0x1a0] sm:$0xf]
  %v291 = vld [vmem:[%s1 + $0x1a4] sm:$0xf]
  %v292 = vld [vmem:[%s1 + $0x1a8] sm:$0xf]
  %v293 = vld [vmem:[%s1 + $0x1ac] sm:$0xf]
  %v294 = vld [vmem:[%s1 + $0x1b0] sm:$0xf]
  %v295 = vld [vmem:[%s1 + $0x1b4] sm:$0xf]
  %v296 = vld [vmem:[%s1 + $0x1b8] sm:$0xf]
  %v297 = vld [vmem:[%s1 + $0x1bc] sm:$0xf]
  %v298 = vld [vmem:[%s1 + $0x1c0] sm:$0xf]
  %v299 = vld [vmem:[%s1 + $0x1c4] sm:$0xf]
  %v300 = vld [vmem:[%s1 + $0x1c8] sm:$0xf]
  %v301 = vld [vmem:[%s1 + $0x1cc] sm:$0xf]
  %v302 = vld [vmem:[%s1 + $0x1d0] sm:$0xf]
  %v303 = vld [vmem:[%s1 + $0x1d4] sm:$0xf]
  %v304 = vld [vmem:[%s1 + $0x1d8] sm:$0xf]
  %v305 = vld [vmem:[%s1 + $0x1dc] sm:$0xf]
  %v306 = vld [vmem:[%s1 + $0x1e0] sm:$0xf]
  %v307 = vld [vmem:[%s1 + $0x1e4] sm:$0xf]
  %v308 = vld [vmem:[%s1 + $0x1e8] sm:$0xf]
  %v309 = vld [vmem:[%s1 + $0x1ec] sm:$0xf]
  %v310 = vld [vmem:[%s1 + $0x1f0] sm:$0xf]
  %v311 = vld [vmem:[%s1 + $0x1f4] sm:$0xf]
  %v312 = vld [vmem:[%s1 + $0x1f8] sm:$0xf]
  %v313 = vld [vmem:[%s1 + $0x1fc] sm:$0xf]
  %v426 = vunpack.c.l.b16 %v74
  %v427 = vunpack.c.h.b16 %v74
  %v428 = vunpack.c.l.b16 %v75
  %v429 = vunpack.c.h.b16 %v75
  %v430 = vunpack.c.l.b16 %v76
  %v431 = vunpack.c.h.b16 %v76
  %v432 = vunpack.c.l.b16 %v77
  %v433 = vunpack.c.h.b16 %v77
  %v434 = vunpack.c.l.b16 %v78
  %v435 = vunpack.c.h.b16 %v78
  %v436 = vunpack.c.l.b16 %v79
  %v437 = vunpack.c.h.b16 %v79
  %v438 = vunpack.c.l.b16 %v80
  %v439 = vunpack.c.h.b16 %v80
  %v440 = vunpack.c.l.b16 %v81
  %v441 = vunpack.c.h.b16 %v81
  %v442 = vunpack.c.l.b16 %v82
  %v443 = vunpack.c.h.b16 %v82
  %v444 = vunpack.c.l.b16 %v83
  %v445 = vunpack.c.h.b16 %v83
  %v446 = vunpack.c.l.b16 %v84
  %v447 = vunpack.c.h.b16 %v84
  %v448 = vunpack.c.l.b16 %v85
  %v449 = vunpack.c.h.b16 %v85
  %v450 = vunpack.c.l.b16 %v86
  %v451 = vunpack.c.h.b16 %v86
  %v452 = vunpack.c.l.b16 %v87
  %v453 = vunpack.c.h.b16 %v87
  %v454 = vunpack.c.l.b16 %v88
  %v455 = vunpack.c.h.b16 %v88
  %v456 = vunpack.c.l.b16 %v89
  %v457 = vunpack.c.h.b16 %v89
  %v458 = vunpack.c.l.b16 %v90
  %v459 = vunpack.c.h.b16 %v90
  %v460 = vunpack.c.l.b16 %v91
  %v461 = vunpack.c.h.b16 %v91
  %v462 = vunpack.c.l.b16 %v92
  %v463 = vunpack.c.h.b16 %v92
  %v464 = vunpack.c.l.b16 %v93
  %v465 = vunpack.c.h.b16 %v93
  %v466 = vunpack.c.l.b16 %v94
  %v467 = vunpack.c.h.b16 %v94
  %v468 = vunpack.c.l.b16 %v95
  %v469 = vunpack.c.h.b16 %v95
  %v470 = vunpack.c.l.b16 %v96
  %v471 = vunpack.c.h.b16 %v96
  %v472 = vunpack.c.l.b16 %v97
  %v473 = vunpack.c.h.b16 %v97
  %v474 = vunpack.c.l.b16 %v98
  %v475 = vunpack.c.h.b16 %v98
  %v476 = vunpack.c.l.b16 %v99
  %v477 = vunpack.c.h.b16 %v99
  %v478 = vunpack.c.l.b16 %v100
  %v479 = vunpack.c.h.b16 %v100
  %v480 = vunpack.c.l.b16 %v101
  %v481 = vunpack.c.h.b16 %v101
  %v482 = vunpack.c.l.b16 %v102
  %v483 = vunpack.c.h.b16 %v102
  %v484 = vunpack.c.l.b16 %v103
  %v485 = vunpack.c.h.b16 %v103
  %v486 = vunpack.c.l.b16 %v104
  %v487 = vunpack.c.h.b16 %v104
  %v488 = vunpack.c.l.b16 %v105
  %v489 = vunpack.c.h.b16 %v105
  %v490 = vunpack.c.l.b16 %v106
  %v491 = vunpack.c.h.b16 %v106
  %v492 = vunpack.c.l.b16 %v107
  %v493 = vunpack.c.h.b16 %v107
  %v494 = vunpack.c.l.b16 %v108
  %v495 = vunpack.c.h.b16 %v108
  %v496 = vunpack.c.l.b16 %v109
  %v497 = vunpack.c.h.b16 %v109
  %v498 = vunpack.c.l.b16 %v110
  %v499 = vunpack.c.h.b16 %v110
  %v500 = vunpack.c.l.b16 %v111
  %v501 = vunpack.c.h.b16 %v111
  %v502 = vunpack.c.l.b16 %v112
  %v503 = vunpack.c.h.b16 %v112
  %v504 = vunpack.c.l.b16 %v113
  %v505 = vunpack.c.h.b16 %v113
  %v506 = vunpack.c.l.b16 %v114
  %v507 = vunpack.c.h.b16 %v114
  %v508 = vunpack.c.l.b16 %v115
  %v509 = vunpack.c.h.b16 %v115
  %v510 = vunpack.c.l.b16 %v116
  %v511 = vunpack.c.h.b16 %v116
  %v512 = vunpack.c.l.b16 %v117
  %v513 = vunpack.c.h.b16 %v117
  %v514 = vunpack.c.l.b16 %v118
  %v515 = vunpack.c.h.b16 %v118
  %v516 = vunpack.c.l.b16 %v119
  %v517 = vunpack.c.h.b16 %v119
  %v518 = vunpack.c.l.b16 %v120
  %v519 = vunpack.c.h.b16 %v120
  %v520 = vunpack.c.l.b16 %v121
  %v521 = vunpack.c.h.b16 %v121
  %v522 = vunpack.c.l.b16 %v122
  %v523 = vunpack.c.h.b16 %v122
  %v524 = vunpack.c.l.b16 %v123
  %v525 = vunpack.c.h.b16 %v123
  %v526 = vunpack.c.l.b16 %v124
  %v527 = vunpack.c.h.b16 %v124
  %v528 = vunpack.c.l.b16 %v125
  %v529 = vunpack.c.h.b16 %v125
  %v530 = vunpack.c.l.b16 %v126
  %v531 = vunpack.c.h.b16 %v126
  %v532 = vunpack.c.l.b16 %v127
  %v533 = vunpack.c.h.b16 %v127
  %v534 = vunpack.c.l.b16 %v128
  %v535 = vunpack.c.h.b16 %v128
  %v536 = vunpack.c.l.b16 %v129
  %v537 = vunpack.c.h.b16 %v129
  %v538 = vunpack.c.l.b16 %v130
  %v539 = vunpack.c.h.b16 %v130
  %v540 = vunpack.c.l.b16 %v131
  %v541 = vunpack.c.h.b16 %v131
  %v542 = vunpack.c.l.b16 %v132
  %v543 = vunpack.c.h.b16 %v132
  %v544 = vunpack.c.l.b16 %v133
  %v545 = vunpack.c.h.b16 %v133
  %v546 = vunpack.c.l.b16 %v134
  %v547 = vunpack.c.h.b16 %v134
  %v548 = vunpack.c.l.b16 %v135
  %v549 = vunpack.c.h.b16 %v135
  %v550 = vunpack.c.l.b16 %v136
  %v551 = vunpack.c.h.b16 %v136
  %v552 = vunpack.c.l.b16 %v137
  %v553 = vunpack.c.h.b16 %v137
  %v554 = vunpack.c.l.b16 %v138
  %v555 = vunpack.c.h.b16 %v138
  %v556 = vunpack.c.l.b16 %v139
  %v557 = vunpack.c.h.b16 %v139
  %v558 = vunpack.c.l.b16 %v140
  %v559 = vunpack.c.h.b16 %v140
  %v560 = vunpack.c.l.b16 %v141
  %v561 = vunpack.c.h.b16 %v141
  %v562 = vunpack.c.l.b16 %v142
  %v563 = vunpack.c.h.b16 %v142
  %v564 = vunpack.c.l.b16 %v143
  %v565 = vunpack.c.h.b16 %v143
  %v566 = vunpack.c.l.b16 %v144
  %v567 = vunpack.c.h.b16 %v144
  %v568 = vunpack.c.l.b16 %v145
  %v569 = vunpack.c.h.b16 %v145
  %v570 = vunpack.c.l.b16 %v146
  %v571 = vunpack.c.h.b16 %v146
  %v572 = vunpack.c.l.b16 %v147
  %v573 = vunpack.c.h.b16 %v147
  %v574 = vunpack.c.l.b16 %v148
  %v575 = vunpack.c.h.b16 %v148
  %v576 = vunpack.c.l.b16 %v149
  %v577 = vunpack.c.h.b16 %v149
  %v578 = vunpack.c.l.b16 %v150
  %v579 = vunpack.c.h.b16 %v150
  %v580 = vunpack.c.l.b16 %v151
  %v581 = vunpack.c.h.b16 %v151
  %v582 = vunpack.c.l.b16 %v152
  %v583 = vunpack.c.h.b16 %v152
  %v584 = vunpack.c.l.b16 %v153
  %v585 = vunpack.c.h.b16 %v153
  %v586 = vunpack.c.l.b16 %v154
  %v587 = vunpack.c.h.b16 %v154
  %v588 = vunpack.c.l.b16 %v155
  %v589 = vunpack.c.h.b16 %v155
  %v590 = vunpack.c.l.b16 %v156
  %v591 = vunpack.c.h.b16 %v156
  %v592 = vunpack.c.l.b16 %v157
  %v593 = vunpack.c.h.b16 %v157
  %v594 = vunpack.c.l.b16 %v158
  %v595 = vunpack.c.h.b16 %v158
  %v596 = vunpack.c.l.b16 %v159
  %v597 = vunpack.c.h.b16 %v159
  %v598 = vunpack.c.l.b16 %v160
  %v599 = vunpack.c.h.b16 %v160
  %v600 = vunpack.c.l.b16 %v161
  %v601 = vunpack.c.h.b16 %v161
  %v602 = vunpack.c.l.b16 %v162
  %v603 = vunpack.c.h.b16 %v162
  %v604 = vunpack.c.l.b16 %v163
  %v605 = vunpack.c.h.b16 %v163
  %v606 = vunpack.c.l.b16 %v164
  %v607 = vunpack.c.h.b16 %v164
  %v608 = vunpack.c.l.b16 %v165
  %v609 = vunpack.c.h.b16 %v165
  %v610 = vunpack.c.l.b16 %v166
  %v611 = vunpack.c.h.b16 %v166
  %v612 = vunpack.c.l.b16 %v167
  %v613 = vunpack.c.h.b16 %v167
  %v614 = vunpack.c.l.b16 %v168
  %v615 = vunpack.c.h.b16 %v168
  %v616 = vunpack.c.l.b16 %v169
  %v617 = vunpack.c.h.b16 %v169
  %v618 = vunpack.c.l.b16 %v170
  %v619 = vunpack.c.h.b16 %v170
  %v620 = vunpack.c.l.b16 %v171
  %v621 = vunpack.c.h.b16 %v171
  %v622 = vunpack.c.l.b16 %v172
  %v623 = vunpack.c.h.b16 %v172
  %v624 = vunpack.c.l.b16 %v173
  %v625 = vunpack.c.h.b16 %v173
  %v626 = vunpack.c.l.b16 %v174
  %v627 = vunpack.c.h.b16 %v174
  %v628 = vunpack.c.l.b16 %v175
  %v629 = vunpack.c.h.b16 %v175
  %v630 = vunpack.c.l.b16 %v176
  %v631 = vunpack.c.h.b16 %v176
  %v632 = vunpack.c.l.b16 %v177
  %v633 = vunpack.c.h.b16 %v177
  %v634 = vunpack.c.l.b16 %v178
  %v635 = vunpack.c.h.b16 %v178
  %v636 = vunpack.c.l.b16 %v179
  %v637 = vunpack.c.h.b16 %v179
  %v638 = vunpack.c.l.b16 %v180
  %v639 = vunpack.c.h.b16 %v180
  %v640 = vunpack.c.l.b16 %v181
  %v641 = vunpack.c.h.b16 %v181
  %v642 = vunpack.c.l.b16 %v182
  %v643 = vunpack.c.h.b16 %v182
  %v644 = vunpack.c.l.b16 %v183
  %v645 = vunpack.c.h.b16 %v183
  %v646 = vunpack.c.l.b16 %v184
  %v647 = vunpack.c.h.b16 %v184
  %v648 = vunpack.c.l.b16 %v185
  %v649 = vunpack.c.h.b16 %v185
  %v650 = vpack.c.b16 %v434, %v426
  %v651 = vpack.c.b16 %v435, %v427
  %v652 = vpack.c.b16 %v436, %v428
  %v653 = vpack.c.b16 %v437, %v429
  %v654 = vpack.c.b16 %v438, %v430
  %v655 = vpack.c.b16 %v439, %v431
  %v656 = vpack.c.b16 %v440, %v432
  %v657 = vpack.c.b16 %v441, %v433
  %v658 = vpack.c.b16 %v450, %v442
  %v659 = vpack.c.b16 %v451, %v443
  %v660 = vpack.c.b16 %v452, %v444
  %v661 = vpack.c.b16 %v453, %v445
  %v662 = vpack.c.b16 %v454, %v446
  %v663 = vpack.c.b16 %v455, %v447
  %v664 = vpack.c.b16 %v456, %v448
  %v665 = vpack.c.b16 %v457, %v449
  %v666 = vpack.c.b16 %v466, %v458
  %v667 = vpack.c.b16 %v467, %v459
  %v668 = vpack.c.b16 %v468, %v460
  %v669 = vpack.c.b16 %v469, %v461
  %v670 = vpack.c.b16 %v470, %v462
  %v671 = vpack.c.b16 %v471, %v463
  %v672 = vpack.c.b16 %v472, %v464
  %v673 = vpack.c.b16 %v473, %v465
  %v674 = vpack.c.b16 %v482, %v474
  %v675 = vpack.c.b16 %v483, %v475
  %v676 = vpack.c.b16 %v484, %v476
  %v677 = vpack.c.b16 %v485, %v477
  %v678 = vpack.c.b16 %v486, %v478
  %v679 = vpack.c.b16 %v487, %v479
  %v680 = vpack.c.b16 %v488, %v480
  %v681 = vpack.c.b16 %v489, %v481
  %v682 = vpack.c.b16 %v498, %v490
  %v683 = vpack.c.b16 %v499, %v491
  %v684 = vpack.c.b16 %v500, %v492
  %v685 = vpack.c.b16 %v501, %v493
  %v686 = vpack.c.b16 %v502, %v494
  %v687 = vpack.c.b16 %v503, %v495
  %v688 = vpack.c.b16 %v504, %v496
  %v689 = vpack.c.b16 %v505, %v497
  %v690 = vpack.c.b16 %v514, %v506
  %v691 = vpack.c.b16 %v515, %v507
  %v692 = vpack.c.b16 %v516, %v508
  %v693 = vpack.c.b16 %v517, %v509
  %v694 = vpack.c.b16 %v518, %v510
  %v695 = vpack.c.b16 %v519, %v511
  %v696 = vpack.c.b16 %v520, %v512
  %v697 = vpack.c.b16 %v521, %v513
  %v698 = vpack.c.b16 %v530, %v522
  %v699 = vpack.c.b16 %v531, %v523
  %v700 = vpack.c.b16 %v532, %v524
  %v701 = vpack.c.b16 %v533, %v525
  %v702 = vpack.c.b16 %v534, %v526
  %v703 = vpack.c.b16 %v535, %v527
  %v704 = vpack.c.b16 %v536, %v528
  %v705 = vpack.c.b16 %v537, %v529
  %v706 = vpack.c.b16 %v546, %v538
  %v707 = vpack.c.b16 %v547, %v539
  %v708 = vpack.c.b16 %v548, %v540
  %v709 = vpack.c.b16 %v549, %v541
  %v710 = vpack.c.b16 %v550, %v542
  %v711 = vpack.c.b16 %v551, %v543
  %v712 = vpack.c.b16 %v552, %v544
  %v713 = vpack.c.b16 %v553, %v545
  %v714 = vpack.c.b16 %v562, %v554
  %v715 = vpack.c.b16 %v563, %v555
  %v716 = vpack.c.b16 %v564, %v556
  %v717 = vpack.c.b16 %v565, %v557
  %v718 = vpack.c.b16 %v566, %v558
  %v719 = vpack.c.b16 %v567, %v559
  %v720 = vpack.c.b16 %v568, %v560
  %v721 = vpack.c.b16 %v569, %v561
  %v722 = vpack.c.b16 %v578, %v570
  %v723 = vpack.c.b16 %v579, %v571
  %v724 = vpack.c.b16 %v580, %v572
  %v725 = vpack.c.b16 %v581, %v573
  %v726 = vpack.c.b16 %v582, %v574
  %v727 = vpack.c.b16 %v583, %v575
  %v728 = vpack.c.b16 %v584, %v576
  %v729 = vpack.c.b16 %v585, %v577
  %v730 = vpack.c.b16 %v594, %v586
  %v731 = vpack.c.b16 %v595, %v587
  %v732 = vpack.c.b16 %v596, %v588
  %v733 = vpack.c.b16 %v597, %v589
  %v734 = vpack.c.b16 %v598, %v590
  %v735 = vpack.c.b16 %v599, %v591
  %v736 = vpack.c.b16 %v600, %v592
  %v737 = vpack.c.b16 %v601, %v593
  %v738 = vpack.c.b16 %v610, %v602
  %v739 = vpack.c.b16 %v611, %v603
  %v740 = vpack.c.b16 %v612, %v604
  %v741 = vpack.c.b16 %v613, %v605
  %v742 = vpack.c.b16 %v614, %v606
  %v743 = vpack.c.b16 %v615, %v607
  %v744 = vpack.c.b16 %v616, %v608
  %v745 = vpack.c.b16 %v617, %v609
  %v746 = vpack.c.b16 %v626, %v618
  %v747 = vpack.c.b16 %v627, %v619
  %v748 = vpack.c.b16 %v628, %v620
  %v749 = vpack.c.b16 %v629, %v621
  %v750 = vpack.c.b16 %v630, %v622
  %v751 = vpack.c.b16 %v631, %v623
  %v752 = vpack.c.b16 %v632, %v624
  %v753 = vpack.c.b16 %v633, %v625
  %v754 = vpack.c.b16 %v642, %v634
  %v755 = vpack.c.b16 %v643, %v635
  %v756 = vpack.c.b16 %v644, %v636
  %v757 = vpack.c.b16 %v645, %v637
  %v758 = vpack.c.b16 %v646, %v638
  %v759 = vpack.c.b16 %v647, %v639
  %v760 = vpack.c.b16 %v648, %v640
  %v761 = vpack.c.b16 %v649, %v641
  %v1002 = vunpack.c.l.b16 %v186
  %v1003 = vunpack.c.l.b16 %v187
  %v1004 = vunpack.c.l.b16 %v188
  %v1005 = vunpack.c.l.b16 %v189
  %v1006 = vunpack.c.l.b16 %v190
  %v1007 = vunpack.c.l.b16 %v191
  %v1008 = vunpack.c.l.b16 %v192
  %v1009 = vunpack.c.l.b16 %v193
  %v1010 = vunpack.c.l.b16 %v194
  %v1011 = vunpack.c.l.b16 %v195
  %v1012 = vunpack.c.l.b16 %v196
  %v1013 = vunpack.c.l.b16 %v197
  %v1014 = vunpack.c.l.b16 %v198
  %v1015 = vunpack.c.l.b16 %v199
  %v1016 = vunpack.c.l.b16 %v200
  %v1017 = vunpack.c.l.b16 %v201
  %v1018 = vunpack.c.l.b16 %v202
  %v1019 = vunpack.c.l.b16 %v203
  %v1020 = vunpack.c.l.b16 %v204
  %v1021 = vunpack.c.l.b16 %v205
  %v1022 = vunpack.c.l.b16 %v206
  %v1023 = vunpack.c.l.b16 %v207
  %v1024 = vunpack.c.l.b16 %v208
  %v1025 = vunpack.c.l.b16 %v209
  %v1026 = vunpack.c.l.b16 %v210
  %v1027 = vunpack.c.l.b16 %v211
  %v1028 = vunpack.c.l.b16 %v212
  %v1029 = vunpack.c.l.b16 %v213
  %v1030 = vunpack.c.l.b16 %v214
  %v1031 = vunpack.c.l.b16 %v215
  %v1032 = vunpack.c.l.b16 %v216
  %v1033 = vunpack.c.l.b16 %v217
  %v1034 = vunpack.c.l.b16 %v218
  %v1035 = vunpack.c.l.b16 %v219
  %v1036 = vunpack.c.l.b16 %v220
  %v1037 = vunpack.c.l.b16 %v221
  %v1038 = vunpack.c.l.b16 %v222
  %v1039 = vunpack.c.l.b16 %v223
  %v1040 = vunpack.c.l.b16 %v224
  %v1041 = vunpack.c.l.b16 %v225
  %v1042 = vunpack.c.l.b16 %v226
  %v1043 = vunpack.c.l.b16 %v227
  %v1044 = vunpack.c.l.b16 %v228
  %v1045 = vunpack.c.l.b16 %v229
  %v1046 = vunpack.c.l.b16 %v230
  %v1047 = vunpack.c.l.b16 %v231
  %v1048 = vunpack.c.l.b16 %v232
  %v1049 = vunpack.c.l.b16 %v233
  %v1050 = vunpack.c.l.b16 %v234
  %v1051 = vunpack.c.l.b16 %v235
  %v1052 = vunpack.c.l.b16 %v236
  %v1053 = vunpack.c.l.b16 %v237
  %v1054 = vunpack.c.l.b16 %v238
  %v1055 = vunpack.c.l.b16 %v239
  %v1056 = vunpack.c.l.b16 %v240
  %v1057 = vunpack.c.l.b16 %v241
  %v1058 = vunpack.c.l.b16 %v242
  %v1059 = vunpack.c.l.b16 %v243
  %v1060 = vunpack.c.l.b16 %v244
  %v1061 = vunpack.c.l.b16 %v245
  %v1062 = vunpack.c.l.b16 %v246
  %v1063 = vunpack.c.l.b16 %v247
  %v1064 = vunpack.c.l.b16 %v248
  %v1065 = vunpack.c.l.b16 %v249
  %v1066 = vunpack.c.l.b16 %v250
  %v1067 = vunpack.c.l.b16 %v251
  %v1068 = vunpack.c.l.b16 %v252
  %v1069 = vunpack.c.l.b16 %v253
  %v1070 = vunpack.c.l.b16 %v254
  %v1071 = vunpack.c.l.b16 %v255
  %v1072 = vunpack.c.l.b16 %v256
  %v1073 = vunpack.c.l.b16 %v257
  %v1074 = vunpack.c.l.b16 %v258
  %v1075 = vunpack.c.l.b16 %v259
  %v1076 = vunpack.c.l.b16 %v260
  %v1077 = vunpack.c.l.b16 %v261
  %v1078 = vunpack.c.l.b16 %v262
  %v1079 = vunpack.c.l.b16 %v263
  %v1080 = vunpack.c.l.b16 %v264
  %v1081 = vunpack.c.l.b16 %v265
  %v1082 = vunpack.c.l.b16 %v266
  %v1083 = vunpack.c.l.b16 %v267
  %v1084 = vunpack.c.l.b16 %v268
  %v1085 = vunpack.c.l.b16 %v269
  %v1086 = vunpack.c.l.b16 %v270
  %v1087 = vunpack.c.l.b16 %v271
  %v1088 = vunpack.c.l.b16 %v272
  %v1089 = vunpack.c.l.b16 %v273
  %v1090 = vunpack.c.l.b16 %v274
  %v1091 = vunpack.c.l.b16 %v275
  %v1092 = vunpack.c.l.b16 %v276
  %v1093 = vunpack.c.l.b16 %v277
  %v1094 = vunpack.c.l.b16 %v278
  %v1095 = vunpack.c.l.b16 %v279
  %v1096 = vunpack.c.l.b16 %v280
  %v1097 = vunpack.c.l.b16 %v281
  %v1098 = vunpack.c.l.b16 %v282
  %v1099 = vunpack.c.l.b16 %v283
  %v1100 = vunpack.c.l.b16 %v284
  %v1101 = vunpack.c.l.b16 %v285
  %v1102 = vunpack.c.l.b16 %v286
  %v1103 = vunpack.c.l.b16 %v287
  %v1104 = vunpack.c.l.b16 %v288
  %v1105 = vunpack.c.l.b16 %v289
  %v1106 = vunpack.c.l.b16 %v290
  %v1107 = vunpack.c.l.b16 %v291
  %v1108 = vunpack.c.l.b16 %v292
  %v1109 = vunpack.c.l.b16 %v293
  %v1110 = vunpack.c.l.b16 %v294
  %v1111 = vunpack.c.l.b16 %v295
  %v1112 = vunpack.c.l.b16 %v296
  %v1113 = vunpack.c.l.b16 %v297
  %v1114 = vunpack.c.l.b16 %v298
  %v1115 = vunpack.c.l.b16 %v299
  %v1116 = vunpack.c.l.b16 %v300
  %v1117 = vunpack.c.l.b16 %v301
  %v1118 = vunpack.c.l.b16 %v302
  %v1119 = vunpack.c.l.b16 %v303
  %v1120 = vunpack.c.l.b16 %v304
  %v1121 = vunpack.c.l.b16 %v305
  %v1122 = vunpack.c.l.b16 %v306
  %v1123 = vunpack.c.l.b16 %v307
  %v1124 = vunpack.c.l.b16 %v308
  %v1125 = vunpack.c.l.b16 %v309
  %v1126 = vunpack.c.l.b16 %v310
  %v1127 = vunpack.c.l.b16 %v311
  %v1128 = vunpack.c.l.b16 %v312
  %v1129 = vunpack.c.l.b16 %v313
  %v1130 = vpack.c.b16 %v1003, %v1002
  %v1131 = vpack.c.b16 %v1005, %v1004
  %v1132 = vpack.c.b16 %v1007, %v1006
  %v1133 = vpack.c.b16 %v1009, %v1008
  %v1134 = vpack.c.b16 %v1011, %v1010
  %v1135 = vpack.c.b16 %v1013, %v1012
  %v1136 = vpack.c.b16 %v1015, %v1014
  %v1137 = vpack.c.b16 %v1017, %v1016
  %v1138 = vpack.c.b16 %v1019, %v1018
  %v1139 = vpack.c.b16 %v1021, %v1020
  %v1140 = vpack.c.b16 %v1023, %v1022
  %v1141 = vpack.c.b16 %v1025, %v1024
  %v1142 = vpack.c.b16 %v1027, %v1026
  %v1143 = vpack.c.b16 %v1029, %v1028
  %v1144 = vpack.c.b16 %v1031, %v1030
  %v1145 = vpack.c.b16 %v1033, %v1032
  %v1146 = vpack.c.b16 %v1035, %v1034
  %v1147 = vpack.c.b16 %v1037, %v1036
  %v1148 = vpack.c.b16 %v1039, %v1038
  %v1149 = vpack.c.b16 %v1041, %v1040
  %v1150 = vpack.c.b16 %v1043, %v1042
  %v1151 = vpack.c.b16 %v1045, %v1044
  %v1152 = vpack.c.b16 %v1047, %v1046
  %v1153 = vpack.c.b16 %v1049, %v1048
  %v1154 = vpack.c.b16 %v1051, %v1050
  %v1155 = vpack.c.b16 %v1053, %v1052
  %v1156 = vpack.c.b16 %v1055, %v1054
  %v1157 = vpack.c.b16 %v1057, %v1056
  %v1158 = vpack.c.b16 %v1059, %v1058
  %v1159 = vpack.c.b16 %v1061, %v1060
  %v1160 = vpack.c.b16 %v1063, %v1062
  %v1161 = vpack.c.b16 %v1065, %v1064
  %v1162 = vpack.c.b16 %v1067, %v1066
  %v1163 = vpack.c.b16 %v1069, %v1068
  %v1164 = vpack.c.b16 %v1071, %v1070
  %v1165 = vpack.c.b16 %v1073, %v1072
  %v1166 = vpack.c.b16 %v1075, %v1074
  %v1167 = vpack.c.b16 %v1077, %v1076
  %v1168 = vpack.c.b16 %v1079, %v1078
  %v1169 = vpack.c.b16 %v1081, %v1080
  %v1170 = vpack.c.b16 %v1083, %v1082
  %v1171 = vpack.c.b16 %v1085, %v1084
  %v1172 = vpack.c.b16 %v1087, %v1086
  %v1173 = vpack.c.b16 %v1089, %v1088
  %v1174 = vpack.c.b16 %v1091, %v1090
  %v1175 = vpack.c.b16 %v1093, %v1092
  %v1176 = vpack.c.b16 %v1095, %v1094
  %v1177 = vpack.c.b16 %v1097, %v1096
  %v1178 = vpack.c.b16 %v1099, %v1098
  %v1179 = vpack.c.b16 %v1101, %v1100
  %v1180 = vpack.c.b16 %v1103, %v1102
  %v1181 = vpack.c.b16 %v1105, %v1104
  %v1182 = vpack.c.b16 %v1107, %v1106
  %v1183 = vpack.c.b16 %v1109, %v1108
  %v1184 = vpack.c.b16 %v1111, %v1110
  %v1185 = vpack.c.b16 %v1113, %v1112
  %v1186 = vpack.c.b16 %v1115, %v1114
  %v1187 = vpack.c.b16 %v1117, %v1116
  %v1188 = vpack.c.b16 %v1119, %v1118
  %v1189 = vpack.c.b16 %v1121, %v1120
  %v1190 = vpack.c.b16 %v1123, %v1122
  %v1191 = vpack.c.b16 %v1125, %v1124
  %v1192 = vpack.c.b16 %v1127, %v1126
  %v1193 = vpack.c.b16 %v1129, %v1128
  %1258 = vmatpush.bf16.msra.mxu0 %v1137
  %1259 = vmatpush.bf16.msra.mxu0 %v1136
  %1260 = vmatpush.bf16.msra.mxu0 %v1135
  %1261 = vmatpush.bf16.msra.mxu0 %v1134
  %1262 = vmatpush.bf16.msra.mxu0 %v1133
  %1263 = vmatpush.bf16.msra.mxu0 %v1132
  %1264 = vmatpush.bf16.msra.mxu0 %v1131
  %1265 = vmatpush.bf16.msra.mxu0 %v1130
  %1266 = vmatmul.bf16.gmra.mxu0 %v650
  %v1267 = vpop.f32.mrf.mxu0
  %v1268 = vadd.f32 0.0, %v1267
  %v1269 = vpop.f32.mrf.mxu0
  %v1270 = vadd.f32 0.0, %v1269
  %1271 = vmatmul.bf16.gmra.mxu0 %v658
  %v1272 = vpop.f32.mrf.mxu0
  %v1273 = vadd.f32 0.0, %v1272
  %v1274 = vpop.f32.mrf.mxu0
  %v1275 = vadd.f32 0.0, %v1274
  %1276 = vmatmul.bf16.gmra.mxu0 %v666
  %v1277 = vpop.f32.mrf.mxu0
  %v1278 = vadd.f32 0.0, %v1277
  %v1279 = vpop.f32.mrf.mxu0
  %v1280 = vadd.f32 0.0, %v1279
  %1281 = vmatmul.bf16.gmra.mxu0 %v674
  %v1282 = vpop.f32.mrf.mxu0
  %v1283 = vadd.f32 0.0, %v1282
  %v1284 = vpop.f32.mrf.mxu0
  %v1285 = vadd.f32 0.0, %v1284
  %1286 = vmatmul.bf16.gmra.mxu0 %v682
  %v1287 = vpop.f32.mrf.mxu0
  %v1288 = vadd.f32 0.0, %v1287
  %v1289 = vpop.f32.mrf.mxu0
  %v1290 = vadd.f32 0.0, %v1289
  %1291 = vmatmul.bf16.gmra.mxu0 %v690
  %v1292 = vpop.f32.mrf.mxu0
  %v1293 = vadd.f32 0.0, %v1292
  %v1294 = vpop.f32.mrf.mxu0
  %v1295 = vadd.f32 0.0, %v1294
  %1296 = vmatmul.bf16.gmra.mxu0 %v698
  %v1297 = vpop.f32.mrf.mxu0
  %v1298 = vadd.f32 0.0, %v1297
  %v1299 = vpop.f32.mrf.mxu0
  %v1300 = vadd.f32 0.0, %v1299
  %1301 = vmatmul.bf16.gmra.mxu0 %v706
  %v1302 = vpop.f32.mrf.mxu0
  %v1303 = vadd.f32 0.0, %v1302
  %v1304 = vpop.f32.mrf.mxu0
  %v1305 = vadd.f32 0.0, %v1304
  %1306 = vmatmul.bf16.gmra.mxu0 %v714
  %v1307 = vpop.f32.mrf.mxu0
  %v1308 = vadd.f32 0.0, %v1307
  %v1309 = vpop.f32.mrf.mxu0
  %v1310 = vadd.f32 0.0, %v1309
  %1311 = vmatmul.bf16.gmra.mxu0 %v722
  %v1312 = vpop.f32.mrf.mxu0
  %v1313 = vadd.f32 0.0, %v1312
  %v1314 = vpop.f32.mrf.mxu0
  %v1315 = vadd.f32 0.0, %v1314
  %1316 = vmatmul.bf16.gmra.mxu0 %v730
  %v1317 = vpop.f32.mrf.mxu0
  %v1318 = vadd.f32 0.0, %v1317
  %v1319 = vpop.f32.mrf.mxu0
  %v1320 = vadd.f32 0.0, %v1319
  %1321 = vmatmul.bf16.gmra.mxu0 %v738
  %v1322 = vpop.f32.mrf.mxu0
  %v1323 = vadd.f32 0.0, %v1322
  %v1324 = vpop.f32.mrf.mxu0
  %v1325 = vadd.f32 0.0, %v1324
  %1326 = vmatmul.bf16.gmra.mxu0 %v746
  %v1327 = vpop.f32.mrf.mxu0
  %v1328 = vadd.f32 0.0, %v1327
  %v1329 = vpop.f32.mrf.mxu0
  %v1330 = vadd.f32 0.0, %v1329
  %1331 = vmatmul.bf16.gmra.mxu0 %v754
  %v1332 = vpop.f32.mrf.mxu0
  %v1333 = vadd.f32 0.0, %v1332
  %v1334 = vpop.f32.mrf.mxu0
  %v1335 = vadd.f32 0.0, %v1334
  %1336 = vdwg.mxu0
  %1337 = vmatpush.bf16.msra.mxu0 %v1145
  %1338 = vmatpush.bf16.msra.mxu0 %v1144
  %1339 = vmatpush.bf16.msra.mxu0 %v1143
  %1340 = vmatpush.bf16.msra.mxu0 %v1142
  %1341 = vmatpush.bf16.msra.mxu0 %v1141
  %1342 = vmatpush.bf16.msra.mxu0 %v1140
  %1343 = vmatpush.bf16.msra.mxu0 %v1139
  %1344 = vmatpush.bf16.msra.mxu0 %v1138
  %1345 = vmatmul.bf16.gmra.mxu0 %v651
  %v1346 = vpop.f32.mrf.mxu0
  %v1347 = vadd.f32 %v1268, %v1346
  %v1348 = vpop.f32.mrf.mxu0
  %v1349 = vadd.f32 %v1270, %v1348
  %1350 = vmatmul.bf16.gmra.mxu0 %v659
  %v1351 = vpop.f32.mrf.mxu0
  %v1352 = vadd.f32 %v1273, %v1351
  %v1353 = vpop.f32.mrf.mxu0
  %v1354 = vadd.f32 %v1275, %v1353
  %1355 = vmatmul.bf16.gmra.mxu0 %v667
  %v1356 = vpop.f32.mrf.mxu0
  %v1357 = vadd.f32 %v1278, %v1356
  %v1358 = vpop.f32.mrf.mxu0
  %v1359 = vadd.f32 %v1280, %v1358
  %1360 = vmatmul.bf16.gmra.mxu0 %v675
  %v1361 = vpop.f32.mrf.mxu0
  %v1362 = vadd.f32 %v1283, %v1361
  %v1363 = vpop.f32.mrf.mxu0
  %v1364 = vadd.f32 %v1285, %v1363
  %1365 = vmatmul.bf16.gmra.mxu0 %v683
  %v1366 = vpop.f32.mrf.mxu0
  %v1367 = vadd.f32 %v1288, %v1366
  %v1368 = vpop.f32.mrf.mxu0
  %v1369 = vadd.f32 %v1290, %v1368
  %1370 = vmatmul.bf16.gmra.mxu0 %v691
  %v1371 = vpop.f32.mrf.mxu0
  %v1372 = vadd.f32 %v1293, %v1371
  %v1373 = vpop.f32.mrf.mxu0
  %v1374 = vadd.f32 %v1295, %v1373
  %1375 = vmatmul.bf16.gmra.mxu0 %v699
  %v1376 = vpop.f32.mrf.mxu0
  %v1377 = vadd.f32 %v1298, %v1376
  %v1378 = vpop.f32.mrf.mxu0
  %v1379 = vadd.f32 %v1300, %v1378
  %1380 = vmatmul.bf16.gmra.mxu0 %v707
  %v1381 = vpop.f32.mrf.mxu0
  %v1382 = vadd.f32 %v1303, %v1381
  %v1383 = vpop.f32.mrf.mxu0
  %v1384 = vadd.f32 %v1305, %v1383
  %1385 = vmatmul.bf16.gmra.mxu0 %v715
  %v1386 = vpop.f32.mrf.mxu0
  %v1387 = vadd.f32 %v1308, %v1386
  %v1388 = vpop.f32.mrf.mxu0
  %v1389 = vadd.f32 %v1310, %v1388
  %1390 = vmatmul.bf16.gmra.mxu0 %v723
  %v1391 = vpop.f32.mrf.mxu0
  %v1392 = vadd.f32 %v1313, %v1391
  %v1393 = vpop.f32.mrf.mxu0
  %v1394 = vadd.f32 %v1315, %v1393
  %1395 = vmatmul.bf16.gmra.mxu0 %v731
  %v1396 = vpop.f32.mrf.mxu0
  %v1397 = vadd.f32 %v1318, %v1396
  %v1398 = vpop.f32.mrf.mxu0
  %v1399 = vadd.f32 %v1320, %v1398
  %1400 = vmatmul.bf16.gmra.mxu0 %v739
  %v1401 = vpop.f32.mrf.mxu0
  %v1402 = vadd.f32 %v1323, %v1401
  %v1403 = vpop.f32.mrf.mxu0
  %v1404 = vadd.f32 %v1325, %v1403
  %1405 = vmatmul.bf16.gmra.mxu0 %v747
  %v1406 = vpop.f32.mrf.mxu0
  %v1407 = vadd.f32 %v1328, %v1406
  %v1408 = vpop.f32.mrf.mxu0
  %v1409 = vadd.f32 %v1330, %v1408
  %1410 = vmatmul.bf16.gmra.mxu0 %v755
  %v1411 = vpop.f32.mrf.mxu0
  %v1412 = vadd.f32 %v1333, %v1411
  %v1413 = vpop.f32.mrf.mxu0
  %v1414 = vadd.f32 %v1335, %v1413
  %1415 = vdwg.mxu0
  %1416 = vmatpush.bf16.msra.mxu0 %v1153
  %1417 = vmatpush.bf16.msra.mxu0 %v1152
  %1418 = vmatpush.bf16.msra.mxu0 %v1151
  %1419 = vmatpush.bf16.msra.mxu0 %v1150
  %1420 = vmatpush.bf16.msra.mxu0 %v1149
  %1421 = vmatpush.bf16.msra.mxu0 %v1148
  %1422 = vmatpush.bf16.msra.mxu0 %v1147
  %1423 = vmatpush.bf16.msra.mxu0 %v1146
  %1424 = vmatmul.bf16.gmra.mxu0 %v652
  %v1425 = vpop.f32.mrf.mxu0
  %v1426 = vadd.f32 %v1347, %v1425
  %v1427 = vpop.f32.mrf.mxu0
  %v1428 = vadd.f32 %v1349, %v1427
  %1429 = vmatmul.bf16.gmra.mxu0 %v660
  %v1430 = vpop.f32.mrf.mxu0
  %v1431 = vadd.f32 %v1352, %v1430
  %v1432 = vpop.f32.mrf.mxu0
  %v1433 = vadd.f32 %v1354, %v1432
  %1434 = vmatmul.bf16.gmra.mxu0 %v668
  %v1435 = vpop.f32.mrf.mxu0
  %v1436 = vadd.f32 %v1357, %v1435
  %v1437 = vpop.f32.mrf.mxu0
  %v1438 = vadd.f32 %v1359, %v1437
  %1439 = vmatmul.bf16.gmra.mxu0 %v676
  %v1440 = vpop.f32.mrf.mxu0
  %v1441 = vadd.f32 %v1362, %v1440
  %v1442 = vpop.f32.mrf.mxu0
  %v1443 = vadd.f32 %v1364, %v1442
  %1444 = vmatmul.bf16.gmra.mxu0 %v684
  %v1445 = vpop.f32.mrf.mxu0
  %v1446 = vadd.f32 %v1367, %v1445
  %v1447 = vpop.f32.mrf.mxu0
  %v1448 = vadd.f32 %v1369, %v1447
  %1449 = vmatmul.bf16.gmra.mxu0 %v692
  %v1450 = vpop.f32.mrf.mxu0
  %v1451 = vadd.f32 %v1372, %v1450
  %v1452 = vpop.f32.mrf.mxu0
  %v1453 = vadd.f32 %v1374, %v1452
  %1454 = vmatmul.bf16.gmra.mxu0 %v700
  %v1455 = vpop.f32.mrf.mxu0
  %v1456 = vadd.f32 %v1377, %v1455
  %v1457 = vpop.f32.mrf.mxu0
  %v1458 = vadd.f32 %v1379, %v1457
  %1459 = vmatmul.bf16.gmra.mxu0 %v708
  %v1460 = vpop.f32.mrf.mxu0
  %v1461 = vadd.f32 %v1382, %v1460
  %v1462 = vpop.f32.mrf.mxu0
  %v1463 = vadd.f32 %v1384, %v1462
  %1464 = vmatmul.bf16.gmra.mxu0 %v716
  %v1465 = vpop.f32.mrf.mxu0
  %v1466 = vadd.f32 %v1387, %v1465
  %v1467 = vpop.f32.mrf.mxu0
  %v1468 = vadd.f32 %v1389, %v1467
  %1469 = vmatmul.bf16.gmra.mxu0 %v724
  %v1470 = vpop.f32.mrf.mxu0
  %v1471 = vadd.f32 %v1392, %v1470
  %v1472 = vpop.f32.mrf.mxu0
  %v1473 = vadd.f32 %v1394, %v1472
  %1474 = vmatmul.bf16.gmra.mxu0 %v732
  %v1475 = vpop.f32.mrf.mxu0
  %v1476 = vadd.f32 %v1397, %v1475
  %v1477 = vpop.f32.mrf.mxu0
  %v1478 = vadd.f32 %v1399, %v1477
  %1479 = vmatmul.bf16.gmra.mxu0 %v740
  %v1480 = vpop.f32.mrf.mxu0
  %v1481 = vadd.f32 %v1402, %v1480
  %v1482 = vpop.f32.mrf.mxu0
  %v1483 = vadd.f32 %v1404, %v1482
  %1484 = vmatmul.bf16.gmra.mxu0 %v748
  %v1485 = vpop.f32.mrf.mxu0
  %v1486 = vadd.f32 %v1407, %v1485
  %v1487 = vpop.f32.mrf.mxu0
  %v1488 = vadd.f32 %v1409, %v1487
  %1489 = vmatmul.bf16.gmra.mxu0 %v756
  %v1490 = vpop.f32.mrf.mxu0
  %v1491 = vadd.f32 %v1412, %v1490
  %v1492 = vpop.f32.mrf.mxu0
  %v1493 = vadd.f32 %v1414, %v1492
  %1494 = vdwg.mxu0
  %1495 = vmatpush.bf16.msra.mxu0 %v1161
  %1496 = vmatpush.bf16.msra.mxu0 %v1160
  %1497 = vmatpush.bf16.msra.mxu0 %v1159
  %1498 = vmatpush.bf16.msra.mxu0 %v1158
  %1499 = vmatpush.bf16.msra.mxu0 %v1157
  %1500 = vmatpush.bf16.msra.mxu0 %v1156
  %1501 = vmatpush.bf16.msra.mxu0 %v1155
  %1502 = vmatpush.bf16.msra.mxu0 %v1154
  %1503 = vmatmul.bf16.gmra.mxu0 %v653
  %v1504 = vpop.f32.mrf.mxu0
  %v1505 = vadd.f32 %v1426, %v1504
  %v1506 = vpop.f32.mrf.mxu0
  %v1507 = vadd.f32 %v1428, %v1506
  %1508 = vmatmul.bf16.gmra.mxu0 %v661
  %v1509 = vpop.f32.mrf.mxu0
  %v1510 = vadd.f32 %v1431, %v1509
  %v1511 = vpop.f32.mrf.mxu0
  %v1512 = vadd.f32 %v1433, %v1511
  %1513 = vmatmul.bf16.gmra.mxu0 %v669
  %v1514 = vpop.f32.mrf.mxu0
  %v1515 = vadd.f32 %v1436, %v1514
  %v1516 = vpop.f32.mrf.mxu0
  %v1517 = vadd.f32 %v1438, %v1516
  %1518 = vmatmul.bf16.gmra.mxu0 %v677
  %v1519 = vpop.f32.mrf.mxu0
  %v1520 = vadd.f32 %v1441, %v1519
  %v1521 = vpop.f32.mrf.mxu0
  %v1522 = vadd.f32 %v1443, %v1521
  %1523 = vmatmul.bf16.gmra.mxu0 %v685
  %v1524 = vpop.f32.mrf.mxu0
  %v1525 = vadd.f32 %v1446, %v1524
  %v1526 = vpop.f32.mrf.mxu0
  %v1527 = vadd.f32 %v1448, %v1526
  %1528 = vmatmul.bf16.gmra.mxu0 %v693
  %v1529 = vpop.f32.mrf.mxu0
  %v1530 = vadd.f32 %v1451, %v1529
  %v1531 = vpop.f32.mrf.mxu0
  %v1532 = vadd.f32 %v1453, %v1531
  %1533 = vmatmul.bf16.gmra.mxu0 %v701
  %v1534 = vpop.f32.mrf.mxu0
  %v1535 = vadd.f32 %v1456, %v1534
  %v1536 = vpop.f32.mrf.mxu0
  %v1537 = vadd.f32 %v1458, %v1536
  %1538 = vmatmul.bf16.gmra.mxu0 %v709
  %v1539 = vpop.f32.mrf.mxu0
  %v1540 = vadd.f32 %v1461, %v1539
  %v1541 = vpop.f32.mrf.mxu0
  %v1542 = vadd.f32 %v1463, %v1541
  %1543 = vmatmul.bf16.gmra.mxu0 %v717
  %v1544 = vpop.f32.mrf.mxu0
  %v1545 = vadd.f32 %v1466, %v1544
  %v1546 = vpop.f32.mrf.mxu0
  %v1547 = vadd.f32 %v1468, %v1546
  %1548 = vmatmul.bf16.gmra.mxu0 %v725
  %v1549 = vpop.f32.mrf.mxu0
  %v1550 = vadd.f32 %v1471, %v1549
  %v1551 = vpop.f32.mrf.mxu0
  %v1552 = vadd.f32 %v1473, %v1551
  %1553 = vmatmul.bf16.gmra.mxu0 %v733
  %v1554 = vpop.f32.mrf.mxu0
  %v1555 = vadd.f32 %v1476, %v1554
  %v1556 = vpop.f32.mrf.mxu0
  %v1557 = vadd.f32 %v1478, %v1556
  %1558 = vmatmul.bf16.gmra.mxu0 %v741
  %v1559 = vpop.f32.mrf.mxu0
  %v1560 = vadd.f32 %v1481, %v1559
  %v1561 = vpop.f32.mrf.mxu0
  %v1562 = vadd.f32 %v1483, %v1561
  %1563 = vmatmul.bf16.gmra.mxu0 %v749
  %v1564 = vpop.f32.mrf.mxu0
  %v1565 = vadd.f32 %v1486, %v1564
  %v1566 = vpop.f32.mrf.mxu0
  %v1567 = vadd.f32 %v1488, %v1566
  %1568 = vmatmul.bf16.gmra.mxu0 %v757
  %v1569 = vpop.f32.mrf.mxu0
  %v1570 = vadd.f32 %v1491, %v1569
  %v1571 = vpop.f32.mrf.mxu0
  %v1572 = vadd.f32 %v1493, %v1571
  %1573 = vdwg.mxu0
  %1574 = vmatpush.bf16.msra.mxu0 %v1169
  %1575 = vmatpush.bf16.msra.mxu0 %v1168
  %1576 = vmatpush.bf16.msra.mxu0 %v1167
  %1577 = vmatpush.bf16.msra.mxu0 %v1166
  %1578 = vmatpush.bf16.msra.mxu0 %v1165
  %1579 = vmatpush.bf16.msra.mxu0 %v1164
  %1580 = vmatpush.bf16.msra.mxu0 %v1163
  %1581 = vmatpush.bf16.msra.mxu0 %v1162
  %1582 = vmatmul.bf16.gmra.mxu0 %v654
  %v1583 = vpop.f32.mrf.mxu0
  %v1584 = vadd.f32 %v1505, %v1583
  %v1585 = vpop.f32.mrf.mxu0
  %v1586 = vadd.f32 %v1507, %v1585
  %1587 = vmatmul.bf16.gmra.mxu0 %v662
  %v1588 = vpop.f32.mrf.mxu0
  %v1589 = vadd.f32 %v1510, %v1588
  %v1590 = vpop.f32.mrf.mxu0
  %v1591 = vadd.f32 %v1512, %v1590
  %1592 = vmatmul.bf16.gmra.mxu0 %v670
  %v1593 = vpop.f32.mrf.mxu0
  %v1594 = vadd.f32 %v1515, %v1593
  %v1595 = vpop.f32.mrf.mxu0
  %v1596 = vadd.f32 %v1517, %v1595
  %1597 = vmatmul.bf16.gmra.mxu0 %v678
  %v1598 = vpop.f32.mrf.mxu0
  %v1599 = vadd.f32 %v1520, %v1598
  %v1600 = vpop.f32.mrf.mxu0
  %v1601 = vadd.f32 %v1522, %v1600
  %1602 = vmatmul.bf16.gmra.mxu0 %v686
  %v1603 = vpop.f32.mrf.mxu0
  %v1604 = vadd.f32 %v1525, %v1603
  %v1605 = vpop.f32.mrf.mxu0
  %v1606 = vadd.f32 %v1527, %v1605
  %1607 = vmatmul.bf16.gmra.mxu0 %v694
  %v1608 = vpop.f32.mrf.mxu0
  %v1609 = vadd.f32 %v1530, %v1608
  %v1610 = vpop.f32.mrf.mxu0
  %v1611 = vadd.f32 %v1532, %v1610
  %1612 = vmatmul.bf16.gmra.mxu0 %v702
  %v1613 = vpop.f32.mrf.mxu0
  %v1614 = vadd.f32 %v1535, %v1613
  %v1615 = vpop.f32.mrf.mxu0
  %v1616 = vadd.f32 %v1537, %v1615
  %1617 = vmatmul.bf16.gmra.mxu0 %v710
  %v1618 = vpop.f32.mrf.mxu0
  %v1619 = vadd.f32 %v1540, %v1618
  %v1620 = vpop.f32.mrf.mxu0
  %v1621 = vadd.f32 %v1542, %v1620
  %1622 = vmatmul.bf16.gmra.mxu0 %v718
  %v1623 = vpop.f32.mrf.mxu0
  %v1624 = vadd.f32 %v1545, %v1623
  %v1625 = vpop.f32.mrf.mxu0
  %v1626 = vadd.f32 %v1547, %v1625
  %1627 = vmatmul.bf16.gmra.mxu0 %v726
  %v1628 = vpop.f32.mrf.mxu0
  %v1629 = vadd.f32 %v1550, %v1628
  %v1630 = vpop.f32.mrf.mxu0
  %v1631 = vadd.f32 %v1552, %v1630
  %1632 = vmatmul.bf16.gmra.mxu0 %v734
  %v1633 = vpop.f32.mrf.mxu0
  %v1634 = vadd.f32 %v1555, %v1633
  %v1635 = vpop.f32.mrf.mxu0
  %v1636 = vadd.f32 %v1557, %v1635
  %1637 = vmatmul.bf16.gmra.mxu0 %v742
  %v1638 = vpop.f32.mrf.mxu0
  %v1639 = vadd.f32 %v1560, %v1638
  %v1640 = vpop.f32.mrf.mxu0
  %v1641 = vadd.f32 %v1562, %v1640
  %1642 = vmatmul.bf16.gmra.mxu0 %v750
  %v1643 = vpop.f32.mrf.mxu0
  %v1644 = vadd.f32 %v1565, %v1643
  %v1645 = vpop.f32.mrf.mxu0
  %v1646 = vadd.f32 %v1567, %v1645
  %1647 = vmatmul.bf16.gmra.mxu0 %v758
  %v1648 = vpop.f32.mrf.mxu0
  %v1649 = vadd.f32 %v1570, %v1648
  %v1650 = vpop.f32.mrf.mxu0
  %v1651 = vadd.f32 %v1572, %v1650
  %1652 = vdwg.mxu0
  %1653 = vmatpush.bf16.msra.mxu0 %v1177
  %1654 = vmatpush.bf16.msra.mxu0 %v1176
  %1655 = vmatpush.bf16.msra.mxu0 %v1175
  %1656 = vmatpush.bf16.msra.mxu0 %v1174
  %1657 = vmatpush.bf16.msra.mxu0 %v1173
  %1658 = vmatpush.bf16.msra.mxu0 %v1172
  %1659 = vmatpush.bf16.msra.mxu0 %v1171
  %1660 = vmatpush.bf16.msra.mxu0 %v1170
  %1661 = vmatmul.bf16.gmra.mxu0 %v655
  %v1662 = vpop.f32.mrf.mxu0
  %v1663 = vadd.f32 %v1584, %v1662
  %v1664 = vpop.f32.mrf.mxu0
  %v1665 = vadd.f32 %v1586, %v1664
  %1666 = vmatmul.bf16.gmra.mxu0 %v663
  %v1667 = vpop.f32.mrf.mxu0
  %v1668 = vadd.f32 %v1589, %v1667
  %v1669 = vpop.f32.mrf.mxu0
  %v1670 = vadd.f32 %v1591, %v1669
  %1671 = vmatmul.bf16.gmra.mxu0 %v671
  %v1672 = vpop.f32.mrf.mxu0
  %v1673 = vadd.f32 %v1594, %v1672
  %v1674 = vpop.f32.mrf.mxu0
  %v1675 = vadd.f32 %v1596, %v1674
  %1676 = vmatmul.bf16.gmra.mxu0 %v679
  %v1677 = vpop.f32.mrf.mxu0
  %v1678 = vadd.f32 %v1599, %v1677
  %v1679 = vpop.f32.mrf.mxu0
  %v1680 = vadd.f32 %v1601, %v1679
  %1681 = vmatmul.bf16.gmra.mxu0 %v687
  %v1682 = vpop.f32.mrf.mxu0
  %v1683 = vadd.f32 %v1604, %v1682
  %v1684 = vpop.f32.mrf.mxu0
  %v1685 = vadd.f32 %v1606, %v1684
  %1686 = vmatmul.bf16.gmra.mxu0 %v695
  %v1687 = vpop.f32.mrf.mxu0
  %v1688 = vadd.f32 %v1609, %v1687
  %v1689 = vpop.f32.mrf.mxu0
  %v1690 = vadd.f32 %v1611, %v1689
  %1691 = vmatmul.bf16.gmra.mxu0 %v703
  %v1692 = vpop.f32.mrf.mxu0
  %v1693 = vadd.f32 %v1614, %v1692
  %v1694 = vpop.f32.mrf.mxu0
  %v1695 = vadd.f32 %v1616, %v1694
  %1696 = vmatmul.bf16.gmra.mxu0 %v711
  %v1697 = vpop.f32.mrf.mxu0
  %v1698 = vadd.f32 %v1619, %v1697
  %v1699 = vpop.f32.mrf.mxu0
  %v1700 = vadd.f32 %v1621, %v1699
  %1701 = vmatmul.bf16.gmra.mxu0 %v719
  %v1702 = vpop.f32.mrf.mxu0
  %v1703 = vadd.f32 %v1624, %v1702
  %v1704 = vpop.f32.mrf.mxu0
  %v1705 = vadd.f32 %v1626, %v1704
  %1706 = vmatmul.bf16.gmra.mxu0 %v727
  %v1707 = vpop.f32.mrf.mxu0
  %v1708 = vadd.f32 %v1629, %v1707
  %v1709 = vpop.f32.mrf.mxu0
  %v1710 = vadd.f32 %v1631, %v1709
  %1711 = vmatmul.bf16.gmra.mxu0 %v735
  %v1712 = vpop.f32.mrf.mxu0
  %v1713 = vadd.f32 %v1634, %v1712
  %v1714 = vpop.f32.mrf.mxu0
  %v1715 = vadd.f32 %v1636, %v1714
  %1716 = vmatmul.bf16.gmra.mxu0 %v743
  %v1717 = vpop.f32.mrf.mxu0
  %v1718 = vadd.f32 %v1639, %v1717
  %v1719 = vpop.f32.mrf.mxu0
  %v1720 = vadd.f32 %v1641, %v1719
  %1721 = vmatmul.bf16.gmra.mxu0 %v751
  %v1722 = vpop.f32.mrf.mxu0
  %v1723 = vadd.f32 %v1644, %v1722
  %v1724 = vpop.f32.mrf.mxu0
  %v1725 = vadd.f32 %v1646, %v1724
  %1726 = vmatmul.bf16.gmra.mxu0 %v759
  %v1727 = vpop.f32.mrf.mxu0
  %v1728 = vadd.f32 %v1649, %v1727
  %v1729 = vpop.f32.mrf.mxu0
  %v1730 = vadd.f32 %v1651, %v1729
  %1731 = vdwg.mxu0
  %1732 = vmatpush.bf16.msra.mxu0 %v1185
  %1733 = vmatpush.bf16.msra.mxu0 %v1184
  %1734 = vmatpush.bf16.msra.mxu0 %v1183
  %1735 = vmatpush.bf16.msra.mxu0 %v1182
  %1736 = vmatpush.bf16.msra.mxu0 %v1181
  %1737 = vmatpush.bf16.msra.mxu0 %v1180
  %1738 = vmatpush.bf16.msra.mxu0 %v1179
  %1739 = vmatpush.bf16.msra.mxu0 %v1178
  %1740 = vmatmul.bf16.gmra.mxu0 %v656
  %v1741 = vpop.f32.mrf.mxu0
  %v1742 = vadd.f32 %v1663, %v1741
  %v1743 = vpop.f32.mrf.mxu0
  %v1744 = vadd.f32 %v1665, %v1743
  %1745 = vmatmul.bf16.gmra.mxu0 %v664
  %v1746 = vpop.f32.mrf.mxu0
  %v1747 = vadd.f32 %v1668, %v1746
  %v1748 = vpop.f32.mrf.mxu0
  %v1749 = vadd.f32 %v1670, %v1748
  %1750 = vmatmul.bf16.gmra.mxu0 %v672
  %v1751 = vpop.f32.mrf.mxu0
  %v1752 = vadd.f32 %v1673, %v1751
  %v1753 = vpop.f32.mrf.mxu0
  %v1754 = vadd.f32 %v1675, %v1753
  %1755 = vmatmul.bf16.gmra.mxu0 %v680
  %v1756 = vpop.f32.mrf.mxu0
  %v1757 = vadd.f32 %v1678, %v1756
  %v1758 = vpop.f32.mrf.mxu0
  %v1759 = vadd.f32 %v1680, %v1758
  %1760 = vmatmul.bf16.gmra.mxu0 %v688
  %v1761 = vpop.f32.mrf.mxu0
  %v1762 = vadd.f32 %v1683, %v1761
  %v1763 = vpop.f32.mrf.mxu0
  %v1764 = vadd.f32 %v1685, %v1763
  %1765 = vmatmul.bf16.gmra.mxu0 %v696
  %v1766 = vpop.f32.mrf.mxu0
  %v1767 = vadd.f32 %v1688, %v1766
  %v1768 = vpop.f32.mrf.mxu0
  %v1769 = vadd.f32 %v1690, %v1768
  %1770 = vmatmul.bf16.gmra.mxu0 %v704
  %v1771 = vpop.f32.mrf.mxu0
  %v1772 = vadd.f32 %v1693, %v1771
  %v1773 = vpop.f32.mrf.mxu0
  %v1774 = vadd.f32 %v1695, %v1773
  %1775 = vmatmul.bf16.gmra.mxu0 %v712
  %v1776 = vpop.f32.mrf.mxu0
  %v1777 = vadd.f32 %v1698, %v1776
  %v1778 = vpop.f32.mrf.mxu0
  %v1779 = vadd.f32 %v1700, %v1778
  %1780 = vmatmul.bf16.gmra.mxu0 %v720
  %v1781 = vpop.f32.mrf.mxu0
  %v1782 = vadd.f32 %v1703, %v1781
  %v1783 = vpop.f32.mrf.mxu0
  %v1784 = vadd.f32 %v1705, %v1783
  %1785 = vmatmul.bf16.gmra.mxu0 %v728
  %v1786 = vpop.f32.mrf.mxu0
  %v1787 = vadd.f32 %v1708, %v1786
  %v1788 = vpop.f32.mrf.mxu0
  %v1789 = vadd.f32 %v1710, %v1788
  %1790 = vmatmul.bf16.gmra.mxu0 %v736
  %v1791 = vpop.f32.mrf.mxu0
  %v1792 = vadd.f32 %v1713, %v1791
  %v1793 = vpop.f32.mrf.mxu0
  %v1794 = vadd.f32 %v1715, %v1793
  %1795 = vmatmul.bf16.gmra.mxu0 %v744
  %v1796 = vpop.f32.mrf.mxu0
  %v1797 = vadd.f32 %v1718, %v1796
  %v1798 = vpop.f32.mrf.mxu0
  %v1799 = vadd.f32 %v1720, %v1798
  %1800 = vmatmul.bf16.gmra.mxu0 %v752
  %v1801 = vpop.f32.mrf.mxu0
  %v1802 = vadd.f32 %v1723, %v1801
  %v1803 = vpop.f32.mrf.mxu0
  %v1804 = vadd.f32 %v1725, %v1803
  %1805 = vmatmul.bf16.gmra.mxu0 %v760
  %v1806 = vpop.f32.mrf.mxu0
  %v1807 = vadd.f32 %v1728, %v1806
  %v1808 = vpop.f32.mrf.mxu0
  %v1809 = vadd.f32 %v1730, %v1808
  %1810 = vdwg.mxu0
  %1811 = vmatpush.bf16.msra.mxu0 %v1193
  %1812 = vmatpush.bf16.msra.mxu0 %v1192
  %1813 = vmatpush.bf16.msra.mxu0 %v1191
  %1814 = vmatpush.bf16.msra.mxu0 %v1190
  %1815 = vmatpush.bf16.msra.mxu0 %v1189
  %1816 = vmatpush.bf16.msra.mxu0 %v1188
  %1817 = vmatpush.bf16.msra.mxu0 %v1187
  %1818 = vmatpush.bf16.msra.mxu0 %v1186
  %1819 = vmatmul.bf16.gmra.mxu0 %v657
  %v1820 = vpop.f32.mrf.mxu0
  %v1821 = vadd.f32 %v1742, %v1820
  %v1822 = vpop.f32.mrf.mxu0
  %v1823 = vadd.f32 %v1744, %v1822
  %1824 = vmatmul.bf16.gmra.mxu0 %v665
  %v1825 = vpop.f32.mrf.mxu0
  %v1826 = vadd.f32 %v1747, %v1825
  %v1827 = vpop.f32.mrf.mxu0
  %v1828 = vadd.f32 %v1749, %v1827
  %1829 = vmatmul.bf16.gmra.mxu0 %v673
  %v1830 = vpop.f32.mrf.mxu0
  %v1831 = vadd.f32 %v1752, %v1830
  %v1832 = vpop.f32.mrf.mxu0
  %v1833 = vadd.f32 %v1754, %v1832
  %1834 = vmatmul.bf16.gmra.mxu0 %v681
  %v1835 = vpop.f32.mrf.mxu0
  %v1836 = vadd.f32 %v1757, %v1835
  %v1837 = vpop.f32.mrf.mxu0
  %v1838 = vadd.f32 %v1759, %v1837
  %1839 = vmatmul.bf16.gmra.mxu0 %v689
  %v1840 = vpop.f32.mrf.mxu0
  %v1841 = vadd.f32 %v1762, %v1840
  %v1842 = vpop.f32.mrf.mxu0
  %v1843 = vadd.f32 %v1764, %v1842
  %1844 = vmatmul.bf16.gmra.mxu0 %v697
  %v1845 = vpop.f32.mrf.mxu0
  %v1846 = vadd.f32 %v1767, %v1845
  %v1847 = vpop.f32.mrf.mxu0
  %v1848 = vadd.f32 %v1769, %v1847
  %1849 = vmatmul.bf16.gmra.mxu0 %v705
  %v1850 = vpop.f32.mrf.mxu0
  %v1851 = vadd.f32 %v1772, %v1850
  %v1852 = vpop.f32.mrf.mxu0
  %v1853 = vadd.f32 %v1774, %v1852
  %1854 = vmatmul.bf16.gmra.mxu0 %v713
  %v1855 = vpop.f32.mrf.mxu0
  %v1856 = vadd.f32 %v1777, %v1855
  %v1857 = vpop.f32.mrf.mxu0
  %v1858 = vadd.f32 %v1779, %v1857
  %1859 = vmatmul.bf16.gmra.mxu0 %v721
  %v1860 = vpop.f32.mrf.mxu0
  %v1861 = vadd.f32 %v1782, %v1860
  %v1862 = vpop.f32.mrf.mxu0
  %v1863 = vadd.f32 %v1784, %v1862
  %1864 = vmatmul.bf16.gmra.mxu0 %v729
  %v1865 = vpop.f32.mrf.mxu0
  %v1866 = vadd.f32 %v1787, %v1865
  %v1867 = vpop.f32.mrf.mxu0
  %v1868 = vadd.f32 %v1789, %v1867
  %1869 = vmatmul.bf16.gmra.mxu0 %v737
  %v1870 = vpop.f32.mrf.mxu0
  %v1871 = vadd.f32 %v1792, %v1870
  %v1872 = vpop.f32.mrf.mxu0
  %v1873 = vadd.f32 %v1794, %v1872
  %1874 = vmatmul.bf16.gmra.mxu0 %v745
  %v1875 = vpop.f32.mrf.mxu0
  %v1876 = vadd.f32 %v1797, %v1875
  %v1877 = vpop.f32.mrf.mxu0
  %v1878 = vadd.f32 %v1799, %v1877
  %1879 = vmatmul.bf16.gmra.mxu0 %v753
  %v1880 = vpop.f32.mrf.mxu0
  %v1881 = vadd.f32 %v1802, %v1880
  %v1882 = vpop.f32.mrf.mxu0
  %v1883 = vadd.f32 %v1804, %v1882
  %1884 = vmatmul.bf16.gmra.mxu0 %v761
  %v1885 = vpop.f32.mrf.mxu0
  %v1886 = vadd.f32 %v1807, %v1885
  %v1887 = vpop.f32.mrf.mxu0
  %v1888 = vadd.f32 %v1809, %v1887
  %1889 = vdwg.mxu0
  %v1890 = vadd.f32 %v46, %v1821
  %v1891 = vadd.f32 %v47, %v1823
  %v1892 = vadd.f32 %v48, %v1826
  %v1893 = vadd.f32 %v49, %v1828
  %v1894 = vadd.f32 %v50, %v1831
  %v1895 = vadd.f32 %v51, %v1833
  %v1896 = vadd.f32 %v52, %v1836
  %v1897 = vadd.f32 %v53, %v1838
  %v1898 = vadd.f32 %v54, %v1841
  %v1899 = vadd.f32 %v55, %v1843
  %v1900 = vadd.f32 %v56, %v1846
  %v1901 = vadd.f32 %v57, %v1848
  %v1902 = vadd.f32 %v58, %v1851
  %v1903 = vadd.f32 %v59, %v1853
  %v1904 = vadd.f32 %v60, %v1856
  %v1905 = vadd.f32 %v61, %v1858
  %v1906 = vadd.f32 %v62, %v1861
  %v1907 = vadd.f32 %v63, %v1863
  %v1908 = vadd.f32 %v64, %v1866
  %v1909 = vadd.f32 %v65, %v1868
  %v1910 = vadd.f32 %v66, %v1871
  %v1911 = vadd.f32 %v67, %v1873
  %v1912 = vadd.f32 %v68, %v1876
  %v1913 = vadd.f32 %v69, %v1878
  %v1914 = vadd.f32 %v70, %v1881
  %v1915 = vadd.f32 %v71, %v1883
  %v1916 = vadd.f32 %v72, %v1886
  %v1917 = vadd.f32 %v73, %v1888
  %vm1918 = vcmask 130048
  %1919 = vst.msk [vmem:[#allocation2] sm:$0xff] %vm1918, %v1890
  %1920 = vst.msk [vmem:[#allocation2 + $0x8] sm:$0xff] %vm1918, %v1891
  %1921 = vst.msk [vmem:[#allocation2 + $0x10] sm:$0xff] %vm1918, %v1892
  %1922 = vst.msk [vmem:[#allocation2 + $0x18] sm:$0xff] %vm1918, %v1893
  %1923 = vst.msk [vmem:[#allocation2 + $0x20] sm:$0xff] %vm1918, %v1894
  %1924 = vst.msk [vmem:[#allocation2 + $0x28] sm:$0xff] %vm1918, %v1895
  %1925 = vst.msk [vmem:[#allocation2 + $0x30] sm:$0xff] %vm1918, %v1896
  %1926 = vst.msk [vmem:[#allocation2 + $0x38] sm:$0xff] %vm1918, %v1897
  %1927 = vst.msk [vmem:[#allocation2 + $0x40] sm:$0xff] %vm1918, %v1898
  %1928 = vst.msk [vmem:[#allocation2 + $0x48] sm:$0xff] %vm1918, %v1899
  %1929 = vst.msk [vmem:[#allocation2 + $0x50] sm:$0xff] %vm1918, %v1900
  %1930 = vst.msk [vmem:[#allocation2 + $0x58] sm:$0xff] %vm1918, %v1901
  %1931 = vst.msk [vmem:[#allocation2 + $0x60] sm:$0xff] %vm1918, %v1902
  %1932 = vst.msk [vmem:[#allocation2 + $0x68] sm:$0xff] %vm1918, %v1903
  %1933 = vst.msk [vmem:[#allocation2 + $0x70] sm:$0xff] %vm1918, %v1904
  %1934 = vst.msk [vmem:[#allocation2 + $0x78] sm:$0xff] %vm1918, %v1905
  %1935 = vst.msk [vmem:[#allocation2 + $0x80] sm:$0xff] %vm1918, %v1906
  %1936 = vst.msk [vmem:[#allocation2 + $0x88] sm:$0xff] %vm1918, %v1907
  %1937 = vst.msk [vmem:[#allocation2 + $0x90] sm:$0xff] %vm1918, %v1908
  %1938 = vst.msk [vmem:[#allocation2 + $0x98] sm:$0xff] %vm1918, %v1909
  %1939 = vst.msk [vmem:[#allocation2 + $0xa0] sm:$0xff] %vm1918, %v1910
  %1940 = vst.msk [vmem:[#allocation2 + $0xa8] sm:$0xff] %vm1918, %v1911
  %1941 = vst.msk [vmem:[#allocation2 + $0xb0] sm:$0xff] %vm1918, %v1912
  %1942 = vst.msk [vmem:[#allocation2 + $0xb8] sm:$0xff] %vm1918, %v1913
  %1943 = vst.msk [vmem:[#allocation2 + $0xc0] sm:$0xff] %vm1918, %v1914
  %1944 = vst.msk [vmem:[#allocation2 + $0xc8] sm:$0xff] %vm1918, %v1915
  %1945 = vst.msk [vmem:[#allocation2 + $0xd0] sm:$0xff] %vm1918, %v1916
  %1946 = vst.msk [vmem:[#allocation2 + $0xd8] sm:$0xff] %vm1918, %v1917
  // Predicated region
  $region14: #{hcnet_forward.29} parent=0 // pred_check
    %p1947 = pneg %p13
  $region15: #{hcnet_forward.29} parent=0 // pred_check_branch
    %1949 = sbr.rel (%p1947) target = $region17
  $region16: #{hcnet_forward.29} parent=0 // pred_region
    %v1950 = vld [vmem:[#allocation2] sm:$0xff]
    %v1951 = vld [vmem:[#allocation2 + $0x8] sm:$0xff]
    %v1952 = vld [vmem:[#allocation2 + $0x10] sm:$0xff]
    %v1953 = vld [vmem:[#allocation2 + $0x18] sm:$0xff]
    %v1954 = vld [vmem:[#allocation2 + $0x20] sm:$0xff]
    %v1955 = vld [vmem:[#allocation2 + $0x28] sm:$0xff]
    %v1956 = vld [vmem:[#allocation2 + $0x30] sm:$0xff]
    %v1957 = vld [vmem:[#allocation2 + $0x38] sm:$0xff]
    %v1958 = vld [vmem:[#allocation2 + $0x40] sm:$0xff]
    %v1959 = vld [vmem:[#allocation2 + $0x48] sm:$0xff]
    %v1960 = vld [vmem:[#allocation2 + $0x50] sm:$0xff]
    %v1961 = vld [vmem:[#allocation2 + $0x58] sm:$0xff]
    %v1962 = vld [vmem:[#allocation2 + $0x60] sm:$0xff]
    %v1963 = vld [vmem:[#allocation2 + $0x68] sm:$0xff]
    %v1964 = vld [vmem:[#allocation2 + $0x70] sm:$0xff]
    %v1965 = vld [vmem:[#allocation2 + $0x78] sm:$0xff]
    %v1966 = vld [vmem:[#allocation2 + $0x80] sm:$0xff]
    %v1967 = vld [vmem:[#allocation2 + $0x88] sm:$0xff]
    %v1968 = vld [vmem:[#allocation2 + $0x90] sm:$0xff]
    %v1969 = vld [vmem:[#allocation2 + $0x98] sm:$0xff]
    %v1970 = vld [vmem:[#allocation2 + $0xa0] sm:$0xff]
    %v1971 = vld [vmem:[#allocation2 + $0xa8] sm:$0xff]
    %v1972 = vld [vmem:[#allocation2 + $0xb0] sm:$0xff]
    %v1973 = vld [vmem:[#allocation2 + $0xb8] sm:$0xff]
    %v1974 = vld [vmem:[#allocation2 + $0xc0] sm:$0xff]
    %v1975 = vld [vmem:[#allocation2 + $0xc8] sm:$0xff]
    %v1976 = vld [vmem:[#allocation2 + $0xd0] sm:$0xff]
    %v1977 = vld [vmem:[#allocation2 + $0xd8] sm:$0xff]
    %1978 = vst.msk [vmem:[%s2] sm:$0xff] %vm1918, %v1950
    %1979 = vst.msk [vmem:[%s2 + $0x8] sm:$0xff] %vm1918, %v1951
    %1980 = vst.msk [vmem:[%s2 + $0x10] sm:$0xff] %vm1918, %v1952
    %1981 = vst.msk [vmem:[%s2 + $0x18] sm:$0xff] %vm1918, %v1953
    %1982 = vst.msk [vmem:[%s2 + $0x20] sm:$0xff] %vm1918, %v1954
    %1983 = vst.msk [vmem:[%s2 + $0x28] sm:$0xff] %vm1918, %v1955
    %1984 = vst.msk [vmem:[%s2 + $0x30] sm:$0xff] %vm1918, %v1956
    %1985 = vst.msk [vmem:[%s2 + $0x38] sm:$0xff] %vm1918, %v1957
    %1986 = vst.msk [vmem:[%s2 + $0x40] sm:$0xff] %vm1918, %v1958
    %1987 = vst.msk [vmem:[%s2 + $0x48] sm:$0xff] %vm1918, %v1959
    %1988 = vst.msk [vmem:[%s2 + $0x50] sm:$0xff] %vm1918, %v1960
    %1989 = vst.msk [vmem:[%s2 + $0x58] sm:$0xff] %vm1918, %v1961
    %1990 = vst.msk [vmem:[%s2 + $0x60] sm:$0xff] %vm1918, %v1962
    %1991 = vst.msk [vmem:[%s2 + $0x68] sm:$0xff] %vm1918, %v1963
    %1992 = vst.msk [vmem:[%s2 + $0x70] sm:$0xff] %vm1918, %v1964
    %1993 = vst.msk [vmem:[%s2 + $0x78] sm:$0xff] %vm1918, %v1965
    %1994 = vst.msk [vmem:[%s2 + $0x80] sm:$0xff] %vm1918, %v1966
    %1995 = vst.msk [vmem:[%s2 + $0x88] sm:$0xff] %vm1918, %v1967
    %1996 = vst.msk [vmem:[%s2 + $0x90] sm:$0xff] %vm1918, %v1968
    %1997 = vst.msk [vmem:[%s2 + $0x98] sm:$0xff] %vm1918, %v1969
    %1998 = vst.msk [vmem:[%s2 + $0xa0] sm:$0xff] %vm1918, %v1970
    %1999 = vst.msk [vmem:[%s2 + $0xa8] sm:$0xff] %vm1918, %v1971
    %2000 = vst.msk [vmem:[%s2 + $0xb0] sm:$0xff] %vm1918, %v1972
    %2001 = vst.msk [vmem:[%s2 + $0xb8] sm:$0xff] %vm1918, %v1973
    %2002 = vst.msk [vmem:[%s2 + $0xc0] sm:$0xff] %vm1918, %v1974
    %2003 = vst.msk [vmem:[%s2 + $0xc8] sm:$0xff] %vm1918, %v1975
    %2004 = vst.msk [vmem:[%s2 + $0xd0] sm:$0xff] %vm1918, %v1976
    %2005 = vst.msk [vmem:[%s2 + $0xd8] sm:$0xff] %vm1918, %v1977
    %v2006 = vsel %vm1918, %v1950, 0.0
    %v2007 = vsel %vm1918, %v1951, 0.0
    %v2008 = vadd.f32 %v2006, %v2007
    %v2009 = vsel %vm1918, %v1952, 0.0
    %v2010 = vadd.f32 %v2008, %v2009
    %v2011 = vsel %vm1918, %v1953, 0.0
    %v2012 = vadd.f32 %v2010, %v2011
    %v2013 = vsel %vm1918, %v1954, 0.0
    %v2014 = vadd.f32 %v2012, %v2013
    %v2015 = vsel %vm1918, %v1955, 0.0
    %v2016 = vadd.f32 %v2014, %v2015
    %v2017 = vsel %vm1918, %v1956, 0.0
    %v2018 = vadd.f32 %v2016, %v2017
    %v2019 = vsel %vm1918, %v1957, 0.0
    %v2020 = vadd.f32 %v2018, %v2019
    %v2021 = vsel %vm1918, %v1958, 0.0
    %v2022 = vadd.f32 %v2020, %v2021
    %v2023 = vsel %vm1918, %v1959, 0.0
    %v2024 = vadd.f32 %v2022, %v2023
    %v2025 = vsel %vm1918, %v1960, 0.0
    %v2026 = vadd.f32 %v2024, %v2025
    %v2027 = vsel %vm1918, %v1961, 0.0
    %v2028 = vadd.f32 %v2026, %v2027
    %v2029 = vsel %vm1918, %v1962, 0.0
    %v2030 = vadd.f32 %v2028, %v2029
    %v2031 = vsel %vm1918, %v1963, 0.0
    %v2032 = vadd.f32 %v2030, %v2031
    %v2033 = vsel %vm1918, %v1964, 0.0
    %v2034 = vadd.f32 %v2032, %v2033
    %v2035 = vsel %vm1918, %v1965, 0.0
    %v2036 = vadd.f32 %v2034, %v2035
    %v2037 = vsel %vm1918, %v1966, 0.0
    %v2038 = vadd.f32 %v2036, %v2037
    %v2039 = vsel %vm1918, %v1967, 0.0
    %v2040 = vadd.f32 %v2038, %v2039
    %v2041 = vsel %vm1918, %v1968, 0.0
    %v2042 = vadd.f32 %v2040, %v2041
    %v2043 = vsel %vm1918, %v1969, 0.0
    %v2044 = vadd.f32 %v2042, %v2043
    %v2045 = vsel %vm1918, %v1970, 0.0
    %v2046 = vadd.f32 %v2044, %v2045
    %v2047 = vsel %vm1918, %v1971, 0.0
    %v2048 = vadd.f32 %v2046, %v2047
    %v2049 = vsel %vm1918, %v1972, 0.0
    %v2050 = vadd.f32 %v2048, %v2049
    %v2051 = vsel %vm1918, %v1973, 0.0
    %v2052 = vadd.f32 %v2050, %v2051
    %v2053 = vsel %vm1918, %v1974, 0.0
    %v2054 = vadd.f32 %v2052, %v2053
    %v2055 = vsel %vm1918, %v1975, 0.0
    %v2056 = vadd.f32 %v2054, %v2055
    %v2057 = vsel %vm1918, %v1976, 0.0
    %v2058 = vadd.f32 %v2056, %v2057
    %v2059 = vsel %vm1918, %v1977, 0.0
    %v2060 = vadd.f32 %v2058, %v2059
    %v2061 = vrot.slane %v2060, 4
    %v2062 = vadd.f32 %v2060, %v2061
    %v2063 = vrot.slane %v2062, 2
    %v2064 = vadd.f32 %v2062, %v2063
    %v2065 = vrot.slane %v2064, 1
    %v2066 = vadd.f32 %v2064, %v2065
    %v2067 = vmul.f32 %v1950, %v1950
    %v2068 = vmul.f32 %v1951, %v1951
    %v2069 = vmul.f32 %v1952, %v1952
    %v2070 = vmul.f32 %v1953, %v1953
    %v2071 = vmul.f32 %v1954, %v1954
    %v2072 = vmul.f32 %v1955, %v1955
    %v2073 = vmul.f32 %v1956, %v1956
    %v2074 = vmul.f32 %v1957, %v1957
    %v2075 = vmul.f32 %v1958, %v1958
    %v2076 = vmul.f32 %v1959, %v1959
    %v2077 = vmul.f32 %v1960, %v1960
    %v2078 = vmul.f32 %v1961, %v1961
    %v2079 = vmul.f32 %v1962, %v1962
    %v2080 = vmul.f32 %v1963, %v1963
    %v2081 = vmul.f32 %v1964, %v1964
    %v2082 = vmul.f32 %v1965, %v1965
    %v2083 = vmul.f32 %v1966, %v1966
    %v2084 = vmul.f32 %v1967, %v1967
    %v2085 = vmul.f32 %v1968, %v1968
    %v2086 = vmul.f32 %v1969, %v1969
    %v2087 = vmul.f32 %v1970, %v1970
    %v2088 = vmul.f32 %v1971, %v1971
    %v2089 = vmul.f32 %v1972, %v1972
    %v2090 = vmul.f32 %v1973, %v1973
    %v2091 = vmul.f32 %v1974, %v1974
    %v2092 = vmul.f32 %v1975, %v1975
    %v2093 = vmul.f32 %v1976, %v1976
    %v2094 = vmul.f32 %v1977, %v1977
    %v2095 = vsel %vm1918, %v2067, 0.0
    %v2096 = vsel %vm1918, %v2068, 0.0
    %v2097 = vadd.f32 %v2095, %v2096
    %v2098 = vsel %vm1918, %v2069, 0.0
    %v2099 = vadd.f32 %v2097, %v2098
    %v2100 = vsel %vm1918, %v2070, 0.0
    %v2101 = vadd.f32 %v2099, %v2100
    %v2102 = vsel %vm1918, %v2071, 0.0
    %v2103 = vadd.f32 %v2101, %v2102
    %v2104 = vsel %vm1918, %v2072, 0.0
    %v2105 = vadd.f32 %v2103, %v2104
    %v2106 = vsel %vm1918, %v2073, 0.0
    %v2107 = vadd.f32 %v2105, %v2106
    %v2108 = vsel %vm1918, %v2074, 0.0
    %v2109 = vadd.f32 %v2107, %v2108
    %v2110 = vsel %vm1918, %v2075, 0.0
    %v2111 = vadd.f32 %v2109, %v2110
    %v2112 = vsel %vm1918, %v2076, 0.0
    %v2113 = vadd.f32 %v2111, %v2112
    %v2114 = vsel %vm1918, %v2077, 0.0
    %v2115 = vadd.f32 %v2113, %v2114
    %v2116 = vsel %vm1918, %v2078, 0.0
    %v2117 = vadd.f32 %v2115, %v2116
    %v2118 = vsel %vm1918, %v2079, 0.0
    %v2119 = vadd.f32 %v2117, %v2118
    %v2120 = vsel %vm1918, %v2080, 0.0
    %v2121 = vadd.f32 %v2119, %v2120
    %v2122 = vsel %vm1918, %v2081, 0.0
    %v2123 = vadd.f32 %v2121, %v2122
    %v2124 = vsel %vm1918, %v2082, 0.0
    %v2125 = vadd.f32 %v2123, %v2124
    %v2126 = vsel %vm1918, %v2083, 0.0
    %v2127 = vadd.f32 %v2125, %v2126
    %v2128 = vsel %vm1918, %v2084, 0.0
    %v2129 = vadd.f32 %v2127, %v2128
    %v2130 = vsel %vm1918, %v2085, 0.0
    %v2131 = vadd.f32 %v2129, %v2130
    %v2132 = vsel %vm1918, %v2086, 0.0
    %v2133 = vadd.f32 %v2131, %v2132
    %v2134 = vsel %vm1918, %v2087, 0.0
    %v2135 = vadd.f32 %v2133, %v2134
    %v2136 = vsel %vm1918, %v2088, 0.0
    %v2137 = vadd.f32 %v2135, %v2136
    %v2138 = vsel %vm1918, %v2089, 0.0
    %v2139 = vadd.f32 %v2137, %v2138
    %v2140 = vsel %vm1918, %v2090, 0.0
    %v2141 = vadd.f32 %v2139, %v2140
    %v2142 = vsel %vm1918, %v2091, 0.0
    %v2143 = vadd.f32 %v2141, %v2142
    %v2144 = vsel %vm1918, %v2092, 0.0
    %v2145 = vadd.f32 %v2143, %v2144
    %v2146 = vsel %vm1918, %v2093, 0.0
    %v2147 = vadd.f32 %v2145, %v2146
    %v2148 = vsel %vm1918, %v2094, 0.0
    %v2149 = vadd.f32 %v2147, %v2148
    %v2150 = vrot.slane %v2149, 4
    %v2151 = vadd.f32 %v2149, %v2150
    %v2152 = vrot.slane %v2151, 2
    %v2153 = vadd.f32 %v2151, %v2152
    %v2154 = vrot.slane %v2153, 1
    %v2155 = vadd.f32 %v2153, %v2154
    %v2156 = vlaneseq
    %v2157 = vshrl.u32 %v2156, 7
    %vm2158 = vcmp.eq.s32.totalorder %v2157, 0
    %vm2159 = vcmp.eq.s32.totalorder %v2157, 1
    %v2160 = vsel %vm2159, %v2155, 0.0
    %v2161 = vsel %vm2158, %v2066, %v2160
    %2162 = vst.msk [vmem:[%s3] sm:$0xff] %vm1918, %v2161
  $region17: #{hcnet_forward.29} parent=0 // pred_fallthru
    _
  // Predicated region
  $region18: #{hcnet_forward.29} parent=0 // pred_check
    _
  $region19: #{hcnet_forward.29} parent=0 // pred_check_branch
    %2164 = sbr.rel (0) target = $region21
  $region20: #{hcnet_forward.29} parent=0 // pred_region
    _
  $region21: #{hcnet_forward.29} parent=0 // pred_fallthru
    _
  // Predicated region
  $region22: #{hcnet_forward.29} parent=0 // pred_check
    _
  $region23: #{hcnet_forward.29} parent=0 // pred_check_branch
    %2166 = sbr.rel (0) target = $region25
  $region24: #{hcnet_forward.29} parent=0 // pred_region
    _
  $region25: #{hcnet_forward.29} parent=0 // pred_fallthru
    _
  // Predicated region
  $region26: #{hcnet_forward.29} parent=0 // pred_check
    _
  $region27: #{hcnet_forward.29} parent=0 // pred_check_branch
    %2168 = sbr.rel (0) target = $region29
  $region28: #{hcnet_forward.29} parent=0 // pred_region
    _
  $region29: #{hcnet_forward.29} parent=0 // pred_fallthru
    _
  // Predicated region
  $region30: #{hcnet_forward.29} parent=0 // pred_check
    _
  $region31: #{hcnet_forward.29} parent=0 // pred_check_branch
    %2170 = sbr.rel (0) target = $region33
  $region32: #{hcnet_forward.29} parent=0 // pred_region
    _
  $region33: #{hcnet_forward.29} parent=0 // pred_fallthru
    _

// kernel: hcnet_forward.30
$region0: #{hcnet_forward.30}
  #allocation0 [shape = 'u32[]', space=smem, size = 0x4, offset = 0x4, fixed_abs, tag = 'smem constant byte address 0x4 - core index']
  #allocation1 [shape = 'u32[72,128]{1,0:T(1,128)}', space=vmem, size = 0x9000, scoped, tag = 'internal scratch']
  %s0 = inlined_call_operand.vmem [shape: f32[224,16], index: 0, kind: input, shape index: {}]
  %s1 = inlined_call_operand.vmem [shape: f32[1,16], index: 1, kind: input, shape index: {}]
  %s2 = inlined_call_operand.vmem [shape: f32[1,16], index: 2, kind: input, shape index: {}]
  %s3 = inlined_call_operand.vmem [shape: f32[224,16], index: 3, kind: output, shape index: {}]
  %s4 = sld [smem:[#allocation0]]
  $region22: #{hcnet_forward.30} parent=0
    _
  %s6 = ssub.s32 1, %s4
  %s7 = scalar_select 0, %s6, %s4
  // Predicated region
  $region2: #{hcnet_forward.30} parent=0 // pred_check
    _
  $region3: #{hcnet_forward.30} parent=0 // pred_check_branch
    %9 = sbr.rel (0) target = $region5
  $region4: #{hcnet_forward.30} parent=0 // pred_region
    _
  $region5: #{hcnet_forward.30} parent=0 // pred_fallthru
    _
  // Predicated region
  $region6: #{hcnet_forward.30} parent=0 // pred_check
    _
  $region7: #{hcnet_forward.30} parent=0 // pred_check_branch
    %11 = sbr.rel (0) target = $region9
  $region8: #{hcnet_forward.30} parent=0 // pred_region
    _
  $region9: #{hcnet_forward.30} parent=0 // pred_fallthru
    _
  // Predicated region
  $region10: #{hcnet_forward.30} parent=0 // pred_check
    _
  $region11: #{hcnet_forward.30} parent=0 // pred_check_branch
    %13 = sbr.rel (0) target = $region13
  $region12: #{hcnet_forward.30} parent=0 // pred_region
    _
  $region13: #{hcnet_forward.30} parent=0 // pred_fallthru
    _
  %v14 = vld [vmem:[%s0] sm:$0xff]
  %v15 = vld [vmem:[%s0 + $0x8] sm:$0xff]
  %v16 = vld [vmem:[%s0 + $0x10] sm:$0xff]
  %v17 = vld [vmem:[%s0 + $0x18] sm:$0xff]
  %v18 = vld [vmem:[%s0 + $0x20] sm:$0xff]
  %v19 = vld [vmem:[%s0 + $0x28] sm:$0xff]
  %v20 = vld [vmem:[%s0 + $0x30] sm:$0xff]
  %v21 = vld [vmem:[%s0 + $0x38] sm:$0xff]
  %v22 = vld [vmem:[%s0 + $0x40] sm:$0xff]
  %v23 = vld [vmem:[%s0 + $0x48] sm:$0xff]
  %v24 = vld [vmem:[%s0 + $0x50] sm:$0xff]
  %v25 = vld [vmem:[%s0 + $0x58] sm:$0xff]
  %v26 = vld [vmem:[%s0 + $0x60] sm:$0xff]
  %v27 = vld [vmem:[%s0 + $0x68] sm:$0xff]
  %v28 = vld [vmem:[%s0 + $0x70] sm:$0xff]
  %v29 = vld [vmem:[%s0 + $0x78] sm:$0xff]
  %v30 = vld [vmem:[%s0 + $0x80] sm:$0xff]
  %v31 = vld [vmem:[%s0 + $0x88] sm:$0xff]
  %v32 = vld [vmem:[%s0 + $0x90] sm:$0xff]
  %v33 = vld [vmem:[%s0 + $0x98] sm:$0xff]
  %v34 = vld [vmem:[%s0 + $0xa0] sm:$0xff]
  %v35 = vld [vmem:[%s0 + $0xa8] sm:$0xff]
  %v36 = vld [vmem:[%s0 + $0xb0] sm:$0xff]
  %v37 = vld [vmem:[%s0 + $0xb8] sm:$0xff]
  %v38 = vld [vmem:[%s0 + $0xc0] sm:$0xff]
  %v39 = vld [vmem:[%s0 + $0xc8] sm:$0xff]
  %v40 = vld [vmem:[%s0 + $0xd0] sm:$0xff]
  %v41 = vld [vmem:[%s0 + $0xd8] sm:$0xff]
  %v42 = vld [vmem:[%s1] sm:$0x1]
  %v44 = vperm.slane %v42, 0
  %v46 = vmul.f32 %v14, %v44
  %v47 = vmul.f32 %v15, %v44
  %v48 = vmul.f32 %v16, %v44
  %v49 = vmul.f32 %v17, %v44
  %v50 = vmul.f32 %v18, %v44
  %v51 = vmul.f32 %v19, %v44
  %v52 = vmul.f32 %v20, %v44
  %v53 = vmul.f32 %v21, %v44
  %v54 = vmul.f32 %v22, %v44
  %v55 = vmul.f32 %v23, %v44
  %v56 = vmul.f32 %v24, %v44
  %v57 = vmul.f32 %v25, %v44
  %v58 = vmul.f32 %v26, %v44
  %v59 = vmul.f32 %v27, %v44
  %v60 = vmul.f32 %v28, %v44
  %v61 = vmul.f32 %v29, %v44
  %v62 = vmul.f32 %v30, %v44
  %v63 = vmul.f32 %v31, %v44
  %v64 = vmul.f32 %v32, %v44
  %v65 = vmul.f32 %v33, %v44
  %v66 = vmul.f32 %v34, %v44
  %v67 = vmul.f32 %v35, %v44
  %v68 = vmul.f32 %v36, %v44
  %v69 = vmul.f32 %v37, %v44
  %v70 = vmul.f32 %v38, %v44
  %v71 = vmul.f32 %v39, %v44
  %v72 = vmul.f32 %v40, %v44
  %v73 = vmul.f32 %v41, %v44
  %v74 = vld [vmem:[%s2] sm:$0x1]
  %v76 = vperm.slane %v74, 0
  %v78 = vadd.f32 %v46, %v76
  %v79 = vadd.f32 %v47, %v76
  %v80 = vadd.f32 %v48, %v76
  %v81 = vadd.f32 %v49, %v76
  %v82 = vadd.f32 %v50, %v76
  %v83 = vadd.f32 %v51, %v76
  %v84 = vadd.f32 %v52, %v76
  %v85 = vadd.f32 %v53, %v76
  %v86 = vadd.f32 %v54, %v76
  %v87 = vadd.f32 %v55, %v76
  %v88 = vadd.f32 %v56, %v76
  %v89 = vadd.f32 %v57, %v76
  %v90 = vadd.f32 %v58, %v76
  %v91 = vadd.f32 %v59, %v76
  %v92 = vadd.f32 %v60, %v76
  %v93 = vadd.f32 %v61, %v76
  %v94 = vadd.f32 %v62, %v76
  %v95 = vadd.f32 %v63, %v76
  %v96 = vadd.f32 %v64, %v76
  %v97 = vadd.f32 %v65, %v76
  %v98 = vadd.f32 %v66, %v76
  %v99 = vadd.f32 %v67, %v76
  %v100 = vadd.f32 %v68, %v76
  %v101 = vadd.f32 %v69, %v76
  %v102 = vadd.f32 %v70, %v76
  %v103 = vadd.f32 %v71, %v76
  %v104 = vadd.f32 %v72, %v76
  %v105 = vadd.f32 %v73, %v76
  %vm106 = vcmp.ge.f32.partialorder %v78, 0.0
  %vm107 = vcmp.ge.f32.partialorder %v79, 0.0
  %vm108 = vcmp.ge.f32.partialorder %v80, 0.0
  %vm109 = vcmp.ge.f32.partialorder %v81, 0.0
  %vm110 = vcmp.ge.f32.partialorder %v82, 0.0
  %vm111 = vcmp.ge.f32.partialorder %v83, 0.0
  %vm112 = vcmp.ge.f32.partialorder %v84, 0.0
  %vm113 = vcmp.ge.f32.partialorder %v85, 0.0
  %vm114 = vcmp.ge.f32.partialorder %v86, 0.0
  %vm115 = vcmp.ge.f32.partialorder %v87, 0.0
  %vm116 = vcmp.ge.f32.partialorder %v88, 0.0
  %vm117 = vcmp.ge.f32.partialorder %v89, 0.0
  %vm118 = vcmp.ge.f32.partialorder %v90, 0.0
  %vm119 = vcmp.ge.f32.partialorder %v91, 0.0
  %vm120 = vcmp.ge.f32.partialorder %v92, 0.0
  %vm121 = vcmp.ge.f32.partialorder %v93, 0.0
  %vm122 = vcmp.ge.f32.partialorder %v94, 0.0
  %vm123 = vcmp.ge.f32.partialorder %v95, 0.0
  %vm124 = vcmp.ge.f32.partialorder %v96, 0.0
  %vm125 = vcmp.ge.f32.partialorder %v97, 0.0
  %vm126 = vcmp.ge.f32.partialorder %v98, 0.0
  %vm127 = vcmp.ge.f32.partialorder %v99, 0.0
  %vm128 = vcmp.ge.f32.partialorder %v100, 0.0
  %vm129 = vcmp.ge.f32.partialorder %v101, 0.0
  %vm130 = vcmp.ge.f32.partialorder %v102, 0.0
  %vm131 = vcmp.ge.f32.partialorder %v103, 0.0
  %vm132 = vcmp.ge.f32.partialorder %v104, 0.0
  %vm133 = vcmp.ge.f32.partialorder %v105, 0.0
  %v134 = vmul.f32 %v78, 0.01
  %v135 = vmul.f32 %v79, 0.01
  %v136 = vmul.f32 %v80, 0.01
  %v137 = vmul.f32 %v81, 0.01
  %v138 = vmul.f32 %v82, 0.01
  %v139 = vmul.f32 %v83, 0.01
  %v140 = vmul.f32 %v84, 0.01
  %v141 = vmul.f32 %v85, 0.01
  %v142 = vmul.f32 %v86, 0.01
  %v143 = vmul.f32 %v87, 0.01
  %v144 = vmul.f32 %v88, 0.01
  %v145 = vmul.f32 %v89, 0.01
  %v146 = vmul.f32 %v90, 0.01
  %v147 = vmul.f32 %v91, 0.01
  %v148 = vmul.f32 %v92, 0.01
  %v149 = vmul.f32 %v93, 0.01
  %v150 = vmul.f32 %v94, 0.01
  %v151 = vmul.f32 %v95, 0.01
  %v152 = vmul.f32 %v96, 0.01
  %v153 = vmul.f32 %v97, 0.01
  %v154 = vmul.f32 %v98, 0.01
  %v155 = vmul.f32 %v99, 0.01
  %v156 = vmul.f32 %v100, 0.01
  %v157 = vmul.f32 %v101, 0.01
  %v158 = vmul.f32 %v102, 0.01
  %v159 = vmul.f32 %v103, 0.01
  %v160 = vmul.f32 %v104, 0.01
  %v161 = vmul.f32 %v105, 0.01
  %v162 = vsel %vm106, %v78, %v134
  %v163 = vsel %vm107, %v79, %v135
  %v164 = vsel %vm108, %v80, %v136
  %v165 = vsel %vm109, %v81, %v137
  %v166 = vsel %vm110, %v82, %v138
  %v167 = vsel %vm111, %v83, %v139
  %v168 = vsel %vm112, %v84, %v140
  %v169 = vsel %vm113, %v85, %v141
  %v170 = vsel %vm114, %v86, %v142
  %v171 = vsel %vm115, %v87, %v143
  %v172 = vsel %vm116, %v88, %v144
  %v173 = vsel %vm117, %v89, %v145
  %v174 = vsel %vm118, %v90, %v146
  %v175 = vsel %vm119, %v91, %v147
  %v176 = vsel %vm120, %v92, %v148
  %v177 = vsel %vm121, %v93, %v149
  %v178 = vsel %vm122, %v94, %v150
  %v179 = vsel %vm123, %v95, %v151
  %v180 = vsel %vm124, %v96, %v152
  %v181 = vsel %vm125, %v97, %v153
  %v182 = vsel %vm126, %v98, %v154
  %v183 = vsel %vm127, %v99, %v155
  %v184 = vsel %vm128, %v100, %v156
  %v185 = vsel %vm129, %v101, %v157
  %v186 = vsel %vm130, %v102, %v158
  %v187 = vsel %vm131, %v103, %v159
  %v188 = vsel %vm132, %v104, %v160
  %v189 = vsel %vm133, %v105, %v161
  %vm190 = vcmask 130048
  %191 = vst.msk [vmem:[%s3] sm:$0xff] %vm190, %v162
  %192 = vst.msk [vmem:[%s3 + $0x8] sm:$0xff] %vm190, %v163
  %193 = vst.msk [vmem:[%s3 + $0x10] sm:$0xff] %vm190, %v164
  %194 = vst.msk [vmem:[%s3 + $0x18] sm:$0xff] %vm190, %v165
  %195 = vst.msk [vmem:[%s3 + $0x20] sm:$0xff] %vm190, %v166
  %196 = vst.msk [vmem:[%s3 + $0x28] sm:$0xff] %vm190, %v167
  %197 = vst.msk [vmem:[%s3 + $0x30] sm:$0xff] %vm190, %v168
  %198 = vst.msk [vmem:[%s3 + $0x38] sm:$0xff] %vm190, %v169
  %199 = vst.msk [vmem:[%s3 + $0x40] sm:$0xff] %vm190, %v170
  %200 = vst.msk [vmem:[%s3 + $0x48] sm:$0xff] %vm190, %v171
  %201 = vst.msk [vmem:[%s3 + $0x50] sm:$0xff] %vm190, %v172
  %202 = vst.msk [vmem:[%s3 + $0x58] sm:$0xff] %vm190, %v173
  %203 = vst.msk [vmem:[%s3 + $0x60] sm:$0xff] %vm190, %v174
  %204 = vst.msk [vmem:[%s3 + $0x68] sm:$0xff] %vm190, %v175
  %205 = vst.msk [vmem:[%s3 + $0x70] sm:$0xff] %vm190, %v176
  %206 = vst.msk [vmem:[%s3 + $0x78] sm:$0xff] %vm190, %v177
  %207 = vst.msk [vmem:[%s3 + $0x80] sm:$0xff] %vm190, %v178
  %208 = vst.msk [vmem:[%s3 + $0x88] sm:$0xff] %vm190, %v179
  %209 = vst.msk [vmem:[%s3 + $0x90] sm:$0xff] %vm190, %v180
  %210 = vst.msk [vmem:[%s3 + $0x98] sm:$0xff] %vm190, %v181
  %211 = vst.msk [vmem:[%s3 + $0xa0] sm:$0xff] %vm190, %v182
  %212 = vst.msk [vmem:[%s3 + $0xa8] sm:$0xff] %vm190, %v183
  %213 = vst.msk [vmem:[%s3 + $0xb0] sm:$0xff] %vm190, %v184
  %214 = vst.msk [vmem:[%s3 + $0xb8] sm:$0xff] %vm190, %v185
  %215 = vst.msk [vmem:[%s3 + $0xc0] sm:$0xff] %vm190, %v186
  %216 = vst.msk [vmem:[%s3 + $0xc8] sm:$0xff] %vm190, %v187
  %217 = vst.msk [vmem:[%s3 + $0xd0] sm:$0xff] %vm190, %v188
  %218 = vst.msk [vmem:[%s3 + $0xd8] sm:$0xff] %vm190, %v189
  // Predicated region
  $region14: #{hcnet_forward.30} parent=0 // pred_check
    _
  $region15: #{hcnet_forward.30} parent=0 // pred_check_branch
    %220 = sbr.rel (0) target = $region17
  $region16: #{hcnet_forward.30} parent=0 // pred_region
    _
  $region17: #{hcnet_forward.30} parent=0 // pred_fallthru
    _
  // Predicated region
  $region18: #{hcnet_forward.30} parent=0 // pred_check
    _
  $region19: #{hcnet_forward.30} parent=0 // pred_check_branch
    %222 = sbr.rel (0) target = $region21
  $region20: #{hcnet_forward.30} parent=0 // pred_region
    _
  $region21: #{hcnet_forward.30} parent=0 // pred_fallthru
    _

// kernel: hcnet_forward.31
$region0: #{hcnet_forward.31}
  #allocation0 [shape = 'u32[]', space=smem, size = 0x4, offset = 0x4, fixed_abs, tag = 'smem constant byte address 0x4 - core index']
  #allocation1 [shape = 'u32[72,128]{1,0:T(1,128)}', space=vmem, size = 0x9000, scoped, tag = 'internal scratch']
  #allocation2 [shape = 'f32[224,24]{1,0:T(8,128)}', space=vmem, size = 0x1c000, scoped, tag = 'scratch operand']
  %s0 = inlined_call_operand.vmem [shape: bf16[224,512], index: 0, kind: input, shape index: {}]
  %s1 = inlined_call_operand.vmem [shape: bf16[512,24], index: 1, kind: input, shape index: {}]
  %s2 = inlined_call_operand.vmem [shape: f32[224,24], index: 2, kind: output, shape index: {0}]
  %s3 = inlined_call_operand.vmem [shape: f32[8,24], index: 3, kind: output, shape index: {1}]
  %4 = xla_tuple %s2, %s3
  %s5 = sld [smem:[#allocation0]]
  $region34: #{hcnet_forward.31} parent=0
    _
  %s7 = ssub.s32 1, %s5
  %s8 = scalar_select 0, %s7, %s5
  // Predicated region
  $region2: #{hcnet_forward.31} parent=0 // pred_check
    _
  $region3: #{hcnet_forward.31} parent=0 // pred_check_branch
    %10 = sbr.rel (0) target = $region5
  $region4: #{hcnet_forward.31} parent=0 // pred_region
    _
  $region5: #{hcnet_forward.31} parent=0 // pred_fallthru
    _
  // Predicated region
  $region6: #{hcnet_forward.31} parent=0 // pred_check
    _
  $region7: #{hcnet_forward.31} parent=0 // pred_check_branch
    %12 = sbr.rel (0) target = $region9
  $region8: #{hcnet_forward.31} parent=0 // pred_region
    _
  $region9: #{hcnet_forward.31} parent=0 // pred_fallthru
    _
  %p13 = scmp.eq.s32.totalorder 0, 0
  // Predicated region
  $region10: #{hcnet_forward.31} parent=0 // pred_check
    %p14 = pneg %p13
  $region11: #{hcnet_forward.31} parent=0 // pred_check_branch
    %16 = sbr.rel (%p14) target = $region13
  $region12: #{hcnet_forward.31} parent=0 // pred_region
    %vm17 = vcmask 195584
    %18 = vst.msk [vmem:[#allocation2] sm:$0xff] %vm17, 0.0
    %19 = vst.msk [vmem:[#allocation2 + $0x8] sm:$0xff] %vm17, 0.0
    %20 = vst.msk [vmem:[#allocation2 + $0x10] sm:$0xff] %vm17, 0.0
    %21 = vst.msk [vmem:[#allocation2 + $0x18] sm:$0xff] %vm17, 0.0
    %22 = vst.msk [vmem:[#allocation2 + $0x20] sm:$0xff] %vm17, 0.0
    %23 = vst.msk [vmem:[#allocation2 + $0x28] sm:$0xff] %vm17, 0.0
    %24 = vst.msk [vmem:[#allocation2 + $0x30] sm:$0xff] %vm17, 0.0
    %25 = vst.msk [vmem:[#allocation2 + $0x38] sm:$0xff] %vm17, 0.0
    %26 = vst.msk [vmem:[#allocation2 + $0x40] sm:$0xff] %vm17, 0.0
    %27 = vst.msk [vmem:[#allocation2 + $0x48] sm:$0xff] %vm17, 0.0
    %28 = vst.msk [vmem:[#allocation2 + $0x50] sm:$0xff] %vm17, 0.0
    %29 = vst.msk [vmem:[#allocation2 + $0x58] sm:$0xff] %vm17, 0.0
    %30 = vst.msk [vmem:[#allocation2 + $0x60] sm:$0xff] %vm17, 0.0
    %31 = vst.msk [vmem:[#allocation2 + $0x68] sm:$0xff] %vm17, 0.0
    %32 = vst.msk [vmem:[#allocation2 + $0x70] sm:$0xff] %vm17, 0.0
    %33 = vst.msk [vmem:[#allocation2 + $0x78] sm:$0xff] %vm17, 0.0
    %34 = vst.msk [vmem:[#allocation2 + $0x80] sm:$0xff] %vm17, 0.0
    %35 = vst.msk [vmem:[#allocation2 + $0x88] sm:$0xff] %vm17, 0.0
    %36 = vst.msk [vmem:[#allocation2 + $0x90] sm:$0xff] %vm17, 0.0
    %37 = vst.msk [vmem:[#allocation2 + $0x98] sm:$0xff] %vm17, 0.0
    %38 = vst.msk [vmem:[#allocation2 + $0xa0] sm:$0xff] %vm17, 0.0
    %39 = vst.msk [vmem:[#allocation2 + $0xa8] sm:$0xff] %vm17, 0.0
    %40 = vst.msk [vmem:[#allocation2 + $0xb0] sm:$0xff] %vm17, 0.0
    %41 = vst.msk [vmem:[#allocation2 + $0xb8] sm:$0xff] %vm17, 0.0
    %42 = vst.msk [vmem:[#allocation2 + $0xc0] sm:$0xff] %vm17, 0.0
    %43 = vst.msk [vmem:[#allocation2 + $0xc8] sm:$0xff] %vm17, 0.0
    %44 = vst.msk [vmem:[#allocation2 + $0xd0] sm:$0xff] %vm17, 0.0
    %45 = vst.msk [vmem:[#allocation2 + $0xd8] sm:$0xff] %vm17, 0.0
  $region13: #{hcnet_forward.31} parent=0 // pred_fallthru
    _
  %v46 = vld [vmem:[#allocation2] sm:$0xff]
  %v47 = vld [vmem:[#allocation2 + $0x8] sm:$0xff]
  %v48 = vld [vmem:[#allocation2 + $0x10] sm:$0xff]
  %v49 = vld [vmem:[#allocation2 + $0x18] sm:$0xff]
  %v50 = vld [vmem:[#allocation2 + $0x20] sm:$0xff]
  %v51 = vld [vmem:[#allocation2 + $0x28] sm:$0xff]
  %v52 = vld [vmem:[#allocation2 + $0x30] sm:$0xff]
  %v53 = vld [vmem:[#allocation2 + $0x38] sm:$0xff]
  %v54 = vld [vmem:[#allocation2 + $0x40] sm:$0xff]
  %v55 = vld [vmem:[#allocation2 + $0x48] sm:$0xff]
  %v56 = vld [vmem:[#allocation2 + $0x50] sm:$0xff]
  %v57 = vld [vmem:[#allocation2 + $0x58] sm:$0xff]
  %v58 = vld [vmem:[#allocation2 + $0x60] sm:$0xff]
  %v59 = vld [vmem:[#allocation2 + $0x68] sm:$0xff]
  %v60 = vld [vmem:[#allocation2 + $0x70] sm:$0xff]
  %v61 = vld [vmem:[#allocation2 + $0x78] sm:$0xff]
  %v62 = vld [vmem:[#allocation2 + $0x80] sm:$0xff]
  %v63 = vld [vmem:[#allocation2 + $0x88] sm:$0xff]
  %v64 = vld [vmem:[#allocation2 + $0x90] sm:$0xff]
  %v65 = vld [vmem:[#allocation2 + $0x98] sm:$0xff]
  %v66 = vld [vmem:[#allocation2 + $0xa0] sm:$0xff]
  %v67 = vld [vmem:[#allocation2 + $0xa8] sm:$0xff]
  %v68 = vld [vmem:[#allocation2 + $0xb0] sm:$0xff]
  %v69 = vld [vmem:[#allocation2 + $0xb8] sm:$0xff]
  %v70 = vld [vmem:[#allocation2 + $0xc0] sm:$0xff]
  %v71 = vld [vmem:[#allocation2 + $0xc8] sm:$0xff]
  %v72 = vld [vmem:[#allocation2 + $0xd0] sm:$0xff]
  %v73 = vld [vmem:[#allocation2 + $0xd8] sm:$0xff]
  %v74 = vld [vmem:[%s0] sm:$0xff]
  %v75 = vld [vmem:[%s0 + $0x8] sm:$0xff]
  %v76 = vld [vmem:[%s0 + $0x10] sm:$0xff]
  %v77 = vld [vmem:[%s0 + $0x18] sm:$0xff]
  %v78 = vld [vmem:[%s0 + $0x20] sm:$0xff]
  %v79 = vld [vmem:[%s0 + $0x28] sm:$0xff]
  %v80 = vld [vmem:[%s0 + $0x30] sm:$0xff]
  %v81 = vld [vmem:[%s0 + $0x38] sm:$0xff]
  %v82 = vld [vmem:[%s0 + $0x40] sm:$0xff]
  %v83 = vld [vmem:[%s0 + $0x48] sm:$0xff]
  %v84 = vld [vmem:[%s0 + $0x50] sm:$0xff]
  %v85 = vld [vmem:[%s0 + $0x58] sm:$0xff]
  %v86 = vld [vmem:[%s0 + $0x60] sm:$0xff]
  %v87 = vld [vmem:[%s0 + $0x68] sm:$0xff]
  %v88 = vld [vmem:[%s0 + $0x70] sm:$0xff]
  %v89 = vld [vmem:[%s0 + $0x78] sm:$0xff]
  %v90 = vld [vmem:[%s0 + $0x80] sm:$0xff]
  %v91 = vld [vmem:[%s0 + $0x88] sm:$0xff]
  %v92 = vld [vmem:[%s0 + $0x90] sm:$0xff]
  %v93 = vld [vmem:[%s0 + $0x98] sm:$0xff]
  %v94 = vld [vmem:[%s0 + $0xa0] sm:$0xff]
  %v95 = vld [vmem:[%s0 + $0xa8] sm:$0xff]
  %v96 = vld [vmem:[%s0 + $0xb0] sm:$0xff]
  %v97 = vld [vmem:[%s0 + $0xb8] sm:$0xff]
  %v98 = vld [vmem:[%s0 + $0xc0] sm:$0xff]
  %v99 = vld [vmem:[%s0 + $0xc8] sm:$0xff]
  %v100 = vld [vmem:[%s0 + $0xd0] sm:$0xff]
  %v101 = vld [vmem:[%s0 + $0xd8] sm:$0xff]
  %v102 = vld [vmem:[%s0 + $0xe0] sm:$0xff]
  %v103 = vld [vmem:[%s0 + $0xe8] sm:$0xff]
  %v104 = vld [vmem:[%s0 + $0xf0] sm:$0xff]
  %v105 = vld [vmem:[%s0 + $0xf8] sm:$0xff]
  %v106 = vld [vmem:[%s0 + $0x100] sm:$0xff]
  %v107 = vld [vmem:[%s0 + $0x108] sm:$0xff]
  %v108 = vld [vmem:[%s0 + $0x110] sm:$0xff]
  %v109 = vld [vmem:[%s0 + $0x118] sm:$0xff]
  %v110 = vld [vmem:[%s0 + $0x120] sm:$0xff]
  %v111 = vld [vmem:[%s0 + $0x128] sm:$0xff]
  %v112 = vld [vmem:[%s0 + $0x130] sm:$0xff]
  %v113 = vld [vmem:[%s0 + $0x138] sm:$0xff]
  %v114 = vld [vmem:[%s0 + $0x140] sm:$0xff]
  %v115 = vld [vmem:[%s0 + $0x148] sm:$0xff]
  %v116 = vld [vmem:[%s0 + $0x150] sm:$0xff]
  %v117 = vld [vmem:[%s0 + $0x158] sm:$0xff]
  %v118 = vld [vmem:[%s0 + $0x160] sm:$0xff]
  %v119 = vld [vmem:[%s0 + $0x168] sm:$0xff]
  %v120 = vld [vmem:[%s0 + $0x170] sm:$0xff]
  %v121 = vld [vmem:[%s0 + $0x178] sm:$0xff]
  %v122 = vld [vmem:[%s0 + $0x180] sm:$0xff]
  %v123 = vld [vmem:[%s0 + $0x188] sm:$0xff]
  %v124 = vld [vmem:[%s0 + $0x190] sm:$0xff]
  %v125 = vld [vmem:[%s0 + $0x198] sm:$0xff]
  %v126 = vld [vmem:[%s0 + $0x1a0] sm:$0xff]
  %v127 = vld [vmem:[%s0 + $0x1a8] sm:$0xff]
  %v128 = vld [vmem:[%s0 + $0x1b0] sm:$0xff]
  %v129 = vld [vmem:[%s0 + $0x1b8] sm:$0xff]
  %v130 = vld [vmem:[%s1] sm:$0xf]
  %v131 = vld [vmem:[%s1 + $0x4] sm:$0xf]
  %v132 = vld [vmem:[%s1 + $0x8] sm:$0xf]
  %v133 = vld [vmem:[%s1 + $0xc] sm:$0xf]
  %v134 = vld [vmem:[%s1 + $0x10] sm:$0xf]
  %v135 = vld [vmem:[%s1 + $0x14] sm:$0xf]
  %v136 = vld [vmem:[%s1 + $0x18] sm:$0xf]
  %v137 = vld [vmem:[%s1 + $0x1c] sm:$0xf]
  %v138 = vld [vmem:[%s1 + $0x20] sm:$0xf]
  %v139 = vld [vmem:[%s1 + $0x24] sm:$0xf]
  %v140 = vld [vmem:[%s1 + $0x28] sm:$0xf]
  %v141 = vld [vmem:[%s1 + $0x2c] sm:$0xf]
  %v142 = vld [vmem:[%s1 + $0x30] sm:$0xf]
  %v143 = vld [vmem:[%s1 + $0x34] sm:$0xf]
  %v144 = vld [vmem:[%s1 + $0x38] sm:$0xf]
  %v145 = vld [vmem:[%s1 + $0x3c] sm:$0xf]
  %v146 = vld [vmem:[%s1 + $0x40] sm:$0xf]
  %v147 = vld [vmem:[%s1 + $0x44] sm:$0xf]
  %v148 = vld [vmem:[%s1 + $0x48] sm:$0xf]
  %v149 = vld [vmem:[%s1 + $0x4c] sm:$0xf]
  %v150 = vld [vmem:[%s1 + $0x50] sm:$0xf]
  %v151 = vld [vmem:[%s1 + $0x54] sm:$0xf]
  %v152 = vld [vmem:[%s1 + $0x58] sm:$0xf]
  %v153 = vld [vmem:[%s1 + $0x5c] sm:$0xf]
  %v154 = vld [vmem:[%s1 + $0x60] sm:$0xf]
  %v155 = vld [vmem:[%s1 + $0x64] sm:$0xf]
  %v156 = vld [vmem:[%s1 + $0x68] sm:$0xf]
  %v157 = vld [vmem:[%s1 + $0x6c] sm:$0xf]
  %v158 = vld [vmem:[%s1 + $0x70] sm:$0xf]
  %v159 = vld [vmem:[%s1 + $0x74] sm:$0xf]
  %v160 = vld [vmem:[%s1 + $0x78] sm:$0xf]
  %v161 = vld [vmem:[%s1 + $0x7c] sm:$0xf]
  %v162 = vld [vmem:[%s1 + $0x80] sm:$0xf]
  %v163 = vld [vmem:[%s1 + $0x84] sm:$0xf]
  %v164 = vld [vmem:[%s1 + $0x88] sm:$0xf]
  %v165 = vld [vmem:[%s1 + $0x8c] sm:$0xf]
  %v166 = vld [vmem:[%s1 + $0x90] sm:$0xf]
  %v167 = vld [vmem:[%s1 + $0x94] sm:$0xf]
  %v168 = vld [vmem:[%s1 + $0x98] sm:$0xf]
  %v169 = vld [vmem:[%s1 + $0x9c] sm:$0xf]
  %v170 = vld [vmem:[%s1 + $0xa0] sm:$0xf]
  %v171 = vld [vmem:[%s1 + $0xa4] sm:$0xf]
  %v172 = vld [vmem:[%s1 + $0xa8] sm:$0xf]
  %v173 = vld [vmem:[%s1 + $0xac] sm:$0xf]
  %v174 = vld [vmem:[%s1 + $0xb0] sm:$0xf]
  %v175 = vld [vmem:[%s1 + $0xb4] sm:$0xf]
  %v176 = vld [vmem:[%s1 + $0xb8] sm:$0xf]
  %v177 = vld [vmem:[%s1 + $0xbc] sm:$0xf]
  %v178 = vld [vmem:[%s1 + $0xc0] sm:$0xf]
  %v179 = vld [vmem:[%s1 + $0xc4] sm:$0xf]
  %v180 = vld [vmem:[%s1 + $0xc8] sm:$0xf]
  %v181 = vld [vmem:[%s1 + $0xcc] sm:$0xf]
  %v182 = vld [vmem:[%s1 + $0xd0] sm:$0xf]
  %v183 = vld [vmem:[%s1 + $0xd4] sm:$0xf]
  %v184 = vld [vmem:[%s1 + $0xd8] sm:$0xf]
  %v185 = vld [vmem:[%s1 + $0xdc] sm:$0xf]
  %v186 = vld [vmem:[%s1 + $0xe0] sm:$0xf]
  %v187 = vld [vmem:[%s1 + $0xe4] sm:$0xf]
  %v188 = vld [vmem:[%s1 + $0xe8] sm:$0xf]
  %v189 = vld [vmem:[%s1 + $0xec] sm:$0xf]
  %v190 = vld [vmem:[%s1 + $0xf0] sm:$0xf]
  %v191 = vld [vmem:[%s1 + $0xf4] sm:$0xf]
  %v192 = vld [vmem:[%s1 + $0xf8] sm:$0xf]
  %v193 = vld [vmem:[%s1 + $0xfc] sm:$0xf]
  %v250 = vunpack.c.l.b16 %v74
  %v251 = vunpack.c.h.b16 %v74
  %v252 = vunpack.c.l.b16 %v75
  %v253 = vunpack.c.h.b16 %v75
  %v254 = vunpack.c.l.b16 %v76
  %v255 = vunpack.c.h.b16 %v76
  %v256 = vunpack.c.l.b16 %v77
  %v257 = vunpack.c.h.b16 %v77
  %v258 = vunpack.c.l.b16 %v78
  %v259 = vunpack.c.h.b16 %v78
  %v260 = vunpack.c.l.b16 %v79
  %v261 = vunpack.c.h.b16 %v79
  %v262 = vunpack.c.l.b16 %v80
  %v263 = vunpack.c.h.b16 %v80
  %v264 = vunpack.c.l.b16 %v81
  %v265 = vunpack.c.h.b16 %v81
  %v266 = vunpack.c.l.b16 %v82
  %v267 = vunpack.c.h.b16 %v82
  %v268 = vunpack.c.l.b16 %v83
  %v269 = vunpack.c.h.b16 %v83
  %v270 = vunpack.c.l.b16 %v84
  %v271 = vunpack.c.h.b16 %v84
  %v272 = vunpack.c.l.b16 %v85
  %v273 = vunpack.c.h.b16 %v85
  %v274 = vunpack.c.l.b16 %v86
  %v275 = vunpack.c.h.b16 %v86
  %v276 = vunpack.c.l.b16 %v87
  %v277 = vunpack.c.h.b16 %v87
  %v278 = vunpack.c.l.b16 %v88
  %v279 = vunpack.c.h.b16 %v88
  %v280 = vunpack.c.l.b16 %v89
  %v281 = vunpack.c.h.b16 %v89
  %v282 = vunpack.c.l.b16 %v90
  %v283 = vunpack.c.h.b16 %v90
  %v284 = vunpack.c.l.b16 %v91
  %v285 = vunpack.c.h.b16 %v91
  %v286 = vunpack.c.l.b16 %v92
  %v287 = vunpack.c.h.b16 %v92
  %v288 = vunpack.c.l.b16 %v93
  %v289 = vunpack.c.h.b16 %v93
  %v290 = vunpack.c.l.b16 %v94
  %v291 = vunpack.c.h.b16 %v94
  %v292 = vunpack.c.l.b16 %v95
  %v293 = vunpack.c.h.b16 %v95
  %v294 = vunpack.c.l.b16 %v96
  %v295 = vunpack.c.h.b16 %v96
  %v296 = vunpack.c.l.b16 %v97
  %v297 = vunpack.c.h.b16 %v97
  %v298 = vunpack.c.l.b16 %v98
  %v299 = vunpack.c.h.b16 %v98
  %v300 = vunpack.c.l.b16 %v99
  %v301 = vunpack.c.h.b16 %v99
  %v302 = vunpack.c.l.b16 %v100
  %v303 = vunpack.c.h.b16 %v100
  %v304 = vunpack.c.l.b16 %v101
  %v305 = vunpack.c.h.b16 %v101
  %v306 = vunpack.c.l.b16 %v102
  %v307 = vunpack.c.h.b16 %v102
  %v308 = vunpack.c.l.b16 %v103
  %v309 = vunpack.c.h.b16 %v103
  %v310 = vunpack.c.l.b16 %v104
  %v311 = vunpack.c.h.b16 %v104
  %v312 = vunpack.c.l.b16 %v105
  %v313 = vunpack.c.h.b16 %v105
  %v314 = vunpack.c.l.b16 %v106
  %v315 = vunpack.c.h.b16 %v106
  %v316 = vunpack.c.l.b16 %v107
  %v317 = vunpack.c.h.b16 %v107
  %v318 = vunpack.c.l.b16 %v108
  %v319 = vunpack.c.h.b16 %v108
  %v320 = vunpack.c.l.b16 %v109
  %v321 = vunpack.c.h.b16 %v109
  %v322 = vunpack.c.l.b16 %v110
  %v323 = vunpack.c.h.b16 %v110
  %v324 = vunpack.c.l.b16 %v111
  %v325 = vunpack.c.h.b16 %v111
  %v326 = vunpack.c.l.b16 %v112
  %v327 = vunpack.c.h.b16 %v112
  %v328 = vunpack.c.l.b16 %v113
  %v329 = vunpack.c.h.b16 %v113
  %v330 = vunpack.c.l.b16 %v114
  %v331 = vunpack.c.h.b16 %v114
  %v332 = vunpack.c.l.b16 %v115
  %v333 = vunpack.c.h.b16 %v115
  %v334 = vunpack.c.l.b16 %v116
  %v335 = vunpack.c.h.b16 %v116
  %v336 = vunpack.c.l.b16 %v117
  %v337 = vunpack.c.h.b16 %v117
  %v338 = vunpack.c.l.b16 %v118
  %v339 = vunpack.c.h.b16 %v118
  %v340 = vunpack.c.l.b16 %v119
  %v341 = vunpack.c.h.b16 %v119
  %v342 = vunpack.c.l.b16 %v120
  %v343 = vunpack.c.h.b16 %v120
  %v344 = vunpack.c.l.b16 %v121
  %v345 = vunpack.c.h.b16 %v121
  %v346 = vunpack.c.l.b16 %v122
  %v347 = vunpack.c.h.b16 %v122
  %v348 = vunpack.c.l.b16 %v123
  %v349 = vunpack.c.h.b16 %v123
  %v350 = vunpack.c.l.b16 %v124
  %v351 = vunpack.c.h.b16 %v124
  %v352 = vunpack.c.l.b16 %v125
  %v353 = vunpack.c.h.b16 %v125
  %v354 = vunpack.c.l.b16 %v126
  %v355 = vunpack.c.h.b16 %v126
  %v356 = vunpack.c.l.b16 %v127
  %v357 = vunpack.c.h.b16 %v127
  %v358 = vunpack.c.l.b16 %v128
  %v359 = vunpack.c.h.b16 %v128
  %v360 = vunpack.c.l.b16 %v129
  %v361 = vunpack.c.h.b16 %v129
  %v362 = vpack.c.b16 %v254, %v250
  %v363 = vpack.c.b16 %v255, %v251
  %v364 = vpack.c.b16 %v256, %v252
  %v365 = vpack.c.b16 %v257, %v253
  %v366 = vpack.c.b16 %v262, %v258
  %v367 = vpack.c.b16 %v263, %v259
  %v368 = vpack.c.b16 %v264, %v260
  %v369 = vpack.c.b16 %v265, %v261
  %v370 = vpack.c.b16 %v270, %v266
  %v371 = vpack.c.b16 %v271, %v267
  %v372 = vpack.c.b16 %v272, %v268
  %v373 = vpack.c.b16 %v273, %v269
  %v374 = vpack.c.b16 %v278, %v274
  %v375 = vpack.c.b16 %v279, %v275
  %v376 = vpack.c.b16 %v280, %v276
  %v377 = vpack.c.b16 %v281, %v277
  %v378 = vpack.c.b16 %v286, %v282
  %v379 = vpack.c.b16 %v287, %v283
  %v380 = vpack.c.b16 %v288, %v284
  %v381 = vpack.c.b16 %v289, %v285
  %v382 = vpack.c.b16 %v294, %v290
  %v383 = vpack.c.b16 %v295, %v291
  %v384 = vpack.c.b16 %v296, %v292
  %v385 = vpack.c.b16 %v297, %v293
  %v386 = vpack.c.b16 %v302, %v298
  %v387 = vpack.c.b16 %v303, %v299
  %v388 = vpack.c.b16 %v304, %v300
  %v389 = vpack.c.b16 %v305, %v301
  %v390 = vpack.c.b16 %v310, %v306
  %v391 = vpack.c.b16 %v311, %v307
  %v392 = vpack.c.b16 %v312, %v308
  %v393 = vpack.c.b16 %v313, %v309
  %v394 = vpack.c.b16 %v318, %v314
  %v395 = vpack.c.b16 %v319, %v315
  %v396 = vpack.c.b16 %v320, %v316
  %v397 = vpack.c.b16 %v321, %v317
  %v398 = vpack.c.b16 %v326, %v322
  %v399 = vpack.c.b16 %v327, %v323
  %v400 = vpack.c.b16 %v328, %v324
  %v401 = vpack.c.b16 %v329, %v325
  %v402 = vpack.c.b16 %v334, %v330
  %v403 = vpack.c.b16 %v335, %v331
  %v404 = vpack.c.b16 %v336, %v332
  %v405 = vpack.c.b16 %v337, %v333
  %v406 = vpack.c.b16 %v342, %v338
  %v407 = vpack.c.b16 %v343, %v339
  %v408 = vpack.c.b16 %v344, %v340
  %v409 = vpack.c.b16 %v345, %v341
  %v410 = vpack.c.b16 %v350, %v346
  %v411 = vpack.c.b16 %v351, %v347
  %v412 = vpack.c.b16 %v352, %v348
  %v413 = vpack.c.b16 %v353, %v349
  %v414 = vpack.c.b16 %v358, %v354
  %v415 = vpack.c.b16 %v359, %v355
  %v416 = vpack.c.b16 %v360, %v356
  %v417 = vpack.c.b16 %v361, %v357
  %v538 = vunpack.c.l.b16 %v130
  %v539 = vunpack.c.l.b16 %v131
  %v540 = vunpack.c.l.b16 %v132
  %v541 = vunpack.c.l.b16 %v133
  %v542 = vunpack.c.l.b16 %v134
  %v543 = vunpack.c.l.b16 %v135
  %v544 = vunpack.c.l.b16 %v136
  %v545 = vunpack.c.l.b16 %v137
  %v546 = vunpack.c.l.b16 %v138
  %v547 = vunpack.c.l.b16 %v139
  %v548 = vunpack.c.l.b16 %v140
  %v549 = vunpack.c.l.b16 %v141
  %v550 = vunpack.c.l.b16 %v142
  %v551 = vunpack.c.l.b16 %v143
  %v552 = vunpack.c.l.b16 %v144
  %v553 = vunpack.c.l.b16 %v145
  %v554 = vunpack.c.l.b16 %v146
  %v555 = vunpack.c.l.b16 %v147
  %v556 = vunpack.c.l.b16 %v148
  %v557 = vunpack.c.l.b16 %v149
  %v558 = vunpack.c.l.b16 %v150
  %v559 = vunpack.c.l.b16 %v151
  %v560 = vunpack.c.l.b16 %v152
  %v561 = vunpack.c.l.b16 %v153
  %v562 = vunpack.c.l.b16 %v154
  %v563 = vunpack.c.l.b16 %v155
  %v564 = vunpack.c.l.b16 %v156
  %v565 = vunpack.c.l.b16 %v157
  %v566 = vunpack.c.l.b16 %v158
  %v567 = vunpack.c.l.b16 %v159
  %v568 = vunpack.c.l.b16 %v160
  %v569 = vunpack.c.l.b16 %v161
  %v570 = vunpack.c.l.b16 %v162
  %v571 = vunpack.c.l.b16 %v163
  %v572 = vunpack.c.l.b16 %v164
  %v573 = vunpack.c.l.b16 %v165
  %v574 = vunpack.c.l.b16 %v166
  %v575 = vunpack.c.l.b16 %v167
  %v576 = vunpack.c.l.b16 %v168
  %v577 = vunpack.c.l.b16 %v169
  %v578 = vunpack.c.l.b16 %v170
  %v579 = vunpack.c.l.b16 %v171
  %v580 = vunpack.c.l.b16 %v172
  %v581 = vunpack.c.l.b16 %v173
  %v582 = vunpack.c.l.b16 %v174
  %v583 = vunpack.c.l.b16 %v175
  %v584 = vunpack.c.l.b16 %v176
  %v585 = vunpack.c.l.b16 %v177
  %v586 = vunpack.c.l.b16 %v178
  %v587 = vunpack.c.l.b16 %v179
  %v588 = vunpack.c.l.b16 %v180
  %v589 = vunpack.c.l.b16 %v181
  %v590 = vunpack.c.l.b16 %v182
  %v591 = vunpack.c.l.b16 %v183
  %v592 = vunpack.c.l.b16 %v184
  %v593 = vunpack.c.l.b16 %v185
  %v594 = vunpack.c.l.b16 %v186
  %v595 = vunpack.c.l.b16 %v187
  %v596 = vunpack.c.l.b16 %v188
  %v597 = vunpack.c.l.b16 %v189
  %v598 = vunpack.c.l.b16 %v190
  %v599 = vunpack.c.l.b16 %v191
  %v600 = vunpack.c.l.b16 %v192
  %v601 = vunpack.c.l.b16 %v193
  %v602 = vpack.c.b16 %v539, %v538
  %v603 = vpack.c.b16 %v541, %v540
  %v604 = vpack.c.b16 %v543, %v542
  %v605 = vpack.c.b16 %v545, %v544
  %v606 = vpack.c.b16 %v547, %v546
  %v607 = vpack.c.b16 %v549, %v548
  %v608 = vpack.c.b16 %v551, %v550
  %v609 = vpack.c.b16 %v553, %v552
  %v610 = vpack.c.b16 %v555, %v554
  %v611 = vpack.c.b16 %v557, %v556
  %v612 = vpack.c.b16 %v559, %v558
  %v613 = vpack.c.b16 %v561, %v560
  %v614 = vpack.c.b16 %v563, %v562
  %v615 = vpack.c.b16 %v565, %v564
  %v616 = vpack.c.b16 %v567, %v566
  %v617 = vpack.c.b16 %v569, %v568
  %v618 = vpack.c.b16 %v571, %v570
  %v619 = vpack.c.b16 %v573, %v572
  %v620 = vpack.c.b16 %v575, %v574
  %v621 = vpack.c.b16 %v577, %v576
  %v622 = vpack.c.b16 %v579, %v578
  %v623 = vpack.c.b16 %v581, %v580
  %v624 = vpack.c.b16 %v583, %v582
  %v625 = vpack.c.b16 %v585, %v584
  %v626 = vpack.c.b16 %v587, %v586
  %v627 = vpack.c.b16 %v589, %v588
  %v628 = vpack.c.b16 %v591, %v590
  %v629 = vpack.c.b16 %v593, %v592
  %v630 = vpack.c.b16 %v595, %v594
  %v631 = vpack.c.b16 %v597, %v596
  %v632 = vpack.c.b16 %v599, %v598
  %v633 = vpack.c.b16 %v601, %v600
  %666 = vmatpush.bf16.msra.mxu0 %v609
  %667 = vmatpush.bf16.msra.mxu0 %v608
  %668 = vmatpush.bf16.msra.mxu0 %v607
  %669 = vmatpush.bf16.msra.mxu0 %v606
  %670 = vmatpush.bf16.msra.mxu0 %v605
  %671 = vmatpush.bf16.msra.mxu0 %v604
  %672 = vmatpush.bf16.msra.mxu0 %v603
  %673 = vmatpush.bf16.msra.mxu0 %v602
  %674 = vmatmul.bf16.gmra.mxu0 %v362
  %v675 = vpop.f32.mrf.mxu0
  %v676 = vadd.f32 0.0, %v675
  %v677 = vpop.f32.mrf.mxu0
  %v678 = vadd.f32 0.0, %v677
  %679 = vmatmul.bf16.gmra.mxu0 %v366
  %v680 = vpop.f32.mrf.mxu0
  %v681 = vadd.f32 0.0, %v680
  %v682 = vpop.f32.mrf.mxu0
  %v683 = vadd.f32 0.0, %v682
  %684 = vmatmul.bf16.gmra.mxu0 %v370
  %v685 = vpop.f32.mrf.mxu0
  %v686 = vadd.f32 0.0, %v685
  %v687 = vpop.f32.mrf.mxu0
  %v688 = vadd.f32 0.0, %v687
  %689 = vmatmul.bf16.gmra.mxu0 %v374
  %v690 = vpop.f32.mrf.mxu0
  %v691 = vadd.f32 0.0, %v690
  %v692 = vpop.f32.mrf.mxu0
  %v693 = vadd.f32 0.0, %v692
  %694 = vmatmul.bf16.gmra.mxu0 %v378
  %v695 = vpop.f32.mrf.mxu0
  %v696 = vadd.f32 0.0, %v695
  %v697 = vpop.f32.mrf.mxu0
  %v698 = vadd.f32 0.0, %v697
  %699 = vmatmul.bf16.gmra.mxu0 %v382
  %v700 = vpop.f32.mrf.mxu0
  %v701 = vadd.f32 0.0, %v700
  %v702 = vpop.f32.mrf.mxu0
  %v703 = vadd.f32 0.0, %v702
  %704 = vmatmul.bf16.gmra.mxu0 %v386
  %v705 = vpop.f32.mrf.mxu0
  %v706 = vadd.f32 0.0, %v705
  %v707 = vpop.f32.mrf.mxu0
  %v708 = vadd.f32 0.0, %v707
  %709 = vmatmul.bf16.gmra.mxu0 %v390
  %v710 = vpop.f32.mrf.mxu0
  %v711 = vadd.f32 0.0, %v710
  %v712 = vpop.f32.mrf.mxu0
  %v713 = vadd.f32 0.0, %v712
  %714 = vmatmul.bf16.gmra.mxu0 %v394
  %v715 = vpop.f32.mrf.mxu0
  %v716 = vadd.f32 0.0, %v715
  %v717 = vpop.f32.mrf.mxu0
  %v718 = vadd.f32 0.0, %v717
  %719 = vmatmul.bf16.gmra.mxu0 %v398
  %v720 = vpop.f32.mrf.mxu0
  %v721 = vadd.f32 0.0, %v720
  %v722 = vpop.f32.mrf.mxu0
  %v723 = vadd.f32 0.0, %v722
  %724 = vmatmul.bf16.gmra.mxu0 %v402
  %v725 = vpop.f32.mrf.mxu0
  %v726 = vadd.f32 0.0, %v725
  %v727 = vpop.f32.mrf.mxu0
  %v728 = vadd.f32 0.0, %v727
  %729 = vmatmul.bf16.gmra.mxu0 %v406
  %v730 = vpop.f32.mrf.mxu0
  %v731 = vadd.f32 0.0, %v730
  %v732 = vpop.f32.mrf.mxu0
  %v733 = vadd.f32 0.0, %v732
  %734 = vmatmul.bf16.gmra.mxu0 %v410
  %v735 = vpop.f32.mrf.mxu0
  %v736 = vadd.f32 0.0, %v735
  %v737 = vpop.f32.mrf.mxu0
  %v738 = vadd.f32 0.0, %v737
  %739 = vmatmul.bf16.gmra.mxu0 %v414
  %v740 = vpop.f32.mrf.mxu0
  %v741 = vadd.f32 0.0, %v740
  %v742 = vpop.f32.mrf.mxu0
  %v743 = vadd.f32 0.0, %v742
  %744 = vdwg.mxu0
  %745 = vmatpush.bf16.msra.mxu0 %v617
  %746 = vmatpush.bf16.msra.mxu0 %v616
  %747 = vmatpush.bf16.msra.mxu0 %v615
  %748 = vmatpush.bf16.msra.mxu0 %v614
  %749 = vmatpush.bf16.msra.mxu0 %v613
  %750 = vmatpush.bf16.msra.mxu0 %v612
  %751 = vmatpush.bf16.msra.mxu0 %v611
  %752 = vmatpush.bf16.msra.mxu0 %v610
  %753 = vmatmul.bf16.gmra.mxu0 %v363
  %v754 = vpop.f32.mrf.mxu0
  %v755 = vadd.f32 %v676, %v754
  %v756 = vpop.f32.mrf.mxu0
  %v757 = vadd.f32 %v678, %v756
  %758 = vmatmul.bf16.gmra.mxu0 %v367
  %v759 = vpop.f32.mrf.mxu0
  %v760 = vadd.f32 %v681, %v759
  %v761 = vpop.f32.mrf.mxu0
  %v762 = vadd.f32 %v683, %v761
  %763 = vmatmul.bf16.gmra.mxu0 %v371
  %v764 = vpop.f32.mrf.mxu0
  %v765 = vadd.f32 %v686, %v764
  %v766 = vpop.f32.mrf.mxu0
  %v767 = vadd.f32 %v688, %v766
  %768 = vmatmul.bf16.gmra.mxu0 %v375
  %v769 = vpop.f32.mrf.mxu0
  %v770 = vadd.f32 %v691, %v769
  %v771 = vpop.f32.mrf.mxu0
  %v772 = vadd.f32 %v693, %v771
  %773 = vmatmul.bf16.gmra.mxu0 %v379
  %v774 = vpop.f32.mrf.mxu0
  %v775 = vadd.f32 %v696, %v774
  %v776 = vpop.f32.mrf.mxu0
  %v777 = vadd.f32 %v698, %v776
  %778 = vmatmul.bf16.gmra.mxu0 %v383
  %v779 = vpop.f32.mrf.mxu0
  %v780 = vadd.f32 %v701, %v779
  %v781 = vpop.f32.mrf.mxu0
  %v782 = vadd.f32 %v703, %v781
  %783 = vmatmul.bf16.gmra.mxu0 %v387
  %v784 = vpop.f32.mrf.mxu0
  %v785 = vadd.f32 %v706, %v784
  %v786 = vpop.f32.mrf.mxu0
  %v787 = vadd.f32 %v708, %v786
  %788 = vmatmul.bf16.gmra.mxu0 %v391
  %v789 = vpop.f32.mrf.mxu0
  %v790 = vadd.f32 %v711, %v789
  %v791 = vpop.f32.mrf.mxu0
  %v792 = vadd.f32 %v713, %v791
  %793 = vmatmul.bf16.gmra.mxu0 %v395
  %v794 = vpop.f32.mrf.mxu0
  %v795 = vadd.f32 %v716, %v794
  %v796 = vpop.f32.mrf.mxu0
  %v797 = vadd.f32 %v718, %v796
  %798 = vmatmul.bf16.gmra.mxu0 %v399
  %v799 = vpop.f32.mrf.mxu0
  %v800 = vadd.f32 %v721, %v799
  %v801 = vpop.f32.mrf.mxu0
  %v802 = vadd.f32 %v723, %v801
  %803 = vmatmul.bf16.gmra.mxu0 %v403
  %v804 = vpop.f32.mrf.mxu0
  %v805 = vadd.f32 %v726, %v804
  %v806 = vpop.f32.mrf.mxu0
  %v807 = vadd.f32 %v728, %v806
  %808 = vmatmul.bf16.gmra.mxu0 %v407
  %v809 = vpop.f32.mrf.mxu0
  %v810 = vadd.f32 %v731, %v809
  %v811 = vpop.f32.mrf.mxu0
  %v812 = vadd.f32 %v733, %v811
  %813 = vmatmul.bf16.gmra.mxu0 %v411
  %v814 = vpop.f32.mrf.mxu0
  %v815 = vadd.f32 %v736, %v814
  %v816 = vpop.f32.mrf.mxu0
  %v817 = vadd.f32 %v738, %v816
  %818 = vmatmul.bf16.gmra.mxu0 %v415
  %v819 = vpop.f32.mrf.mxu0
  %v820 = vadd.f32 %v741, %v819
  %v821 = vpop.f32.mrf.mxu0
  %v822 = vadd.f32 %v743, %v821
  %823 = vdwg.mxu0
  %824 = vmatpush.bf16.msra.mxu0 %v625
  %825 = vmatpush.bf16.msra.mxu0 %v624
  %826 = vmatpush.bf16.msra.mxu0 %v623
  %827 = vmatpush.bf16.msra.mxu0 %v622
  %828 = vmatpush.bf16.msra.mxu0 %v621
  %829 = vmatpush.bf16.msra.mxu0 %v620
  %830 = vmatpush.bf16.msra.mxu0 %v619
  %831 = vmatpush.bf16.msra.mxu0 %v618
  %832 = vmatmul.bf16.gmra.mxu0 %v364
  %v833 = vpop.f32.mrf.mxu0
  %v834 = vadd.f32 %v755, %v833
  %v835 = vpop.f32.mrf.mxu0
  %v836 = vadd.f32 %v757, %v835
  %837 = vmatmul.bf16.gmra.mxu0 %v368
  %v838 = vpop.f32.mrf.mxu0
  %v839 = vadd.f32 %v760, %v838
  %v840 = vpop.f32.mrf.mxu0
  %v841 = vadd.f32 %v762, %v840
  %842 = vmatmul.bf16.gmra.mxu0 %v372
  %v843 = vpop.f32.mrf.mxu0
  %v844 = vadd.f32 %v765, %v843
  %v845 = vpop.f32.mrf.mxu0
  %v846 = vadd.f32 %v767, %v845
  %847 = vmatmul.bf16.gmra.mxu0 %v376
  %v848 = vpop.f32.mrf.mxu0
  %v849 = vadd.f32 %v770, %v848
  %v850 = vpop.f32.mrf.mxu0
  %v851 = vadd.f32 %v772, %v850
  %852 = vmatmul.bf16.gmra.mxu0 %v380
  %v853 = vpop.f32.mrf.mxu0
  %v854 = vadd.f32 %v775, %v853
  %v855 = vpop.f32.mrf.mxu0
  %v856 = vadd.f32 %v777, %v855
  %857 = vmatmul.bf16.gmra.mxu0 %v384
  %v858 = vpop.f32.mrf.mxu0
  %v859 = vadd.f32 %v780, %v858
  %v860 = vpop.f32.mrf.mxu0
  %v861 = vadd.f32 %v782, %v860
  %862 = vmatmul.bf16.gmra.mxu0 %v388
  %v863 = vpop.f32.mrf.mxu0
  %v864 = vadd.f32 %v785, %v863
  %v865 = vpop.f32.mrf.mxu0
  %v866 = vadd.f32 %v787, %v865
  %867 = vmatmul.bf16.gmra.mxu0 %v392
  %v868 = vpop.f32.mrf.mxu0
  %v869 = vadd.f32 %v790, %v868
  %v870 = vpop.f32.mrf.mxu0
  %v871 = vadd.f32 %v792, %v870
  %872 = vmatmul.bf16.gmra.mxu0 %v396
  %v873 = vpop.f32.mrf.mxu0
  %v874 = vadd.f32 %v795, %v873
  %v875 = vpop.f32.mrf.mxu0
  %v876 = vadd.f32 %v797, %v875
  %877 = vmatmul.bf16.gmra.mxu0 %v400
  %v878 = vpop.f32.mrf.mxu0
  %v879 = vadd.f32 %v800, %v878
  %v880 = vpop.f32.mrf.mxu0
  %v881 = vadd.f32 %v802, %v880
  %882 = vmatmul.bf16.gmra.mxu0 %v404
  %v883 = vpop.f32.mrf.mxu0
  %v884 = vadd.f32 %v805, %v883
  %v885 = vpop.f32.mrf.mxu0
  %v886 = vadd.f32 %v807, %v885
  %887 = vmatmul.bf16.gmra.mxu0 %v408
  %v888 = vpop.f32.mrf.mxu0
  %v889 = vadd.f32 %v810, %v888
  %v890 = vpop.f32.mrf.mxu0
  %v891 = vadd.f32 %v812, %v890
  %892 = vmatmul.bf16.gmra.mxu0 %v412
  %v893 = vpop.f32.mrf.mxu0
  %v894 = vadd.f32 %v815, %v893
  %v895 = vpop.f32.mrf.mxu0
  %v896 = vadd.f32 %v817, %v895
  %897 = vmatmul.bf16.gmra.mxu0 %v416
  %v898 = vpop.f32.mrf.mxu0
  %v899 = vadd.f32 %v820, %v898
  %v900 = vpop.f32.mrf.mxu0
  %v901 = vadd.f32 %v822, %v900
  %902 = vdwg.mxu0
  %903 = vmatpush.bf16.msra.mxu0 %v633
  %904 = vmatpush.bf16.msra.mxu0 %v632
  %905 = vmatpush.bf16.msra.mxu0 %v631
  %906 = vmatpush.bf16.msra.mxu0 %v630
  %907 = vmatpush.bf16.msra.mxu0 %v629
  %908 = vmatpush.bf16.msra.mxu0 %v628
  %909 = vmatpush.bf16.msra.mxu0 %v627
  %910 = vmatpush.bf16.msra.mxu0 %v626
  %911 = vmatmul.bf16.gmra.mxu0 %v365
  %v912 = vpop.f32.mrf.mxu0
  %v913 = vadd.f32 %v834, %v912
  %v914 = vpop.f32.mrf.mxu0
  %v915 = vadd.f32 %v836, %v914
  %916 = vmatmul.bf16.gmra.mxu0 %v369
  %v917 = vpop.f32.mrf.mxu0
  %v918 = vadd.f32 %v839, %v917
  %v919 = vpop.f32.mrf.mxu0
  %v920 = vadd.f32 %v841, %v919
  %921 = vmatmul.bf16.gmra.mxu0 %v373
  %v922 = vpop.f32.mrf.mxu0
  %v923 = vadd.f32 %v844, %v922
  %v924 = vpop.f32.mrf.mxu0
  %v925 = vadd.f32 %v846, %v924
  %926 = vmatmul.bf16.gmra.mxu0 %v377
  %v927 = vpop.f32.mrf.mxu0
  %v928 = vadd.f32 %v849, %v927
  %v929 = vpop.f32.mrf.mxu0
  %v930 = vadd.f32 %v851, %v929
  %931 = vmatmul.bf16.gmra.mxu0 %v381
  %v932 = vpop.f32.mrf.mxu0
  %v933 = vadd.f32 %v854, %v932
  %v934 = vpop.f32.mrf.mxu0
  %v935 = vadd.f32 %v856, %v934
  %936 = vmatmul.bf16.gmra.mxu0 %v385
  %v937 = vpop.f32.mrf.mxu0
  %v938 = vadd.f32 %v859, %v937
  %v939 = vpop.f32.mrf.mxu0
  %v940 = vadd.f32 %v861, %v939
  %941 = vmatmul.bf16.gmra.mxu0 %v389
  %v942 = vpop.f32.mrf.mxu0
  %v943 = vadd.f32 %v864, %v942
  %v944 = vpop.f32.mrf.mxu0
  %v945 = vadd.f32 %v866, %v944
  %946 = vmatmul.bf16.gmra.mxu0 %v393
  %v947 = vpop.f32.mrf.mxu0
  %v948 = vadd.f32 %v869, %v947
  %v949 = vpop.f32.mrf.mxu0
  %v950 = vadd.f32 %v871, %v949
  %951 = vmatmul.bf16.gmra.mxu0 %v397
  %v952 = vpop.f32.mrf.mxu0
  %v953 = vadd.f32 %v874, %v952
  %v954 = vpop.f32.mrf.mxu0
  %v955 = vadd.f32 %v876, %v954
  %956 = vmatmul.bf16.gmra.mxu0 %v401
  %v957 = vpop.f32.mrf.mxu0
  %v958 = vadd.f32 %v879, %v957
  %v959 = vpop.f32.mrf.mxu0
  %v960 = vadd.f32 %v881, %v959
  %961 = vmatmul.bf16.gmra.mxu0 %v405
  %v962 = vpop.f32.mrf.mxu0
  %v963 = vadd.f32 %v884, %v962
  %v964 = vpop.f32.mrf.mxu0
  %v965 = vadd.f32 %v886, %v964
  %966 = vmatmul.bf16.gmra.mxu0 %v409
  %v967 = vpop.f32.mrf.mxu0
  %v968 = vadd.f32 %v889, %v967
  %v969 = vpop.f32.mrf.mxu0
  %v970 = vadd.f32 %v891, %v969
  %971 = vmatmul.bf16.gmra.mxu0 %v413
  %v972 = vpop.f32.mrf.mxu0
  %v973 = vadd.f32 %v894, %v972
  %v974 = vpop.f32.mrf.mxu0
  %v975 = vadd.f32 %v896, %v974
  %976 = vmatmul.bf16.gmra.mxu0 %v417
  %v977 = vpop.f32.mrf.mxu0
  %v978 = vadd.f32 %v899, %v977
  %v979 = vpop.f32.mrf.mxu0
  %v980 = vadd.f32 %v901, %v979
  %981 = vdwg.mxu0
  %v982 = vadd.f32 %v46, %v913
  %v983 = vadd.f32 %v47, %v915
  %v984 = vadd.f32 %v48, %v918
  %v985 = vadd.f32 %v49, %v920
  %v986 = vadd.f32 %v50, %v923
  %v987 = vadd.f32 %v51, %v925
  %v988 = vadd.f32 %v52, %v928
  %v989 = vadd.f32 %v53, %v930
  %v990 = vadd.f32 %v54, %v933
  %v991 = vadd.f32 %v55, %v935
  %v992 = vadd.f32 %v56, %v938
  %v993 = vadd.f32 %v57, %v940
  %v994 = vadd.f32 %v58, %v943
  %v995 = vadd.f32 %v59, %v945
  %v996 = vadd.f32 %v60, %v948
  %v997 = vadd.f32 %v61, %v950
  %v998 = vadd.f32 %v62, %v953
  %v999 = vadd.f32 %v63, %v955
  %v1000 = vadd.f32 %v64, %v958
  %v1001 = vadd.f32 %v65, %v960
  %v1002 = vadd.f32 %v66, %v963
  %v1003 = vadd.f32 %v67, %v965
  %v1004 = vadd.f32 %v68, %v968
  %v1005 = vadd.f32 %v69, %v970
  %v1006 = vadd.f32 %v70, %v973
  %v1007 = vadd.f32 %v71, %v975
  %v1008 = vadd.f32 %v72, %v978
  %v1009 = vadd.f32 %v73, %v980
  %vm1010 = vcmask 195584
  %1011 = vst.msk [vmem:[#allocation2] sm:$0xff] %vm1010, %v982
  %1012 = vst.msk [vmem:[#allocation2 + $0x8] sm:$0xff] %vm1010, %v983
  %1013 = vst.msk [vmem:[#allocation2 + $0x10] sm:$0xff] %vm1010, %v984
  %1014 = vst.msk [vmem:[#allocation2 + $0x18] sm:$0xff] %vm1010, %v985
  %1015 = vst.msk [vmem:[#allocation2 + $0x20] sm:$0xff] %vm1010, %v986
  %1016 = vst.msk [vmem:[#allocation2 + $0x28] sm:$0xff] %vm1010, %v987
  %1017 = vst.msk [vmem:[#allocation2 + $0x30] sm:$0xff] %vm1010, %v988
  %1018 = vst.msk [vmem:[#allocation2 + $0x38] sm:$0xff] %vm1010, %v989
  %1019 = vst.msk [vmem:[#allocation2 + $0x40] sm:$0xff] %vm1010, %v990
  %1020 = vst.msk [vmem:[#allocation2 + $0x48] sm:$0xff] %vm1010, %v991
  %1021 = vst.msk [vmem:[#allocation2 + $0x50] sm:$0xff] %vm1010, %v992
  %1022 = vst.msk [vmem:[#allocation2 + $0x58] sm:$0xff] %vm1010, %v993
  %1023 = vst.msk [vmem:[#allocation2 + $0x60] sm:$0xff] %vm1010, %v994
  %1024 = vst.msk [vmem:[#allocation2 + $0x68] sm:$0xff] %vm1010, %v995
  %1025 = vst.msk [vmem:[#allocation2 + $0x70] sm:$0xff] %vm1010, %v996
  %1026 = vst.msk [vmem:[#allocation2 + $0x78] sm:$0xff] %vm1010, %v997
  %1027 = vst.msk [vmem:[#allocation2 + $0x80] sm:$0xff] %vm1010, %v998
  %1028 = vst.msk [vmem:[#allocation2 + $0x88] sm:$0xff] %vm1010, %v999
  %1029 = vst.msk [vmem:[#allocation2 + $0x90] sm:$0xff] %vm1010, %v1000
  %1030 = vst.msk [vmem:[#allocation2 + $0x98] sm:$0xff] %vm1010, %v1001
  %1031 = vst.msk [vmem:[#allocation2 + $0xa0] sm:$0xff] %vm1010, %v1002
  %1032 = vst.msk [vmem:[#allocation2 + $0xa8] sm:$0xff] %vm1010, %v1003
  %1033 = vst.msk [vmem:[#allocation2 + $0xb0] sm:$0xff] %vm1010, %v1004
  %1034 = vst.msk [vmem:[#allocation2 + $0xb8] sm:$0xff] %vm1010, %v1005
  %1035 = vst.msk [vmem:[#allocation2 + $0xc0] sm:$0xff] %vm1010, %v1006
  %1036 = vst.msk [vmem:[#allocation2 + $0xc8] sm:$0xff] %vm1010, %v1007
  %1037 = vst.msk [vmem:[#allocation2 + $0xd0] sm:$0xff] %vm1010, %v1008
  %1038 = vst.msk [vmem:[#allocation2 + $0xd8] sm:$0xff] %vm1010, %v1009
  // Predicated region
  $region14: #{hcnet_forward.31} parent=0 // pred_check
    %p1039 = pneg %p13
  $region15: #{hcnet_forward.31} parent=0 // pred_check_branch
    %1041 = sbr.rel (%p1039) target = $region17
  $region16: #{hcnet_forward.31} parent=0 // pred_region
    %v1042 = vld [vmem:[#allocation2] sm:$0xff]
    %v1043 = vld [vmem:[#allocation2 + $0x8] sm:$0xff]
    %v1044 = vld [vmem:[#allocation2 + $0x10] sm:$0xff]
    %v1045 = vld [vmem:[#allocation2 + $0x18] sm:$0xff]
    %v1046 = vld [vmem:[#allocation2 + $0x20] sm:$0xff]
    %v1047 = vld [vmem:[#allocation2 + $0x28] sm:$0xff]
    %v1048 = vld [vmem:[#allocation2 + $0x30] sm:$0xff]
    %v1049 = vld [vmem:[#allocation2 + $0x38] sm:$0xff]
    %v1050 = vld [vmem:[#allocation2 + $0x40] sm:$0xff]
    %v1051 = vld [vmem:[#allocation2 + $0x48] sm:$0xff]
    %v1052 = vld [vmem:[#allocation2 + $0x50] sm:$0xff]
    %v1053 = vld [vmem:[#allocation2 + $0x58] sm:$0xff]
    %v1054 = vld [vmem:[#allocation2 + $0x60] sm:$0xff]
    %v1055 = vld [vmem:[#allocation2 + $0x68] sm:$0xff]
    %v1056 = vld [vmem:[#allocation2 + $0x70] sm:$0xff]
    %v1057 = vld [vmem:[#allocation2 + $0x78] sm:$0xff]
    %v1058 = vld [vmem:[#allocation2 + $0x80] sm:$0xff]
    %v1059 = vld [vmem:[#allocation2 + $0x88] sm:$0xff]
    %v1060 = vld [vmem:[#allocation2 + $0x90] sm:$0xff]
    %v1061 = vld [vmem:[#allocation2 + $0x98] sm:$0xff]
    %v1062 = vld [vmem:[#allocation2 + $0xa0] sm:$0xff]
    %v1063 = vld [vmem:[#allocation2 + $0xa8] sm:$0xff]
    %v1064 = vld [vmem:[#allocation2 + $0xb0] sm:$0xff]
    %v1065 = vld [vmem:[#allocation2 + $0xb8] sm:$0xff]
    %v1066 = vld [vmem:[#allocation2 + $0xc0] sm:$0xff]
    %v1067 = vld [vmem:[#allocation2 + $0xc8] sm:$0xff]
    %v1068 = vld [vmem:[#allocation2 + $0xd0] sm:$0xff]
    %v1069 = vld [vmem:[#allocation2 + $0xd8] sm:$0xff]
    %1070 = vst.msk [vmem:[%s2] sm:$0xff] %vm1010, %v1042
    %1071 = vst.msk [vmem:[%s2 + $0x8] sm:$0xff] %vm1010, %v1043
    %1072 = vst.msk [vmem:[%s2 + $0x10] sm:$0xff] %vm1010, %v1044
    %1073 = vst.msk [vmem:[%s2 + $0x18] sm:$0xff] %vm1010, %v1045
    %1074 = vst.msk [vmem:[%s2 + $0x20] sm:$0xff] %vm1010, %v1046
    %1075 = vst.msk [vmem:[%s2 + $0x28] sm:$0xff] %vm1010, %v1047
    %1076 = vst.msk [vmem:[%s2 + $0x30] sm:$0xff] %vm1010, %v1048
    %1077 = vst.msk [vmem:[%s2 + $0x38] sm:$0xff] %vm1010, %v1049
    %1078 = vst.msk [vmem:[%s2 + $0x40] sm:$0xff] %vm1010, %v1050
    %1079 = vst.msk [vmem:[%s2 + $0x48] sm:$0xff] %vm1010, %v1051
    %1080 = vst.msk [vmem:[%s2 + $0x50] sm:$0xff] %vm1010, %v1052
    %1081 = vst.msk [vmem:[%s2 + $0x58] sm:$0xff] %vm1010, %v1053
    %1082 = vst.msk [vmem:[%s2 + $0x60] sm:$0xff] %vm1010, %v1054
    %1083 = vst.msk [vmem:[%s2 + $0x68] sm:$0xff] %vm1010, %v1055
    %1084 = vst.msk [vmem:[%s2 + $0x70] sm:$0xff] %vm1010, %v1056
    %1085 = vst.msk [vmem:[%s2 + $0x78] sm:$0xff] %vm1010, %v1057
    %1086 = vst.msk [vmem:[%s2 + $0x80] sm:$0xff] %vm1010, %v1058
    %1087 = vst.msk [vmem:[%s2 + $0x88] sm:$0xff] %vm1010, %v1059
    %1088 = vst.msk [vmem:[%s2 + $0x90] sm:$0xff] %vm1010, %v1060
    %1089 = vst.msk [vmem:[%s2 + $0x98] sm:$0xff] %vm1010, %v1061
    %1090 = vst.msk [vmem:[%s2 + $0xa0] sm:$0xff] %vm1010, %v1062
    %1091 = vst.msk [vmem:[%s2 + $0xa8] sm:$0xff] %vm1010, %v1063
    %1092 = vst.msk [vmem:[%s2 + $0xb0] sm:$0xff] %vm1010, %v1064
    %1093 = vst.msk [vmem:[%s2 + $0xb8] sm:$0xff] %vm1010, %v1065
    %1094 = vst.msk [vmem:[%s2 + $0xc0] sm:$0xff] %vm1010, %v1066
    %1095 = vst.msk [vmem:[%s2 + $0xc8] sm:$0xff] %vm1010, %v1067
    %1096 = vst.msk [vmem:[%s2 + $0xd0] sm:$0xff] %vm1010, %v1068
    %1097 = vst.msk [vmem:[%s2 + $0xd8] sm:$0xff] %vm1010, %v1069
    %v1098 = vsel %vm1010, %v1042, 0.0
    %v1099 = vsel %vm1010, %v1043, 0.0
    %v1100 = vadd.f32 %v1098, %v1099
    %v1101 = vsel %vm1010, %v1044, 0.0
    %v1102 = vadd.f32 %v1100, %v1101
    %v1103 = vsel %vm1010, %v1045, 0.0
    %v1104 = vadd.f32 %v1102, %v1103
    %v1105 = vsel %vm1010, %v1046, 0.0
    %v1106 = vadd.f32 %v1104, %v1105
    %v1107 = vsel %vm1010, %v1047, 0.0
    %v1108 = vadd.f32 %v1106, %v1107
    %v1109 = vsel %vm1010, %v1048, 0.0
    %v1110 = vadd.f32 %v1108, %v1109
    %v1111 = vsel %vm1010, %v1049, 0.0
    %v1112 = vadd.f32 %v1110, %v1111
    %v1113 = vsel %vm1010, %v1050, 0.0
    %v1114 = vadd.f32 %v1112, %v1113
    %v1115 = vsel %vm1010, %v1051, 0.0
    %v1116 = vadd.f32 %v1114, %v1115
    %v1117 = vsel %vm1010, %v1052, 0.0
    %v1118 = vadd.f32 %v1116, %v1117
    %v1119 = vsel %vm1010, %v1053, 0.0
    %v1120 = vadd.f32 %v1118, %v1119
    %v1121 = vsel %vm1010, %v1054, 0.0
    %v1122 = vadd.f32 %v1120, %v1121
    %v1123 = vsel %vm1010, %v1055, 0.0
    %v1124 = vadd.f32 %v1122, %v1123
    %v1125 = vsel %vm1010, %v1056, 0.0
    %v1126 = vadd.f32 %v1124, %v1125
    %v1127 = vsel %vm1010, %v1057, 0.0
    %v1128 = vadd.f32 %v1126, %v1127
    %v1129 = vsel %vm1010, %v1058, 0.0
    %v1130 = vadd.f32 %v1128, %v1129
    %v1131 = vsel %vm1010, %v1059, 0.0
    %v1132 = vadd.f32 %v1130, %v1131
    %v1133 = vsel %vm1010, %v1060, 0.0
    %v1134 = vadd.f32 %v1132, %v1133
    %v1135 = vsel %vm1010, %v1061, 0.0
    %v1136 = vadd.f32 %v1134, %v1135
    %v1137 = vsel %vm1010, %v1062, 0.0
    %v1138 = vadd.f32 %v1136, %v1137
    %v1139 = vsel %vm1010, %v1063, 0.0
    %v1140 = vadd.f32 %v1138, %v1139
    %v1141 = vsel %vm1010, %v1064, 0.0
    %v1142 = vadd.f32 %v1140, %v1141
    %v1143 = vsel %vm1010, %v1065, 0.0
    %v1144 = vadd.f32 %v1142, %v1143
    %v1145 = vsel %vm1010, %v1066, 0.0
    %v1146 = vadd.f32 %v1144, %v1145
    %v1147 = vsel %vm1010, %v1067, 0.0
    %v1148 = vadd.f32 %v1146, %v1147
    %v1149 = vsel %vm1010, %v1068, 0.0
    %v1150 = vadd.f32 %v1148, %v1149
    %v1151 = vsel %vm1010, %v1069, 0.0
    %v1152 = vadd.f32 %v1150, %v1151
    %v1153 = vrot.slane %v1152, 4
    %v1154 = vadd.f32 %v1152, %v1153
    %v1155 = vrot.slane %v1154, 2
    %v1156 = vadd.f32 %v1154, %v1155
    %v1157 = vrot.slane %v1156, 1
    %v1158 = vadd.f32 %v1156, %v1157
    %v1159 = vmul.f32 %v1042, %v1042
    %v1160 = vmul.f32 %v1043, %v1043
    %v1161 = vmul.f32 %v1044, %v1044
    %v1162 = vmul.f32 %v1045, %v1045
    %v1163 = vmul.f32 %v1046, %v1046
    %v1164 = vmul.f32 %v1047, %v1047
    %v1165 = vmul.f32 %v1048, %v1048
    %v1166 = vmul.f32 %v1049, %v1049
    %v1167 = vmul.f32 %v1050, %v1050
    %v1168 = vmul.f32 %v1051, %v1051
    %v1169 = vmul.f32 %v1052, %v1052
    %v1170 = vmul.f32 %v1053, %v1053
    %v1171 = vmul.f32 %v1054, %v1054
    %v1172 = vmul.f32 %v1055, %v1055
    %v1173 = vmul.f32 %v1056, %v1056
    %v1174 = vmul.f32 %v1057, %v1057
    %v1175 = vmul.f32 %v1058, %v1058
    %v1176 = vmul.f32 %v1059, %v1059
    %v1177 = vmul.f32 %v1060, %v1060
    %v1178 = vmul.f32 %v1061, %v1061
    %v1179 = vmul.f32 %v1062, %v1062
    %v1180 = vmul.f32 %v1063, %v1063
    %v1181 = vmul.f32 %v1064, %v1064
    %v1182 = vmul.f32 %v1065, %v1065
    %v1183 = vmul.f32 %v1066, %v1066
    %v1184 = vmul.f32 %v1067, %v1067
    %v1185 = vmul.f32 %v1068, %v1068
    %v1186 = vmul.f32 %v1069, %v1069
    %v1187 = vsel %vm1010, %v1159, 0.0
    %v1188 = vsel %vm1010, %v1160, 0.0
    %v1189 = vadd.f32 %v1187, %v1188
    %v1190 = vsel %vm1010, %v1161, 0.0
    %v1191 = vadd.f32 %v1189, %v1190
    %v1192 = vsel %vm1010, %v1162, 0.0
    %v1193 = vadd.f32 %v1191, %v1192
    %v1194 = vsel %vm1010, %v1163, 0.0
    %v1195 = vadd.f32 %v1193, %v1194
    %v1196 = vsel %vm1010, %v1164, 0.0
    %v1197 = vadd.f32 %v1195, %v1196
    %v1198 = vsel %vm1010, %v1165, 0.0
    %v1199 = vadd.f32 %v1197, %v1198
    %v1200 = vsel %vm1010, %v1166, 0.0
    %v1201 = vadd.f32 %v1199, %v1200
    %v1202 = vsel %vm1010, %v1167, 0.0
    %v1203 = vadd.f32 %v1201, %v1202
    %v1204 = vsel %vm1010, %v1168, 0.0
    %v1205 = vadd.f32 %v1203, %v1204
    %v1206 = vsel %vm1010, %v1169, 0.0
    %v1207 = vadd.f32 %v1205, %v1206
    %v1208 = vsel %vm1010, %v1170, 0.0
    %v1209 = vadd.f32 %v1207, %v1208
    %v1210 = vsel %vm1010, %v1171, 0.0
    %v1211 = vadd.f32 %v1209, %v1210
    %v1212 = vsel %vm1010, %v1172, 0.0
    %v1213 = vadd.f32 %v1211, %v1212
    %v1214 = vsel %vm1010, %v1173, 0.0
    %v1215 = vadd.f32 %v1213, %v1214
    %v1216 = vsel %vm1010, %v1174, 0.0
    %v1217 = vadd.f32 %v1215, %v1216
    %v1218 = vsel %vm1010, %v1175, 0.0
    %v1219 = vadd.f32 %v1217, %v1218
    %v1220 = vsel %vm1010, %v1176, 0.0
    %v1221 = vadd.f32 %v1219, %v1220
    %v1222 = vsel %vm1010, %v1177, 0.0
    %v1223 = vadd.f32 %v1221, %v1222
    %v1224 = vsel %vm1010, %v1178, 0.0
    %v1225 = vadd.f32 %v1223, %v1224
    %v1226 = vsel %vm1010, %v1179, 0.0
    %v1227 = vadd.f32 %v1225, %v1226
    %v1228 = vsel %vm1010, %v1180, 0.0
    %v1229 = vadd.f32 %v1227, %v1228
    %v1230 = vsel %vm1010, %v1181, 0.0
    %v1231 = vadd.f32 %v1229, %v1230
    %v1232 = vsel %vm1010, %v1182, 0.0
    %v1233 = vadd.f32 %v1231, %v1232
    %v1234 = vsel %vm1010, %v1183, 0.0
    %v1235 = vadd.f32 %v1233, %v1234
    %v1236 = vsel %vm1010, %v1184, 0.0
    %v1237 = vadd.f32 %v1235, %v1236
    %v1238 = vsel %vm1010, %v1185, 0.0
    %v1239 = vadd.f32 %v1237, %v1238
    %v1240 = vsel %vm1010, %v1186, 0.0
    %v1241 = vadd.f32 %v1239, %v1240
    %v1242 = vrot.slane %v1241, 4
    %v1243 = vadd.f32 %v1241, %v1242
    %v1244 = vrot.slane %v1243, 2
    %v1245 = vadd.f32 %v1243, %v1244
    %v1246 = vrot.slane %v1245, 1
    %v1247 = vadd.f32 %v1245, %v1246
    %v1248 = vlaneseq
    %v1249 = vshrl.u32 %v1248, 7
    %vm1250 = vcmp.eq.s32.totalorder %v1249, 0
    %vm1251 = vcmp.eq.s32.totalorder %v1249, 1
    %v1252 = vsel %vm1251, %v1247, 0.0
    %v1253 = vsel %vm1250, %v1158, %v1252
    %1254 = vst.msk [vmem:[%s3] sm:$0xff] %vm1010, %v1253
  $region17: #{hcnet_forward.31} parent=0 // pred_fallthru
    _
  // Predicated region
  $region18: #{hcnet_forward.31} parent=0 // pred_check
    _
  $region19: #{hcnet_forward.31} parent=0 // pred_check_branch
    %1256 = sbr.rel (0) target = $region21
  $region20: #{hcnet_forward.31} parent=0 // pred_region
    _
  $region21: #{hcnet_forward.31} parent=0 // pred_fallthru
    _
  // Predicated region
  $region22: #{hcnet_forward.31} parent=0 // pred_check
    _
  $region23: #{hcnet_forward.31} parent=0 // pred_check_branch
    %1258 = sbr.rel (0) target = $region25
  $region24: #{hcnet_forward.31} parent=0 // pred_region
    _
  $region25: #{hcnet_forward.31} parent=0 // pred_fallthru
    _
  // Predicated region
  $region26: #{hcnet_forward.31} parent=0 // pred_check
    _
  $region27: #{hcnet_forward.31} parent=0 // pred_check_branch
    %1260 = sbr.rel (0) target = $region29
  $region28: #{hcnet_forward.31} parent=0 // pred_region
    _
  $region29: #{hcnet_forward.31} parent=0 // pred_fallthru
    _
  // Predicated region
  $region30: #{hcnet_forward.31} parent=0 // pred_check
    _
  $region31: #{hcnet_forward.31} parent=0 // pred_check_branch
    %1262 = sbr.rel (0) target = $region33
  $region32: #{hcnet_forward.31} parent=0 // pred_region
    _
  $region33: #{hcnet_forward.31} parent=0 // pred_fallthru
    _

// kernel: hcnet_forward.32
$region0: #{hcnet_forward.32}
  #allocation0 [shape = 'u32[]', space=smem, size = 0x4, offset = 0x4, fixed_abs, tag = 'smem constant byte address 0x4 - core index']
  #allocation1 [shape = 'u32[72,128]{1,0:T(1,128)}', space=vmem, size = 0x9000, scoped, tag = 'internal scratch']
  %s0 = inlined_call_operand.vmem [shape: f32[224,24], index: 0, kind: input, shape index: {}]
  %s1 = inlined_call_operand.vmem [shape: f32[1,24], index: 1, kind: input, shape index: {}]
  %s2 = inlined_call_operand.vmem [shape: f32[1,24], index: 2, kind: input, shape index: {}]
  %s3 = inlined_call_operand.vmem [shape: f32[224,24], index: 3, kind: output, shape index: {}]
  %s4 = sld [smem:[#allocation0]]
  $region22: #{hcnet_forward.32} parent=0
    _
  %s6 = ssub.s32 1, %s4
  %s7 = scalar_select 0, %s6, %s4
  // Predicated region
  $region2: #{hcnet_forward.32} parent=0 // pred_check
    _
  $region3: #{hcnet_forward.32} parent=0 // pred_check_branch
    %9 = sbr.rel (0) target = $region5
  $region4: #{hcnet_forward.32} parent=0 // pred_region
    _
  $region5: #{hcnet_forward.32} parent=0 // pred_fallthru
    _
  // Predicated region
  $region6: #{hcnet_forward.32} parent=0 // pred_check
    _
  $region7: #{hcnet_forward.32} parent=0 // pred_check_branch
    %11 = sbr.rel (0) target = $region9
  $region8: #{hcnet_forward.32} parent=0 // pred_region
    _
  $region9: #{hcnet_forward.32} parent=0 // pred_fallthru
    _
  // Predicated region
  $region10: #{hcnet_forward.32} parent=0 // pred_check
    _
  $region11: #{hcnet_forward.32} parent=0 // pred_check_branch
    %13 = sbr.rel (0) target = $region13
  $region12: #{hcnet_forward.32} parent=0 // pred_region
    _
  $region13: #{hcnet_forward.32} parent=0 // pred_fallthru
    _
  %v14 = vld [vmem:[%s0] sm:$0xff]
  %v15 = vld [vmem:[%s0 + $0x8] sm:$0xff]
  %v16 = vld [vmem:[%s0 + $0x10] sm:$0xff]
  %v17 = vld [vmem:[%s0 + $0x18] sm:$0xff]
  %v18 = vld [vmem:[%s0 + $0x20] sm:$0xff]
  %v19 = vld [vmem:[%s0 + $0x28] sm:$0xff]
  %v20 = vld [vmem:[%s0 + $0x30] sm:$0xff]
  %v21 = vld [vmem:[%s0 + $0x38] sm:$0xff]
  %v22 = vld [vmem:[%s0 + $0x40] sm:$0xff]
  %v23 = vld [vmem:[%s0 + $0x48] sm:$0xff]
  %v24 = vld [vmem:[%s0 + $0x50] sm:$0xff]
  %v25 = vld [vmem:[%s0 + $0x58] sm:$0xff]
  %v26 = vld [vmem:[%s0 + $0x60] sm:$0xff]
  %v27 = vld [vmem:[%s0 + $0x68] sm:$0xff]
  %v28 = vld [vmem:[%s0 + $0x70] sm:$0xff]
  %v29 = vld [vmem:[%s0 + $0x78] sm:$0xff]
  %v30 = vld [vmem:[%s0 + $0x80] sm:$0xff]
  %v31 = vld [vmem:[%s0 + $0x88] sm:$0xff]
  %v32 = vld [vmem:[%s0 + $0x90] sm:$0xff]
  %v33 = vld [vmem:[%s0 + $0x98] sm:$0xff]
  %v34 = vld [vmem:[%s0 + $0xa0] sm:$0xff]
  %v35 = vld [vmem:[%s0 + $0xa8] sm:$0xff]
  %v36 = vld [vmem:[%s0 + $0xb0] sm:$0xff]
  %v37 = vld [vmem:[%s0 + $0xb8] sm:$0xff]
  %v38 = vld [vmem:[%s0 + $0xc0] sm:$0xff]
  %v39 = vld [vmem:[%s0 + $0xc8] sm:$0xff]
  %v40 = vld [vmem:[%s0 + $0xd0] sm:$0xff]
  %v41 = vld [vmem:[%s0 + $0xd8] sm:$0xff]
  %v42 = vld [vmem:[%s1] sm:$0x1]
  %v44 = vperm.slane %v42, 0
  %v46 = vmul.f32 %v14, %v44
  %v47 = vmul.f32 %v15, %v44
  %v48 = vmul.f32 %v16, %v44
  %v49 = vmul.f32 %v17, %v44
  %v50 = vmul.f32 %v18, %v44
  %v51 = vmul.f32 %v19, %v44
  %v52 = vmul.f32 %v20, %v44
  %v53 = vmul.f32 %v21, %v44
  %v54 = vmul.f32 %v22, %v44
  %v55 = vmul.f32 %v23, %v44
  %v56 = vmul.f32 %v24, %v44
  %v57 = vmul.f32 %v25, %v44
  %v58 = vmul.f32 %v26, %v44
  %v59 = vmul.f32 %v27, %v44
  %v60 = vmul.f32 %v28, %v44
  %v61 = vmul.f32 %v29, %v44
  %v62 = vmul.f32 %v30, %v44
  %v63 = vmul.f32 %v31, %v44
  %v64 = vmul.f32 %v32, %v44
  %v65 = vmul.f32 %v33, %v44
  %v66 = vmul.f32 %v34, %v44
  %v67 = vmul.f32 %v35, %v44
  %v68 = vmul.f32 %v36, %v44
  %v69 = vmul.f32 %v37, %v44
  %v70 = vmul.f32 %v38, %v44
  %v71 = vmul.f32 %v39, %v44
  %v72 = vmul.f32 %v40, %v44
  %v73 = vmul.f32 %v41, %v44
  %v74 = vld [vmem:[%s2] sm:$0x1]
  %v76 = vperm.slane %v74, 0
  %v78 = vadd.f32 %v46, %v76
  %v79 = vadd.f32 %v47, %v76
  %v80 = vadd.f32 %v48, %v76
  %v81 = vadd.f32 %v49, %v76
  %v82 = vadd.f32 %v50, %v76
  %v83 = vadd.f32 %v51, %v76
  %v84 = vadd.f32 %v52, %v76
  %v85 = vadd.f32 %v53, %v76
  %v86 = vadd.f32 %v54, %v76
  %v87 = vadd.f32 %v55, %v76
  %v88 = vadd.f32 %v56, %v76
  %v89 = vadd.f32 %v57, %v76
  %v90 = vadd.f32 %v58, %v76
  %v91 = vadd.f32 %v59, %v76
  %v92 = vadd.f32 %v60, %v76
  %v93 = vadd.f32 %v61, %v76
  %v94 = vadd.f32 %v62, %v76
  %v95 = vadd.f32 %v63, %v76
  %v96 = vadd.f32 %v64, %v76
  %v97 = vadd.f32 %v65, %v76
  %v98 = vadd.f32 %v66, %v76
  %v99 = vadd.f32 %v67, %v76
  %v100 = vadd.f32 %v68, %v76
  %v101 = vadd.f32 %v69, %v76
  %v102 = vadd.f32 %v70, %v76
  %v103 = vadd.f32 %v71, %v76
  %v104 = vadd.f32 %v72, %v76
  %v105 = vadd.f32 %v73, %v76
  %vm106 = vcmp.ge.f32.partialorder %v78, 0.0
  %vm107 = vcmp.ge.f32.partialorder %v79, 0.0
  %vm108 = vcmp.ge.f32.partialorder %v80, 0.0
  %vm109 = vcmp.ge.f32.partialorder %v81, 0.0
  %vm110 = vcmp.ge.f32.partialorder %v82, 0.0
  %vm111 = vcmp.ge.f32.partialorder %v83, 0.0
  %vm112 = vcmp.ge.f32.partialorder %v84, 0.0
  %vm113 = vcmp.ge.f32.partialorder %v85, 0.0
  %vm114 = vcmp.ge.f32.partialorder %v86, 0.0
  %vm115 = vcmp.ge.f32.partialorder %v87, 0.0
  %vm116 = vcmp.ge.f32.partialorder %v88, 0.0
  %vm117 = vcmp.ge.f32.partialorder %v89, 0.0
  %vm118 = vcmp.ge.f32.partialorder %v90, 0.0
  %vm119 = vcmp.ge.f32.partialorder %v91, 0.0
  %vm120 = vcmp.ge.f32.partialorder %v92, 0.0
  %vm121 = vcmp.ge.f32.partialorder %v93, 0.0
  %vm122 = vcmp.ge.f32.partialorder %v94, 0.0
  %vm123 = vcmp.ge.f32.partialorder %v95, 0.0
  %vm124 = vcmp.ge.f32.partialorder %v96, 0.0
  %vm125 = vcmp.ge.f32.partialorder %v97, 0.0
  %vm126 = vcmp.ge.f32.partialorder %v98, 0.0
  %vm127 = vcmp.ge.f32.partialorder %v99, 0.0
  %vm128 = vcmp.ge.f32.partialorder %v100, 0.0
  %vm129 = vcmp.ge.f32.partialorder %v101, 0.0
  %vm130 = vcmp.ge.f32.partialorder %v102, 0.0
  %vm131 = vcmp.ge.f32.partialorder %v103, 0.0
  %vm132 = vcmp.ge.f32.partialorder %v104, 0.0
  %vm133 = vcmp.ge.f32.partialorder %v105, 0.0
  %v134 = vmul.f32 %v78, 0.01
  %v135 = vmul.f32 %v79, 0.01
  %v136 = vmul.f32 %v80, 0.01
  %v137 = vmul.f32 %v81, 0.01
  %v138 = vmul.f32 %v82, 0.01
  %v139 = vmul.f32 %v83, 0.01
  %v140 = vmul.f32 %v84, 0.01
  %v141 = vmul.f32 %v85, 0.01
  %v142 = vmul.f32 %v86, 0.01
  %v143 = vmul.f32 %v87, 0.01
  %v144 = vmul.f32 %v88, 0.01
  %v145 = vmul.f32 %v89, 0.01
  %v146 = vmul.f32 %v90, 0.01
  %v147 = vmul.f32 %v91, 0.01
  %v148 = vmul.f32 %v92, 0.01
  %v149 = vmul.f32 %v93, 0.01
  %v150 = vmul.f32 %v94, 0.01
  %v151 = vmul.f32 %v95, 0.01
  %v152 = vmul.f32 %v96, 0.01
  %v153 = vmul.f32 %v97, 0.01
  %v154 = vmul.f32 %v98, 0.01
  %v155 = vmul.f32 %v99, 0.01
  %v156 = vmul.f32 %v100, 0.01
  %v157 = vmul.f32 %v101, 0.01
  %v158 = vmul.f32 %v102, 0.01
  %v159 = vmul.f32 %v103, 0.01
  %v160 = vmul.f32 %v104, 0.01
  %v161 = vmul.f32 %v105, 0.01
  %v162 = vsel %vm106, %v78, %v134
  %v163 = vsel %vm107, %v79, %v135
  %v164 = vsel %vm108, %v80, %v136
  %v165 = vsel %vm109, %v81, %v137
  %v166 = vsel %vm110, %v82, %v138
  %v167 = vsel %vm111, %v83, %v139
  %v168 = vsel %vm112, %v84, %v140
  %v169 = vsel %vm113, %v85, %v141
  %v170 = vsel %vm114, %v86, %v142
  %v171 = vsel %vm115, %v87, %v143
  %v172 = vsel %vm116, %v88, %v144
  %v173 = vsel %vm117, %v89, %v145
  %v174 = vsel %vm118, %v90, %v146
  %v175 = vsel %vm119, %v91, %v147
  %v176 = vsel %vm120, %v92, %v148
  %v177 = vsel %vm121, %v93, %v149
  %v178 = vsel %vm122, %v94, %v150
  %v179 = vsel %vm123, %v95, %v151
  %v180 = vsel %vm124, %v96, %v152
  %v181 = vsel %vm125, %v97, %v153
  %v182 = vsel %vm126, %v98, %v154
  %v183 = vsel %vm127, %v99, %v155
  %v184 = vsel %vm128, %v100, %v156
  %v185 = vsel %vm129, %v101, %v157
  %v186 = vsel %vm130, %v102, %v158
  %v187 = vsel %vm131, %v103, %v159
  %v188 = vsel %vm132, %v104, %v160
  %v189 = vsel %vm133, %v105, %v161
  %vm190 = vcmask 195584
  %191 = vst.msk [vmem:[%s3] sm:$0xff] %vm190, %v162
  %192 = vst.msk [vmem:[%s3 + $0x8] sm:$0xff] %vm190, %v163
  %193 = vst.msk [vmem:[%s3 + $0x10] sm:$0xff] %vm190, %v164
  %194 = vst.msk [vmem:[%s3 + $0x18] sm:$0xff] %vm190, %v165
  %195 = vst.msk [vmem:[%s3 + $0x20] sm:$0xff] %vm190, %v166
  %196 = vst.msk [vmem:[%s3 + $0x28] sm:$0xff] %vm190, %v167
  %197 = vst.msk [vmem:[%s3 + $0x30] sm:$0xff] %vm190, %v168
  %198 = vst.msk [vmem:[%s3 + $0x38] sm:$0xff] %vm190, %v169
  %199 = vst.msk [vmem:[%s3 + $0x40] sm:$0xff] %vm190, %v170
  %200 = vst.msk [vmem:[%s3 + $0x48] sm:$0xff] %vm190, %v171
  %201 = vst.msk [vmem:[%s3 + $0x50] sm:$0xff] %vm190, %v172
  %202 = vst.msk [vmem:[%s3 + $0x58] sm:$0xff] %vm190, %v173
  %203 = vst.msk [vmem:[%s3 + $0x60] sm:$0xff] %vm190, %v174
  %204 = vst.msk [vmem:[%s3 + $0x68] sm:$0xff] %vm190, %v175
  %205 = vst.msk [vmem:[%s3 + $0x70] sm:$0xff] %vm190, %v176
  %206 = vst.msk [vmem:[%s3 + $0x78] sm:$0xff] %vm190, %v177
  %207 = vst.msk [vmem:[%s3 + $0x80] sm:$0xff] %vm190, %v178
  %208 = vst.msk [vmem:[%s3 + $0x88] sm:$0xff] %vm190, %v179
  %209 = vst.msk [vmem:[%s3 + $0x90] sm:$0xff] %vm190, %v180
  %210 = vst.msk [vmem:[%s3 + $0x98] sm:$0xff] %vm190, %v181
  %211 = vst.msk [vmem:[%s3 + $0xa0] sm:$0xff] %vm190, %v182
  %212 = vst.msk [vmem:[%s3 + $0xa8] sm:$0xff] %vm190, %v183
  %213 = vst.msk [vmem:[%s3 + $0xb0] sm:$0xff] %vm190, %v184
  %214 = vst.msk [vmem:[%s3 + $0xb8] sm:$0xff] %vm190, %v185
  %215 = vst.msk [vmem:[%s3 + $0xc0] sm:$0xff] %vm190, %v186
  %216 = vst.msk [vmem:[%s3 + $0xc8] sm:$0xff] %vm190, %v187
  %217 = vst.msk [vmem:[%s3 + $0xd0] sm:$0xff] %vm190, %v188
  %218 = vst.msk [vmem:[%s3 + $0xd8] sm:$0xff] %vm190, %v189
  // Predicated region
  $region14: #{hcnet_forward.32} parent=0 // pred_check
    _
  $region15: #{hcnet_forward.32} parent=0 // pred_check_branch
    %220 = sbr.rel (0) target = $region17
  $region16: #{hcnet_forward.32} parent=0 // pred_region
    _
  $region17: #{hcnet_forward.32} parent=0 // pred_fallthru
    _
  // Predicated region
  $region18: #{hcnet_forward.32} parent=0 // pred_check
    _
  $region19: #{hcnet_forward.32} parent=0 // pred_check_branch
    %222 = sbr.rel (0) target = $region21
  $region20: #{hcnet_forward.32} parent=0 // pred_region
    _
  $region21: #{hcnet_forward.32} parent=0 // pred_fallthru
    _

// kernel: hcnet_forward.33
$region0: #{hcnet_forward.33}
  #allocation0 [shape = 'u32[]', space=smem, size = 0x4, offset = 0x4, fixed_abs, tag = 'smem constant byte address 0x4 - core index']
  #allocation1 [shape = 'u32[72,128]{1,0:T(1,128)}', space=vmem, size = 0x9000, scoped, tag = 'internal scratch']
  #allocation2 [shape = 'f32[224,3]{1,0:T(8,128)}', space=vmem, size = 0x1c000, scoped, tag = 'scratch operand']
  %s0 = inlined_call_operand.vmem [shape: bf16[224,128], index: 0, kind: input, shape index: {}]
  %s1 = inlined_call_operand.vmem [shape: bf16[128,3], index: 1, kind: input, shape index: {}]
  %s2 = inlined_call_operand.vmem [shape: f32[1,3], index: 2, kind: input, shape index: {}]
  %s3 = inlined_call_operand.vmem [shape: f32[224,3], index: 3, kind: output, shape index: {}]
  %s4 = sld [smem:[#allocation0]]
  $region30: #{hcnet_forward.33} parent=0
    _
  %s6 = ssub.s32 1, %s4
  %s7 = scalar_select 0, %s6, %s4
  // Predicated region
  $region2: #{hcnet_forward.33} parent=0 // pred_check
    _
  $region3: #{hcnet_forward.33} parent=0 // pred_check_branch
    %9 = sbr.rel (0) target = $region5
  $region4: #{hcnet_forward.33} parent=0 // pred_region
    _
  $region5: #{hcnet_forward.33} parent=0 // pred_fallthru
    _
  // Predicated region
  $region6: #{hcnet_forward.33} parent=0 // pred_check
    _
  $region7: #{hcnet_forward.33} parent=0 // pred_check_branch
    %11 = sbr.rel (0) target = $region9
  $region8: #{hcnet_forward.33} parent=0 // pred_region
    _
  $region9: #{hcnet_forward.33} parent=0 // pred_fallthru
    _
  // Predicated region
  $region10: #{hcnet_forward.33} parent=0 // pred_check
    _
  $region11: #{hcnet_forward.33} parent=0 // pred_check_branch
    %13 = sbr.rel (0) target = $region13
  $region12: #{hcnet_forward.33} parent=0 // pred_region
    _
  $region13: #{hcnet_forward.33} parent=0 // pred_fallthru
    _
  %p14 = scmp.eq.s32.totalorder 0, 0
  // Predicated region
  $region14: #{hcnet_forward.33} parent=0 // pred_check
    %p15 = pneg %p14
  $region15: #{hcnet_forward.33} parent=0 // pred_check_branch
    %17 = sbr.rel (%p15) target = $region17
  $region16: #{hcnet_forward.33} parent=0 // pred_region
    %vm18 = vcmask 23552
    %19 = vst.msk [vmem:[#allocation2] sm:$0xff] %vm18, 0.0
    %20 = vst.msk [vmem:[#allocation2 + $0x8] sm:$0xff] %vm18, 0.0
    %21 = vst.msk [vmem:[#allocation2 + $0x10] sm:$0xff] %vm18, 0.0
    %22 = vst.msk [vmem:[#allocation2 + $0x18] sm:$0xff] %vm18, 0.0
    %23 = vst.msk [vmem:[#allocation2 + $0x20] sm:$0xff] %vm18, 0.0
    %24 = vst.msk [vmem:[#allocation2 + $0x28] sm:$0xff] %vm18, 0.0
    %25 = vst.msk [vmem:[#allocation2 + $0x30] sm:$0xff] %vm18, 0.0
    %26 = vst.msk [vmem:[#allocation2 + $0x38] sm:$0xff] %vm18, 0.0
    %27 = vst.msk [vmem:[#allocation2 + $0x40] sm:$0xff] %vm18, 0.0
    %28 = vst.msk [vmem:[#allocation2 + $0x48] sm:$0xff] %vm18, 0.0
    %29 = vst.msk [vmem:[#allocation2 + $0x50] sm:$0xff] %vm18, 0.0
    %30 = vst.msk [vmem:[#allocation2 + $0x58] sm:$0xff] %vm18, 0.0
    %31 = vst.msk [vmem:[#allocation2 + $0x60] sm:$0xff] %vm18, 0.0
    %32 = vst.msk [vmem:[#allocation2 + $0x68] sm:$0xff] %vm18, 0.0
    %33 = vst.msk [vmem:[#allocation2 + $0x70] sm:$0xff] %vm18, 0.0
    %34 = vst.msk [vmem:[#allocation2 + $0x78] sm:$0xff] %vm18, 0.0
    %35 = vst.msk [vmem:[#allocation2 + $0x80] sm:$0xff] %vm18, 0.0
    %36 = vst.msk [vmem:[#allocation2 + $0x88] sm:$0xff] %vm18, 0.0
    %37 = vst.msk [vmem:[#allocation2 + $0x90] sm:$0xff] %vm18, 0.0
    %38 = vst.msk [vmem:[#allocation2 + $0x98] sm:$0xff] %vm18, 0.0
    %39 = vst.msk [vmem:[#allocation2 + $0xa0] sm:$0xff] %vm18, 0.0
    %40 = vst.msk [vmem:[#allocation2 + $0xa8] sm:$0xff] %vm18, 0.0
    %41 = vst.msk [vmem:[#allocation2 + $0xb0] sm:$0xff] %vm18, 0.0
    %42 = vst.msk [vmem:[#allocation2 + $0xb8] sm:$0xff] %vm18, 0.0
    %43 = vst.msk [vmem:[#allocation2 + $0xc0] sm:$0xff] %vm18, 0.0
    %44 = vst.msk [vmem:[#allocation2 + $0xc8] sm:$0xff] %vm18, 0.0
    %45 = vst.msk [vmem:[#allocation2 + $0xd0] sm:$0xff] %vm18, 0.0
    %46 = vst.msk [vmem:[#allocation2 + $0xd8] sm:$0xff] %vm18, 0.0
  $region17: #{hcnet_forward.33} parent=0 // pred_fallthru
    _
  %v47 = vld [vmem:[#allocation2] sm:$0xff]
  %v48 = vld [vmem:[#allocation2 + $0x8] sm:$0xff]
  %v49 = vld [vmem:[#allocation2 + $0x10] sm:$0xff]
  %v50 = vld [vmem:[#allocation2 + $0x18] sm:$0xff]
  %v51 = vld [vmem:[#allocation2 + $0x20] sm:$0xff]
  %v52 = vld [vmem:[#allocation2 + $0x28] sm:$0xff]
  %v53 = vld [vmem:[#allocation2 + $0x30] sm:$0xff]
  %v54 = vld [vmem:[#allocation2 + $0x38] sm:$0xff]
  %v55 = vld [vmem:[#allocation2 + $0x40] sm:$0xff]
  %v56 = vld [vmem:[#allocation2 + $0x48] sm:$0xff]
  %v57 = vld [vmem:[#allocation2 + $0x50] sm:$0xff]
  %v58 = vld [vmem:[#allocation2 + $0x58] sm:$0xff]
  %v59 = vld [vmem:[#allocation2 + $0x60] sm:$0xff]
  %v60 = vld [vmem:[#allocation2 + $0x68] sm:$0xff]
  %v61 = vld [vmem:[#allocation2 + $0x70] sm:$0xff]
  %v62 = vld [vmem:[#allocation2 + $0x78] sm:$0xff]
  %v63 = vld [vmem:[#allocation2 + $0x80] sm:$0xff]
  %v64 = vld [vmem:[#allocation2 + $0x88] sm:$0xff]
  %v65 = vld [vmem:[#allocation2 + $0x90] sm:$0xff]
  %v66 = vld [vmem:[#allocation2 + $0x98] sm:$0xff]
  %v67 = vld [vmem:[#allocation2 + $0xa0] sm:$0xff]
  %v68 = vld [vmem:[#allocation2 + $0xa8] sm:$0xff]
  %v69 = vld [vmem:[#allocation2 + $0xb0] sm:$0xff]
  %v70 = vld [vmem:[#allocation2 + $0xb8] sm:$0xff]
  %v71 = vld [vmem:[#allocation2 + $0xc0] sm:$0xff]
  %v72 = vld [vmem:[#allocation2 + $0xc8] sm:$0xff]
  %v73 = vld [vmem:[#allocation2 + $0xd0] sm:$0xff]
  %v74 = vld [vmem:[#allocation2 + $0xd8] sm:$0xff]
  %v75 = vld [vmem:[%s0] sm:$0xf]
  %v76 = vld [vmem:[%s0 + $0x4] sm:$0xf]
  %v77 = vld [vmem:[%s0 + $0x8] sm:$0xf]
  %v78 = vld [vmem:[%s0 + $0xc] sm:$0xf]
  %v79 = vld [vmem:[%s0 + $0x10] sm:$0xf]
  %v80 = vld [vmem:[%s0 + $0x14] sm:$0xf]
  %v81 = vld [vmem:[%s0 + $0x18] sm:$0xf]
  %v82 = vld [vmem:[%s0 + $0x1c] sm:$0xf]
  %v83 = vld [vmem:[%s0 + $0x20] sm:$0xf]
  %v84 = vld [vmem:[%s0 + $0x24] sm:$0xf]
  %v85 = vld [vmem:[%s0 + $0x28] sm:$0xf]
  %v86 = vld [vmem:[%s0 + $0x2c] sm:$0xf]
  %v87 = vld [vmem:[%s0 + $0x30] sm:$0xf]
  %v88 = vld [vmem:[%s0 + $0x34] sm:$0xf]
  %v89 = vld [vmem:[%s0 + $0x38] sm:$0xf]
  %v90 = vld [vmem:[%s0 + $0x3c] sm:$0xf]
  %v91 = vld [vmem:[%s0 + $0x40] sm:$0xf]
  %v92 = vld [vmem:[%s0 + $0x44] sm:$0xf]
  %v93 = vld [vmem:[%s0 + $0x48] sm:$0xf]
  %v94 = vld [vmem:[%s0 + $0x4c] sm:$0xf]
  %v95 = vld [vmem:[%s0 + $0x50] sm:$0xf]
  %v96 = vld [vmem:[%s0 + $0x54] sm:$0xf]
  %v97 = vld [vmem:[%s0 + $0x58] sm:$0xf]
  %v98 = vld [vmem:[%s0 + $0x5c] sm:$0xf]
  %v99 = vld [vmem:[%s0 + $0x60] sm:$0xf]
  %v100 = vld [vmem:[%s0 + $0x64] sm:$0xf]
  %v101 = vld [vmem:[%s0 + $0x68] sm:$0xf]
  %v102 = vld [vmem:[%s0 + $0x6c] sm:$0xf]
  %v103 = vld [vmem:[%s1] sm:$0xf]
  %v104 = vld [vmem:[%s1 + $0x4] sm:$0xf]
  %v105 = vld [vmem:[%s1 + $0x8] sm:$0xf]
  %v106 = vld [vmem:[%s1 + $0xc] sm:$0xf]
  %v107 = vld [vmem:[%s1 + $0x10] sm:$0xf]
  %v108 = vld [vmem:[%s1 + $0x14] sm:$0xf]
  %v109 = vld [vmem:[%s1 + $0x18] sm:$0xf]
  %v110 = vld [vmem:[%s1 + $0x1c] sm:$0xf]
  %v111 = vld [vmem:[%s1 + $0x20] sm:$0xf]
  %v112 = vld [vmem:[%s1 + $0x24] sm:$0xf]
  %v113 = vld [vmem:[%s1 + $0x28] sm:$0xf]
  %v114 = vld [vmem:[%s1 + $0x2c] sm:$0xf]
  %v115 = vld [vmem:[%s1 + $0x30] sm:$0xf]
  %v116 = vld [vmem:[%s1 + $0x34] sm:$0xf]
  %v117 = vld [vmem:[%s1 + $0x38] sm:$0xf]
  %v118 = vld [vmem:[%s1 + $0x3c] sm:$0xf]
  %v147 = vunpack.c.l.b16 %v75
  %v148 = vunpack.c.l.b16 %v76
  %v149 = vunpack.c.l.b16 %v77
  %v150 = vunpack.c.l.b16 %v78
  %v151 = vunpack.c.l.b16 %v79
  %v152 = vunpack.c.l.b16 %v80
  %v153 = vunpack.c.l.b16 %v81
  %v154 = vunpack.c.l.b16 %v82
  %v155 = vunpack.c.l.b16 %v83
  %v156 = vunpack.c.l.b16 %v84
  %v157 = vunpack.c.l.b16 %v85
  %v158 = vunpack.c.l.b16 %v86
  %v159 = vunpack.c.l.b16 %v87
  %v160 = vunpack.c.l.b16 %v88
  %v161 = vunpack.c.l.b16 %v89
  %v162 = vunpack.c.l.b16 %v90
  %v163 = vunpack.c.l.b16 %v91
  %v164 = vunpack.c.l.b16 %v92
  %v165 = vunpack.c.l.b16 %v93
  %v166 = vunpack.c.l.b16 %v94
  %v167 = vunpack.c.l.b16 %v95
  %v168 = vunpack.c.l.b16 %v96
  %v169 = vunpack.c.l.b16 %v97
  %v170 = vunpack.c.l.b16 %v98
  %v171 = vunpack.c.l.b16 %v99
  %v172 = vunpack.c.l.b16 %v100
  %v173 = vunpack.c.l.b16 %v101
  %v174 = vunpack.c.l.b16 %v102
  %v175 = vpack.c.b16 %v148, %v147
  %v176 = vpack.c.b16 %v150, %v149
  %v177 = vpack.c.b16 %v152, %v151
  %v178 = vpack.c.b16 %v154, %v153
  %v179 = vpack.c.b16 %v156, %v155
  %v180 = vpack.c.b16 %v158, %v157
  %v181 = vpack.c.b16 %v160, %v159
  %v182 = vpack.c.b16 %v162, %v161
  %v183 = vpack.c.b16 %v164, %v163
  %v184 = vpack.c.b16 %v166, %v165
  %v185 = vpack.c.b16 %v168, %v167
  %v186 = vpack.c.b16 %v170, %v169
  %v187 = vpack.c.b16 %v172, %v171
  %v188 = vpack.c.b16 %v174, %v173
  %v219 = vunpack.c.l.b16 %v103
  %v220 = vunpack.c.l.b16 %v104
  %v221 = vunpack.c.l.b16 %v105
  %v222 = vunpack.c.l.b16 %v106
  %v223 = vunpack.c.l.b16 %v107
  %v224 = vunpack.c.l.b16 %v108
  %v225 = vunpack.c.l.b16 %v109
  %v226 = vunpack.c.l.b16 %v110
  %v227 = vunpack.c.l.b16 %v111
  %v228 = vunpack.c.l.b16 %v112
  %v229 = vunpack.c.l.b16 %v113
  %v230 = vunpack.c.l.b16 %v114
  %v231 = vunpack.c.l.b16 %v115
  %v232 = vunpack.c.l.b16 %v116
  %v233 = vunpack.c.l.b16 %v117
  %v234 = vunpack.c.l.b16 %v118
  %v235 = vpack.c.b16 %v220, %v219
  %v236 = vpack.c.b16 %v222, %v221
  %v237 = vpack.c.b16 %v224, %v223
  %v238 = vpack.c.b16 %v226, %v225
  %v239 = vpack.c.b16 %v228, %v227
  %v240 = vpack.c.b16 %v230, %v229
  %v241 = vpack.c.b16 %v232, %v231
  %v242 = vpack.c.b16 %v234, %v233
  %251 = vmatpush.bf16.msra.mxu0 %v242
  %252 = vmatpush.bf16.msra.mxu0 %v241
  %253 = vmatpush.bf16.msra.mxu0 %v240
  %254 = vmatpush.bf16.msra.mxu0 %v239
  %255 = vmatpush.bf16.msra.mxu0 %v238
  %256 = vmatpush.bf16.msra.mxu0 %v237
  %257 = vmatpush.bf16.msra.mxu0 %v236
  %258 = vmatpush.bf16.msra.mxu0 %v235
  %259 = vmatmul.bf16.gmra.mxu0 %v175
  %v260 = vpop.f32.mrf.mxu0
  %v261 = vadd.f32 0.0, %v260
  %v262 = vpop.f32.mrf.mxu0
  %v263 = vadd.f32 0.0, %v262
  %264 = vmatmul.bf16.gmra.mxu0 %v176
  %v265 = vpop.f32.mrf.mxu0
  %v266 = vadd.f32 0.0, %v265
  %v267 = vpop.f32.mrf.mxu0
  %v268 = vadd.f32 0.0, %v267
  %269 = vmatmul.bf16.gmra.mxu0 %v177
  %v270 = vpop.f32.mrf.mxu0
  %v271 = vadd.f32 0.0, %v270
  %v272 = vpop.f32.mrf.mxu0
  %v273 = vadd.f32 0.0, %v272
  %274 = vmatmul.bf16.gmra.mxu0 %v178
  %v275 = vpop.f32.mrf.mxu0
  %v276 = vadd.f32 0.0, %v275
  %v277 = vpop.f32.mrf.mxu0
  %v278 = vadd.f32 0.0, %v277
  %279 = vmatmul.bf16.gmra.mxu0 %v179
  %v280 = vpop.f32.mrf.mxu0
  %v281 = vadd.f32 0.0, %v280
  %v282 = vpop.f32.mrf.mxu0
  %v283 = vadd.f32 0.0, %v282
  %284 = vmatmul.bf16.gmra.mxu0 %v180
  %v285 = vpop.f32.mrf.mxu0
  %v286 = vadd.f32 0.0, %v285
  %v287 = vpop.f32.mrf.mxu0
  %v288 = vadd.f32 0.0, %v287
  %289 = vmatmul.bf16.gmra.mxu0 %v181
  %v290 = vpop.f32.mrf.mxu0
  %v291 = vadd.f32 0.0, %v290
  %v292 = vpop.f32.mrf.mxu0
  %v293 = vadd.f32 0.0, %v292
  %294 = vmatmul.bf16.gmra.mxu0 %v182
  %v295 = vpop.f32.mrf.mxu0
  %v296 = vadd.f32 0.0, %v295
  %v297 = vpop.f32.mrf.mxu0
  %v298 = vadd.f32 0.0, %v297
  %299 = vmatmul.bf16.gmra.mxu0 %v183
  %v300 = vpop.f32.mrf.mxu0
  %v301 = vadd.f32 0.0, %v300
  %v302 = vpop.f32.mrf.mxu0
  %v303 = vadd.f32 0.0, %v302
  %304 = vmatmul.bf16.gmra.mxu0 %v184
  %v305 = vpop.f32.mrf.mxu0
  %v306 = vadd.f32 0.0, %v305
  %v307 = vpop.f32.mrf.mxu0
  %v308 = vadd.f32 0.0, %v307
  %309 = vmatmul.bf16.gmra.mxu0 %v185
  %v310 = vpop.f32.mrf.mxu0
  %v311 = vadd.f32 0.0, %v310
  %v312 = vpop.f32.mrf.mxu0
  %v313 = vadd.f32 0.0, %v312
  %314 = vmatmul.bf16.gmra.mxu0 %v186
  %v315 = vpop.f32.mrf.mxu0
  %v316 = vadd.f32 0.0, %v315
  %v317 = vpop.f32.mrf.mxu0
  %v318 = vadd.f32 0.0, %v317
  %319 = vmatmul.bf16.gmra.mxu0 %v187
  %v320 = vpop.f32.mrf.mxu0
  %v321 = vadd.f32 0.0, %v320
  %v322 = vpop.f32.mrf.mxu0
  %v323 = vadd.f32 0.0, %v322
  %324 = vmatmul.bf16.gmra.mxu0 %v188
  %v325 = vpop.f32.mrf.mxu0
  %v326 = vadd.f32 0.0, %v325
  %v327 = vpop.f32.mrf.mxu0
  %v328 = vadd.f32 0.0, %v327
  %329 = vdwg.mxu0
  %v330 = vadd.f32 %v47, %v261
  %v331 = vadd.f32 %v48, %v263
  %v332 = vadd.f32 %v49, %v266
  %v333 = vadd.f32 %v50, %v268
  %v334 = vadd.f32 %v51, %v271
  %v335 = vadd.f32 %v52, %v273
  %v336 = vadd.f32 %v53, %v276
  %v337 = vadd.f32 %v54, %v278
  %v338 = vadd.f32 %v55, %v281
  %v339 = vadd.f32 %v56, %v283
  %v340 = vadd.f32 %v57, %v286
  %v341 = vadd.f32 %v58, %v288
  %v342 = vadd.f32 %v59, %v291
  %v343 = vadd.f32 %v60, %v293
  %v344 = vadd.f32 %v61, %v296
  %v345 = vadd.f32 %v62, %v298
  %v346 = vadd.f32 %v63, %v301
  %v347 = vadd.f32 %v64, %v303
  %v348 = vadd.f32 %v65, %v306
  %v349 = vadd.f32 %v66, %v308
  %v350 = vadd.f32 %v67, %v311
  %v351 = vadd.f32 %v68, %v313
  %v352 = vadd.f32 %v69, %v316
  %v353 = vadd.f32 %v70, %v318
  %v354 = vadd.f32 %v71, %v321
  %v355 = vadd.f32 %v72, %v323
  %v356 = vadd.f32 %v73, %v326
  %v357 = vadd.f32 %v74, %v328
  %vm358 = vcmask 23552
  %359 = vst.msk [vmem:[#allocation2] sm:$0xff] %vm358, %v330
  %360 = vst.msk [vmem:[#allocation2 + $0x8] sm:$0xff] %vm358, %v331
  %361 = vst.msk [vmem:[#allocation2 + $0x10] sm:$0xff] %vm358, %v332
  %362 = vst.msk [vmem:[#allocation2 + $0x18] sm:$0xff] %vm358, %v333
  %363 = vst.msk [vmem:[#allocation2 + $0x20] sm:$0xff] %vm358, %v334
  %364 = vst.msk [vmem:[#allocation2 + $0x28] sm:$0xff] %vm358, %v335
  %365 = vst.msk [vmem:[#allocation2 + $0x30] sm:$0xff] %vm358, %v336
  %366 = vst.msk [vmem:[#allocation2 + $0x38] sm:$0xff] %vm358, %v337
  %367 = vst.msk [vmem:[#allocation2 + $0x40] sm:$0xff] %vm358, %v338
  %368 = vst.msk [vmem:[#allocation2 + $0x48] sm:$0xff] %vm358, %v339
  %369 = vst.msk [vmem:[#allocation2 + $0x50] sm:$0xff] %vm358, %v340
  %370 = vst.msk [vmem:[#allocation2 + $0x58] sm:$0xff] %vm358, %v341
  %371 = vst.msk [vmem:[#allocation2 + $0x60] sm:$0xff] %vm358, %v342
  %372 = vst.msk [vmem:[#allocation2 + $0x68] sm:$0xff] %vm358, %v343
  %373 = vst.msk [vmem:[#allocation2 + $0x70] sm:$0xff] %vm358, %v344
  %374 = vst.msk [vmem:[#allocation2 + $0x78] sm:$0xff] %vm358, %v345
  %375 = vst.msk [vmem:[#allocation2 + $0x80] sm:$0xff] %vm358, %v346
  %376 = vst.msk [vmem:[#allocation2 + $0x88] sm:$0xff] %vm358, %v347
  %377 = vst.msk [vmem:[#allocation2 + $0x90] sm:$0xff] %vm358, %v348
  %378 = vst.msk [vmem:[#allocation2 + $0x98] sm:$0xff] %vm358, %v349
  %379 = vst.msk [vmem:[#allocation2 + $0xa0] sm:$0xff] %vm358, %v350
  %380 = vst.msk [vmem:[#allocation2 + $0xa8] sm:$0xff] %vm358, %v351
  %381 = vst.msk [vmem:[#allocation2 + $0xb0] sm:$0xff] %vm358, %v352
  %382 = vst.msk [vmem:[#allocation2 + $0xb8] sm:$0xff] %vm358, %v353
  %383 = vst.msk [vmem:[#allocation2 + $0xc0] sm:$0xff] %vm358, %v354
  %384 = vst.msk [vmem:[#allocation2 + $0xc8] sm:$0xff] %vm358, %v355
  %385 = vst.msk [vmem:[#allocation2 + $0xd0] sm:$0xff] %vm358, %v356
  %386 = vst.msk [vmem:[#allocation2 + $0xd8] sm:$0xff] %vm358, %v357
  // Predicated region
  $region18: #{hcnet_forward.33} parent=0 // pred_check
    %p387 = pneg %p14
  $region19: #{hcnet_forward.33} parent=0 // pred_check_branch
    %389 = sbr.rel (%p387) target = $region21
  $region20: #{hcnet_forward.33} parent=0 // pred_region
    %v390 = vld [vmem:[#allocation2] sm:$0xff]
    %v391 = vld [vmem:[#allocation2 + $0x8] sm:$0xff]
    %v392 = vld [vmem:[#allocation2 + $0x10] sm:$0xff]
    %v393 = vld [vmem:[#allocation2 + $0x18] sm:$0xff]
    %v394 = vld [vmem:[#allocation2 + $0x20] sm:$0xff]
    %v395 = vld [vmem:[#allocation2 + $0x28] sm:$0xff]
    %v396 = vld [vmem:[#allocation2 + $0x30] sm:$0xff]
    %v397 = vld [vmem:[#allocation2 + $0x38] sm:$0xff]
    %v398 = vld [vmem:[#allocation2 + $0x40] sm:$0xff]
    %v399 = vld [vmem:[#allocation2 + $0x48] sm:$0xff]
    %v400 = vld [vmem:[#allocation2 + $0x50] sm:$0xff]
    %v401 = vld [vmem:[#allocation2 + $0x58] sm:$0xff]
    %v402 = vld [vmem:[#allocation2 + $0x60] sm:$0xff]
    %v403 = vld [vmem:[#allocation2 + $0x68] sm:$0xff]
    %v404 = vld [vmem:[#allocation2 + $0x70] sm:$0xff]
    %v405 = vld [vmem:[#allocation2 + $0x78] sm:$0xff]
    %v406 = vld [vmem:[#allocation2 + $0x80] sm:$0xff]
    %v407 = vld [vmem:[#allocation2 + $0x88] sm:$0xff]
    %v408 = vld [vmem:[#allocation2 + $0x90] sm:$0xff]
    %v409 = vld [vmem:[#allocation2 + $0x98] sm:$0xff]
    %v410 = vld [vmem:[#allocation2 + $0xa0] sm:$0xff]
    %v411 = vld [vmem:[#allocation2 + $0xa8] sm:$0xff]
    %v412 = vld [vmem:[#allocation2 + $0xb0] sm:$0xff]
    %v413 = vld [vmem:[#allocation2 + $0xb8] sm:$0xff]
    %v414 = vld [vmem:[#allocation2 + $0xc0] sm:$0xff]
    %v415 = vld [vmem:[#allocation2 + $0xc8] sm:$0xff]
    %v416 = vld [vmem:[#allocation2 + $0xd0] sm:$0xff]
    %v417 = vld [vmem:[#allocation2 + $0xd8] sm:$0xff]
    %v418 = vld [vmem:[%s2] sm:$0x1]
    %v420 = vperm.slane %v418, 0
    %v422 = vadd.f32 %v390, %v420
    %v423 = vadd.f32 %v391, %v420
    %v424 = vadd.f32 %v392, %v420
    %v425 = vadd.f32 %v393, %v420
    %v426 = vadd.f32 %v394, %v420
    %v427 = vadd.f32 %v395, %v420
    %v428 = vadd.f32 %v396, %v420
    %v429 = vadd.f32 %v397, %v420
    %v430 = vadd.f32 %v398, %v420
    %v431 = vadd.f32 %v399, %v420
    %v432 = vadd.f32 %v400, %v420
    %v433 = vadd.f32 %v401, %v420
    %v434 = vadd.f32 %v402, %v420
    %v435 = vadd.f32 %v403, %v420
    %v436 = vadd.f32 %v404, %v420
    %v437 = vadd.f32 %v405, %v420
    %v438 = vadd.f32 %v406, %v420
    %v439 = vadd.f32 %v407, %v420
    %v440 = vadd.f32 %v408, %v420
    %v441 = vadd.f32 %v409, %v420
    %v442 = vadd.f32 %v410, %v420
    %v443 = vadd.f32 %v411, %v420
    %v444 = vadd.f32 %v412, %v420
    %v445 = vadd.f32 %v413, %v420
    %v446 = vadd.f32 %v414, %v420
    %v447 = vadd.f32 %v415, %v420
    %v448 = vadd.f32 %v416, %v420
    %v449 = vadd.f32 %v417, %v420
    %v450 = vtanh.pop %v422
    %v451 = vtanh.pop %v423
    %v452 = vtanh.pop %v424
    %v453 = vtanh.pop %v425
    %v454 = vtanh.pop %v426
    %v455 = vtanh.pop %v427
    %v456 = vtanh.pop %v428
    %v457 = vtanh.pop %v429
    %v458 = vtanh.pop %v430
    %v459 = vtanh.pop %v431
    %v460 = vtanh.pop %v432
    %v461 = vtanh.pop %v433
    %v462 = vtanh.pop %v434
    %v463 = vtanh.pop %v435
    %v464 = vtanh.pop %v436
    %v465 = vtanh.pop %v437
    %v466 = vtanh.pop %v438
    %v467 = vtanh.pop %v439
    %v468 = vtanh.pop %v440
    %v469 = vtanh.pop %v441
    %v470 = vtanh.pop %v442
    %v471 = vtanh.pop %v443
    %v472 = vtanh.pop %v444
    %v473 = vtanh.pop %v445
    %v474 = vtanh.pop %v446
    %v475 = vtanh.pop %v447
    %v476 = vtanh.pop %v448
    %v477 = vtanh.pop %v449
    %478 = vst.msk [vmem:[%s3] sm:$0xff] %vm358, %v450
    %479 = vst.msk [vmem:[%s3 + $0x8] sm:$0xff] %vm358, %v451
    %480 = vst.msk [vmem:[%s3 + $0x10] sm:$0xff] %vm358, %v452
    %481 = vst.msk [vmem:[%s3 + $0x18] sm:$0xff] %vm358, %v453
    %482 = vst.msk [vmem:[%s3 + $0x20] sm:$0xff] %vm358, %v454
    %483 = vst.msk [vmem:[%s3 + $0x28] sm:$0xff] %vm358, %v455
    %484 = vst.msk [vmem:[%s3 + $0x30] sm:$0xff] %vm358, %v456
    %485 = vst.msk [vmem:[%s3 + $0x38] sm:$0xff] %vm358, %v457
    %486 = vst.msk [vmem:[%s3 + $0x40] sm:$0xff] %vm358, %v458
    %487 = vst.msk [vmem:[%s3 + $0x48] sm:$0xff] %vm358, %v459
    %488 = vst.msk [vmem:[%s3 + $0x50] sm:$0xff] %vm358, %v460
    %489 = vst.msk [vmem:[%s3 + $0x58] sm:$0xff] %vm358, %v461
    %490 = vst.msk [vmem:[%s3 + $0x60] sm:$0xff] %vm358, %v462
    %491 = vst.msk [vmem:[%s3 + $0x68] sm:$0xff] %vm358, %v463
    %492 = vst.msk [vmem:[%s3 + $0x70] sm:$0xff] %vm358, %v464
    %493 = vst.msk [vmem:[%s3 + $0x78] sm:$0xff] %vm358, %v465
    %494 = vst.msk [vmem:[%s3 + $0x80] sm:$0xff] %vm358, %v466
    %495 = vst.msk [vmem:[%s3 + $0x88] sm:$0xff] %vm358, %v467
    %496 = vst.msk [vmem:[%s3 + $0x90] sm:$0xff] %vm358, %v468
    %497 = vst.msk [vmem:[%s3 + $0x98] sm:$0xff] %vm358, %v469
    %498 = vst.msk [vmem:[%s3 + $0xa0] sm:$0xff] %vm358, %v470
    %499 = vst.msk [vmem:[%s3 + $0xa8] sm:$0xff] %vm358, %v471
    %500 = vst.msk [vmem:[%s3 + $0xb0] sm:$0xff] %vm358, %v472
    %501 = vst.msk [vmem:[%s3 + $0xb8] sm:$0xff] %vm358, %v473
    %502 = vst.msk [vmem:[%s3 + $0xc0] sm:$0xff] %vm358, %v474
    %503 = vst.msk [vmem:[%s3 + $0xc8] sm:$0xff] %vm358, %v475
    %504 = vst.msk [vmem:[%s3 + $0xd0] sm:$0xff] %vm358, %v476
    %505 = vst.msk [vmem:[%s3 + $0xd8] sm:$0xff] %vm358, %v477
  $region21: #{hcnet_forward.33} parent=0 // pred_fallthru
    _
  // Predicated region
  $region22: #{hcnet_forward.33} parent=0 // pred_check
    _
  $region23: #{hcnet_forward.33} parent=0 // pred_check_branch
    %507 = sbr.rel (0) target = $region25
  $region24: #{hcnet_forward.33} parent=0 // pred_region
    _
  $region25: #{hcnet_forward.33} parent=0 // pred_fallthru
    _
  // Predicated region
  $region26: #{hcnet_forward.33} parent=0 // pred_check
    _
  $region27: #{hcnet_forward.33} parent=0 // pred_check_branch
    %509 = sbr.rel (0) target = $region29
  $region28: #{hcnet_forward.33} parent=0 // pred_region
    _
  $region29: #{hcnet_forward.33} parent=0 // pred_fallthru
    _

</llo_original>
